<compile_context>
chip_gen: v7x
topology: tpu7x:2x2x1
jax: 0.10.0
libtpu: 0.0.40
codegen_flags: <defaults>
</compile_context>

<pallas_src>
import jax
import jax.numpy as jnp
from jax import lax
from jax.experimental import pallas as pl
from jax.experimental.pallas import tpu as pltpu


def _make_down_kernel(H, W, Cin, Cout):
    """Fused conv+BN+ReLU x2 + 2x2 maxpool kernel for one batch element."""
    WP = W + 2                       # padded row width ("wide" layout)
    L1 = H * WP                      # conv-output rows in wide layout (2 junk cols/row)
    Lh = (H - 1) * WP
    Ho, Wo = H // 2, W // 2
    pad0 = (-(WP + 1)) % 8           # makes the interior store sublane-aligned
    a1_start = pad0 + WP + 1         # aligned (multiple of 8) by construction
    a1_end = a1_start + L1
    LP1 = pad0 + (H + 3) * WP        # padded conv1-output slab (+ slack rows)

    def kernel(xp_ref, w1_ref, b1_ref, w2_ref, b2_ref, o_ref, p1_ref):
        # xp_ref: (1, (H+3)*WP, Cin)  zero-padded, flattened input slab
        # w1_ref: (9, Cin, Cout)      BN1-folded conv1 weights, tap k = 3*dy + dx
        # w2_ref: (9, Cout, Cout)     BN2-folded conv2 weights
        # b1_ref, b2_ref: (1, Cout)   BN-folded biases
        # o_ref : (1, Ho, Wo, Cout)   pooled output
        # p1_ref: (LP1, Cout)         VMEM scratch: padded conv1 output (conv2 input)

        # ---------------- conv1 (3x3, pad=1) + folded BN1 + ReLU ----------------
        acc1 = jnp.dot(xp_ref[0, 0:L1, :], w1_ref[0],
                       preferred_element_type=jnp.float32)
        for k in range(1, 9):
            dy, dx = divmod(k, 3)
            s = dy * WP + dx
            acc1 = acc1 + jnp.dot(xp_ref[0, s:s + L1, :], w1_ref[k],
                                  preferred_element_type=jnp.float32)
        a1 = jnp.maximum(acc1 + b1_ref[...], 0.0)
        # Zero the 2 junk columns per row: they double as the left/right zero
        # padding of the conv2 input once placed into the slab.
        col = lax.broadcasted_iota(jnp.int32, (L1, 1), 0) % WP
        a1 = jnp.where(col < W, a1, 0.0)

        # ------- place conv1 result into the padded conv2-input slab (VMEM) -------
        # Zero only the top/bottom border regions; interior is written once by a1.
        p1_ref[0:a1_start, :] = jnp.zeros((a1_start, Cout), jnp.float32)
        p1_ref[a1_end:LP1, :] = jnp.zeros((LP1 - a1_end, Cout), jnp.float32)
        p1_ref[a1_start:a1_end, :] = a1

        # ---------------- conv2 (3x3, pad=1) + folded BN2 + ReLU ----------------
        acc2 = jnp.dot(p1_ref[pad0:pad0 + L1, :], w2_ref[0],
                       preferred_element_type=jnp.float32)
        for k in range(1, 9):
            dy, dx = divmod(k, 3)
            s = pad0 + dy * WP + dx
            acc2 = acc2 + jnp.dot(p1_ref[s:s + L1, :], w2_ref[k],
                                  preferred_element_type=jnp.float32)
        a2 = jnp.maximum(acc2 + b2_ref[...], 0.0)

        # ------------------------- 2x2 max-pool, stride 2 ------------------------
        hm = jnp.maximum(a2[0:Lh, :], a2[WP:WP + Lh, :])      # max over row pairs (y, y+1)
        wm = jnp.maximum(hm[0:Lh - 1, :], hm[1:Lh, :])        # max over col pairs (x, x+1)
        # Even-column selector (decimation by 2), built once and hoisted.
        r_idx = lax.broadcasted_iota(jnp.int32, (Wo, W), 0)
        c_idx = lax.broadcasted_iota(jnp.int32, (Wo, W), 1)
        sel = (c_idx == 2 * r_idx).astype(jnp.float32)        # (Wo, W)
        for y2 in range(Ho):
            chunk = wm[2 * y2 * WP: 2 * y2 * WP + W, :]       # (W, Cout) contiguous
            o_ref[0, y2, :, :] = jnp.dot(sel, chunk,
                                         preferred_element_type=jnp.float32
                                         ).astype(o_ref.dtype)

    return kernel, LP1


def down_forward(x_nchw, params, eps=1e-5):
    """Pallas implementation of Down.forward (NCHW in, NCHW out)."""
    x = jnp.transpose(x_nchw, (0, 2, 3, 1)).astype(jnp.float32)   # NHWC
    N, H, W, Cin = x.shape
    Cout = params["w1"].shape[0]
    assert H % 2 == 0 and W % 2 == 0
    WP = W + 2
    Ho, Wo = H // 2, W // 2
    L1 = H * WP
    LP0 = (H + 3) * WP

    # Fold BatchNorm (inference/eval mode, running stats) into conv weights/bias.
    # TODO(synk): PyTorch's default train-mode batch statistics are not reproduced.
    s1 = params["g1"] / jnp.sqrt(params["v1"] + eps)
    s2 = params["g2"] / jnp.sqrt(params["v2"] + eps)
    t1 = (params["b1"] - params["m1"]) * s1 + params["be1"]
    t2 = (params["b2"] - params["m2"]) * s2 + params["be2"]
    w1 = jnp.transpose(params["w1"] * s1[:, None, None, None],
                       (2, 3, 1, 0)).reshape(9, Cin, Cout)
    w2 = jnp.transpose(params["w2"] * s2[:, None, None, None],
                       (2, 3, 1, 0)).reshape(9, Cout, Cout)
    b1 = t1.reshape(1, Cout)
    b2 = t2.reshape(1, Cout)

    # Single zero-pad of the input (only HBM-side glue); flattened so every conv
    # tap is a contiguous slice inside the kernel (extra bottom rows = slack).
    xp = jnp.pad(x, ((0, 0), (1, 2), (1, 1), (0, 0))).reshape(N, LP0, Cin)

    kernel, LP1 = _make_down_kernel(H, W, Cin, Cout)
    # TODO(synk): the optional Dropout(0.5) branch (module default dropout=False)
    # is not implemented.

    flops = N * (2 * 9 * L1 * Cin * Cout + 2 * 9 * L1 * Cout * Cout
                 + 2 * Ho * Wo * W * Cout)
    bytes_accessed = 4 * (xp.size + w1.size + w2.size + b1.size + b2.size
                          + N * Ho * Wo * Cout)
    cost = pl.CostEstimate(flops=flops, transcendentals=0,
                           bytes_accessed=bytes_accessed)

    out = pl.pallas_call(
        kernel,
        out_shape=jax.ShapeDtypeStruct((N, Ho, Wo, Cout), jnp.float32),
        grid=(N,),
        in_specs=[
            pl.BlockSpec((1, LP0, Cin), lambda b: (b, 0, 0)),
            pl.BlockSpec((9, Cin, Cout), lambda b: (0, 0, 0)),
            pl.BlockSpec((1, Cout), lambda b: (0, 0)),
            pl.BlockSpec((9, Cout, Cout), lambda b: (0, 0, 0)),
            pl.BlockSpec((1, Cout), lambda b: (0, 0)),
        ],
        out_specs=pl.BlockSpec((1, Ho, Wo, Cout), lambda b: (b, 0, 0, 0)),
        scratch_shapes=[pltpu.VMEM((LP1, Cout), jnp.float32)],
        compiler_params=pltpu.CompilerParams(dimension_semantics=("parallel",)),
        cost_estimate=cost,
    )(xp, w1, b1, w2, b2)

    return jnp.transpose(out, (0, 3, 1, 2))                      # back to NCHW


def down_forward_reference(x, params, eps=1e-5):
    """Pure-JAX NCHW reference mirroring the PyTorch module (BN in eval mode)."""
    def conv_bn_relu(y, w, b, g, be, m, v):
        y = lax.conv_general_dilated(y, w, (1, 1), ((1, 1), (1, 1)),
                                     dimension_numbers=("NCHW", "OIHW", "NCHW"))
        y = y + b[None, :, None, None]
        y = (y - m[None, :, None, None]) / jnp.sqrt(v[None, :, None, None] + eps)
        y = y * g[None, :, None, None] + be[None, :, None, None]
        return jax.nn.relu(y)

    y = conv_bn_relu(x, params["w1"], params["b1"], params["g1"], params["be1"],
                     params["m1"], params["v1"])
    y = conv_bn_relu(y, params["w2"], params["b2"], params["g2"], params["be2"],
                     params["m2"], params["v2"])
    return lax.reduce_window(y, -jnp.inf, lax.max, (1, 1, 2, 2), (1, 1, 2, 2), "VALID")


if __name__ == "__main__":
    in_channels, out_channels = 16, 8
    N, H, W = 2, 16, 16

    key = jax.random.PRNGKey(0)
    ks = jax.random.split(key, 13)
    params = {
        "w1": 0.2 * jax.random.normal(ks[0], (out_channels, in_channels, 3, 3), jnp.float32),
        "b1": 0.1 * jax.random.normal(ks[1], (out_channels,), jnp.float32),
        "g1": 1.0 + 0.1 * jax.random.normal(ks[2], (out_channels,), jnp.float32),
        "be1": 0.1 * jax.random.normal(ks[3], (out_channels,), jnp.float32),
        "m1": 0.1 * jax.random.normal(ks[4], (out_channels,), jnp.float32),
        "v1": 1.0 + 0.1 * jnp.abs(jax.random.normal(ks[5], (out_channels,), jnp.float32)),
        "w2": 0.2 * jax.random.normal(ks[6], (out_channels, out_channels, 3, 3), jnp.float32),
        "b2": 0.1 * jax.random.normal(ks[7], (out_channels,), jnp.float32),
        "g2": 1.0 + 0.1 * jax.random.normal(ks[8], (out_channels,), jnp.float32),
        "be2": 0.1 * jax.random.normal(ks[9], (out_channels,), jnp.float32),
        "m2": 0.1 * jax.random.normal(ks[10], (out_channels,), jnp.float32),
        "v2": 1.0 + 0.1 * jnp.abs(jax.random.normal(ks[11], (out_channels,), jnp.float32)),
    }
    x = jax.random.normal(ks[12], (N, in_channels, H, W), jnp.float32)

    out = jax.block_until_ready(down_forward(x, params))
    ref = jax.block_until_ready(down_forward_reference(x, params))

    assert out.shape == (N, out_channels, H // 2, W // 2), out.shape
    max_err = float(jnp.max(jnp.abs(out - ref)))
    assert max_err < 2e-4, f"mismatch vs reference: max abs err = {max_err}"
    print("KERNEL_OK")
</pallas_src>

<mosaic_0001>
module attributes {stable_mosaic.version = 11 : i64} {
  func.func @kernel(%arg0: i32, %arg1: memref<1x342x16xf32, #tpu.memory_space<vmem>>, %arg2: memref<9x16x8xf32, #tpu.memory_space<vmem>>, %arg3: memref<1x8xf32, #tpu.memory_space<vmem>>, %arg4: memref<9x8x8xf32, #tpu.memory_space<vmem>>, %arg5: memref<1x8xf32, #tpu.memory_space<vmem>>, %arg6: memref<1x8x8x8xf32, #tpu.memory_space<vmem>>, %arg7: memref<347x8xf32, #tpu.memory_space<vmem>>) attributes {dimension_semantics = [#tpu.dimension_semantics<parallel>], iteration_bounds = array<i64: 2>, scalar_prefetch = 0 : i64, scratch_operands = 1 : i64, tpu.core_type = #tpu.core_type<tc>, window_params = [{transform_indices = @transform_0, window_bounds = array<i64: 1, 342, 16>}, {pipeline_mode = #tpu.pipeline_mode<synchronous>, transform_indices = @transform_1, window_bounds = array<i64: 9, 16, 8>}, {pipeline_mode = #tpu.pipeline_mode<synchronous>, transform_indices = @transform_2, window_bounds = array<i64: 1, 8>}, {pipeline_mode = #tpu.pipeline_mode<synchronous>, transform_indices = @transform_3, window_bounds = array<i64: 9, 8, 8>}, {pipeline_mode = #tpu.pipeline_mode<synchronous>, transform_indices = @transform_4, window_bounds = array<i64: 1, 8>}, {transform_indices = @transform_5, window_bounds = array<i64: 1, 8, 8, 8>}]} {
    %c0 = arith.constant 0 : index
    %c0_0 = arith.constant 0 : index
    %c0_1 = arith.constant 0 : index
    %0 = vector.load %arg1[%c0, %c0_0, %c0_1] : memref<1x342x16xf32, #tpu.memory_space<vmem>>, vector<1x288x16xf32>
    %1 = vector.shape_cast %0 : vector<1x288x16xf32> to vector<288x16xf32>
    %c0_2 = arith.constant 0 : index
    %c0_3 = arith.constant 0 : index
    %c0_4 = arith.constant 0 : index
    %2 = vector.load %arg2[%c0_2, %c0_3, %c0_4] : memref<9x16x8xf32, #tpu.memory_space<vmem>>, vector<1x16x8xf32>
    %3 = vector.shape_cast %2 : vector<1x16x8xf32> to vector<16x8xf32>
    %cst = arith.constant dense<0.000000e+00> : vector<288x8xf32>
    %4 = tpu.matmul %1, %3, %cst {dimension_numbers = #tpu.dot_dimension_numbers<[1], [0], [0], [1], [0, 0, 1, 1], [], []>} : vector<288x16xf32>, vector<16x8xf32>, vector<288x8xf32> -> vector<288x8xf32>
    %c0_5 = arith.constant 0 : index
    %c1 = arith.constant 1 : index
    %c0_6 = arith.constant 0 : index
    %5 = vector.load %arg1[%c0_5, %c1, %c0_6] : memref<1x342x16xf32, #tpu.memory_space<vmem>>, vector<1x288x16xf32>
    %6 = vector.shape_cast %5 : vector<1x288x16xf32> to vector<288x16xf32>
    %c1_7 = arith.constant 1 : index
    %c0_8 = arith.constant 0 : index
    %c0_9 = arith.constant 0 : index
    %7 = vector.load %arg2[%c1_7, %c0_8, %c0_9] : memref<9x16x8xf32, #tpu.memory_space<vmem>>, vector<1x16x8xf32>
    %8 = vector.shape_cast %7 : vector<1x16x8xf32> to vector<16x8xf32>
    %cst_10 = arith.constant dense<0.000000e+00> : vector<288x8xf32>
    %9 = tpu.matmul %6, %8, %cst_10 {dimension_numbers = #tpu.dot_dimension_numbers<[1], [0], [0], [1], [0, 0, 1, 1], [], []>} : vector<288x16xf32>, vector<16x8xf32>, vector<288x8xf32> -> vector<288x8xf32>
    %10 = arith.addf %4, %9 : vector<288x8xf32>
    %c0_11 = arith.constant 0 : index
    %c2 = arith.constant 2 : index
    %c0_12 = arith.constant 0 : index
    %11 = vector.load %arg1[%c0_11, %c2, %c0_12] : memref<1x342x16xf32, #tpu.memory_space<vmem>>, vector<1x288x16xf32>
    %12 = vector.shape_cast %11 : vector<1x288x16xf32> to vector<288x16xf32>
    %c2_13 = arith.constant 2 : index
    %c0_14 = arith.constant 0 : index
    %c0_15 = arith.constant 0 : index
    %13 = vector.load %arg2[%c2_13, %c0_14, %c0_15] : memref<9x16x8xf32, #tpu.memory_space<vmem>>, vector<1x16x8xf32>
    %14 = vector.shape_cast %13 : vector<1x16x8xf32> to vector<16x8xf32>
    %cst_16 = arith.constant dense<0.000000e+00> : vector<288x8xf32>
    %15 = tpu.matmul %12, %14, %cst_16 {dimension_numbers = #tpu.dot_dimension_numbers<[1], [0], [0], [1], [0, 0, 1, 1], [], []>} : vector<288x16xf32>, vector<16x8xf32>, vector<288x8xf32> -> vector<288x8xf32>
    %16 = arith.addf %10, %15 : vector<288x8xf32>
    %c0_17 = arith.constant 0 : index
    %c18 = arith.constant 18 : index
    %c0_18 = arith.constant 0 : index
    %17 = vector.load %arg1[%c0_17, %c18, %c0_18] : memref<1x342x16xf32, #tpu.memory_space<vmem>>, vector<1x288x16xf32>
    %18 = vector.shape_cast %17 : vector<1x288x16xf32> to vector<288x16xf32>
    %c3 = arith.constant 3 : index
    %c0_19 = arith.constant 0 : index
    %c0_20 = arith.constant 0 : index
    %19 = vector.load %arg2[%c3, %c0_19, %c0_20] : memref<9x16x8xf32, #tpu.memory_space<vmem>>, vector<1x16x8xf32>
    %20 = vector.shape_cast %19 : vector<1x16x8xf32> to vector<16x8xf32>
    %cst_21 = arith.constant dense<0.000000e+00> : vector<288x8xf32>
    %21 = tpu.matmul %18, %20, %cst_21 {dimension_numbers = #tpu.dot_dimension_numbers<[1], [0], [0], [1], [0, 0, 1, 1], [], []>} : vector<288x16xf32>, vector<16x8xf32>, vector<288x8xf32> -> vector<288x8xf32>
    %22 = arith.addf %16, %21 : vector<288x8xf32>
    %c0_22 = arith.constant 0 : index
    %c19 = arith.constant 19 : index
    %c0_23 = arith.constant 0 : index
    %23 = vector.load %arg1[%c0_22, %c19, %c0_23] : memref<1x342x16xf32, #tpu.memory_space<vmem>>, vector<1x288x16xf32>
    %24 = vector.shape_cast %23 : vector<1x288x16xf32> to vector<288x16xf32>
    %c4 = arith.constant 4 : index
    %c0_24 = arith.constant 0 : index
    %c0_25 = arith.constant 0 : index
    %25 = vector.load %arg2[%c4, %c0_24, %c0_25] : memref<9x16x8xf32, #tpu.memory_space<vmem>>, vector<1x16x8xf32>
    %26 = vector.shape_cast %25 : vector<1x16x8xf32> to vector<16x8xf32>
    %cst_26 = arith.constant dense<0.000000e+00> : vector<288x8xf32>
    %27 = tpu.matmul %24, %26, %cst_26 {dimension_numbers = #tpu.dot_dimension_numbers<[1], [0], [0], [1], [0, 0, 1, 1], [], []>} : vector<288x16xf32>, vector<16x8xf32>, vector<288x8xf32> -> vector<288x8xf32>
    %28 = arith.addf %22, %27 : vector<288x8xf32>
    %c0_27 = arith.constant 0 : index
    %c20 = arith.constant 20 : index
    %c0_28 = arith.constant 0 : index
    %29 = vector.load %arg1[%c0_27, %c20, %c0_28] : memref<1x342x16xf32, #tpu.memory_space<vmem>>, vector<1x288x16xf32>
    %30 = vector.shape_cast %29 : vector<1x288x16xf32> to vector<288x16xf32>
    %c5 = arith.constant 5 : index
    %c0_29 = arith.constant 0 : index
    %c0_30 = arith.constant 0 : index
    %31 = vector.load %arg2[%c5, %c0_29, %c0_30] : memref<9x16x8xf32, #tpu.memory_space<vmem>>, vector<1x16x8xf32>
    %32 = vector.shape_cast %31 : vector<1x16x8xf32> to vector<16x8xf32>
    %cst_31 = arith.constant dense<0.000000e+00> : vector<288x8xf32>
    %33 = tpu.matmul %30, %32, %cst_31 {dimension_numbers = #tpu.dot_dimension_numbers<[1], [0], [0], [1], [0, 0, 1, 1], [], []>} : vector<288x16xf32>, vector<16x8xf32>, vector<288x8xf32> -> vector<288x8xf32>
    %34 = arith.addf %28, %33 : vector<288x8xf32>
    %c0_32 = arith.constant 0 : index
    %c36 = arith.constant 36 : index
    %c0_33 = arith.constant 0 : index
    %35 = vector.load %arg1[%c0_32, %c36, %c0_33] : memref<1x342x16xf32, #tpu.memory_space<vmem>>, vector<1x288x16xf32>
    %36 = vector.shape_cast %35 : vector<1x288x16xf32> to vector<288x16xf32>
    %c6 = arith.constant 6 : index
    %c0_34 = arith.constant 0 : index
    %c0_35 = arith.constant 0 : index
    %37 = vector.load %arg2[%c6, %c0_34, %c0_35] : memref<9x16x8xf32, #tpu.memory_space<vmem>>, vector<1x16x8xf32>
    %38 = vector.shape_cast %37 : vector<1x16x8xf32> to vector<16x8xf32>
    %cst_36 = arith.constant dense<0.000000e+00> : vector<288x8xf32>
    %39 = tpu.matmul %36, %38, %cst_36 {dimension_numbers = #tpu.dot_dimension_numbers<[1], [0], [0], [1], [0, 0, 1, 1], [], []>} : vector<288x16xf32>, vector<16x8xf32>, vector<288x8xf32> -> vector<288x8xf32>
    %40 = arith.addf %34, %39 : vector<288x8xf32>
    %c0_37 = arith.constant 0 : index
    %c37 = arith.constant 37 : index
    %c0_38 = arith.constant 0 : index
    %41 = vector.load %arg1[%c0_37, %c37, %c0_38] : memref<1x342x16xf32, #tpu.memory_space<vmem>>, vector<1x288x16xf32>
    %42 = vector.shape_cast %41 : vector<1x288x16xf32> to vector<288x16xf32>
    %c7 = arith.constant 7 : index
    %c0_39 = arith.constant 0 : index
    %c0_40 = arith.constant 0 : index
    %43 = vector.load %arg2[%c7, %c0_39, %c0_40] : memref<9x16x8xf32, #tpu.memory_space<vmem>>, vector<1x16x8xf32>
    %44 = vector.shape_cast %43 : vector<1x16x8xf32> to vector<16x8xf32>
    %cst_41 = arith.constant dense<0.000000e+00> : vector<288x8xf32>
    %45 = tpu.matmul %42, %44, %cst_41 {dimension_numbers = #tpu.dot_dimension_numbers<[1], [0], [0], [1], [0, 0, 1, 1], [], []>} : vector<288x16xf32>, vector<16x8xf32>, vector<288x8xf32> -> vector<288x8xf32>
    %46 = arith.addf %40, %45 : vector<288x8xf32>
    %c0_42 = arith.constant 0 : index
    %c38 = arith.constant 38 : index
    %c0_43 = arith.constant 0 : index
    %47 = vector.load %arg1[%c0_42, %c38, %c0_43] : memref<1x342x16xf32, #tpu.memory_space<vmem>>, vector<1x288x16xf32>
    %48 = vector.shape_cast %47 : vector<1x288x16xf32> to vector<288x16xf32>
    %c8 = arith.constant 8 : index
    %c0_44 = arith.constant 0 : index
    %c0_45 = arith.constant 0 : index
    %49 = vector.load %arg2[%c8, %c0_44, %c0_45] : memref<9x16x8xf32, #tpu.memory_space<vmem>>, vector<1x16x8xf32>
    %50 = vector.shape_cast %49 : vector<1x16x8xf32> to vector<16x8xf32>
    %cst_46 = arith.constant dense<0.000000e+00> : vector<288x8xf32>
    %51 = tpu.matmul %48, %50, %cst_46 {dimension_numbers = #tpu.dot_dimension_numbers<[1], [0], [0], [1], [0, 0, 1, 1], [], []>} : vector<288x16xf32>, vector<16x8xf32>, vector<288x8xf32> -> vector<288x8xf32>
    %52 = arith.addf %46, %51 : vector<288x8xf32>
    %c0_47 = arith.constant 0 : index
    %c0_48 = arith.constant 0 : index
    %53 = vector.load %arg3[%c0_47, %c0_48] : memref<1x8xf32, #tpu.memory_space<vmem>>, vector<1x8xf32>
    %54 = vector.broadcast %53 : vector<1x8xf32> to vector<288x8xf32>
    %55 = arith.addf %52, %54 : vector<288x8xf32>
    %cst_49 = arith.constant 0.000000e+00 : f32
    %56 = vector.broadcast %cst_49 : f32 to vector<288x8xf32>
    %57 = arith.maximumf %55, %56 : vector<288x8xf32>
    %58 = tpu.iota {dimensions = array<i32: 0>} : vector<288x1xi32>
    %c18_i32 = arith.constant 18 : i32
    %c0_i32 = arith.constant 0 : i32
    %59 = arith.cmpi eq, %c18_i32, %c0_i32 : i32
    %c1_i32 = arith.constant 1 : i32
    %60 = arith.select %59, %c1_i32, %c18_i32 : i32
    %61 = vector.broadcast %60 : i32 to vector<288x1xi32>
    %62 = arith.remsi %58, %61 : vector<288x1xi32>
    %c0_i32_50 = arith.constant 0 : i32
    %63 = vector.broadcast %c0_i32_50 : i32 to vector<288x1xi32>
    %64 = arith.cmpi ne, %62, %63 : vector<288x1xi32>
    %c0_i32_51 = arith.constant 0 : i32
    %65 = vector.broadcast %c0_i32_51 : i32 to vector<288x1xi32>
    %66 = arith.cmpi slt, %62, %65 : vector<288x1xi32>
    %c0_i32_52 = arith.constant 0 : i32
    %67 = arith.cmpi slt, %60, %c0_i32_52 : i32
    %68 = vector.broadcast %67 : i1 to vector<288x1xi1>
    %69 = vector.broadcast %68 : vector<288x1xi1> to vector<288x1xi1>
    %70 = arith.xori %66, %69 : vector<288x1xi1>
    %71 = arith.andi %70, %64 : vector<288x1xi1>
    %72 = vector.broadcast %60 : i32 to vector<288x1xi32>
    %73 = arith.addi %62, %72 : vector<288x1xi32>
    %74 = arith.select %71, %73, %62 : vector<288x1xi1>, vector<288x1xi32>
    %c16_i32 = arith.constant 16 : i32
    %75 = vector.broadcast %c16_i32 : i32 to vector<288x1xi32>
    %76 = arith.cmpi slt, %74, %75 : vector<288x1xi32>
    %cst_53 = arith.constant 0.000000e+00 : f32
    %77 = vector.shape_cast %76 : vector<288x1xi1> to vector<288x1xi1>
    %78 = vector.broadcast %77 : vector<288x1xi1> to vector<288x8xi1>
    %79 = vector.broadcast %cst_53 : f32 to vector<288x8xf32>
    %80 = arith.select %78, %57, %79 : vector<288x8xi1>, vector<288x8xf32>
    %cst_54 = arith.constant 0.000000e+00 : f32
    %81 = vector.broadcast %cst_54 : f32 to vector<24x8xf32>
    %c0_55 = arith.constant 0 : index
    %c0_56 = arith.constant 0 : index
    %82 = vector.load %arg7[%c0_55, %c0_56] : memref<347x8xf32, #tpu.memory_space<vmem>>, vector<24x8xf32>
    tpu.vector_store %arg7[%c0_55, %c0_56], %81 {strides = array<i32>} : memref<347x8xf32, #tpu.memory_space<vmem>>, vector<24x8xf32>,
    %cst_57 = arith.constant 0.000000e+00 : f32
    %83 = vector.broadcast %cst_57 : f32 to vector<35x8xf32>
    %c312 = arith.constant 312 : index
    %c0_58 = arith.constant 0 : index
    %84 = vector.load %arg7[%c312, %c0_58] : memref<347x8xf32, #tpu.memory_space<vmem>>, vector<35x8xf32>
    tpu.vector_store %arg7[%c312, %c0_58], %83 {strides = array<i32>} : memref<347x8xf32, #tpu.memory_space<vmem>>, vector<35x8xf32>,
    %c24 = arith.constant 24 : index
    %c0_59 = arith.constant 0 : index
    %85 = vector.load %arg7[%c24, %c0_59] : memref<347x8xf32, #tpu.memory_space<vmem>>, vector<288x8xf32>
    tpu.vector_store %arg7[%c24, %c0_59], %80 {strides = array<i32>} : memref<347x8xf32, #tpu.memory_space<vmem>>, vector<288x8xf32>,
    %c5_60 = arith.constant 5 : index
    %c0_61 = arith.constant 0 : index
    %86 = vector.load %arg7[%c5_60, %c0_61] : memref<347x8xf32, #tpu.memory_space<vmem>>, vector<288x8xf32>
    %c0_62 = arith.constant 0 : index
    %c0_63 = arith.constant 0 : index
    %c0_64 = arith.constant 0 : index
    %87 = vector.load %arg4[%c0_62, %c0_63, %c0_64] : memref<9x8x8xf32, #tpu.memory_space<vmem>>, vector<1x8x8xf32>
    %88 = vector.shape_cast %87 : vector<1x8x8xf32> to vector<8x8xf32>
    %cst_65 = arith.constant dense<0.000000e+00> : vector<288x8xf32>
    %89 = tpu.matmul %86, %88, %cst_65 {dimension_numbers = #tpu.dot_dimension_numbers<[1], [0], [0], [1], [0, 0, 1, 1], [], []>} : vector<288x8xf32>, vector<8x8xf32>, vector<288x8xf32> -> vector<288x8xf32>
    %c6_66 = arith.constant 6 : index
    %c0_67 = arith.constant 0 : index
    %90 = vector.load %arg7[%c6_66, %c0_67] : memref<347x8xf32, #tpu.memory_space<vmem>>, vector<288x8xf32>
    %c1_68 = arith.constant 1 : index
    %c0_69 = arith.constant 0 : index
    %c0_70 = arith.constant 0 : index
    %91 = vector.load %arg4[%c1_68, %c0_69, %c0_70] : memref<9x8x8xf32, #tpu.memory_space<vmem>>, vector<1x8x8xf32>
    %92 = vector.shape_cast %91 : vector<1x8x8xf32> to vector<8x8xf32>
    %cst_71 = arith.constant dense<0.000000e+00> : vector<288x8xf32>
    %93 = tpu.matmul %90, %92, %cst_71 {dimension_numbers = #tpu.dot_dimension_numbers<[1], [0], [0], [1], [0, 0, 1, 1], [], []>} : vector<288x8xf32>, vector<8x8xf32>, vector<288x8xf32> -> vector<288x8xf32>
    %94 = arith.addf %89, %93 : vector<288x8xf32>
    %c7_72 = arith.constant 7 : index
    %c0_73 = arith.constant 0 : index
    %95 = vector.load %arg7[%c7_72, %c0_73] : memref<347x8xf32, #tpu.memory_space<vmem>>, vector<288x8xf32>
    %c2_74 = arith.constant 2 : index
    %c0_75 = arith.constant 0 : index
    %c0_76 = arith.constant 0 : index
    %96 = vector.load %arg4[%c2_74, %c0_75, %c0_76] : memref<9x8x8xf32, #tpu.memory_space<vmem>>, vector<1x8x8xf32>
    %97 = vector.shape_cast %96 : vector<1x8x8xf32> to vector<8x8xf32>
    %cst_77 = arith.constant dense<0.000000e+00> : vector<288x8xf32>
    %98 = tpu.matmul %95, %97, %cst_77 {dimension_numbers = #tpu.dot_dimension_numbers<[1], [0], [0], [1], [0, 0, 1, 1], [], []>} : vector<288x8xf32>, vector<8x8xf32>, vector<288x8xf32> -> vector<288x8xf32>
    %99 = arith.addf %94, %98 : vector<288x8xf32>
    %c23 = arith.constant 23 : index
    %c0_78 = arith.constant 0 : index
    %100 = vector.load %arg7[%c23, %c0_78] : memref<347x8xf32, #tpu.memory_space<vmem>>, vector<288x8xf32>
    %c3_79 = arith.constant 3 : index
    %c0_80 = arith.constant 0 : index
    %c0_81 = arith.constant 0 : index
    %101 = vector.load %arg4[%c3_79, %c0_80, %c0_81] : memref<9x8x8xf32, #tpu.memory_space<vmem>>, vector<1x8x8xf32>
    %102 = vector.shape_cast %101 : vector<1x8x8xf32> to vector<8x8xf32>
    %cst_82 = arith.constant dense<0.000000e+00> : vector<288x8xf32>
    %103 = tpu.matmul %100, %102, %cst_82 {dimension_numbers = #tpu.dot_dimension_numbers<[1], [0], [0], [1], [0, 0, 1, 1], [], []>} : vector<288x8xf32>, vector<8x8xf32>, vector<288x8xf32> -> vector<288x8xf32>
    %104 = arith.addf %99, %103 : vector<288x8xf32>
    %c24_83 = arith.constant 24 : index
    %c0_84 = arith.constant 0 : index
    %105 = vector.load %arg7[%c24_83, %c0_84] : memref<347x8xf32, #tpu.memory_space<vmem>>, vector<288x8xf32>
    %c4_85 = arith.constant 4 : index
    %c0_86 = arith.constant 0 : index
    %c0_87 = arith.constant 0 : index
    %106 = vector.load %arg4[%c4_85, %c0_86, %c0_87] : memref<9x8x8xf32, #tpu.memory_space<vmem>>, vector<1x8x8xf32>
    %107 = vector.shape_cast %106 : vector<1x8x8xf32> to vector<8x8xf32>
    %cst_88 = arith.constant dense<0.000000e+00> : vector<288x8xf32>
    %108 = tpu.matmul %105, %107, %cst_88 {dimension_numbers = #tpu.dot_dimension_numbers<[1], [0], [0], [1], [0, 0, 1, 1], [], []>} : vector<288x8xf32>, vector<8x8xf32>, vector<288x8xf32> -> vector<288x8xf32>
    %109 = arith.addf %104, %108 : vector<288x8xf32>
    %c25 = arith.constant 25 : index
    %c0_89 = arith.constant 0 : index
    %110 = vector.load %arg7[%c25, %c0_89] : memref<347x8xf32, #tpu.memory_space<vmem>>, vector<288x8xf32>
    %c5_90 = arith.constant 5 : index
    %c0_91 = arith.constant 0 : index
    %c0_92 = arith.constant 0 : index
    %111 = vector.load %arg4[%c5_90, %c0_91, %c0_92] : memref<9x8x8xf32, #tpu.memory_space<vmem>>, vector<1x8x8xf32>
    %112 = vector.shape_cast %111 : vector<1x8x8xf32> to vector<8x8xf32>
    %cst_93 = arith.constant dense<0.000000e+00> : vector<288x8xf32>
    %113 = tpu.matmul %110, %112, %cst_93 {dimension_numbers = #tpu.dot_dimension_numbers<[1], [0], [0], [1], [0, 0, 1, 1], [], []>} : vector<288x8xf32>, vector<8x8xf32>, vector<288x8xf32> -> vector<288x8xf32>
    %114 = arith.addf %109, %113 : vector<288x8xf32>
    %c41 = arith.constant 41 : index
    %c0_94 = arith.constant 0 : index
    %115 = vector.load %arg7[%c41, %c0_94] : memref<347x8xf32, #tpu.memory_space<vmem>>, vector<288x8xf32>
    %c6_95 = arith.constant 6 : index
    %c0_96 = arith.constant 0 : index
    %c0_97 = arith.constant 0 : index
    %116 = vector.load %arg4[%c6_95, %c0_96, %c0_97] : memref<9x8x8xf32, #tpu.memory_space<vmem>>, vector<1x8x8xf32>
    %117 = vector.shape_cast %116 : vector<1x8x8xf32> to vector<8x8xf32>
    %cst_98 = arith.constant dense<0.000000e+00> : vector<288x8xf32>
    %118 = tpu.matmul %115, %117, %cst_98 {dimension_numbers = #tpu.dot_dimension_numbers<[1], [0], [0], [1], [0, 0, 1, 1], [], []>} : vector<288x8xf32>, vector<8x8xf32>, vector<288x8xf32> -> vector<288x8xf32>
    %119 = arith.addf %114, %118 : vector<288x8xf32>
    %c42 = arith.constant 42 : index
    %c0_99 = arith.constant 0 : index
    %120 = vector.load %arg7[%c42, %c0_99] : memref<347x8xf32, #tpu.memory_space<vmem>>, vector<288x8xf32>
    %c7_100 = arith.constant 7 : index
    %c0_101 = arith.constant 0 : index
    %c0_102 = arith.constant 0 : index
    %121 = vector.load %arg4[%c7_100, %c0_101, %c0_102] : memref<9x8x8xf32, #tpu.memory_space<vmem>>, vector<1x8x8xf32>
    %122 = vector.shape_cast %121 : vector<1x8x8xf32> to vector<8x8xf32>
    %cst_103 = arith.constant dense<0.000000e+00> : vector<288x8xf32>
    %123 = tpu.matmul %120, %122, %cst_103 {dimension_numbers = #tpu.dot_dimension_numbers<[1], [0], [0], [1], [0, 0, 1, 1], [], []>} : vector<288x8xf32>, vector<8x8xf32>, vector<288x8xf32> -> vector<288x8xf32>
    %124 = arith.addf %119, %123 : vector<288x8xf32>
    %c43 = arith.constant 43 : index
    %c0_104 = arith.constant 0 : index
    %125 = vector.load %arg7[%c43, %c0_104] : memref<347x8xf32, #tpu.memory_space<vmem>>, vector<288x8xf32>
    %c8_105 = arith.constant 8 : index
    %c0_106 = arith.constant 0 : index
    %c0_107 = arith.constant 0 : index
    %126 = vector.load %arg4[%c8_105, %c0_106, %c0_107] : memref<9x8x8xf32, #tpu.memory_space<vmem>>, vector<1x8x8xf32>
    %127 = vector.shape_cast %126 : vector<1x8x8xf32> to vector<8x8xf32>
    %cst_108 = arith.constant dense<0.000000e+00> : vector<288x8xf32>
    %128 = tpu.matmul %125, %127, %cst_108 {dimension_numbers = #tpu.dot_dimension_numbers<[1], [0], [0], [1], [0, 0, 1, 1], [], []>} : vector<288x8xf32>, vector<8x8xf32>, vector<288x8xf32> -> vector<288x8xf32>
    %129 = arith.addf %124, %128 : vector<288x8xf32>
    %c0_109 = arith.constant 0 : index
    %c0_110 = arith.constant 0 : index
    %130 = vector.load %arg5[%c0_109, %c0_110] : memref<1x8xf32, #tpu.memory_space<vmem>>, vector<1x8xf32>
    %131 = vector.broadcast %130 : vector<1x8xf32> to vector<288x8xf32>
    %132 = arith.addf %129, %131 : vector<288x8xf32>
    %cst_111 = arith.constant 0.000000e+00 : f32
    %133 = vector.broadcast %cst_111 : f32 to vector<288x8xf32>
    %134 = arith.maximumf %132, %133 : vector<288x8xf32>
    %135 = vector.extract_strided_slice %134 {offsets = [0, 0], sizes = [270, 8], strides = [1, 1]} : vector<288x8xf32> to vector<270x8xf32>
    %136 = vector.extract_strided_slice %134 {offsets = [18, 0], sizes = [270, 8], strides = [1, 1]} : vector<288x8xf32> to vector<270x8xf32>
    %137 = arith.maximumf %135, %136 : vector<270x8xf32>
    %138 = vector.extract_strided_slice %137 {offsets = [0, 0], sizes = [269, 8], strides = [1, 1]} : vector<270x8xf32> to vector<269x8xf32>
    %139 = vector.extract_strided_slice %137 {offsets = [1, 0], sizes = [269, 8], strides = [1, 1]} : vector<270x8xf32> to vector<269x8xf32>
    %140 = arith.maximumf %138, %139 : vector<269x8xf32>
    %141 = tpu.iota {dimensions = array<i32: 0>} : vector<8x16xi32>
    %142 = tpu.iota {dimensions = array<i32: 1>} : vector<8x16xi32>
    %c2_i32 = arith.constant 2 : i32
    %143 = vector.broadcast %c2_i32 : i32 to vector<8x16xi32>
    %144 = arith.muli %143, %141 : vector<8x16xi32>
    %145 = arith.cmpi eq, %142, %144 : vector<8x16xi32>
    %146 = arith.extui %145 : vector<8x16xi1> to vector<8x16xi32>
    %147 = arith.sitofp %146 : vector<8x16xi32> to vector<8x16xf32>
    %148 = vector.extract_strided_slice %140 {offsets = [0, 0], sizes = [16, 8], strides = [1, 1]} : vector<269x8xf32> to vector<16x8xf32>
    %cst_112 = arith.constant dense<0.000000e+00> : vector<8x8xf32>
    %149 = tpu.matmul %147, %148, %cst_112 {dimension_numbers = #tpu.dot_dimension_numbers<[1], [0], [0], [1], [0, 0, 1, 1], [], []>} : vector<8x16xf32>, vector<16x8xf32>, vector<8x8xf32> -> vector<8x8xf32>
    %c0_113 = arith.constant 0 : index
    %c0_114 = arith.constant 0 : index
    %c0_115 = arith.constant 0 : index
    %c0_116 = arith.constant 0 : index
    %150 = vector.load %arg6[%c0_113, %c0_114, %c0_115, %c0_116] : memref<1x8x8x8xf32, #tpu.memory_space<vmem>>, vector<1x1x8x8xf32>
    %151 = vector.shape_cast %150 : vector<1x1x8x8xf32> to vector<8x8xf32>
    %152 = vector.shape_cast %149 : vector<8x8xf32> to vector<1x1x8x8xf32>
    tpu.vector_store %arg6[%c0_113, %c0_114, %c0_115, %c0_116], %152 {strides = array<i32>} : memref<1x8x8x8xf32, #tpu.memory_space<vmem>>, vector<1x1x8x8xf32>,
    %153 = vector.extract_strided_slice %140 {offsets = [36, 0], sizes = [16, 8], strides = [1, 1]} : vector<269x8xf32> to vector<16x8xf32>
    %cst_117 = arith.constant dense<0.000000e+00> : vector<8x8xf32>
    %154 = tpu.matmul %147, %153, %cst_117 {dimension_numbers = #tpu.dot_dimension_numbers<[1], [0], [0], [1], [0, 0, 1, 1], [], []>} : vector<8x16xf32>, vector<16x8xf32>, vector<8x8xf32> -> vector<8x8xf32>
    %c0_118 = arith.constant 0 : index
    %c1_119 = arith.constant 1 : index
    %c0_120 = arith.constant 0 : index
    %c0_121 = arith.constant 0 : index
    %155 = vector.load %arg6[%c0_118, %c1_119, %c0_120, %c0_121] : memref<1x8x8x8xf32, #tpu.memory_space<vmem>>, vector<1x1x8x8xf32>
    %156 = vector.shape_cast %155 : vector<1x1x8x8xf32> to vector<8x8xf32>
    %157 = vector.shape_cast %154 : vector<8x8xf32> to vector<1x1x8x8xf32>
    tpu.vector_store %arg6[%c0_118, %c1_119, %c0_120, %c0_121], %157 {strides = array<i32>} : memref<1x8x8x8xf32, #tpu.memory_space<vmem>>, vector<1x1x8x8xf32>,
    %158 = vector.extract_strided_slice %140 {offsets = [72, 0], sizes = [16, 8], strides = [1, 1]} : vector<269x8xf32> to vector<16x8xf32>
    %cst_122 = arith.constant dense<0.000000e+00> : vector<8x8xf32>
    %159 = tpu.matmul %147, %158, %cst_122 {dimension_numbers = #tpu.dot_dimension_numbers<[1], [0], [0], [1], [0, 0, 1, 1], [], []>} : vector<8x16xf32>, vector<16x8xf32>, vector<8x8xf32> -> vector<8x8xf32>
    %c0_123 = arith.constant 0 : index
    %c2_124 = arith.constant 2 : index
    %c0_125 = arith.constant 0 : index
    %c0_126 = arith.constant 0 : index
    %160 = vector.load %arg6[%c0_123, %c2_124, %c0_125, %c0_126] : memref<1x8x8x8xf32, #tpu.memory_space<vmem>>, vector<1x1x8x8xf32>
    %161 = vector.shape_cast %160 : vector<1x1x8x8xf32> to vector<8x8xf32>
    %162 = vector.shape_cast %159 : vector<8x8xf32> to vector<1x1x8x8xf32>
    tpu.vector_store %arg6[%c0_123, %c2_124, %c0_125, %c0_126], %162 {strides = array<i32>} : memref<1x8x8x8xf32, #tpu.memory_space<vmem>>, vector<1x1x8x8xf32>,
    %163 = vector.extract_strided_slice %140 {offsets = [108, 0], sizes = [16, 8], strides = [1, 1]} : vector<269x8xf32> to vector<16x8xf32>
    %cst_127 = arith.constant dense<0.000000e+00> : vector<8x8xf32>
    %164 = tpu.matmul %147, %163, %cst_127 {dimension_numbers = #tpu.dot_dimension_numbers<[1], [0], [0], [1], [0, 0, 1, 1], [], []>} : vector<8x16xf32>, vector<16x8xf32>, vector<8x8xf32> -> vector<8x8xf32>
    %c0_128 = arith.constant 0 : index
    %c3_129 = arith.constant 3 : index
    %c0_130 = arith.constant 0 : index
    %c0_131 = arith.constant 0 : index
    %165 = vector.load %arg6[%c0_128, %c3_129, %c0_130, %c0_131] : memref<1x8x8x8xf32, #tpu.memory_space<vmem>>, vector<1x1x8x8xf32>
    %166 = vector.shape_cast %165 : vector<1x1x8x8xf32> to vector<8x8xf32>
    %167 = vector.shape_cast %164 : vector<8x8xf32> to vector<1x1x8x8xf32>
    tpu.vector_store %arg6[%c0_128, %c3_129, %c0_130, %c0_131], %167 {strides = array<i32>} : memref<1x8x8x8xf32, #tpu.memory_space<vmem>>, vector<1x1x8x8xf32>,
    %168 = vector.extract_strided_slice %140 {offsets = [144, 0], sizes = [16, 8], strides = [1, 1]} : vector<269x8xf32> to vector<16x8xf32>
    %cst_132 = arith.constant dense<0.000000e+00> : vector<8x8xf32>
    %169 = tpu.matmul %147, %168, %cst_132 {dimension_numbers = #tpu.dot_dimension_numbers<[1], [0], [0], [1], [0, 0, 1, 1], [], []>} : vector<8x16xf32>, vector<16x8xf32>, vector<8x8xf32> -> vector<8x8xf32>
    %c0_133 = arith.constant 0 : index
    %c4_134 = arith.constant 4 : index
    %c0_135 = arith.constant 0 : index
    %c0_136 = arith.constant 0 : index
    %170 = vector.load %arg6[%c0_133, %c4_134, %c0_135, %c0_136] : memref<1x8x8x8xf32, #tpu.memory_space<vmem>>, vector<1x1x8x8xf32>
    %171 = vector.shape_cast %170 : vector<1x1x8x8xf32> to vector<8x8xf32>
    %172 = vector.shape_cast %169 : vector<8x8xf32> to vector<1x1x8x8xf32>
    tpu.vector_store %arg6[%c0_133, %c4_134, %c0_135, %c0_136], %172 {strides = array<i32>} : memref<1x8x8x8xf32, #tpu.memory_space<vmem>>, vector<1x1x8x8xf32>,
    %173 = vector.extract_strided_slice %140 {offsets = [180, 0], sizes = [16, 8], strides = [1, 1]} : vector<269x8xf32> to vector<16x8xf32>
    %cst_137 = arith.constant dense<0.000000e+00> : vector<8x8xf32>
    %174 = tpu.matmul %147, %173, %cst_137 {dimension_numbers = #tpu.dot_dimension_numbers<[1], [0], [0], [1], [0, 0, 1, 1], [], []>} : vector<8x16xf32>, vector<16x8xf32>, vector<8x8xf32> -> vector<8x8xf32>
    %c0_138 = arith.constant 0 : index
    %c5_139 = arith.constant 5 : index
    %c0_140 = arith.constant 0 : index
    %c0_141 = arith.constant 0 : index
    %175 = vector.load %arg6[%c0_138, %c5_139, %c0_140, %c0_141] : memref<1x8x8x8xf32, #tpu.memory_space<vmem>>, vector<1x1x8x8xf32>
    %176 = vector.shape_cast %175 : vector<1x1x8x8xf32> to vector<8x8xf32>
    %177 = vector.shape_cast %174 : vector<8x8xf32> to vector<1x1x8x8xf32>
    tpu.vector_store %arg6[%c0_138, %c5_139, %c0_140, %c0_141], %177 {strides = array<i32>} : memref<1x8x8x8xf32, #tpu.memory_space<vmem>>, vector<1x1x8x8xf32>,
    %178 = vector.extract_strided_slice %140 {offsets = [216, 0], sizes = [16, 8], strides = [1, 1]} : vector<269x8xf32> to vector<16x8xf32>
    %cst_142 = arith.constant dense<0.000000e+00> : vector<8x8xf32>
    %179 = tpu.matmul %147, %178, %cst_142 {dimension_numbers = #tpu.dot_dimension_numbers<[1], [0], [0], [1], [0, 0, 1, 1], [], []>} : vector<8x16xf32>, vector<16x8xf32>, vector<8x8xf32> -> vector<8x8xf32>
    %c0_143 = arith.constant 0 : index
    %c6_144 = arith.constant 6 : index
    %c0_145 = arith.constant 0 : index
    %c0_146 = arith.constant 0 : index
    %180 = vector.load %arg6[%c0_143, %c6_144, %c0_145, %c0_146] : memref<1x8x8x8xf32, #tpu.memory_space<vmem>>, vector<1x1x8x8xf32>
    %181 = vector.shape_cast %180 : vector<1x1x8x8xf32> to vector<8x8xf32>
    %182 = vector.shape_cast %179 : vector<8x8xf32> to vector<1x1x8x8xf32>
    tpu.vector_store %arg6[%c0_143, %c6_144, %c0_145, %c0_146], %182 {strides = array<i32>} : memref<1x8x8x8xf32, #tpu.memory_space<vmem>>, vector<1x1x8x8xf32>,
    %183 = vector.extract_strided_slice %140 {offsets = [252, 0], sizes = [16, 8], strides = [1, 1]} : vector<269x8xf32> to vector<16x8xf32>
    %cst_147 = arith.constant dense<0.000000e+00> : vector<8x8xf32>
    %184 = tpu.matmul %147, %183, %cst_147 {dimension_numbers = #tpu.dot_dimension_numbers<[1], [0], [0], [1], [0, 0, 1, 1], [], []>} : vector<8x16xf32>, vector<16x8xf32>, vector<8x8xf32> -> vector<8x8xf32>
    %c0_148 = arith.constant 0 : index
    %c7_149 = arith.constant 7 : index
    %c0_150 = arith.constant 0 : index
    %c0_151 = arith.constant 0 : index
    %185 = vector.load %arg6[%c0_148, %c7_149, %c0_150, %c0_151] : memref<1x8x8x8xf32, #tpu.memory_space<vmem>>, vector<1x1x8x8xf32>
    %186 = vector.shape_cast %185 : vector<1x1x8x8xf32> to vector<8x8xf32>
    %187 = vector.shape_cast %184 : vector<8x8xf32> to vector<1x1x8x8xf32>
    tpu.vector_store %arg6[%c0_148, %c7_149, %c0_150, %c0_151], %187 {strides = array<i32>} : memref<1x8x8x8xf32, #tpu.memory_space<vmem>>, vector<1x1x8x8xf32>,
    return
  }
  func.func @transform_0(%arg0: i32) -> (i32, i32, i32) {
    %c0_i32 = arith.constant 0 : i32
    %c0_i32_0 = arith.constant 0 : i32
    %c0_i32_1 = arith.constant 0 : i32
    return %arg0, %c0_i32, %c0_i32_0 : i32, i32, i32
  }
  func.func @transform_1(%arg0: i32) -> (i32, i32, i32) {
    %c0_i32 = arith.constant 0 : i32
    %c0_i32_0 = arith.constant 0 : i32
    %c0_i32_1 = arith.constant 0 : i32
    %c0_i32_2 = arith.constant 0 : i32
    return %c0_i32, %c0_i32_0, %c0_i32_1 : i32, i32, i32
  }
  func.func @transform_2(%arg0: i32) -> (i32, i32) {
    %c0_i32 = arith.constant 0 : i32
    %c0_i32_0 = arith.constant 0 : i32
    %c0_i32_1 = arith.constant 0 : i32
    return %c0_i32, %c0_i32_0 : i32, i32
  }
  func.func @transform_3(%arg0: i32) -> (i32, i32, i32) {
    %c0_i32 = arith.constant 0 : i32
    %c0_i32_0 = arith.constant 0 : i32
    %c0_i32_1 = arith.constant 0 : i32
    %c0_i32_2 = arith.constant 0 : i32
    return %c0_i32, %c0_i32_0, %c0_i32_1 : i32, i32, i32
  }
  func.func @transform_4(%arg0: i32) -> (i32, i32) {
    %c0_i32 = arith.constant 0 : i32
    %c0_i32_0 = arith.constant 0 : i32
    %c0_i32_1 = arith.constant 0 : i32
    return %c0_i32, %c0_i32_0 : i32, i32
  }
  func.func @transform_5(%arg0: i32) -> (i32, i32, i32, i32) {
    %c0_i32 = arith.constant 0 : i32
    %c0_i32_0 = arith.constant 0 : i32
    %c0_i32_1 = arith.constant 0 : i32
    %c0_i32_2 = arith.constant 0 : i32
    return %arg0, %c0_i32, %c0_i32_0, %c0_i32_1 : i32, i32, i32, i32
  }
}

</mosaic_0001>

<llo_original>
// kernel: tpu_custom_call.1
$region0: #{tpu_custom_call.1}
  #allocation0 [shape = 'u32[]', space=smem, size = 0x4, offset = 0x4, fixed_abs, tag = 'smem constant byte address 0x4 - core index']
  #allocation1 [shape = 'u32[144,128]{1,0:T(1,128)}', space=vmem, size = 0x12000, scoped, tag = 'internal scratch']
  #allocation2 [shape = 'f32[347,8]{1,0:T(8,128)}', space=vmem, size = 0x2c000, scoped, tag = 'scratch operand']
  %s0 = inlined_call_operand.vmem [shape: f32[2,342,16], index: 0, kind: input, shape index: {}]
  %s1 = inlined_call_operand.vmem [shape: f32[9,16,8], index: 1, kind: input, shape index: {}]
  %s2 = inlined_call_operand.vmem [shape: f32[1,8], index: 2, kind: input, shape index: {}]
  %s3 = inlined_call_operand.vmem [shape: f32[9,8,8], index: 3, kind: input, shape index: {}]
  %s4 = inlined_call_operand.vmem [shape: f32[1,8], index: 4, kind: input, shape index: {}]
  %s5 = inlined_call_operand.hbm [shape: f32[2,8,8,8], index: 5, kind: output, shape index: {}]
  %s6 = sld [smem:[#allocation0]]
  $region53: #{tpu_custom_call.1} parent=0
    _
  %s8 = ssub.s32 1, %s6
  %s9 = scalar_select 0, %s8, %s6
  $region1: #{tpu_custom_call.1} parent=0
    #allocation3 [shape = 'u8[65536]{0}', space=vmem, size = 0x10000, scoped, tag = 'output window, operand 0']
    #allocation4 [shape = 's32[2]{0}', space=sflag, size = 0x8, scoped, tag = 'scoped memory for tpu_custom_call.1']
    %10 = vsyncpa [#allocation4], 0
    %s11 = scalar_lea.sflag [#allocation4], 1
    %12 = vsyncpa %s11, 0
    loop: start=0, step=1, limit=4
    $region2: #{tpu_custom_call.1} parent=1 // loop_pre_header
      _
    $region3: #{tpu_custom_call.1} parent=1 // loop_header
      %s14 = sphi 0, %s18
      %p15 = scmp.ge.s32.totalorder %s14, 4
      %s24 = sphi 0, %s26
      %s27 = sphi 0, %s24
      %s28 = sphi 0, %s27
      %s44 = sphi 0, %s28
      %s48 = sphi 0, %s48
      %s50 = sphi 0, %s48
      %s51 = sphi 0, %s50
      %s65 = sphi 0, %s51
      %s69 = sphi 0, %s69
      %s71 = sphi 0, %s69
      %s72 = sphi 0, %s71
      %s86 = sphi 0, %s72
      %s90 = sphi 0, %s90
      %s92 = sphi 0, %s90
      %s93 = sphi 0, %s92
      %s107 = sphi 0, %s93
      %s111 = sphi 0, %s111
      %s113 = sphi 0, %s111
      %s114 = sphi 0, %s113
      %s128 = sphi 0, %s114
      %s134 = sphi 0, %s136
      %s137 = sphi 0, %s134
      %s138 = sphi 0, %s137
      %s154 = sphi 0, %s138
    $region4: #{tpu_custom_call.1} parent=1 // loop_header_branch
      %17 = sbr.rel (%p15) target = $region8
    $region5: #{tpu_custom_call.1} parent=1 // loop_body
      %s19 = ssub.s32 %s14, 1
      %s20 = ssub.s32 %s14, 2
      %s21 = sadd.s32 %s14, 1
      %s22 = ssub.s32 %s14, %s21
      %p23 = scmp.eq.s32.totalorder %s22, 0
      %s25 = sadd.s32 %s24, 1
      %s26 = scalar_select %p23, %s24, %s25
      %p29 = pneg %p23
      %p30 = scmp.eq.s32.totalorder %s14, 1
      %p31 = por %p29, %p30
      %p32 = scmp.ne.s32.totalorder %s24, %s27
      %p33 = scmp.eq.s32.totalorder %s14, 0
      %p34 = por %p32, %p33
      %p35 = scmp.ne.s32.totalorder %s24, %s27
      %p36 = scmp.eq.s32.totalorder %s19, 1
      %p37 = por %p35, %p36
      %p38 = scmp.ne.s32.totalorder %s27, %s28
      %p39 = scmp.eq.s32.totalorder %s19, 0
      %p40 = por %p38, %p39
      %p41 = scmp.ne.s32.totalorder %s27, %s28
      %p42 = scmp.eq.s32.totalorder %s20, 1
      %p43 = por %p41, %p42
      %p45 = scmp.ne.s32.totalorder %s28, %s44
      %p46 = scmp.eq.s32.totalorder %s20, 0
      %p47 = por %p45, %p46
      %s49 = sadd.s32 %s48, 1
      %p52 = scmp.eq.s32.totalorder %s14, 1
      %p53 = scmp.ne.s32.totalorder %s48, %s50
      %p54 = scmp.eq.s32.totalorder %s14, 0
      %p55 = por %p53, %p54
      %p56 = scmp.ne.s32.totalorder %s48, %s50
      %p57 = scmp.eq.s32.totalorder %s19, 1
      %p58 = por %p56, %p57
      %p59 = scmp.ne.s32.totalorder %s50, %s51
      %p60 = scmp.eq.s32.totalorder %s19, 0
      %p61 = por %p59, %p60
      %p62 = scmp.ne.s32.totalorder %s50, %s51
      %p63 = scmp.eq.s32.totalorder %s20, 1
      %p64 = por %p62, %p63
      %p66 = scmp.ne.s32.totalorder %s51, %s65
      %p67 = scmp.eq.s32.totalorder %s20, 0
      %p68 = por %p66, %p67
      %s70 = sadd.s32 %s69, 1
      %p73 = scmp.eq.s32.totalorder %s14, 1
      %p74 = scmp.ne.s32.totalorder %s69, %s71
      %p75 = scmp.eq.s32.totalorder %s14, 0
      %p76 = por %p74, %p75
      %p77 = scmp.ne.s32.totalorder %s69, %s71
      %p78 = scmp.eq.s32.totalorder %s19, 1
      %p79 = por %p77, %p78
      %p80 = scmp.ne.s32.totalorder %s71, %s72
      %p81 = scmp.eq.s32.totalorder %s19, 0
      %p82 = por %p80, %p81
      %p83 = scmp.ne.s32.totalorder %s71, %s72
      %p84 = scmp.eq.s32.totalorder %s20, 1
      %p85 = por %p83, %p84
      %p87 = scmp.ne.s32.totalorder %s72, %s86
      %p88 = scmp.eq.s32.totalorder %s20, 0
      %p89 = por %p87, %p88
      %s91 = sadd.s32 %s90, 1
      %p94 = scmp.eq.s32.totalorder %s14, 1
      %p95 = scmp.ne.s32.totalorder %s90, %s92
      %p96 = scmp.eq.s32.totalorder %s14, 0
      %p97 = por %p95, %p96
      %p98 = scmp.ne.s32.totalorder %s90, %s92
      %p99 = scmp.eq.s32.totalorder %s19, 1
      %p100 = por %p98, %p99
      %p101 = scmp.ne.s32.totalorder %s92, %s93
      %p102 = scmp.eq.s32.totalorder %s19, 0
      %p103 = por %p101, %p102
      %p104 = scmp.ne.s32.totalorder %s92, %s93
      %p105 = scmp.eq.s32.totalorder %s20, 1
      %p106 = por %p104, %p105
      %p108 = scmp.ne.s32.totalorder %s93, %s107
      %p109 = scmp.eq.s32.totalorder %s20, 0
      %p110 = por %p108, %p109
      %s112 = sadd.s32 %s111, 1
      %p115 = scmp.eq.s32.totalorder %s14, 1
      %p116 = scmp.ne.s32.totalorder %s111, %s113
      %p117 = scmp.eq.s32.totalorder %s14, 0
      %p118 = por %p116, %p117
      %p119 = scmp.ne.s32.totalorder %s111, %s113
      %p120 = scmp.eq.s32.totalorder %s19, 1
      %p121 = por %p119, %p120
      %p122 = scmp.ne.s32.totalorder %s113, %s114
      %p123 = scmp.eq.s32.totalorder %s19, 0
      %p124 = por %p122, %p123
      %p125 = scmp.ne.s32.totalorder %s113, %s114
      %p126 = scmp.eq.s32.totalorder %s20, 1
      %p127 = por %p125, %p126
      %p129 = scmp.ne.s32.totalorder %s114, %s128
      %p130 = scmp.eq.s32.totalorder %s20, 0
      %p131 = por %p129, %p130
      %s132 = ssub.s32 %s14, %s21
      %p133 = scmp.eq.s32.totalorder %s132, 0
      %s135 = sadd.s32 %s134, 1
      %s136 = scalar_select %p133, %s134, %s135
      %p139 = pneg %p133
      %p140 = scmp.eq.s32.totalorder %s14, 1
      %p141 = por %p139, %p140
      %p142 = scmp.ne.s32.totalorder %s134, %s137
      %p143 = scmp.eq.s32.totalorder %s14, 0
      %p144 = por %p142, %p143
      %p145 = scmp.ne.s32.totalorder %s134, %s137
      %p146 = scmp.eq.s32.totalorder %s19, 1
      %p147 = por %p145, %p146
      %p148 = scmp.ne.s32.totalorder %s137, %s138
      %p149 = scmp.eq.s32.totalorder %s19, 0
      %p150 = por %p148, %p149
      %p151 = scmp.ne.s32.totalorder %s137, %s138
      %p152 = scmp.eq.s32.totalorder %s20, 1
      %p153 = por %p151, %p152
      %p155 = scmp.ne.s32.totalorder %s138, %s154
      %p156 = scmp.eq.s32.totalorder %s20, 0
      %p157 = por %p155, %p156
      %p158 = scmp.le.s32.totalorder 1, %s14
      %p159 = scmp.lt.s32.totalorder %s14, 3
      %p160 = pnand %p158, %p159
      %p161 = pneg %p160
      // Predicated region
      $region9: #{tpu_custom_call.1} parent=5 // pred_check
        _
      $region10: #{tpu_custom_call.1} parent=5 // pred_check_branch
        %163 = sbr.rel (%p160) target = $region12
      $region11: #{tpu_custom_call.1} parent=5 // pred_region
        %s164 = ssub.s32 %s14, 1
        // Predicated region
        $region13: #{tpu_custom_call.1} parent=11 // pred_check
          %p165 = pneg %p61
        $region14: #{tpu_custom_call.1} parent=11 // pred_check_branch
          %167 = sbr.rel (%p165) target = $region16
        $region15: #{tpu_custom_call.1} parent=11 // pred_region
          _
        $region16: #{tpu_custom_call.1} parent=11 // pred_fallthru
          _
        // Predicated region
        $region17: #{tpu_custom_call.1} parent=11 // pred_check
          %p168 = pneg %p82
        $region18: #{tpu_custom_call.1} parent=11 // pred_check_branch
          %170 = sbr.rel (%p168) target = $region20
        $region19: #{tpu_custom_call.1} parent=11 // pred_region
          _
        $region20: #{tpu_custom_call.1} parent=11 // pred_fallthru
          _
        // Predicated region
        $region21: #{tpu_custom_call.1} parent=11 // pred_check
          %p171 = pneg %p103
        $region22: #{tpu_custom_call.1} parent=11 // pred_check_branch
          %173 = sbr.rel (%p171) target = $region24
        $region23: #{tpu_custom_call.1} parent=11 // pred_region
          _
        $region24: #{tpu_custom_call.1} parent=11 // pred_fallthru
          _
        // Predicated region
        $region25: #{tpu_custom_call.1} parent=11 // pred_check
          %p174 = pneg %p124
        $region26: #{tpu_custom_call.1} parent=11 // pred_check_branch
          %176 = sbr.rel (%p174) target = $region28
        $region27: #{tpu_custom_call.1} parent=11 // pred_region
          _
        $region28: #{tpu_custom_call.1} parent=11 // pred_fallthru
          _
      $region12: #{tpu_custom_call.1} parent=5 // pred_fallthru
        _
      %p177 = scmp.lt.s32.totalorder %s14, 2
      // Predicated region
      $region29: #{tpu_custom_call.1} parent=5 // pred_check
        %p178 = pneg %p177
      $region30: #{tpu_custom_call.1} parent=5 // pred_check_branch
        %180 = sbr.rel (%p178) target = $region32
      $region31: #{tpu_custom_call.1} parent=5 // pred_region
        // Predicated region
        $region33: #{tpu_custom_call.1} parent=31 // pred_check
          %p181 = pneg %p34
        $region34: #{tpu_custom_call.1} parent=31 // pred_check_branch
          %183 = sbr.rel (%p181) target = $region36
        $region35: #{tpu_custom_call.1} parent=31 // pred_region
          %p184 = scmp.lt.s32.totalorder %s14, 1
          %s185 = scalar_select %p184, %s14, 1
          %s186 = smul.addr %s185, 43
          %s187 = smul.addr %s186, 8
          %s188 = scalar_lea.vmem %s0, %s187
        $region36: #{tpu_custom_call.1} parent=31 // pred_fallthru
          _
      $region32: #{tpu_custom_call.1} parent=5 // pred_fallthru
        _
      %p189 = scmp.le.s32.totalorder 1, %s14
      %p190 = scmp.lt.s32.totalorder %s14, 3
      %p191 = pnand %p189, %p190
      %p192 = pneg %p191
      // Predicated region
      $region37: #{tpu_custom_call.1} parent=5 // pred_check
        _
      $region38: #{tpu_custom_call.1} parent=5 // pred_check_branch
        %194 = sbr.rel (%p191) target = $region40
      $region39: #{tpu_custom_call.1} parent=5 // pred_region
        %s195 = ssub.s32 %s14, 1
        %p196 = scmp.lt.s32.totalorder %s19, 1
        %s197 = scalar_select %p196, %s19, 1
        %s198 = smul.addr %s197, 43
        %s199 = smul.addr %s198, 8
        %s200 = scalar_lea.vmem %s0, %s199
        %p201 = pneg %p40
        %p202 = pneg %p37
        %p203 = pneg %p61
        %p204 = pneg %p58
        %p205 = pneg %p82
        %p206 = pneg %p79
        %p207 = pneg %p103
        %p208 = pneg %p100
        %p209 = pneg %p124
        %p210 = pneg %p121
        %p211 = pneg %p150
        %p212 = pneg %p147
        %s213 = sand.u32 %s137, 1
        %s214 = scalar_lea.sflag [#allocation4], %s213
        %s215 = sand.u32 %s137, 1
        %s216 = smul.addr %s215, 64
        %s217 = scalar_lea.vmem [#allocation3], %s216
        %p218 = scmp.lt.s32.totalorder %s19, 1
        %s219 = scalar_select %p218, %s19, 1
        %s220 = smul.addr %s219, 43
        %s221 = smul.addr %s220, 8
        %s222 = scalar_lea.vmem %s0, %s221
        %v223 = vld [vmem:[%s222] sm:$0xff]
        %v224 = vld [vmem:[%s222 + $0x8] sm:$0xff]
        %v225 = vld [vmem:[%s222 + $0x10] sm:$0xff]
        %v226 = vld [vmem:[%s222 + $0x18] sm:$0xff]
        %v227 = vld [vmem:[%s222 + $0x20] sm:$0xff]
        %v228 = vld [vmem:[%s222 + $0x28] sm:$0xff]
        %v229 = vld [vmem:[%s222 + $0x30] sm:$0xff]
        %v230 = vld [vmem:[%s222 + $0x38] sm:$0xff]
        %v231 = vld [vmem:[%s222 + $0x40] sm:$0xff]
        %v232 = vld [vmem:[%s222 + $0x48] sm:$0xff]
        %v233 = vld [vmem:[%s222 + $0x50] sm:$0xff]
        %v234 = vld [vmem:[%s222 + $0x58] sm:$0xff]
        %v235 = vld [vmem:[%s222 + $0x60] sm:$0xff]
        %v236 = vld [vmem:[%s222 + $0x68] sm:$0xff]
        %v237 = vld [vmem:[%s222 + $0x70] sm:$0xff]
        %v238 = vld [vmem:[%s222 + $0x78] sm:$0xff]
        %v239 = vld [vmem:[%s222 + $0x80] sm:$0xff]
        %v240 = vld [vmem:[%s222 + $0x88] sm:$0xff]
        %v241 = vld [vmem:[%s222 + $0x90] sm:$0xff]
        %v242 = vld [vmem:[%s222 + $0x98] sm:$0xff]
        %v243 = vld [vmem:[%s222 + $0xa0] sm:$0xff]
        %v244 = vld [vmem:[%s222 + $0xa8] sm:$0xff]
        %v245 = vld [vmem:[%s222 + $0xb0] sm:$0xff]
        %v246 = vld [vmem:[%s222 + $0xb8] sm:$0xff]
        %v247 = vld [vmem:[%s222 + $0xc0] sm:$0xff]
        %v248 = vld [vmem:[%s222 + $0xc8] sm:$0xff]
        %v249 = vld [vmem:[%s222 + $0xd0] sm:$0xff]
        %v250 = vld [vmem:[%s222 + $0xd8] sm:$0xff]
        %v251 = vld [vmem:[%s222 + $0xe0] sm:$0xff]
        %v252 = vld [vmem:[%s222 + $0xe8] sm:$0xff]
        %v253 = vld [vmem:[%s222 + $0xf0] sm:$0xff]
        %v254 = vld [vmem:[%s222 + $0xf8] sm:$0xff]
        %v255 = vld [vmem:[%s222 + $0x100] sm:$0xff]
        %v256 = vld [vmem:[%s222 + $0x108] sm:$0xff]
        %v257 = vld [vmem:[%s222 + $0x110] sm:$0xff]
        %v258 = vld [vmem:[%s222 + $0x118] sm:$0xff]
        %v259 = vld [vmem:[%s1] sm:$0xff]
        %v260 = vld [vmem:[%s1 + $0x8] sm:$0xff]
        %v261 = vld [vmem:[%s222 + $0x1] sm:$0xff]
        %v262 = vld [vmem:[%s222 + $0x9] sm:$0xff]
        %v263 = vld [vmem:[%s222 + $0x11] sm:$0xff]
        %v264 = vld [vmem:[%s222 + $0x19] sm:$0xff]
        %v265 = vld [vmem:[%s222 + $0x21] sm:$0xff]
        %v266 = vld [vmem:[%s222 + $0x29] sm:$0xff]
        %v267 = vld [vmem:[%s222 + $0x31] sm:$0xff]
        %v268 = vld [vmem:[%s222 + $0x39] sm:$0xff]
        %v269 = vld [vmem:[%s222 + $0x41] sm:$0xff]
        %v270 = vld [vmem:[%s222 + $0x49] sm:$0xff]
        %v271 = vld [vmem:[%s222 + $0x51] sm:$0xff]
        %v272 = vld [vmem:[%s222 + $0x59] sm:$0xff]
        %v273 = vld [vmem:[%s222 + $0x61] sm:$0xff]
        %v274 = vld [vmem:[%s222 + $0x69] sm:$0xff]
        %v275 = vld [vmem:[%s222 + $0x71] sm:$0xff]
        %v276 = vld [vmem:[%s222 + $0x79] sm:$0xff]
        %v277 = vld [vmem:[%s222 + $0x81] sm:$0xff]
        %v278 = vld [vmem:[%s222 + $0x89] sm:$0xff]
        %v279 = vld [vmem:[%s222 + $0x91] sm:$0xff]
        %v280 = vld [vmem:[%s222 + $0x99] sm:$0xff]
        %v281 = vld [vmem:[%s222 + $0xa1] sm:$0xff]
        %v282 = vld [vmem:[%s222 + $0xa9] sm:$0xff]
        %v283 = vld [vmem:[%s222 + $0xb1] sm:$0xff]
        %v284 = vld [vmem:[%s222 + $0xb9] sm:$0xff]
        %v285 = vld [vmem:[%s222 + $0xc1] sm:$0xff]
        %v286 = vld [vmem:[%s222 + $0xc9] sm:$0xff]
        %v287 = vld [vmem:[%s222 + $0xd1] sm:$0xff]
        %v288 = vld [vmem:[%s222 + $0xd9] sm:$0xff]
        %v289 = vld [vmem:[%s222 + $0xe1] sm:$0xff]
        %v290 = vld [vmem:[%s222 + $0xe9] sm:$0xff]
        %v291 = vld [vmem:[%s222 + $0xf1] sm:$0xff]
        %v292 = vld [vmem:[%s222 + $0xf9] sm:$0xff]
        %v293 = vld [vmem:[%s222 + $0x101] sm:$0xff]
        %v294 = vld [vmem:[%s222 + $0x109] sm:$0xff]
        %v295 = vld [vmem:[%s222 + $0x111] sm:$0xff]
        %v296 = vld [vmem:[%s222 + $0x119] sm:$0xff]
        %s297 = scalar_lea.vmem %s1, 16
        %v298 = vld [vmem:[%s297] sm:$0xff]
        %v299 = vld [vmem:[%s297 + $0x8] sm:$0xff]
        %vm300 = vcmask 130048
        %v302 = vsel %vm300, %v261, 0
        %v305 = vsel %vm300, %v262, 0
        %v308 = vsel %vm300, %v263, 0
        %v311 = vsel %vm300, %v264, 0
        %v314 = vsel %vm300, %v265, 0
        %v317 = vsel %vm300, %v266, 0
        %v320 = vsel %vm300, %v267, 0
        %v323 = vsel %vm300, %v268, 0
        %v326 = vsel %vm300, %v269, 0
        %v329 = vsel %vm300, %v270, 0
        %v332 = vsel %vm300, %v271, 0
        %v335 = vsel %vm300, %v272, 0
        %v338 = vsel %vm300, %v273, 0
        %v341 = vsel %vm300, %v274, 0
        %v344 = vsel %vm300, %v275, 0
        %v347 = vsel %vm300, %v276, 0
        %v350 = vsel %vm300, %v277, 0
        %v353 = vsel %vm300, %v278, 0
        %v356 = vsel %vm300, %v279, 0
        %v359 = vsel %vm300, %v280, 0
        %v362 = vsel %vm300, %v281, 0
        %v365 = vsel %vm300, %v282, 0
        %v368 = vsel %vm300, %v283, 0
        %v371 = vsel %vm300, %v284, 0
        %v374 = vsel %vm300, %v285, 0
        %v377 = vsel %vm300, %v286, 0
        %v380 = vsel %vm300, %v287, 0
        %v383 = vsel %vm300, %v288, 0
        %v386 = vsel %vm300, %v289, 0
        %v389 = vsel %vm300, %v290, 0
        %v392 = vsel %vm300, %v291, 0
        %v395 = vsel %vm300, %v292, 0
        %v398 = vsel %vm300, %v293, 0
        %v401 = vsel %vm300, %v294, 0
        %v404 = vsel %vm300, %v295, 0
        %v407 = vsel %vm300, %v296, 0
        %409 = vmatprep.subr.mxu0 0.0
        %410 = vmatpush1.msra.mxu0 %v298
        %411 = vmatprep.subr.mxu0 0.0
        %412 = vmatpush1.msra.mxu0 %v299
        %413 = vmatprep.subr.mxu0 0.0
        %414 = vmatpush1.msra.mxu0 0.0
        %415 = vmatprep.subr.mxu0 0.0
        %416 = vmatpush1.msra.mxu0 0.0
        %417 = vmatprep.subr.mxu0 0.0
        %418 = vmatpush1.msra.mxu0 0.0
        %419 = vmatprep.subr.mxu0 0.0
        %420 = vmatpush1.msra.mxu0 0.0
        %421 = vmatprep.subr.mxu0 0.0
        %422 = vmatpush1.msra.mxu0 0.0
        %423 = vmatprep.subr.mxu0 0.0
        %424 = vmatpush1.msra.mxu0 0.0
        %425 = vmatprep.subr.mxu0 0.0
        %426 = vmatpush1.msra.mxu0 0.0
        %427 = vmatprep.subr.mxu0 0.0
        %428 = vmatpush1.msra.mxu0 0.0
        %429 = vmatprep.subr.mxu0 0.0
        %430 = vmatpush1.msra.mxu0 0.0
        %431 = vmatprep.subr.mxu0 0.0
        %432 = vmatpush1.msra.mxu0 0.0
        %433 = vmatprep.subr.mxu0 0.0
        %434 = vmatpush1.msra.mxu0 0.0
        %435 = vmatprep.subr.mxu0 0.0
        %436 = vmatpush1.msra.mxu0 0.0
        %437 = vmatprep.subr.mxu0 0.0
        %438 = vmatpush1.msra.mxu0 0.0
        %439 = vmatprep.subr.mxu0 0.0
        %440 = vmatpush1.msra.mxu0 0.0
        %441 = vmatprep.subr.mxu0 0.0
        %442 = vmatpush1.msra.mxu0 0.0
        %443 = vmatprep.subr.mxu0 0.0
        %444 = vmatpush1.msra.mxu0 0.0
        %445 = vmatprep.subr.mxu0 0.0
        %446 = vmatpush1.msra.mxu0 0.0
        %447 = vmatprep.subr.mxu0 0.0
        %448 = vmatpush1.msra.mxu0 0.0
        %449 = vmatprep.subr.mxu0 0.0
        %450 = vmatpush1.msra.mxu0 0.0
        %451 = vmatprep.subr.mxu0 0.0
        %452 = vmatpush1.msra.mxu0 0.0
        %453 = vmatprep.subr.mxu0 0.0
        %454 = vmatpush1.msra.mxu0 0.0
        %455 = vmatprep.subr.mxu0 0.0
        %456 = vmatpush1.msra.mxu0 0.0
        %457 = vmatprep.subr.mxu0 0.0
        %458 = vmatpush1.msra.mxu0 0.0
        %459 = vmatprep.subr.mxu0 0.0
        %460 = vmatpush1.msra.mxu0 0.0
        %461 = vmatprep.subr.mxu0 0.0
        %462 = vmatpush1.msra.mxu0 0.0
        %463 = vmatprep.subr.mxu0 0.0
        %464 = vmatpush1.msra.mxu0 0.0
        %465 = vmatprep.subr.mxu0 0.0
        %466 = vmatpush1.msra.mxu0 0.0
        %467 = vmatprep.subr.mxu0 0.0
        %468 = vmatpush1.msra.mxu0 0.0
        %469 = vmatprep.subr.mxu0 0.0
        %470 = vmatpush1.msra.mxu0 0.0
        %471 = vmatprep.subr.mxu0 0.0
        %472 = vmatpush1.msra.mxu0 0.0
        %473 = vmatprep.mubr.f32.mxu0 0.0
        %474 = vmatmul.mubr.f32.gmra.mrb[0].mxu0 %v302
        %v475 = vpop.f32.mrb[0].mxu0
        %v476 = vadd.f32 0.0, %v475
        %v477 = vpop.f32.mrb[0].mxu0
        %478 = vmatprep.mubr.f32.mxu0 0.0
        %479 = vmatmul.mubr.f32.gmra.mrb[0].mxu0 %v305
        %v480 = vpop.f32.mrb[0].mxu0
        %v481 = vadd.f32 0.0, %v480
        %v482 = vpop.f32.mrb[0].mxu0
        %483 = vmatprep.mubr.f32.mxu0 0.0
        %484 = vmatmul.mubr.f32.gmra.mrb[0].mxu0 %v308
        %v485 = vpop.f32.mrb[0].mxu0
        %v486 = vadd.f32 0.0, %v485
        %v487 = vpop.f32.mrb[0].mxu0
        %488 = vmatprep.mubr.f32.mxu0 0.0
        %489 = vmatmul.mubr.f32.gmra.mrb[0].mxu0 %v311
        %v490 = vpop.f32.mrb[0].mxu0
        %v491 = vadd.f32 0.0, %v490
        %v492 = vpop.f32.mrb[0].mxu0
        %493 = vmatprep.mubr.f32.mxu0 0.0
        %494 = vmatmul.mubr.f32.gmra.mrb[0].mxu0 %v314
        %v495 = vpop.f32.mrb[0].mxu0
        %v496 = vadd.f32 0.0, %v495
        %v497 = vpop.f32.mrb[0].mxu0
        %498 = vmatprep.mubr.f32.mxu0 0.0
        %499 = vmatmul.mubr.f32.gmra.mrb[0].mxu0 %v317
        %v500 = vpop.f32.mrb[0].mxu0
        %v501 = vadd.f32 0.0, %v500
        %v502 = vpop.f32.mrb[0].mxu0
        %503 = vmatprep.mubr.f32.mxu0 0.0
        %504 = vmatmul.mubr.f32.gmra.mrb[0].mxu0 %v320
        %v505 = vpop.f32.mrb[0].mxu0
        %v506 = vadd.f32 0.0, %v505
        %v507 = vpop.f32.mrb[0].mxu0
        %508 = vmatprep.mubr.f32.mxu0 0.0
        %509 = vmatmul.mubr.f32.gmra.mrb[0].mxu0 %v323
        %v510 = vpop.f32.mrb[0].mxu0
        %v511 = vadd.f32 0.0, %v510
        %v512 = vpop.f32.mrb[0].mxu0
        %513 = vmatprep.mubr.f32.mxu0 0.0
        %514 = vmatmul.mubr.f32.gmra.mrb[0].mxu0 %v326
        %v515 = vpop.f32.mrb[0].mxu0
        %v516 = vadd.f32 0.0, %v515
        %v517 = vpop.f32.mrb[0].mxu0
        %518 = vmatprep.mubr.f32.mxu0 0.0
        %519 = vmatmul.mubr.f32.gmra.mrb[0].mxu0 %v329
        %v520 = vpop.f32.mrb[0].mxu0
        %v521 = vadd.f32 0.0, %v520
        %v522 = vpop.f32.mrb[0].mxu0
        %523 = vmatprep.mubr.f32.mxu0 0.0
        %524 = vmatmul.mubr.f32.gmra.mrb[0].mxu0 %v332
        %v525 = vpop.f32.mrb[0].mxu0
        %v526 = vadd.f32 0.0, %v525
        %v527 = vpop.f32.mrb[0].mxu0
        %528 = vmatprep.mubr.f32.mxu0 0.0
        %529 = vmatmul.mubr.f32.gmra.mrb[0].mxu0 %v335
        %v530 = vpop.f32.mrb[0].mxu0
        %v531 = vadd.f32 0.0, %v530
        %v532 = vpop.f32.mrb[0].mxu0
        %533 = vmatprep.mubr.f32.mxu0 0.0
        %534 = vmatmul.mubr.f32.gmra.mrb[0].mxu0 %v338
        %v535 = vpop.f32.mrb[0].mxu0
        %v536 = vadd.f32 0.0, %v535
        %v537 = vpop.f32.mrb[0].mxu0
        %538 = vmatprep.mubr.f32.mxu0 0.0
        %539 = vmatmul.mubr.f32.gmra.mrb[0].mxu0 %v341
        %v540 = vpop.f32.mrb[0].mxu0
        %v541 = vadd.f32 0.0, %v540
        %v542 = vpop.f32.mrb[0].mxu0
        %543 = vmatprep.mubr.f32.mxu0 0.0
        %544 = vmatmul.mubr.f32.gmra.mrb[0].mxu0 %v344
        %v545 = vpop.f32.mrb[0].mxu0
        %v546 = vadd.f32 0.0, %v545
        %v547 = vpop.f32.mrb[0].mxu0
        %548 = vmatprep.mubr.f32.mxu0 0.0
        %549 = vmatmul.mubr.f32.gmra.mrb[0].mxu0 %v347
        %v550 = vpop.f32.mrb[0].mxu0
        %v551 = vadd.f32 0.0, %v550
        %v552 = vpop.f32.mrb[0].mxu0
        %553 = vmatprep.mubr.f32.mxu0 0.0
        %554 = vmatmul.mubr.f32.gmra.mrb[0].mxu0 %v350
        %v555 = vpop.f32.mrb[0].mxu0
        %v556 = vadd.f32 0.0, %v555
        %v557 = vpop.f32.mrb[0].mxu0
        %558 = vmatprep.mubr.f32.mxu0 0.0
        %559 = vmatmul.mubr.f32.gmra.mrb[0].mxu0 %v353
        %v560 = vpop.f32.mrb[0].mxu0
        %v561 = vadd.f32 0.0, %v560
        %v562 = vpop.f32.mrb[0].mxu0
        %563 = vmatprep.mubr.f32.mxu0 0.0
        %564 = vmatmul.mubr.f32.gmra.mrb[0].mxu0 %v356
        %v565 = vpop.f32.mrb[0].mxu0
        %v566 = vadd.f32 0.0, %v565
        %v567 = vpop.f32.mrb[0].mxu0
        %568 = vmatprep.mubr.f32.mxu0 0.0
        %569 = vmatmul.mubr.f32.gmra.mrb[0].mxu0 %v359
        %v570 = vpop.f32.mrb[0].mxu0
        %v571 = vadd.f32 0.0, %v570
        %v572 = vpop.f32.mrb[0].mxu0
        %573 = vmatprep.mubr.f32.mxu0 0.0
        %574 = vmatmul.mubr.f32.gmra.mrb[0].mxu0 %v362
        %v575 = vpop.f32.mrb[0].mxu0
        %v576 = vadd.f32 0.0, %v575
        %v577 = vpop.f32.mrb[0].mxu0
        %578 = vmatprep.mubr.f32.mxu0 0.0
        %579 = vmatmul.mubr.f32.gmra.mrb[0].mxu0 %v365
        %v580 = vpop.f32.mrb[0].mxu0
        %v581 = vadd.f32 0.0, %v580
        %v582 = vpop.f32.mrb[0].mxu0
        %583 = vmatprep.mubr.f32.mxu0 0.0
        %584 = vmatmul.mubr.f32.gmra.mrb[0].mxu0 %v368
        %v585 = vpop.f32.mrb[0].mxu0
        %v586 = vadd.f32 0.0, %v585
        %v587 = vpop.f32.mrb[0].mxu0
        %588 = vmatprep.mubr.f32.mxu0 0.0
        %589 = vmatmul.mubr.f32.gmra.mrb[0].mxu0 %v371
        %v590 = vpop.f32.mrb[0].mxu0
        %v591 = vadd.f32 0.0, %v590
        %v592 = vpop.f32.mrb[0].mxu0
        %593 = vmatprep.mubr.f32.mxu0 0.0
        %594 = vmatmul.mubr.f32.gmra.mrb[0].mxu0 %v374
        %v595 = vpop.f32.mrb[0].mxu0
        %v596 = vadd.f32 0.0, %v595
        %v597 = vpop.f32.mrb[0].mxu0
        %598 = vmatprep.mubr.f32.mxu0 0.0
        %599 = vmatmul.mubr.f32.gmra.mrb[0].mxu0 %v377
        %v600 = vpop.f32.mrb[0].mxu0
        %v601 = vadd.f32 0.0, %v600
        %v602 = vpop.f32.mrb[0].mxu0
        %603 = vmatprep.mubr.f32.mxu0 0.0
        %604 = vmatmul.mubr.f32.gmra.mrb[0].mxu0 %v380
        %v605 = vpop.f32.mrb[0].mxu0
        %v606 = vadd.f32 0.0, %v605
        %v607 = vpop.f32.mrb[0].mxu0
        %608 = vmatprep.mubr.f32.mxu0 0.0
        %609 = vmatmul.mubr.f32.gmra.mrb[0].mxu0 %v383
        %v610 = vpop.f32.mrb[0].mxu0
        %v611 = vadd.f32 0.0, %v610
        %v612 = vpop.f32.mrb[0].mxu0
        %613 = vmatprep.mubr.f32.mxu0 0.0
        %614 = vmatmul.mubr.f32.gmra.mrb[0].mxu0 %v386
        %v615 = vpop.f32.mrb[0].mxu0
        %v616 = vadd.f32 0.0, %v615
        %v617 = vpop.f32.mrb[0].mxu0
        %618 = vmatprep.mubr.f32.mxu0 0.0
        %619 = vmatmul.mubr.f32.gmra.mrb[0].mxu0 %v389
        %v620 = vpop.f32.mrb[0].mxu0
        %v621 = vadd.f32 0.0, %v620
        %v622 = vpop.f32.mrb[0].mxu0
        %623 = vmatprep.mubr.f32.mxu0 0.0
        %624 = vmatmul.mubr.f32.gmra.mrb[0].mxu0 %v392
        %v625 = vpop.f32.mrb[0].mxu0
        %v626 = vadd.f32 0.0, %v625
        %v627 = vpop.f32.mrb[0].mxu0
        %628 = vmatprep.mubr.f32.mxu0 0.0
        %629 = vmatmul.mubr.f32.gmra.mrb[0].mxu0 %v395
        %v630 = vpop.f32.mrb[0].mxu0
        %v631 = vadd.f32 0.0, %v630
        %v632 = vpop.f32.mrb[0].mxu0
        %633 = vmatprep.mubr.f32.mxu0 0.0
        %634 = vmatmul.mubr.f32.gmra.mrb[0].mxu0 %v398
        %v635 = vpop.f32.mrb[0].mxu0
        %v636 = vadd.f32 0.0, %v635
        %v637 = vpop.f32.mrb[0].mxu0
        %638 = vmatprep.mubr.f32.mxu0 0.0
        %639 = vmatmul.mubr.f32.gmra.mrb[0].mxu0 %v401
        %v640 = vpop.f32.mrb[0].mxu0
        %v641 = vadd.f32 0.0, %v640
        %v642 = vpop.f32.mrb[0].mxu0
        %643 = vmatprep.mubr.f32.mxu0 0.0
        %644 = vmatmul.mubr.f32.gmra.mrb[0].mxu0 %v404
        %v645 = vpop.f32.mrb[0].mxu0
        %v646 = vadd.f32 0.0, %v645
        %v647 = vpop.f32.mrb[0].mxu0
        %648 = vmatprep.mubr.f32.mxu0 0.0
        %649 = vmatmul.mubr.f32.gmra.mrb[0].mxu0 %v407
        %v650 = vpop.f32.mrb[0].mxu0
        %v651 = vadd.f32 0.0, %v650
        %v652 = vpop.f32.mrb[0].mxu0
        %653 = vdwg.mxu0
        %v655 = vsel %vm300, %v223, 0
        %v658 = vsel %vm300, %v224, 0
        %v661 = vsel %vm300, %v225, 0
        %v664 = vsel %vm300, %v226, 0
        %v667 = vsel %vm300, %v227, 0
        %v670 = vsel %vm300, %v228, 0
        %v673 = vsel %vm300, %v229, 0
        %v676 = vsel %vm300, %v230, 0
        %v679 = vsel %vm300, %v231, 0
        %v682 = vsel %vm300, %v232, 0
        %v685 = vsel %vm300, %v233, 0
        %v688 = vsel %vm300, %v234, 0
        %v691 = vsel %vm300, %v235, 0
        %v694 = vsel %vm300, %v236, 0
        %v697 = vsel %vm300, %v237, 0
        %v700 = vsel %vm300, %v238, 0
        %v703 = vsel %vm300, %v239, 0
        %v706 = vsel %vm300, %v240, 0
        %v709 = vsel %vm300, %v241, 0
        %v712 = vsel %vm300, %v242, 0
        %v715 = vsel %vm300, %v243, 0
        %v718 = vsel %vm300, %v244, 0
        %v721 = vsel %vm300, %v245, 0
        %v724 = vsel %vm300, %v246, 0
        %v727 = vsel %vm300, %v247, 0
        %v730 = vsel %vm300, %v248, 0
        %v733 = vsel %vm300, %v249, 0
        %v736 = vsel %vm300, %v250, 0
        %v739 = vsel %vm300, %v251, 0
        %v742 = vsel %vm300, %v252, 0
        %v745 = vsel %vm300, %v253, 0
        %v748 = vsel %vm300, %v254, 0
        %v751 = vsel %vm300, %v255, 0
        %v754 = vsel %vm300, %v256, 0
        %v757 = vsel %vm300, %v257, 0
        %v760 = vsel %vm300, %v258, 0
        %762 = vmatprep.subr.mxu0 0.0
        %763 = vmatpush1.msra.mxu0 %v259
        %764 = vmatprep.subr.mxu0 0.0
        %765 = vmatpush1.msra.mxu0 %v260
        %766 = vmatprep.subr.mxu0 0.0
        %767 = vmatpush1.msra.mxu0 0.0
        %768 = vmatprep.subr.mxu0 0.0
        %769 = vmatpush1.msra.mxu0 0.0
        %770 = vmatprep.subr.mxu0 0.0
        %771 = vmatpush1.msra.mxu0 0.0
        %772 = vmatprep.subr.mxu0 0.0
        %773 = vmatpush1.msra.mxu0 0.0
        %774 = vmatprep.subr.mxu0 0.0
        %775 = vmatpush1.msra.mxu0 0.0
        %776 = vmatprep.subr.mxu0 0.0
        %777 = vmatpush1.msra.mxu0 0.0
        %778 = vmatprep.subr.mxu0 0.0
        %779 = vmatpush1.msra.mxu0 0.0
        %780 = vmatprep.subr.mxu0 0.0
        %781 = vmatpush1.msra.mxu0 0.0
        %782 = vmatprep.subr.mxu0 0.0
        %783 = vmatpush1.msra.mxu0 0.0
        %784 = vmatprep.subr.mxu0 0.0
        %785 = vmatpush1.msra.mxu0 0.0
        %786 = vmatprep.subr.mxu0 0.0
        %787 = vmatpush1.msra.mxu0 0.0
        %788 = vmatprep.subr.mxu0 0.0
        %789 = vmatpush1.msra.mxu0 0.0
        %790 = vmatprep.subr.mxu0 0.0
        %791 = vmatpush1.msra.mxu0 0.0
        %792 = vmatprep.subr.mxu0 0.0
        %793 = vmatpush1.msra.mxu0 0.0
        %794 = vmatprep.subr.mxu0 0.0
        %795 = vmatpush1.msra.mxu0 0.0
        %796 = vmatprep.subr.mxu0 0.0
        %797 = vmatpush1.msra.mxu0 0.0
        %798 = vmatprep.subr.mxu0 0.0
        %799 = vmatpush1.msra.mxu0 0.0
        %800 = vmatprep.subr.mxu0 0.0
        %801 = vmatpush1.msra.mxu0 0.0
        %802 = vmatprep.subr.mxu0 0.0
        %803 = vmatpush1.msra.mxu0 0.0
        %804 = vmatprep.subr.mxu0 0.0
        %805 = vmatpush1.msra.mxu0 0.0
        %806 = vmatprep.subr.mxu0 0.0
        %807 = vmatpush1.msra.mxu0 0.0
        %808 = vmatprep.subr.mxu0 0.0
        %809 = vmatpush1.msra.mxu0 0.0
        %810 = vmatprep.subr.mxu0 0.0
        %811 = vmatpush1.msra.mxu0 0.0
        %812 = vmatprep.subr.mxu0 0.0
        %813 = vmatpush1.msra.mxu0 0.0
        %814 = vmatprep.subr.mxu0 0.0
        %815 = vmatpush1.msra.mxu0 0.0
        %816 = vmatprep.subr.mxu0 0.0
        %817 = vmatpush1.msra.mxu0 0.0
        %818 = vmatprep.subr.mxu0 0.0
        %819 = vmatpush1.msra.mxu0 0.0
        %820 = vmatprep.subr.mxu0 0.0
        %821 = vmatpush1.msra.mxu0 0.0
        %822 = vmatprep.subr.mxu0 0.0
        %823 = vmatpush1.msra.mxu0 0.0
        %824 = vmatprep.subr.mxu0 0.0
        %825 = vmatpush1.msra.mxu0 0.0
        %826 = vmatprep.mubr.f32.mxu0 0.0
        %827 = vmatmul.mubr.f32.gmra.mrb[0].mxu0 %v655
        %v828 = vpop.f32.mrb[0].mxu0
        %v829 = vadd.f32 %v476, %v828
        %v830 = vpop.f32.mrb[0].mxu0
        %831 = vmatprep.mubr.f32.mxu0 0.0
        %832 = vmatmul.mubr.f32.gmra.mrb[0].mxu0 %v658
        %v833 = vpop.f32.mrb[0].mxu0
        %v834 = vadd.f32 %v481, %v833
        %v835 = vpop.f32.mrb[0].mxu0
        %836 = vmatprep.mubr.f32.mxu0 0.0
        %837 = vmatmul.mubr.f32.gmra.mrb[0].mxu0 %v661
        %v838 = vpop.f32.mrb[0].mxu0
        %v839 = vadd.f32 %v486, %v838
        %v840 = vpop.f32.mrb[0].mxu0
        %841 = vmatprep.mubr.f32.mxu0 0.0
        %842 = vmatmul.mubr.f32.gmra.mrb[0].mxu0 %v664
        %v843 = vpop.f32.mrb[0].mxu0
        %v844 = vadd.f32 %v491, %v843
        %v845 = vpop.f32.mrb[0].mxu0
        %846 = vmatprep.mubr.f32.mxu0 0.0
        %847 = vmatmul.mubr.f32.gmra.mrb[0].mxu0 %v667
        %v848 = vpop.f32.mrb[0].mxu0
        %v849 = vadd.f32 %v496, %v848
        %v850 = vpop.f32.mrb[0].mxu0
        %851 = vmatprep.mubr.f32.mxu0 0.0
        %852 = vmatmul.mubr.f32.gmra.mrb[0].mxu0 %v670
        %v853 = vpop.f32.mrb[0].mxu0
        %v854 = vadd.f32 %v501, %v853
        %v855 = vpop.f32.mrb[0].mxu0
        %856 = vmatprep.mubr.f32.mxu0 0.0
        %857 = vmatmul.mubr.f32.gmra.mrb[0].mxu0 %v673
        %v858 = vpop.f32.mrb[0].mxu0
        %v859 = vadd.f32 %v506, %v858
        %v860 = vpop.f32.mrb[0].mxu0
        %861 = vmatprep.mubr.f32.mxu0 0.0
        %862 = vmatmul.mubr.f32.gmra.mrb[0].mxu0 %v676
        %v863 = vpop.f32.mrb[0].mxu0
        %v864 = vadd.f32 %v511, %v863
        %v865 = vpop.f32.mrb[0].mxu0
        %866 = vmatprep.mubr.f32.mxu0 0.0
        %867 = vmatmul.mubr.f32.gmra.mrb[0].mxu0 %v679
        %v868 = vpop.f32.mrb[0].mxu0
        %v869 = vadd.f32 %v516, %v868
        %v870 = vpop.f32.mrb[0].mxu0
        %871 = vmatprep.mubr.f32.mxu0 0.0
        %872 = vmatmul.mubr.f32.gmra.mrb[0].mxu0 %v682
        %v873 = vpop.f32.mrb[0].mxu0
        %v874 = vadd.f32 %v521, %v873
        %v875 = vpop.f32.mrb[0].mxu0
        %876 = vmatprep.mubr.f32.mxu0 0.0
        %877 = vmatmul.mubr.f32.gmra.mrb[0].mxu0 %v685
        %v878 = vpop.f32.mrb[0].mxu0
        %v879 = vadd.f32 %v526, %v878
        %v880 = vpop.f32.mrb[0].mxu0
        %881 = vmatprep.mubr.f32.mxu0 0.0
        %882 = vmatmul.mubr.f32.gmra.mrb[0].mxu0 %v688
        %v883 = vpop.f32.mrb[0].mxu0
        %v884 = vadd.f32 %v531, %v883
        %v885 = vpop.f32.mrb[0].mxu0
        %886 = vmatprep.mubr.f32.mxu0 0.0
        %887 = vmatmul.mubr.f32.gmra.mrb[0].mxu0 %v691
        %v888 = vpop.f32.mrb[0].mxu0
        %v889 = vadd.f32 %v536, %v888
        %v890 = vpop.f32.mrb[0].mxu0
        %891 = vmatprep.mubr.f32.mxu0 0.0
        %892 = vmatmul.mubr.f32.gmra.mrb[0].mxu0 %v694
        %v893 = vpop.f32.mrb[0].mxu0
        %v894 = vadd.f32 %v541, %v893
        %v895 = vpop.f32.mrb[0].mxu0
        %896 = vmatprep.mubr.f32.mxu0 0.0
        %897 = vmatmul.mubr.f32.gmra.mrb[0].mxu0 %v697
        %v898 = vpop.f32.mrb[0].mxu0
        %v899 = vadd.f32 %v546, %v898
        %v900 = vpop.f32.mrb[0].mxu0
        %901 = vmatprep.mubr.f32.mxu0 0.0
        %902 = vmatmul.mubr.f32.gmra.mrb[0].mxu0 %v700
        %v903 = vpop.f32.mrb[0].mxu0
        %v904 = vadd.f32 %v551, %v903
        %v905 = vpop.f32.mrb[0].mxu0
        %906 = vmatprep.mubr.f32.mxu0 0.0
        %907 = vmatmul.mubr.f32.gmra.mrb[0].mxu0 %v703
        %v908 = vpop.f32.mrb[0].mxu0
        %v909 = vadd.f32 %v556, %v908
        %v910 = vpop.f32.mrb[0].mxu0
        %911 = vmatprep.mubr.f32.mxu0 0.0
        %912 = vmatmul.mubr.f32.gmra.mrb[0].mxu0 %v706
        %v913 = vpop.f32.mrb[0].mxu0
        %v914 = vadd.f32 %v561, %v913
        %v915 = vpop.f32.mrb[0].mxu0
        %916 = vmatprep.mubr.f32.mxu0 0.0
        %917 = vmatmul.mubr.f32.gmra.mrb[0].mxu0 %v709
        %v918 = vpop.f32.mrb[0].mxu0
        %v919 = vadd.f32 %v566, %v918
        %v920 = vpop.f32.mrb[0].mxu0
        %921 = vmatprep.mubr.f32.mxu0 0.0
        %922 = vmatmul.mubr.f32.gmra.mrb[0].mxu0 %v712
        %v923 = vpop.f32.mrb[0].mxu0
        %v924 = vadd.f32 %v571, %v923
        %v925 = vpop.f32.mrb[0].mxu0
        %926 = vmatprep.mubr.f32.mxu0 0.0
        %927 = vmatmul.mubr.f32.gmra.mrb[0].mxu0 %v715
        %v928 = vpop.f32.mrb[0].mxu0
        %v929 = vadd.f32 %v576, %v928
        %v930 = vpop.f32.mrb[0].mxu0
        %931 = vmatprep.mubr.f32.mxu0 0.0
        %932 = vmatmul.mubr.f32.gmra.mrb[0].mxu0 %v718
        %v933 = vpop.f32.mrb[0].mxu0
        %v934 = vadd.f32 %v581, %v933
        %v935 = vpop.f32.mrb[0].mxu0
        %936 = vmatprep.mubr.f32.mxu0 0.0
        %937 = vmatmul.mubr.f32.gmra.mrb[0].mxu0 %v721
        %v938 = vpop.f32.mrb[0].mxu0
        %v939 = vadd.f32 %v586, %v938
        %v940 = vpop.f32.mrb[0].mxu0
        %941 = vmatprep.mubr.f32.mxu0 0.0
        %942 = vmatmul.mubr.f32.gmra.mrb[0].mxu0 %v724
        %v943 = vpop.f32.mrb[0].mxu0
        %v944 = vadd.f32 %v591, %v943
        %v945 = vpop.f32.mrb[0].mxu0
        %946 = vmatprep.mubr.f32.mxu0 0.0
        %947 = vmatmul.mubr.f32.gmra.mrb[0].mxu0 %v727
        %v948 = vpop.f32.mrb[0].mxu0
        %v949 = vadd.f32 %v596, %v948
        %v950 = vpop.f32.mrb[0].mxu0
        %951 = vmatprep.mubr.f32.mxu0 0.0
        %952 = vmatmul.mubr.f32.gmra.mrb[0].mxu0 %v730
        %v953 = vpop.f32.mrb[0].mxu0
        %v954 = vadd.f32 %v601, %v953
        %v955 = vpop.f32.mrb[0].mxu0
        %956 = vmatprep.mubr.f32.mxu0 0.0
        %957 = vmatmul.mubr.f32.gmra.mrb[0].mxu0 %v733
        %v958 = vpop.f32.mrb[0].mxu0
        %v959 = vadd.f32 %v606, %v958
        %v960 = vpop.f32.mrb[0].mxu0
        %961 = vmatprep.mubr.f32.mxu0 0.0
        %962 = vmatmul.mubr.f32.gmra.mrb[0].mxu0 %v736
        %v963 = vpop.f32.mrb[0].mxu0
        %v964 = vadd.f32 %v611, %v963
        %v965 = vpop.f32.mrb[0].mxu0
        %966 = vmatprep.mubr.f32.mxu0 0.0
        %967 = vmatmul.mubr.f32.gmra.mrb[0].mxu0 %v739
        %v968 = vpop.f32.mrb[0].mxu0
        %v969 = vadd.f32 %v616, %v968
        %v970 = vpop.f32.mrb[0].mxu0
        %971 = vmatprep.mubr.f32.mxu0 0.0
        %972 = vmatmul.mubr.f32.gmra.mrb[0].mxu0 %v742
        %v973 = vpop.f32.mrb[0].mxu0
        %v974 = vadd.f32 %v621, %v973
        %v975 = vpop.f32.mrb[0].mxu0
        %976 = vmatprep.mubr.f32.mxu0 0.0
        %977 = vmatmul.mubr.f32.gmra.mrb[0].mxu0 %v745
        %v978 = vpop.f32.mrb[0].mxu0
        %v979 = vadd.f32 %v626, %v978
        %v980 = vpop.f32.mrb[0].mxu0
        %981 = vmatprep.mubr.f32.mxu0 0.0
        %982 = vmatmul.mubr.f32.gmra.mrb[0].mxu0 %v748
        %v983 = vpop.f32.mrb[0].mxu0
        %v984 = vadd.f32 %v631, %v983
        %v985 = vpop.f32.mrb[0].mxu0
        %986 = vmatprep.mubr.f32.mxu0 0.0
        %987 = vmatmul.mubr.f32.gmra.mrb[0].mxu0 %v751
        %v988 = vpop.f32.mrb[0].mxu0
        %v989 = vadd.f32 %v636, %v988
        %v990 = vpop.f32.mrb[0].mxu0
        %991 = vmatprep.mubr.f32.mxu0 0.0
        %992 = vmatmul.mubr.f32.gmra.mrb[0].mxu0 %v754
        %v993 = vpop.f32.mrb[0].mxu0
        %v994 = vadd.f32 %v641, %v993
        %v995 = vpop.f32.mrb[0].mxu0
        %996 = vmatprep.mubr.f32.mxu0 0.0
        %997 = vmatmul.mubr.f32.gmra.mrb[0].mxu0 %v757
        %v998 = vpop.f32.mrb[0].mxu0
        %v999 = vadd.f32 %v646, %v998
        %v1000 = vpop.f32.mrb[0].mxu0
        %1001 = vmatprep.mubr.f32.mxu0 0.0
        %1002 = vmatmul.mubr.f32.gmra.mrb[0].mxu0 %v760
        %v1003 = vpop.f32.mrb[0].mxu0
        %v1004 = vadd.f32 %v651, %v1003
        %v1005 = vpop.f32.mrb[0].mxu0
        %1006 = vdwg.mxu0
        %v1007 = vld [vmem:[%s222 + $0x2] sm:$0xff]
        %v1008 = vld [vmem:[%s222 + $0xa] sm:$0xff]
        %v1009 = vld [vmem:[%s222 + $0x12] sm:$0xff]
        %v1010 = vld [vmem:[%s222 + $0x1a] sm:$0xff]
        %v1011 = vld [vmem:[%s222 + $0x22] sm:$0xff]
        %v1012 = vld [vmem:[%s222 + $0x2a] sm:$0xff]
        %v1013 = vld [vmem:[%s222 + $0x32] sm:$0xff]
        %v1014 = vld [vmem:[%s222 + $0x3a] sm:$0xff]
        %v1015 = vld [vmem:[%s222 + $0x42] sm:$0xff]
        %v1016 = vld [vmem:[%s222 + $0x4a] sm:$0xff]
        %v1017 = vld [vmem:[%s222 + $0x52] sm:$0xff]
        %v1018 = vld [vmem:[%s222 + $0x5a] sm:$0xff]
        %v1019 = vld [vmem:[%s222 + $0x62] sm:$0xff]
        %v1020 = vld [vmem:[%s222 + $0x6a] sm:$0xff]
        %v1021 = vld [vmem:[%s222 + $0x72] sm:$0xff]
        %v1022 = vld [vmem:[%s222 + $0x7a] sm:$0xff]
        %v1023 = vld [vmem:[%s222 + $0x82] sm:$0xff]
        %v1024 = vld [vmem:[%s222 + $0x8a] sm:$0xff]
        %v1025 = vld [vmem:[%s222 + $0x92] sm:$0xff]
        %v1026 = vld [vmem:[%s222 + $0x9a] sm:$0xff]
        %v1027 = vld [vmem:[%s222 + $0xa2] sm:$0xff]
        %v1028 = vld [vmem:[%s222 + $0xaa] sm:$0xff]
        %v1029 = vld [vmem:[%s222 + $0xb2] sm:$0xff]
        %v1030 = vld [vmem:[%s222 + $0xba] sm:$0xff]
        %v1031 = vld [vmem:[%s222 + $0xc2] sm:$0xff]
        %v1032 = vld [vmem:[%s222 + $0xca] sm:$0xff]
        %v1033 = vld [vmem:[%s222 + $0xd2] sm:$0xff]
        %v1034 = vld [vmem:[%s222 + $0xda] sm:$0xff]
        %v1035 = vld [vmem:[%s222 + $0xe2] sm:$0xff]
        %v1036 = vld [vmem:[%s222 + $0xea] sm:$0xff]
        %v1037 = vld [vmem:[%s222 + $0xf2] sm:$0xff]
        %v1038 = vld [vmem:[%s222 + $0xfa] sm:$0xff]
        %v1039 = vld [vmem:[%s222 + $0x102] sm:$0xff]
        %v1040 = vld [vmem:[%s222 + $0x10a] sm:$0xff]
        %v1041 = vld [vmem:[%s222 + $0x112] sm:$0xff]
        %v1042 = vld [vmem:[%s222 + $0x11a] sm:$0xff]
        %s1043 = scalar_lea.vmem %s1, 32
        %v1044 = vld [vmem:[%s1043] sm:$0xff]
        %v1045 = vld [vmem:[%s1043 + $0x8] sm:$0xff]
        %v1047 = vsel %vm300, %v1007, 0
        %v1050 = vsel %vm300, %v1008, 0
        %v1053 = vsel %vm300, %v1009, 0
        %v1056 = vsel %vm300, %v1010, 0
        %v1059 = vsel %vm300, %v1011, 0
        %v1062 = vsel %vm300, %v1012, 0
        %v1065 = vsel %vm300, %v1013, 0
        %v1068 = vsel %vm300, %v1014, 0
        %v1071 = vsel %vm300, %v1015, 0
        %v1074 = vsel %vm300, %v1016, 0
        %v1077 = vsel %vm300, %v1017, 0
        %v1080 = vsel %vm300, %v1018, 0
        %v1083 = vsel %vm300, %v1019, 0
        %v1086 = vsel %vm300, %v1020, 0
        %v1089 = vsel %vm300, %v1021, 0
        %v1092 = vsel %vm300, %v1022, 0
        %v1095 = vsel %vm300, %v1023, 0
        %v1098 = vsel %vm300, %v1024, 0
        %v1101 = vsel %vm300, %v1025, 0
        %v1104 = vsel %vm300, %v1026, 0
        %v1107 = vsel %vm300, %v1027, 0
        %v1110 = vsel %vm300, %v1028, 0
        %v1113 = vsel %vm300, %v1029, 0
        %v1116 = vsel %vm300, %v1030, 0
        %v1119 = vsel %vm300, %v1031, 0
        %v1122 = vsel %vm300, %v1032, 0
        %v1125 = vsel %vm300, %v1033, 0
        %v1128 = vsel %vm300, %v1034, 0
        %v1131 = vsel %vm300, %v1035, 0
        %v1134 = vsel %vm300, %v1036, 0
        %v1137 = vsel %vm300, %v1037, 0
        %v1140 = vsel %vm300, %v1038, 0
        %v1143 = vsel %vm300, %v1039, 0
        %v1146 = vsel %vm300, %v1040, 0
        %v1149 = vsel %vm300, %v1041, 0
        %v1152 = vsel %vm300, %v1042, 0
        %1154 = vmatprep.subr.mxu0 0.0
        %1155 = vmatpush1.msra.mxu0 %v1044
        %1156 = vmatprep.subr.mxu0 0.0
        %1157 = vmatpush1.msra.mxu0 %v1045
        %1158 = vmatprep.subr.mxu0 0.0
        %1159 = vmatpush1.msra.mxu0 0.0
        %1160 = vmatprep.subr.mxu0 0.0
        %1161 = vmatpush1.msra.mxu0 0.0
        %1162 = vmatprep.subr.mxu0 0.0
        %1163 = vmatpush1.msra.mxu0 0.0
        %1164 = vmatprep.subr.mxu0 0.0
        %1165 = vmatpush1.msra.mxu0 0.0
        %1166 = vmatprep.subr.mxu0 0.0
        %1167 = vmatpush1.msra.mxu0 0.0
        %1168 = vmatprep.subr.mxu0 0.0
        %1169 = vmatpush1.msra.mxu0 0.0
        %1170 = vmatprep.subr.mxu0 0.0
        %1171 = vmatpush1.msra.mxu0 0.0
        %1172 = vmatprep.subr.mxu0 0.0
        %1173 = vmatpush1.msra.mxu0 0.0
        %1174 = vmatprep.subr.mxu0 0.0
        %1175 = vmatpush1.msra.mxu0 0.0
        %1176 = vmatprep.subr.mxu0 0.0
        %1177 = vmatpush1.msra.mxu0 0.0
        %1178 = vmatprep.subr.mxu0 0.0
        %1179 = vmatpush1.msra.mxu0 0.0
        %1180 = vmatprep.subr.mxu0 0.0
        %1181 = vmatpush1.msra.mxu0 0.0
        %1182 = vmatprep.subr.mxu0 0.0
        %1183 = vmatpush1.msra.mxu0 0.0
        %1184 = vmatprep.subr.mxu0 0.0
        %1185 = vmatpush1.msra.mxu0 0.0
        %1186 = vmatprep.subr.mxu0 0.0
        %1187 = vmatpush1.msra.mxu0 0.0
        %1188 = vmatprep.subr.mxu0 0.0
        %1189 = vmatpush1.msra.mxu0 0.0
        %1190 = vmatprep.subr.mxu0 0.0
        %1191 = vmatpush1.msra.mxu0 0.0
        %1192 = vmatprep.subr.mxu0 0.0
        %1193 = vmatpush1.msra.mxu0 0.0
        %1194 = vmatprep.subr.mxu0 0.0
        %1195 = vmatpush1.msra.mxu0 0.0
        %1196 = vmatprep.subr.mxu0 0.0
        %1197 = vmatpush1.msra.mxu0 0.0
        %1198 = vmatprep.subr.mxu0 0.0
        %1199 = vmatpush1.msra.mxu0 0.0
        %1200 = vmatprep.subr.mxu0 0.0
        %1201 = vmatpush1.msra.mxu0 0.0
        %1202 = vmatprep.subr.mxu0 0.0
        %1203 = vmatpush1.msra.mxu0 0.0
        %1204 = vmatprep.subr.mxu0 0.0
        %1205 = vmatpush1.msra.mxu0 0.0
        %1206 = vmatprep.subr.mxu0 0.0
        %1207 = vmatpush1.msra.mxu0 0.0
        %1208 = vmatprep.subr.mxu0 0.0
        %1209 = vmatpush1.msra.mxu0 0.0
        %1210 = vmatprep.subr.mxu0 0.0
        %1211 = vmatpush1.msra.mxu0 0.0
        %1212 = vmatprep.subr.mxu0 0.0
        %1213 = vmatpush1.msra.mxu0 0.0
        %1214 = vmatprep.subr.mxu0 0.0
        %1215 = vmatpush1.msra.mxu0 0.0
        %1216 = vmatprep.subr.mxu0 0.0
        %1217 = vmatpush1.msra.mxu0 0.0
        %1218 = vmatprep.mubr.f32.mxu0 0.0
        %1219 = vmatmul.mubr.f32.gmra.mrb[0].mxu0 %v1047
        %v1220 = vpop.f32.mrb[0].mxu0
        %v1221 = vadd.f32 0.0, %v1220
        %v1222 = vpop.f32.mrb[0].mxu0
        %1223 = vmatprep.mubr.f32.mxu0 0.0
        %1224 = vmatmul.mubr.f32.gmra.mrb[0].mxu0 %v1050
        %v1225 = vpop.f32.mrb[0].mxu0
        %v1226 = vadd.f32 0.0, %v1225
        %v1227 = vpop.f32.mrb[0].mxu0
        %1228 = vmatprep.mubr.f32.mxu0 0.0
        %1229 = vmatmul.mubr.f32.gmra.mrb[0].mxu0 %v1053
        %v1230 = vpop.f32.mrb[0].mxu0
        %v1231 = vadd.f32 0.0, %v1230
        %v1232 = vpop.f32.mrb[0].mxu0
        %1233 = vmatprep.mubr.f32.mxu0 0.0
        %1234 = vmatmul.mubr.f32.gmra.mrb[0].mxu0 %v1056
        %v1235 = vpop.f32.mrb[0].mxu0
        %v1236 = vadd.f32 0.0, %v1235
        %v1237 = vpop.f32.mrb[0].mxu0
        %1238 = vmatprep.mubr.f32.mxu0 0.0
        %1239 = vmatmul.mubr.f32.gmra.mrb[0].mxu0 %v1059
        %v1240 = vpop.f32.mrb[0].mxu0
        %v1241 = vadd.f32 0.0, %v1240
        %v1242 = vpop.f32.mrb[0].mxu0
        %1243 = vmatprep.mubr.f32.mxu0 0.0
        %1244 = vmatmul.mubr.f32.gmra.mrb[0].mxu0 %v1062
        %v1245 = vpop.f32.mrb[0].mxu0
        %v1246 = vadd.f32 0.0, %v1245
        %v1247 = vpop.f32.mrb[0].mxu0
        %1248 = vmatprep.mubr.f32.mxu0 0.0
        %1249 = vmatmul.mubr.f32.gmra.mrb[0].mxu0 %v1065
        %v1250 = vpop.f32.mrb[0].mxu0
        %v1251 = vadd.f32 0.0, %v1250
        %v1252 = vpop.f32.mrb[0].mxu0
        %1253 = vmatprep.mubr.f32.mxu0 0.0
        %1254 = vmatmul.mubr.f32.gmra.mrb[0].mxu0 %v1068
        %v1255 = vpop.f32.mrb[0].mxu0
        %v1256 = vadd.f32 0.0, %v1255
        %v1257 = vpop.f32.mrb[0].mxu0
        %1258 = vmatprep.mubr.f32.mxu0 0.0
        %1259 = vmatmul.mubr.f32.gmra.mrb[0].mxu0 %v1071
        %v1260 = vpop.f32.mrb[0].mxu0
        %v1261 = vadd.f32 0.0, %v1260
        %v1262 = vpop.f32.mrb[0].mxu0
        %1263 = vmatprep.mubr.f32.mxu0 0.0
        %1264 = vmatmul.mubr.f32.gmra.mrb[0].mxu0 %v1074
        %v1265 = vpop.f32.mrb[0].mxu0
        %v1266 = vadd.f32 0.0, %v1265
        %v1267 = vpop.f32.mrb[0].mxu0
        %1268 = vmatprep.mubr.f32.mxu0 0.0
        %1269 = vmatmul.mubr.f32.gmra.mrb[0].mxu0 %v1077
        %v1270 = vpop.f32.mrb[0].mxu0
        %v1271 = vadd.f32 0.0, %v1270
        %v1272 = vpop.f32.mrb[0].mxu0
        %1273 = vmatprep.mubr.f32.mxu0 0.0
        %1274 = vmatmul.mubr.f32.gmra.mrb[0].mxu0 %v1080
        %v1275 = vpop.f32.mrb[0].mxu0
        %v1276 = vadd.f32 0.0, %v1275
        %v1277 = vpop.f32.mrb[0].mxu0
        %1278 = vmatprep.mubr.f32.mxu0 0.0
        %1279 = vmatmul.mubr.f32.gmra.mrb[0].mxu0 %v1083
        %v1280 = vpop.f32.mrb[0].mxu0
        %v1281 = vadd.f32 0.0, %v1280
        %v1282 = vpop.f32.mrb[0].mxu0
        %1283 = vmatprep.mubr.f32.mxu0 0.0
        %1284 = vmatmul.mubr.f32.gmra.mrb[0].mxu0 %v1086
        %v1285 = vpop.f32.mrb[0].mxu0
        %v1286 = vadd.f32 0.0, %v1285
        %v1287 = vpop.f32.mrb[0].mxu0
        %1288 = vmatprep.mubr.f32.mxu0 0.0
        %1289 = vmatmul.mubr.f32.gmra.mrb[0].mxu0 %v1089
        %v1290 = vpop.f32.mrb[0].mxu0
        %v1291 = vadd.f32 0.0, %v1290
        %v1292 = vpop.f32.mrb[0].mxu0
        %1293 = vmatprep.mubr.f32.mxu0 0.0
        %1294 = vmatmul.mubr.f32.gmra.mrb[0].mxu0 %v1092
        %v1295 = vpop.f32.mrb[0].mxu0
        %v1296 = vadd.f32 0.0, %v1295
        %v1297 = vpop.f32.mrb[0].mxu0
        %1298 = vmatprep.mubr.f32.mxu0 0.0
        %1299 = vmatmul.mubr.f32.gmra.mrb[0].mxu0 %v1095
        %v1300 = vpop.f32.mrb[0].mxu0
        %v1301 = vadd.f32 0.0, %v1300
        %v1302 = vpop.f32.mrb[0].mxu0
        %1303 = vmatprep.mubr.f32.mxu0 0.0
        %1304 = vmatmul.mubr.f32.gmra.mrb[0].mxu0 %v1098
        %v1305 = vpop.f32.mrb[0].mxu0
        %v1306 = vadd.f32 0.0, %v1305
        %v1307 = vpop.f32.mrb[0].mxu0
        %1308 = vmatprep.mubr.f32.mxu0 0.0
        %1309 = vmatmul.mubr.f32.gmra.mrb[0].mxu0 %v1101
        %v1310 = vpop.f32.mrb[0].mxu0
        %v1311 = vadd.f32 0.0, %v1310
        %v1312 = vpop.f32.mrb[0].mxu0
        %1313 = vmatprep.mubr.f32.mxu0 0.0
        %1314 = vmatmul.mubr.f32.gmra.mrb[0].mxu0 %v1104
        %v1315 = vpop.f32.mrb[0].mxu0
        %v1316 = vadd.f32 0.0, %v1315
        %v1317 = vpop.f32.mrb[0].mxu0
        %1318 = vmatprep.mubr.f32.mxu0 0.0
        %1319 = vmatmul.mubr.f32.gmra.mrb[0].mxu0 %v1107
        %v1320 = vpop.f32.mrb[0].mxu0
        %v1321 = vadd.f32 0.0, %v1320
        %v1322 = vpop.f32.mrb[0].mxu0
        %1323 = vmatprep.mubr.f32.mxu0 0.0
        %1324 = vmatmul.mubr.f32.gmra.mrb[0].mxu0 %v1110
        %v1325 = vpop.f32.mrb[0].mxu0
        %v1326 = vadd.f32 0.0, %v1325
        %v1327 = vpop.f32.mrb[0].mxu0
        %1328 = vmatprep.mubr.f32.mxu0 0.0
        %1329 = vmatmul.mubr.f32.gmra.mrb[0].mxu0 %v1113
        %v1330 = vpop.f32.mrb[0].mxu0
        %v1331 = vadd.f32 0.0, %v1330
        %v1332 = vpop.f32.mrb[0].mxu0
        %1333 = vmatprep.mubr.f32.mxu0 0.0
        %1334 = vmatmul.mubr.f32.gmra.mrb[0].mxu0 %v1116
        %v1335 = vpop.f32.mrb[0].mxu0
        %v1336 = vadd.f32 0.0, %v1335
        %v1337 = vpop.f32.mrb[0].mxu0
        %1338 = vmatprep.mubr.f32.mxu0 0.0
        %1339 = vmatmul.mubr.f32.gmra.mrb[0].mxu0 %v1119
        %v1340 = vpop.f32.mrb[0].mxu0
        %v1341 = vadd.f32 0.0, %v1340
        %v1342 = vpop.f32.mrb[0].mxu0
        %1343 = vmatprep.mubr.f32.mxu0 0.0
        %1344 = vmatmul.mubr.f32.gmra.mrb[0].mxu0 %v1122
        %v1345 = vpop.f32.mrb[0].mxu0
        %v1346 = vadd.f32 0.0, %v1345
        %v1347 = vpop.f32.mrb[0].mxu0
        %1348 = vmatprep.mubr.f32.mxu0 0.0
        %1349 = vmatmul.mubr.f32.gmra.mrb[0].mxu0 %v1125
        %v1350 = vpop.f32.mrb[0].mxu0
        %v1351 = vadd.f32 0.0, %v1350
        %v1352 = vpop.f32.mrb[0].mxu0
        %1353 = vmatprep.mubr.f32.mxu0 0.0
        %1354 = vmatmul.mubr.f32.gmra.mrb[0].mxu0 %v1128
        %v1355 = vpop.f32.mrb[0].mxu0
        %v1356 = vadd.f32 0.0, %v1355
        %v1357 = vpop.f32.mrb[0].mxu0
        %1358 = vmatprep.mubr.f32.mxu0 0.0
        %1359 = vmatmul.mubr.f32.gmra.mrb[0].mxu0 %v1131
        %v1360 = vpop.f32.mrb[0].mxu0
        %v1361 = vadd.f32 0.0, %v1360
        %v1362 = vpop.f32.mrb[0].mxu0
        %1363 = vmatprep.mubr.f32.mxu0 0.0
        %1364 = vmatmul.mubr.f32.gmra.mrb[0].mxu0 %v1134
        %v1365 = vpop.f32.mrb[0].mxu0
        %v1366 = vadd.f32 0.0, %v1365
        %v1367 = vpop.f32.mrb[0].mxu0
        %1368 = vmatprep.mubr.f32.mxu0 0.0
        %1369 = vmatmul.mubr.f32.gmra.mrb[0].mxu0 %v1137
        %v1370 = vpop.f32.mrb[0].mxu0
        %v1371 = vadd.f32 0.0, %v1370
        %v1372 = vpop.f32.mrb[0].mxu0
        %1373 = vmatprep.mubr.f32.mxu0 0.0
        %1374 = vmatmul.mubr.f32.gmra.mrb[0].mxu0 %v1140
        %v1375 = vpop.f32.mrb[0].mxu0
        %v1376 = vadd.f32 0.0, %v1375
        %v1377 = vpop.f32.mrb[0].mxu0
        %1378 = vmatprep.mubr.f32.mxu0 0.0
        %1379 = vmatmul.mubr.f32.gmra.mrb[0].mxu0 %v1143
        %v1380 = vpop.f32.mrb[0].mxu0
        %v1381 = vadd.f32 0.0, %v1380
        %v1382 = vpop.f32.mrb[0].mxu0
        %1383 = vmatprep.mubr.f32.mxu0 0.0
        %1384 = vmatmul.mubr.f32.gmra.mrb[0].mxu0 %v1146
        %v1385 = vpop.f32.mrb[0].mxu0
        %v1386 = vadd.f32 0.0, %v1385
        %v1387 = vpop.f32.mrb[0].mxu0
        %1388 = vmatprep.mubr.f32.mxu0 0.0
        %1389 = vmatmul.mubr.f32.gmra.mrb[0].mxu0 %v1149
        %v1390 = vpop.f32.mrb[0].mxu0
        %v1391 = vadd.f32 0.0, %v1390
        %v1392 = vpop.f32.mrb[0].mxu0
        %1393 = vmatprep.mubr.f32.mxu0 0.0
        %1394 = vmatmul.mubr.f32.gmra.mrb[0].mxu0 %v1152
        %v1395 = vpop.f32.mrb[0].mxu0
        %v1396 = vadd.f32 0.0, %v1395
        %v1397 = vpop.f32.mrb[0].mxu0
        %1398 = vdwg.mxu0
        %v1399 = vadd.f32 %v829, %v1221
        %v1400 = vadd.f32 %v834, %v1226
        %v1401 = vadd.f32 %v839, %v1231
        %v1402 = vadd.f32 %v844, %v1236
        %v1403 = vadd.f32 %v849, %v1241
        %v1404 = vadd.f32 %v854, %v1246
        %v1405 = vadd.f32 %v859, %v1251
        %v1406 = vadd.f32 %v864, %v1256
        %v1407 = vadd.f32 %v869, %v1261
        %v1408 = vadd.f32 %v874, %v1266
        %v1409 = vadd.f32 %v879, %v1271
        %v1410 = vadd.f32 %v884, %v1276
        %v1411 = vadd.f32 %v889, %v1281
        %v1412 = vadd.f32 %v894, %v1286
        %v1413 = vadd.f32 %v899, %v1291
        %v1414 = vadd.f32 %v904, %v1296
        %v1415 = vadd.f32 %v909, %v1301
        %v1416 = vadd.f32 %v914, %v1306
        %v1417 = vadd.f32 %v919, %v1311
        %v1418 = vadd.f32 %v924, %v1316
        %v1419 = vadd.f32 %v929, %v1321
        %v1420 = vadd.f32 %v934, %v1326
        %v1421 = vadd.f32 %v939, %v1331
        %v1422 = vadd.f32 %v944, %v1336
        %v1423 = vadd.f32 %v949, %v1341
        %v1424 = vadd.f32 %v954, %v1346
        %v1425 = vadd.f32 %v959, %v1351
        %v1426 = vadd.f32 %v964, %v1356
        %v1427 = vadd.f32 %v969, %v1361
        %v1428 = vadd.f32 %v974, %v1366
        %v1429 = vadd.f32 %v979, %v1371
        %v1430 = vadd.f32 %v984, %v1376
        %v1431 = vadd.f32 %v989, %v1381
        %v1432 = vadd.f32 %v994, %v1386
        %v1433 = vadd.f32 %v999, %v1391
        %v1434 = vadd.f32 %v1004, %v1396
        %v1435 = vld [vmem:[%s222 + $0x12] sm:$0xff]
        %v1436 = vld [vmem:[%s222 + $0x1a] sm:$0xff]
        %v1437 = vld [vmem:[%s222 + $0x22] sm:$0xff]
        %v1438 = vld [vmem:[%s222 + $0x2a] sm:$0xff]
        %v1439 = vld [vmem:[%s222 + $0x32] sm:$0xff]
        %v1440 = vld [vmem:[%s222 + $0x3a] sm:$0xff]
        %v1441 = vld [vmem:[%s222 + $0x42] sm:$0xff]
        %v1442 = vld [vmem:[%s222 + $0x4a] sm:$0xff]
        %v1443 = vld [vmem:[%s222 + $0x52] sm:$0xff]
        %v1444 = vld [vmem:[%s222 + $0x5a] sm:$0xff]
        %v1445 = vld [vmem:[%s222 + $0x62] sm:$0xff]
        %v1446 = vld [vmem:[%s222 + $0x6a] sm:$0xff]
        %v1447 = vld [vmem:[%s222 + $0x72] sm:$0xff]
        %v1448 = vld [vmem:[%s222 + $0x7a] sm:$0xff]
        %v1449 = vld [vmem:[%s222 + $0x82] sm:$0xff]
        %v1450 = vld [vmem:[%s222 + $0x8a] sm:$0xff]
        %v1451 = vld [vmem:[%s222 + $0x92] sm:$0xff]
        %v1452 = vld [vmem:[%s222 + $0x9a] sm:$0xff]
        %v1453 = vld [vmem:[%s222 + $0xa2] sm:$0xff]
        %v1454 = vld [vmem:[%s222 + $0xaa] sm:$0xff]
        %v1455 = vld [vmem:[%s222 + $0xb2] sm:$0xff]
        %v1456 = vld [vmem:[%s222 + $0xba] sm:$0xff]
        %v1457 = vld [vmem:[%s222 + $0xc2] sm:$0xff]
        %v1458 = vld [vmem:[%s222 + $0xca] sm:$0xff]
        %v1459 = vld [vmem:[%s222 + $0xd2] sm:$0xff]
        %v1460 = vld [vmem:[%s222 + $0xda] sm:$0xff]
        %v1461 = vld [vmem:[%s222 + $0xe2] sm:$0xff]
        %v1462 = vld [vmem:[%s222 + $0xea] sm:$0xff]
        %v1463 = vld [vmem:[%s222 + $0xf2] sm:$0xff]
        %v1464 = vld [vmem:[%s222 + $0xfa] sm:$0xff]
        %v1465 = vld [vmem:[%s222 + $0x102] sm:$0xff]
        %v1466 = vld [vmem:[%s222 + $0x10a] sm:$0xff]
        %v1467 = vld [vmem:[%s222 + $0x112] sm:$0xff]
        %v1468 = vld [vmem:[%s222 + $0x11a] sm:$0xff]
        %v1469 = vld [vmem:[%s222 + $0x122] sm:$0xff]
        %v1470 = vld [vmem:[%s222 + $0x12a] sm:$0xff]
        %s1471 = scalar_lea.vmem %s1, 48
        %v1472 = vld [vmem:[%s1471] sm:$0xff]
        %v1473 = vld [vmem:[%s1471 + $0x8] sm:$0xff]
        %v1475 = vsel %vm300, %v1435, 0
        %v1478 = vsel %vm300, %v1436, 0
        %v1481 = vsel %vm300, %v1437, 0
        %v1484 = vsel %vm300, %v1438, 0
        %v1487 = vsel %vm300, %v1439, 0
        %v1490 = vsel %vm300, %v1440, 0
        %v1493 = vsel %vm300, %v1441, 0
        %v1496 = vsel %vm300, %v1442, 0
        %v1499 = vsel %vm300, %v1443, 0
        %v1502 = vsel %vm300, %v1444, 0
        %v1505 = vsel %vm300, %v1445, 0
        %v1508 = vsel %vm300, %v1446, 0
        %v1511 = vsel %vm300, %v1447, 0
        %v1514 = vsel %vm300, %v1448, 0
        %v1517 = vsel %vm300, %v1449, 0
        %v1520 = vsel %vm300, %v1450, 0
        %v1523 = vsel %vm300, %v1451, 0
        %v1526 = vsel %vm300, %v1452, 0
        %v1529 = vsel %vm300, %v1453, 0
        %v1532 = vsel %vm300, %v1454, 0
        %v1535 = vsel %vm300, %v1455, 0
        %v1538 = vsel %vm300, %v1456, 0
        %v1541 = vsel %vm300, %v1457, 0
        %v1544 = vsel %vm300, %v1458, 0
        %v1547 = vsel %vm300, %v1459, 0
        %v1550 = vsel %vm300, %v1460, 0
        %v1553 = vsel %vm300, %v1461, 0
        %v1556 = vsel %vm300, %v1462, 0
        %v1559 = vsel %vm300, %v1463, 0
        %v1562 = vsel %vm300, %v1464, 0
        %v1565 = vsel %vm300, %v1465, 0
        %v1568 = vsel %vm300, %v1466, 0
        %v1571 = vsel %vm300, %v1467, 0
        %v1574 = vsel %vm300, %v1468, 0
        %v1577 = vsel %vm300, %v1469, 0
        %v1580 = vsel %vm300, %v1470, 0
        %1582 = vmatprep.subr.mxu0 0.0
        %1583 = vmatpush1.msra.mxu0 %v1472
        %1584 = vmatprep.subr.mxu0 0.0
        %1585 = vmatpush1.msra.mxu0 %v1473
        %1586 = vmatprep.subr.mxu0 0.0
        %1587 = vmatpush1.msra.mxu0 0.0
        %1588 = vmatprep.subr.mxu0 0.0
        %1589 = vmatpush1.msra.mxu0 0.0
        %1590 = vmatprep.subr.mxu0 0.0
        %1591 = vmatpush1.msra.mxu0 0.0
        %1592 = vmatprep.subr.mxu0 0.0
        %1593 = vmatpush1.msra.mxu0 0.0
        %1594 = vmatprep.subr.mxu0 0.0
        %1595 = vmatpush1.msra.mxu0 0.0
        %1596 = vmatprep.subr.mxu0 0.0
        %1597 = vmatpush1.msra.mxu0 0.0
        %1598 = vmatprep.subr.mxu0 0.0
        %1599 = vmatpush1.msra.mxu0 0.0
        %1600 = vmatprep.subr.mxu0 0.0
        %1601 = vmatpush1.msra.mxu0 0.0
        %1602 = vmatprep.subr.mxu0 0.0
        %1603 = vmatpush1.msra.mxu0 0.0
        %1604 = vmatprep.subr.mxu0 0.0
        %1605 = vmatpush1.msra.mxu0 0.0
        %1606 = vmatprep.subr.mxu0 0.0
        %1607 = vmatpush1.msra.mxu0 0.0
        %1608 = vmatprep.subr.mxu0 0.0
        %1609 = vmatpush1.msra.mxu0 0.0
        %1610 = vmatprep.subr.mxu0 0.0
        %1611 = vmatpush1.msra.mxu0 0.0
        %1612 = vmatprep.subr.mxu0 0.0
        %1613 = vmatpush1.msra.mxu0 0.0
        %1614 = vmatprep.subr.mxu0 0.0
        %1615 = vmatpush1.msra.mxu0 0.0
        %1616 = vmatprep.subr.mxu0 0.0
        %1617 = vmatpush1.msra.mxu0 0.0
        %1618 = vmatprep.subr.mxu0 0.0
        %1619 = vmatpush1.msra.mxu0 0.0
        %1620 = vmatprep.subr.mxu0 0.0
        %1621 = vmatpush1.msra.mxu0 0.0
        %1622 = vmatprep.subr.mxu0 0.0
        %1623 = vmatpush1.msra.mxu0 0.0
        %1624 = vmatprep.subr.mxu0 0.0
        %1625 = vmatpush1.msra.mxu0 0.0
        %1626 = vmatprep.subr.mxu0 0.0
        %1627 = vmatpush1.msra.mxu0 0.0
        %1628 = vmatprep.subr.mxu0 0.0
        %1629 = vmatpush1.msra.mxu0 0.0
        %1630 = vmatprep.subr.mxu0 0.0
        %1631 = vmatpush1.msra.mxu0 0.0
        %1632 = vmatprep.subr.mxu0 0.0
        %1633 = vmatpush1.msra.mxu0 0.0
        %1634 = vmatprep.subr.mxu0 0.0
        %1635 = vmatpush1.msra.mxu0 0.0
        %1636 = vmatprep.subr.mxu0 0.0
        %1637 = vmatpush1.msra.mxu0 0.0
        %1638 = vmatprep.subr.mxu0 0.0
        %1639 = vmatpush1.msra.mxu0 0.0
        %1640 = vmatprep.subr.mxu0 0.0
        %1641 = vmatpush1.msra.mxu0 0.0
        %1642 = vmatprep.subr.mxu0 0.0
        %1643 = vmatpush1.msra.mxu0 0.0
        %1644 = vmatprep.subr.mxu0 0.0
        %1645 = vmatpush1.msra.mxu0 0.0
        %1646 = vmatprep.mubr.f32.mxu0 0.0
        %1647 = vmatmul.mubr.f32.gmra.mrb[0].mxu0 %v1475
        %v1648 = vpop.f32.mrb[0].mxu0
        %v1649 = vadd.f32 0.0, %v1648
        %v1650 = vpop.f32.mrb[0].mxu0
        %1651 = vmatprep.mubr.f32.mxu0 0.0
        %1652 = vmatmul.mubr.f32.gmra.mrb[0].mxu0 %v1478
        %v1653 = vpop.f32.mrb[0].mxu0
        %v1654 = vadd.f32 0.0, %v1653
        %v1655 = vpop.f32.mrb[0].mxu0
        %1656 = vmatprep.mubr.f32.mxu0 0.0
        %1657 = vmatmul.mubr.f32.gmra.mrb[0].mxu0 %v1481
        %v1658 = vpop.f32.mrb[0].mxu0
        %v1659 = vadd.f32 0.0, %v1658
        %v1660 = vpop.f32.mrb[0].mxu0
        %1661 = vmatprep.mubr.f32.mxu0 0.0
        %1662 = vmatmul.mubr.f32.gmra.mrb[0].mxu0 %v1484
        %v1663 = vpop.f32.mrb[0].mxu0
        %v1664 = vadd.f32 0.0, %v1663
        %v1665 = vpop.f32.mrb[0].mxu0
        %1666 = vmatprep.mubr.f32.mxu0 0.0
        %1667 = vmatmul.mubr.f32.gmra.mrb[0].mxu0 %v1487
        %v1668 = vpop.f32.mrb[0].mxu0
        %v1669 = vadd.f32 0.0, %v1668
        %v1670 = vpop.f32.mrb[0].mxu0
        %1671 = vmatprep.mubr.f32.mxu0 0.0
        %1672 = vmatmul.mubr.f32.gmra.mrb[0].mxu0 %v1490
        %v1673 = vpop.f32.mrb[0].mxu0
        %v1674 = vadd.f32 0.0, %v1673
        %v1675 = vpop.f32.mrb[0].mxu0
        %1676 = vmatprep.mubr.f32.mxu0 0.0
        %1677 = vmatmul.mubr.f32.gmra.mrb[0].mxu0 %v1493
        %v1678 = vpop.f32.mrb[0].mxu0
        %v1679 = vadd.f32 0.0, %v1678
        %v1680 = vpop.f32.mrb[0].mxu0
        %1681 = vmatprep.mubr.f32.mxu0 0.0
        %1682 = vmatmul.mubr.f32.gmra.mrb[0].mxu0 %v1496
        %v1683 = vpop.f32.mrb[0].mxu0
        %v1684 = vadd.f32 0.0, %v1683
        %v1685 = vpop.f32.mrb[0].mxu0
        %1686 = vmatprep.mubr.f32.mxu0 0.0
        %1687 = vmatmul.mubr.f32.gmra.mrb[0].mxu0 %v1499
        %v1688 = vpop.f32.mrb[0].mxu0
        %v1689 = vadd.f32 0.0, %v1688
        %v1690 = vpop.f32.mrb[0].mxu0
        %1691 = vmatprep.mubr.f32.mxu0 0.0
        %1692 = vmatmul.mubr.f32.gmra.mrb[0].mxu0 %v1502
        %v1693 = vpop.f32.mrb[0].mxu0
        %v1694 = vadd.f32 0.0, %v1693
        %v1695 = vpop.f32.mrb[0].mxu0
        %1696 = vmatprep.mubr.f32.mxu0 0.0
        %1697 = vmatmul.mubr.f32.gmra.mrb[0].mxu0 %v1505
        %v1698 = vpop.f32.mrb[0].mxu0
        %v1699 = vadd.f32 0.0, %v1698
        %v1700 = vpop.f32.mrb[0].mxu0
        %1701 = vmatprep.mubr.f32.mxu0 0.0
        %1702 = vmatmul.mubr.f32.gmra.mrb[0].mxu0 %v1508
        %v1703 = vpop.f32.mrb[0].mxu0
        %v1704 = vadd.f32 0.0, %v1703
        %v1705 = vpop.f32.mrb[0].mxu0
        %1706 = vmatprep.mubr.f32.mxu0 0.0
        %1707 = vmatmul.mubr.f32.gmra.mrb[0].mxu0 %v1511
        %v1708 = vpop.f32.mrb[0].mxu0
        %v1709 = vadd.f32 0.0, %v1708
        %v1710 = vpop.f32.mrb[0].mxu0
        %1711 = vmatprep.mubr.f32.mxu0 0.0
        %1712 = vmatmul.mubr.f32.gmra.mrb[0].mxu0 %v1514
        %v1713 = vpop.f32.mrb[0].mxu0
        %v1714 = vadd.f32 0.0, %v1713
        %v1715 = vpop.f32.mrb[0].mxu0
        %1716 = vmatprep.mubr.f32.mxu0 0.0
        %1717 = vmatmul.mubr.f32.gmra.mrb[0].mxu0 %v1517
        %v1718 = vpop.f32.mrb[0].mxu0
        %v1719 = vadd.f32 0.0, %v1718
        %v1720 = vpop.f32.mrb[0].mxu0
        %1721 = vmatprep.mubr.f32.mxu0 0.0
        %1722 = vmatmul.mubr.f32.gmra.mrb[0].mxu0 %v1520
        %v1723 = vpop.f32.mrb[0].mxu0
        %v1724 = vadd.f32 0.0, %v1723
        %v1725 = vpop.f32.mrb[0].mxu0
        %1726 = vmatprep.mubr.f32.mxu0 0.0
        %1727 = vmatmul.mubr.f32.gmra.mrb[0].mxu0 %v1523
        %v1728 = vpop.f32.mrb[0].mxu0
        %v1729 = vadd.f32 0.0, %v1728
        %v1730 = vpop.f32.mrb[0].mxu0
        %1731 = vmatprep.mubr.f32.mxu0 0.0
        %1732 = vmatmul.mubr.f32.gmra.mrb[0].mxu0 %v1526
        %v1733 = vpop.f32.mrb[0].mxu0
        %v1734 = vadd.f32 0.0, %v1733
        %v1735 = vpop.f32.mrb[0].mxu0
        %1736 = vmatprep.mubr.f32.mxu0 0.0
        %1737 = vmatmul.mubr.f32.gmra.mrb[0].mxu0 %v1529
        %v1738 = vpop.f32.mrb[0].mxu0
        %v1739 = vadd.f32 0.0, %v1738
        %v1740 = vpop.f32.mrb[0].mxu0
        %1741 = vmatprep.mubr.f32.mxu0 0.0
        %1742 = vmatmul.mubr.f32.gmra.mrb[0].mxu0 %v1532
        %v1743 = vpop.f32.mrb[0].mxu0
        %v1744 = vadd.f32 0.0, %v1743
        %v1745 = vpop.f32.mrb[0].mxu0
        %1746 = vmatprep.mubr.f32.mxu0 0.0
        %1747 = vmatmul.mubr.f32.gmra.mrb[0].mxu0 %v1535
        %v1748 = vpop.f32.mrb[0].mxu0
        %v1749 = vadd.f32 0.0, %v1748
        %v1750 = vpop.f32.mrb[0].mxu0
        %1751 = vmatprep.mubr.f32.mxu0 0.0
        %1752 = vmatmul.mubr.f32.gmra.mrb[0].mxu0 %v1538
        %v1753 = vpop.f32.mrb[0].mxu0
        %v1754 = vadd.f32 0.0, %v1753
        %v1755 = vpop.f32.mrb[0].mxu0
        %1756 = vmatprep.mubr.f32.mxu0 0.0
        %1757 = vmatmul.mubr.f32.gmra.mrb[0].mxu0 %v1541
        %v1758 = vpop.f32.mrb[0].mxu0
        %v1759 = vadd.f32 0.0, %v1758
        %v1760 = vpop.f32.mrb[0].mxu0
        %1761 = vmatprep.mubr.f32.mxu0 0.0
        %1762 = vmatmul.mubr.f32.gmra.mrb[0].mxu0 %v1544
        %v1763 = vpop.f32.mrb[0].mxu0
        %v1764 = vadd.f32 0.0, %v1763
        %v1765 = vpop.f32.mrb[0].mxu0
        %1766 = vmatprep.mubr.f32.mxu0 0.0
        %1767 = vmatmul.mubr.f32.gmra.mrb[0].mxu0 %v1547
        %v1768 = vpop.f32.mrb[0].mxu0
        %v1769 = vadd.f32 0.0, %v1768
        %v1770 = vpop.f32.mrb[0].mxu0
        %1771 = vmatprep.mubr.f32.mxu0 0.0
        %1772 = vmatmul.mubr.f32.gmra.mrb[0].mxu0 %v1550
        %v1773 = vpop.f32.mrb[0].mxu0
        %v1774 = vadd.f32 0.0, %v1773
        %v1775 = vpop.f32.mrb[0].mxu0
        %1776 = vmatprep.mubr.f32.mxu0 0.0
        %1777 = vmatmul.mubr.f32.gmra.mrb[0].mxu0 %v1553
        %v1778 = vpop.f32.mrb[0].mxu0
        %v1779 = vadd.f32 0.0, %v1778
        %v1780 = vpop.f32.mrb[0].mxu0
        %1781 = vmatprep.mubr.f32.mxu0 0.0
        %1782 = vmatmul.mubr.f32.gmra.mrb[0].mxu0 %v1556
        %v1783 = vpop.f32.mrb[0].mxu0
        %v1784 = vadd.f32 0.0, %v1783
        %v1785 = vpop.f32.mrb[0].mxu0
        %1786 = vmatprep.mubr.f32.mxu0 0.0
        %1787 = vmatmul.mubr.f32.gmra.mrb[0].mxu0 %v1559
        %v1788 = vpop.f32.mrb[0].mxu0
        %v1789 = vadd.f32 0.0, %v1788
        %v1790 = vpop.f32.mrb[0].mxu0
        %1791 = vmatprep.mubr.f32.mxu0 0.0
        %1792 = vmatmul.mubr.f32.gmra.mrb[0].mxu0 %v1562
        %v1793 = vpop.f32.mrb[0].mxu0
        %v1794 = vadd.f32 0.0, %v1793
        %v1795 = vpop.f32.mrb[0].mxu0
        %1796 = vmatprep.mubr.f32.mxu0 0.0
        %1797 = vmatmul.mubr.f32.gmra.mrb[0].mxu0 %v1565
        %v1798 = vpop.f32.mrb[0].mxu0
        %v1799 = vadd.f32 0.0, %v1798
        %v1800 = vpop.f32.mrb[0].mxu0
        %1801 = vmatprep.mubr.f32.mxu0 0.0
        %1802 = vmatmul.mubr.f32.gmra.mrb[0].mxu0 %v1568
        %v1803 = vpop.f32.mrb[0].mxu0
        %v1804 = vadd.f32 0.0, %v1803
        %v1805 = vpop.f32.mrb[0].mxu0
        %1806 = vmatprep.mubr.f32.mxu0 0.0
        %1807 = vmatmul.mubr.f32.gmra.mrb[0].mxu0 %v1571
        %v1808 = vpop.f32.mrb[0].mxu0
        %v1809 = vadd.f32 0.0, %v1808
        %v1810 = vpop.f32.mrb[0].mxu0
        %1811 = vmatprep.mubr.f32.mxu0 0.0
        %1812 = vmatmul.mubr.f32.gmra.mrb[0].mxu0 %v1574
        %v1813 = vpop.f32.mrb[0].mxu0
        %v1814 = vadd.f32 0.0, %v1813
        %v1815 = vpop.f32.mrb[0].mxu0
        %1816 = vmatprep.mubr.f32.mxu0 0.0
        %1817 = vmatmul.mubr.f32.gmra.mrb[0].mxu0 %v1577
        %v1818 = vpop.f32.mrb[0].mxu0
        %v1819 = vadd.f32 0.0, %v1818
        %v1820 = vpop.f32.mrb[0].mxu0
        %1821 = vmatprep.mubr.f32.mxu0 0.0
        %1822 = vmatmul.mubr.f32.gmra.mrb[0].mxu0 %v1580
        %v1823 = vpop.f32.mrb[0].mxu0
        %v1824 = vadd.f32 0.0, %v1823
        %v1825 = vpop.f32.mrb[0].mxu0
        %1826 = vdwg.mxu0
        %v1827 = vadd.f32 %v1399, %v1649
        %v1828 = vadd.f32 %v1400, %v1654
        %v1829 = vadd.f32 %v1401, %v1659
        %v1830 = vadd.f32 %v1402, %v1664
        %v1831 = vadd.f32 %v1403, %v1669
        %v1832 = vadd.f32 %v1404, %v1674
        %v1833 = vadd.f32 %v1405, %v1679
        %v1834 = vadd.f32 %v1406, %v1684
        %v1835 = vadd.f32 %v1407, %v1689
        %v1836 = vadd.f32 %v1408, %v1694
        %v1837 = vadd.f32 %v1409, %v1699
        %v1838 = vadd.f32 %v1410, %v1704
        %v1839 = vadd.f32 %v1411, %v1709
        %v1840 = vadd.f32 %v1412, %v1714
        %v1841 = vadd.f32 %v1413, %v1719
        %v1842 = vadd.f32 %v1414, %v1724
        %v1843 = vadd.f32 %v1415, %v1729
        %v1844 = vadd.f32 %v1416, %v1734
        %v1845 = vadd.f32 %v1417, %v1739
        %v1846 = vadd.f32 %v1418, %v1744
        %v1847 = vadd.f32 %v1419, %v1749
        %v1848 = vadd.f32 %v1420, %v1754
        %v1849 = vadd.f32 %v1421, %v1759
        %v1850 = vadd.f32 %v1422, %v1764
        %v1851 = vadd.f32 %v1423, %v1769
        %v1852 = vadd.f32 %v1424, %v1774
        %v1853 = vadd.f32 %v1425, %v1779
        %v1854 = vadd.f32 %v1426, %v1784
        %v1855 = vadd.f32 %v1427, %v1789
        %v1856 = vadd.f32 %v1428, %v1794
        %v1857 = vadd.f32 %v1429, %v1799
        %v1858 = vadd.f32 %v1430, %v1804
        %v1859 = vadd.f32 %v1431, %v1809
        %v1860 = vadd.f32 %v1432, %v1814
        %v1861 = vadd.f32 %v1433, %v1819
        %v1862 = vadd.f32 %v1434, %v1824
        %v1863 = vld [vmem:[%s222 + $0x13] sm:$0xff]
        %v1864 = vld [vmem:[%s222 + $0x1b] sm:$0xff]
        %v1865 = vld [vmem:[%s222 + $0x23] sm:$0xff]
        %v1866 = vld [vmem:[%s222 + $0x2b] sm:$0xff]
        %v1867 = vld [vmem:[%s222 + $0x33] sm:$0xff]
        %v1868 = vld [vmem:[%s222 + $0x3b] sm:$0xff]
        %v1869 = vld [vmem:[%s222 + $0x43] sm:$0xff]
        %v1870 = vld [vmem:[%s222 + $0x4b] sm:$0xff]
        %v1871 = vld [vmem:[%s222 + $0x53] sm:$0xff]
        %v1872 = vld [vmem:[%s222 + $0x5b] sm:$0xff]
        %v1873 = vld [vmem:[%s222 + $0x63] sm:$0xff]
        %v1874 = vld [vmem:[%s222 + $0x6b] sm:$0xff]
        %v1875 = vld [vmem:[%s222 + $0x73] sm:$0xff]
        %v1876 = vld [vmem:[%s222 + $0x7b] sm:$0xff]
        %v1877 = vld [vmem:[%s222 + $0x83] sm:$0xff]
        %v1878 = vld [vmem:[%s222 + $0x8b] sm:$0xff]
        %v1879 = vld [vmem:[%s222 + $0x93] sm:$0xff]
        %v1880 = vld [vmem:[%s222 + $0x9b] sm:$0xff]
        %v1881 = vld [vmem:[%s222 + $0xa3] sm:$0xff]
        %v1882 = vld [vmem:[%s222 + $0xab] sm:$0xff]
        %v1883 = vld [vmem:[%s222 + $0xb3] sm:$0xff]
        %v1884 = vld [vmem:[%s222 + $0xbb] sm:$0xff]
        %v1885 = vld [vmem:[%s222 + $0xc3] sm:$0xff]
        %v1886 = vld [vmem:[%s222 + $0xcb] sm:$0xff]
        %v1887 = vld [vmem:[%s222 + $0xd3] sm:$0xff]
        %v1888 = vld [vmem:[%s222 + $0xdb] sm:$0xff]
        %v1889 = vld [vmem:[%s222 + $0xe3] sm:$0xff]
        %v1890 = vld [vmem:[%s222 + $0xeb] sm:$0xff]
        %v1891 = vld [vmem:[%s222 + $0xf3] sm:$0xff]
        %v1892 = vld [vmem:[%s222 + $0xfb] sm:$0xff]
        %v1893 = vld [vmem:[%s222 + $0x103] sm:$0xff]
        %v1894 = vld [vmem:[%s222 + $0x10b] sm:$0xff]
        %v1895 = vld [vmem:[%s222 + $0x113] sm:$0xff]
        %v1896 = vld [vmem:[%s222 + $0x11b] sm:$0xff]
        %v1897 = vld [vmem:[%s222 + $0x123] sm:$0xff]
        %v1898 = vld [vmem:[%s222 + $0x12b] sm:$0xff]
        %s1899 = scalar_lea.vmem %s1, 64
        %v1900 = vld [vmem:[%s1899] sm:$0xff]
        %v1901 = vld [vmem:[%s1899 + $0x8] sm:$0xff]
        %v1903 = vsel %vm300, %v1863, 0
        %v1906 = vsel %vm300, %v1864, 0
        %v1909 = vsel %vm300, %v1865, 0
        %v1912 = vsel %vm300, %v1866, 0
        %v1915 = vsel %vm300, %v1867, 0
        %v1918 = vsel %vm300, %v1868, 0
        %v1921 = vsel %vm300, %v1869, 0
        %v1924 = vsel %vm300, %v1870, 0
        %v1927 = vsel %vm300, %v1871, 0
        %v1930 = vsel %vm300, %v1872, 0
        %v1933 = vsel %vm300, %v1873, 0
        %v1936 = vsel %vm300, %v1874, 0
        %v1939 = vsel %vm300, %v1875, 0
        %v1942 = vsel %vm300, %v1876, 0
        %v1945 = vsel %vm300, %v1877, 0
        %v1948 = vsel %vm300, %v1878, 0
        %v1951 = vsel %vm300, %v1879, 0
        %v1954 = vsel %vm300, %v1880, 0
        %v1957 = vsel %vm300, %v1881, 0
        %v1960 = vsel %vm300, %v1882, 0
        %v1963 = vsel %vm300, %v1883, 0
        %v1966 = vsel %vm300, %v1884, 0
        %v1969 = vsel %vm300, %v1885, 0
        %v1972 = vsel %vm300, %v1886, 0
        %v1975 = vsel %vm300, %v1887, 0
        %v1978 = vsel %vm300, %v1888, 0
        %v1981 = vsel %vm300, %v1889, 0
        %v1984 = vsel %vm300, %v1890, 0
        %v1987 = vsel %vm300, %v1891, 0
        %v1990 = vsel %vm300, %v1892, 0
        %v1993 = vsel %vm300, %v1893, 0
        %v1996 = vsel %vm300, %v1894, 0
        %v1999 = vsel %vm300, %v1895, 0
        %v2002 = vsel %vm300, %v1896, 0
        %v2005 = vsel %vm300, %v1897, 0
        %v2008 = vsel %vm300, %v1898, 0
        %2010 = vmatprep.subr.mxu0 0.0
        %2011 = vmatpush1.msra.mxu0 %v1900
        %2012 = vmatprep.subr.mxu0 0.0
        %2013 = vmatpush1.msra.mxu0 %v1901
        %2014 = vmatprep.subr.mxu0 0.0
        %2015 = vmatpush1.msra.mxu0 0.0
        %2016 = vmatprep.subr.mxu0 0.0
        %2017 = vmatpush1.msra.mxu0 0.0
        %2018 = vmatprep.subr.mxu0 0.0
        %2019 = vmatpush1.msra.mxu0 0.0
        %2020 = vmatprep.subr.mxu0 0.0
        %2021 = vmatpush1.msra.mxu0 0.0
        %2022 = vmatprep.subr.mxu0 0.0
        %2023 = vmatpush1.msra.mxu0 0.0
        %2024 = vmatprep.subr.mxu0 0.0
        %2025 = vmatpush1.msra.mxu0 0.0
        %2026 = vmatprep.subr.mxu0 0.0
        %2027 = vmatpush1.msra.mxu0 0.0
        %2028 = vmatprep.subr.mxu0 0.0
        %2029 = vmatpush1.msra.mxu0 0.0
        %2030 = vmatprep.subr.mxu0 0.0
        %2031 = vmatpush1.msra.mxu0 0.0
        %2032 = vmatprep.subr.mxu0 0.0
        %2033 = vmatpush1.msra.mxu0 0.0
        %2034 = vmatprep.subr.mxu0 0.0
        %2035 = vmatpush1.msra.mxu0 0.0
        %2036 = vmatprep.subr.mxu0 0.0
        %2037 = vmatpush1.msra.mxu0 0.0
        %2038 = vmatprep.subr.mxu0 0.0
        %2039 = vmatpush1.msra.mxu0 0.0
        %2040 = vmatprep.subr.mxu0 0.0
        %2041 = vmatpush1.msra.mxu0 0.0
        %2042 = vmatprep.subr.mxu0 0.0
        %2043 = vmatpush1.msra.mxu0 0.0
        %2044 = vmatprep.subr.mxu0 0.0
        %2045 = vmatpush1.msra.mxu0 0.0
        %2046 = vmatprep.subr.mxu0 0.0
        %2047 = vmatpush1.msra.mxu0 0.0
        %2048 = vmatprep.subr.mxu0 0.0
        %2049 = vmatpush1.msra.mxu0 0.0
        %2050 = vmatprep.subr.mxu0 0.0
        %2051 = vmatpush1.msra.mxu0 0.0
        %2052 = vmatprep.subr.mxu0 0.0
        %2053 = vmatpush1.msra.mxu0 0.0
        %2054 = vmatprep.subr.mxu0 0.0
        %2055 = vmatpush1.msra.mxu0 0.0
        %2056 = vmatprep.subr.mxu0 0.0
        %2057 = vmatpush1.msra.mxu0 0.0
        %2058 = vmatprep.subr.mxu0 0.0
        %2059 = vmatpush1.msra.mxu0 0.0
        %2060 = vmatprep.subr.mxu0 0.0
        %2061 = vmatpush1.msra.mxu0 0.0
        %2062 = vmatprep.subr.mxu0 0.0
        %2063 = vmatpush1.msra.mxu0 0.0
        %2064 = vmatprep.subr.mxu0 0.0
        %2065 = vmatpush1.msra.mxu0 0.0
        %2066 = vmatprep.subr.mxu0 0.0
        %2067 = vmatpush1.msra.mxu0 0.0
        %2068 = vmatprep.subr.mxu0 0.0
        %2069 = vmatpush1.msra.mxu0 0.0
        %2070 = vmatprep.subr.mxu0 0.0
        %2071 = vmatpush1.msra.mxu0 0.0
        %2072 = vmatprep.subr.mxu0 0.0
        %2073 = vmatpush1.msra.mxu0 0.0
        %2074 = vmatprep.mubr.f32.mxu0 0.0
        %2075 = vmatmul.mubr.f32.gmra.mrb[0].mxu0 %v1903
        %v2076 = vpop.f32.mrb[0].mxu0
        %v2077 = vadd.f32 0.0, %v2076
        %v2078 = vpop.f32.mrb[0].mxu0
        %2079 = vmatprep.mubr.f32.mxu0 0.0
        %2080 = vmatmul.mubr.f32.gmra.mrb[0].mxu0 %v1906
        %v2081 = vpop.f32.mrb[0].mxu0
        %v2082 = vadd.f32 0.0, %v2081
        %v2083 = vpop.f32.mrb[0].mxu0
        %2084 = vmatprep.mubr.f32.mxu0 0.0
        %2085 = vmatmul.mubr.f32.gmra.mrb[0].mxu0 %v1909
        %v2086 = vpop.f32.mrb[0].mxu0
        %v2087 = vadd.f32 0.0, %v2086
        %v2088 = vpop.f32.mrb[0].mxu0
        %2089 = vmatprep.mubr.f32.mxu0 0.0
        %2090 = vmatmul.mubr.f32.gmra.mrb[0].mxu0 %v1912
        %v2091 = vpop.f32.mrb[0].mxu0
        %v2092 = vadd.f32 0.0, %v2091
        %v2093 = vpop.f32.mrb[0].mxu0
        %2094 = vmatprep.mubr.f32.mxu0 0.0
        %2095 = vmatmul.mubr.f32.gmra.mrb[0].mxu0 %v1915
        %v2096 = vpop.f32.mrb[0].mxu0
        %v2097 = vadd.f32 0.0, %v2096
        %v2098 = vpop.f32.mrb[0].mxu0
        %2099 = vmatprep.mubr.f32.mxu0 0.0
        %2100 = vmatmul.mubr.f32.gmra.mrb[0].mxu0 %v1918
        %v2101 = vpop.f32.mrb[0].mxu0
        %v2102 = vadd.f32 0.0, %v2101
        %v2103 = vpop.f32.mrb[0].mxu0
        %2104 = vmatprep.mubr.f32.mxu0 0.0
        %2105 = vmatmul.mubr.f32.gmra.mrb[0].mxu0 %v1921
        %v2106 = vpop.f32.mrb[0].mxu0
        %v2107 = vadd.f32 0.0, %v2106
        %v2108 = vpop.f32.mrb[0].mxu0
        %2109 = vmatprep.mubr.f32.mxu0 0.0
        %2110 = vmatmul.mubr.f32.gmra.mrb[0].mxu0 %v1924
        %v2111 = vpop.f32.mrb[0].mxu0
        %v2112 = vadd.f32 0.0, %v2111
        %v2113 = vpop.f32.mrb[0].mxu0
        %2114 = vmatprep.mubr.f32.mxu0 0.0
        %2115 = vmatmul.mubr.f32.gmra.mrb[0].mxu0 %v1927
        %v2116 = vpop.f32.mrb[0].mxu0
        %v2117 = vadd.f32 0.0, %v2116
        %v2118 = vpop.f32.mrb[0].mxu0
        %2119 = vmatprep.mubr.f32.mxu0 0.0
        %2120 = vmatmul.mubr.f32.gmra.mrb[0].mxu0 %v1930
        %v2121 = vpop.f32.mrb[0].mxu0
        %v2122 = vadd.f32 0.0, %v2121
        %v2123 = vpop.f32.mrb[0].mxu0
        %2124 = vmatprep.mubr.f32.mxu0 0.0
        %2125 = vmatmul.mubr.f32.gmra.mrb[0].mxu0 %v1933
        %v2126 = vpop.f32.mrb[0].mxu0
        %v2127 = vadd.f32 0.0, %v2126
        %v2128 = vpop.f32.mrb[0].mxu0
        %2129 = vmatprep.mubr.f32.mxu0 0.0
        %2130 = vmatmul.mubr.f32.gmra.mrb[0].mxu0 %v1936
        %v2131 = vpop.f32.mrb[0].mxu0
        %v2132 = vadd.f32 0.0, %v2131
        %v2133 = vpop.f32.mrb[0].mxu0
        %2134 = vmatprep.mubr.f32.mxu0 0.0
        %2135 = vmatmul.mubr.f32.gmra.mrb[0].mxu0 %v1939
        %v2136 = vpop.f32.mrb[0].mxu0
        %v2137 = vadd.f32 0.0, %v2136
        %v2138 = vpop.f32.mrb[0].mxu0
        %2139 = vmatprep.mubr.f32.mxu0 0.0
        %2140 = vmatmul.mubr.f32.gmra.mrb[0].mxu0 %v1942
        %v2141 = vpop.f32.mrb[0].mxu0
        %v2142 = vadd.f32 0.0, %v2141
        %v2143 = vpop.f32.mrb[0].mxu0
        %2144 = vmatprep.mubr.f32.mxu0 0.0
        %2145 = vmatmul.mubr.f32.gmra.mrb[0].mxu0 %v1945
        %v2146 = vpop.f32.mrb[0].mxu0
        %v2147 = vadd.f32 0.0, %v2146
        %v2148 = vpop.f32.mrb[0].mxu0
        %2149 = vmatprep.mubr.f32.mxu0 0.0
        %2150 = vmatmul.mubr.f32.gmra.mrb[0].mxu0 %v1948
        %v2151 = vpop.f32.mrb[0].mxu0
        %v2152 = vadd.f32 0.0, %v2151
        %v2153 = vpop.f32.mrb[0].mxu0
        %2154 = vmatprep.mubr.f32.mxu0 0.0
        %2155 = vmatmul.mubr.f32.gmra.mrb[0].mxu0 %v1951
        %v2156 = vpop.f32.mrb[0].mxu0
        %v2157 = vadd.f32 0.0, %v2156
        %v2158 = vpop.f32.mrb[0].mxu0
        %2159 = vmatprep.mubr.f32.mxu0 0.0
        %2160 = vmatmul.mubr.f32.gmra.mrb[0].mxu0 %v1954
        %v2161 = vpop.f32.mrb[0].mxu0
        %v2162 = vadd.f32 0.0, %v2161
        %v2163 = vpop.f32.mrb[0].mxu0
        %2164 = vmatprep.mubr.f32.mxu0 0.0
        %2165 = vmatmul.mubr.f32.gmra.mrb[0].mxu0 %v1957
        %v2166 = vpop.f32.mrb[0].mxu0
        %v2167 = vadd.f32 0.0, %v2166
        %v2168 = vpop.f32.mrb[0].mxu0
        %2169 = vmatprep.mubr.f32.mxu0 0.0
        %2170 = vmatmul.mubr.f32.gmra.mrb[0].mxu0 %v1960
        %v2171 = vpop.f32.mrb[0].mxu0
        %v2172 = vadd.f32 0.0, %v2171
        %v2173 = vpop.f32.mrb[0].mxu0
        %2174 = vmatprep.mubr.f32.mxu0 0.0
        %2175 = vmatmul.mubr.f32.gmra.mrb[0].mxu0 %v1963
        %v2176 = vpop.f32.mrb[0].mxu0
        %v2177 = vadd.f32 0.0, %v2176
        %v2178 = vpop.f32.mrb[0].mxu0
        %2179 = vmatprep.mubr.f32.mxu0 0.0
        %2180 = vmatmul.mubr.f32.gmra.mrb[0].mxu0 %v1966
        %v2181 = vpop.f32.mrb[0].mxu0
        %v2182 = vadd.f32 0.0, %v2181
        %v2183 = vpop.f32.mrb[0].mxu0
        %2184 = vmatprep.mubr.f32.mxu0 0.0
        %2185 = vmatmul.mubr.f32.gmra.mrb[0].mxu0 %v1969
        %v2186 = vpop.f32.mrb[0].mxu0
        %v2187 = vadd.f32 0.0, %v2186
        %v2188 = vpop.f32.mrb[0].mxu0
        %2189 = vmatprep.mubr.f32.mxu0 0.0
        %2190 = vmatmul.mubr.f32.gmra.mrb[0].mxu0 %v1972
        %v2191 = vpop.f32.mrb[0].mxu0
        %v2192 = vadd.f32 0.0, %v2191
        %v2193 = vpop.f32.mrb[0].mxu0
        %2194 = vmatprep.mubr.f32.mxu0 0.0
        %2195 = vmatmul.mubr.f32.gmra.mrb[0].mxu0 %v1975
        %v2196 = vpop.f32.mrb[0].mxu0
        %v2197 = vadd.f32 0.0, %v2196
        %v2198 = vpop.f32.mrb[0].mxu0
        %2199 = vmatprep.mubr.f32.mxu0 0.0
        %2200 = vmatmul.mubr.f32.gmra.mrb[0].mxu0 %v1978
        %v2201 = vpop.f32.mrb[0].mxu0
        %v2202 = vadd.f32 0.0, %v2201
        %v2203 = vpop.f32.mrb[0].mxu0
        %2204 = vmatprep.mubr.f32.mxu0 0.0
        %2205 = vmatmul.mubr.f32.gmra.mrb[0].mxu0 %v1981
        %v2206 = vpop.f32.mrb[0].mxu0
        %v2207 = vadd.f32 0.0, %v2206
        %v2208 = vpop.f32.mrb[0].mxu0
        %2209 = vmatprep.mubr.f32.mxu0 0.0
        %2210 = vmatmul.mubr.f32.gmra.mrb[0].mxu0 %v1984
        %v2211 = vpop.f32.mrb[0].mxu0
        %v2212 = vadd.f32 0.0, %v2211
        %v2213 = vpop.f32.mrb[0].mxu0
        %2214 = vmatprep.mubr.f32.mxu0 0.0
        %2215 = vmatmul.mubr.f32.gmra.mrb[0].mxu0 %v1987
        %v2216 = vpop.f32.mrb[0].mxu0
        %v2217 = vadd.f32 0.0, %v2216
        %v2218 = vpop.f32.mrb[0].mxu0
        %2219 = vmatprep.mubr.f32.mxu0 0.0
        %2220 = vmatmul.mubr.f32.gmra.mrb[0].mxu0 %v1990
        %v2221 = vpop.f32.mrb[0].mxu0
        %v2222 = vadd.f32 0.0, %v2221
        %v2223 = vpop.f32.mrb[0].mxu0
        %2224 = vmatprep.mubr.f32.mxu0 0.0
        %2225 = vmatmul.mubr.f32.gmra.mrb[0].mxu0 %v1993
        %v2226 = vpop.f32.mrb[0].mxu0
        %v2227 = vadd.f32 0.0, %v2226
        %v2228 = vpop.f32.mrb[0].mxu0
        %2229 = vmatprep.mubr.f32.mxu0 0.0
        %2230 = vmatmul.mubr.f32.gmra.mrb[0].mxu0 %v1996
        %v2231 = vpop.f32.mrb[0].mxu0
        %v2232 = vadd.f32 0.0, %v2231
        %v2233 = vpop.f32.mrb[0].mxu0
        %2234 = vmatprep.mubr.f32.mxu0 0.0
        %2235 = vmatmul.mubr.f32.gmra.mrb[0].mxu0 %v1999
        %v2236 = vpop.f32.mrb[0].mxu0
        %v2237 = vadd.f32 0.0, %v2236
        %v2238 = vpop.f32.mrb[0].mxu0
        %2239 = vmatprep.mubr.f32.mxu0 0.0
        %2240 = vmatmul.mubr.f32.gmra.mrb[0].mxu0 %v2002
        %v2241 = vpop.f32.mrb[0].mxu0
        %v2242 = vadd.f32 0.0, %v2241
        %v2243 = vpop.f32.mrb[0].mxu0
        %2244 = vmatprep.mubr.f32.mxu0 0.0
        %2245 = vmatmul.mubr.f32.gmra.mrb[0].mxu0 %v2005
        %v2246 = vpop.f32.mrb[0].mxu0
        %v2247 = vadd.f32 0.0, %v2246
        %v2248 = vpop.f32.mrb[0].mxu0
        %2249 = vmatprep.mubr.f32.mxu0 0.0
        %2250 = vmatmul.mubr.f32.gmra.mrb[0].mxu0 %v2008
        %v2251 = vpop.f32.mrb[0].mxu0
        %v2252 = vadd.f32 0.0, %v2251
        %v2253 = vpop.f32.mrb[0].mxu0
        %2254 = vdwg.mxu0
        %v2255 = vadd.f32 %v1827, %v2077
        %v2256 = vadd.f32 %v1828, %v2082
        %v2257 = vadd.f32 %v1829, %v2087
        %v2258 = vadd.f32 %v1830, %v2092
        %v2259 = vadd.f32 %v1831, %v2097
        %v2260 = vadd.f32 %v1832, %v2102
        %v2261 = vadd.f32 %v1833, %v2107
        %v2262 = vadd.f32 %v1834, %v2112
        %v2263 = vadd.f32 %v1835, %v2117
        %v2264 = vadd.f32 %v1836, %v2122
        %v2265 = vadd.f32 %v1837, %v2127
        %v2266 = vadd.f32 %v1838, %v2132
        %v2267 = vadd.f32 %v1839, %v2137
        %v2268 = vadd.f32 %v1840, %v2142
        %v2269 = vadd.f32 %v1841, %v2147
        %v2270 = vadd.f32 %v1842, %v2152
        %v2271 = vadd.f32 %v1843, %v2157
        %v2272 = vadd.f32 %v1844, %v2162
        %v2273 = vadd.f32 %v1845, %v2167
        %v2274 = vadd.f32 %v1846, %v2172
        %v2275 = vadd.f32 %v1847, %v2177
        %v2276 = vadd.f32 %v1848, %v2182
        %v2277 = vadd.f32 %v1849, %v2187
        %v2278 = vadd.f32 %v1850, %v2192
        %v2279 = vadd.f32 %v1851, %v2197
        %v2280 = vadd.f32 %v1852, %v2202
        %v2281 = vadd.f32 %v1853, %v2207
        %v2282 = vadd.f32 %v1854, %v2212
        %v2283 = vadd.f32 %v1855, %v2217
        %v2284 = vadd.f32 %v1856, %v2222
        %v2285 = vadd.f32 %v1857, %v2227
        %v2286 = vadd.f32 %v1858, %v2232
        %v2287 = vadd.f32 %v1859, %v2237
        %v2288 = vadd.f32 %v1860, %v2242
        %v2289 = vadd.f32 %v1861, %v2247
        %v2290 = vadd.f32 %v1862, %v2252
        %v2291 = vld [vmem:[%s222 + $0x14] sm:$0xff]
        %v2292 = vld [vmem:[%s222 + $0x1c] sm:$0xff]
        %v2293 = vld [vmem:[%s222 + $0x24] sm:$0xff]
        %v2294 = vld [vmem:[%s222 + $0x2c] sm:$0xff]
        %v2295 = vld [vmem:[%s222 + $0x34] sm:$0xff]
        %v2296 = vld [vmem:[%s222 + $0x3c] sm:$0xff]
        %v2297 = vld [vmem:[%s222 + $0x44] sm:$0xff]
        %v2298 = vld [vmem:[%s222 + $0x4c] sm:$0xff]
        %v2299 = vld [vmem:[%s222 + $0x54] sm:$0xff]
        %v2300 = vld [vmem:[%s222 + $0x5c] sm:$0xff]
        %v2301 = vld [vmem:[%s222 + $0x64] sm:$0xff]
        %v2302 = vld [vmem:[%s222 + $0x6c] sm:$0xff]
        %v2303 = vld [vmem:[%s222 + $0x74] sm:$0xff]
        %v2304 = vld [vmem:[%s222 + $0x7c] sm:$0xff]
        %v2305 = vld [vmem:[%s222 + $0x84] sm:$0xff]
        %v2306 = vld [vmem:[%s222 + $0x8c] sm:$0xff]
        %v2307 = vld [vmem:[%s222 + $0x94] sm:$0xff]
        %v2308 = vld [vmem:[%s222 + $0x9c] sm:$0xff]
        %v2309 = vld [vmem:[%s222 + $0xa4] sm:$0xff]
        %v2310 = vld [vmem:[%s222 + $0xac] sm:$0xff]
        %v2311 = vld [vmem:[%s222 + $0xb4] sm:$0xff]
        %v2312 = vld [vmem:[%s222 + $0xbc] sm:$0xff]
        %v2313 = vld [vmem:[%s222 + $0xc4] sm:$0xff]
        %v2314 = vld [vmem:[%s222 + $0xcc] sm:$0xff]
        %v2315 = vld [vmem:[%s222 + $0xd4] sm:$0xff]
        %v2316 = vld [vmem:[%s222 + $0xdc] sm:$0xff]
        %v2317 = vld [vmem:[%s222 + $0xe4] sm:$0xff]
        %v2318 = vld [vmem:[%s222 + $0xec] sm:$0xff]
        %v2319 = vld [vmem:[%s222 + $0xf4] sm:$0xff]
        %v2320 = vld [vmem:[%s222 + $0xfc] sm:$0xff]
        %v2321 = vld [vmem:[%s222 + $0x104] sm:$0xff]
        %v2322 = vld [vmem:[%s222 + $0x10c] sm:$0xff]
        %v2323 = vld [vmem:[%s222 + $0x114] sm:$0xff]
        %v2324 = vld [vmem:[%s222 + $0x11c] sm:$0xff]
        %v2325 = vld [vmem:[%s222 + $0x124] sm:$0xff]
        %v2326 = vld [vmem:[%s222 + $0x12c] sm:$0xff]
        %s2327 = scalar_lea.vmem %s1, 80
        %v2328 = vld [vmem:[%s2327] sm:$0xff]
        %v2329 = vld [vmem:[%s2327 + $0x8] sm:$0xff]
        %v2331 = vsel %vm300, %v2291, 0
        %v2334 = vsel %vm300, %v2292, 0
        %v2337 = vsel %vm300, %v2293, 0
        %v2340 = vsel %vm300, %v2294, 0
        %v2343 = vsel %vm300, %v2295, 0
        %v2346 = vsel %vm300, %v2296, 0
        %v2349 = vsel %vm300, %v2297, 0
        %v2352 = vsel %vm300, %v2298, 0
        %v2355 = vsel %vm300, %v2299, 0
        %v2358 = vsel %vm300, %v2300, 0
        %v2361 = vsel %vm300, %v2301, 0
        %v2364 = vsel %vm300, %v2302, 0
        %v2367 = vsel %vm300, %v2303, 0
        %v2370 = vsel %vm300, %v2304, 0
        %v2373 = vsel %vm300, %v2305, 0
        %v2376 = vsel %vm300, %v2306, 0
        %v2379 = vsel %vm300, %v2307, 0
        %v2382 = vsel %vm300, %v2308, 0
        %v2385 = vsel %vm300, %v2309, 0
        %v2388 = vsel %vm300, %v2310, 0
        %v2391 = vsel %vm300, %v2311, 0
        %v2394 = vsel %vm300, %v2312, 0
        %v2397 = vsel %vm300, %v2313, 0
        %v2400 = vsel %vm300, %v2314, 0
        %v2403 = vsel %vm300, %v2315, 0
        %v2406 = vsel %vm300, %v2316, 0
        %v2409 = vsel %vm300, %v2317, 0
        %v2412 = vsel %vm300, %v2318, 0
        %v2415 = vsel %vm300, %v2319, 0
        %v2418 = vsel %vm300, %v2320, 0
        %v2421 = vsel %vm300, %v2321, 0
        %v2424 = vsel %vm300, %v2322, 0
        %v2427 = vsel %vm300, %v2323, 0
        %v2430 = vsel %vm300, %v2324, 0
        %v2433 = vsel %vm300, %v2325, 0
        %v2436 = vsel %vm300, %v2326, 0
        %2438 = vmatprep.subr.mxu0 0.0
        %2439 = vmatpush1.msra.mxu0 %v2328
        %2440 = vmatprep.subr.mxu0 0.0
        %2441 = vmatpush1.msra.mxu0 %v2329
        %2442 = vmatprep.subr.mxu0 0.0
        %2443 = vmatpush1.msra.mxu0 0.0
        %2444 = vmatprep.subr.mxu0 0.0
        %2445 = vmatpush1.msra.mxu0 0.0
        %2446 = vmatprep.subr.mxu0 0.0
        %2447 = vmatpush1.msra.mxu0 0.0
        %2448 = vmatprep.subr.mxu0 0.0
        %2449 = vmatpush1.msra.mxu0 0.0
        %2450 = vmatprep.subr.mxu0 0.0
        %2451 = vmatpush1.msra.mxu0 0.0
        %2452 = vmatprep.subr.mxu0 0.0
        %2453 = vmatpush1.msra.mxu0 0.0
        %2454 = vmatprep.subr.mxu0 0.0
        %2455 = vmatpush1.msra.mxu0 0.0
        %2456 = vmatprep.subr.mxu0 0.0
        %2457 = vmatpush1.msra.mxu0 0.0
        %2458 = vmatprep.subr.mxu0 0.0
        %2459 = vmatpush1.msra.mxu0 0.0
        %2460 = vmatprep.subr.mxu0 0.0
        %2461 = vmatpush1.msra.mxu0 0.0
        %2462 = vmatprep.subr.mxu0 0.0
        %2463 = vmatpush1.msra.mxu0 0.0
        %2464 = vmatprep.subr.mxu0 0.0
        %2465 = vmatpush1.msra.mxu0 0.0
        %2466 = vmatprep.subr.mxu0 0.0
        %2467 = vmatpush1.msra.mxu0 0.0
        %2468 = vmatprep.subr.mxu0 0.0
        %2469 = vmatpush1.msra.mxu0 0.0
        %2470 = vmatprep.subr.mxu0 0.0
        %2471 = vmatpush1.msra.mxu0 0.0
        %2472 = vmatprep.subr.mxu0 0.0
        %2473 = vmatpush1.msra.mxu0 0.0
        %2474 = vmatprep.subr.mxu0 0.0
        %2475 = vmatpush1.msra.mxu0 0.0
        %2476 = vmatprep.subr.mxu0 0.0
        %2477 = vmatpush1.msra.mxu0 0.0
        %2478 = vmatprep.subr.mxu0 0.0
        %2479 = vmatpush1.msra.mxu0 0.0
        %2480 = vmatprep.subr.mxu0 0.0
        %2481 = vmatpush1.msra.mxu0 0.0
        %2482 = vmatprep.subr.mxu0 0.0
        %2483 = vmatpush1.msra.mxu0 0.0
        %2484 = vmatprep.subr.mxu0 0.0
        %2485 = vmatpush1.msra.mxu0 0.0
        %2486 = vmatprep.subr.mxu0 0.0
        %2487 = vmatpush1.msra.mxu0 0.0
        %2488 = vmatprep.subr.mxu0 0.0
        %2489 = vmatpush1.msra.mxu0 0.0
        %2490 = vmatprep.subr.mxu0 0.0
        %2491 = vmatpush1.msra.mxu0 0.0
        %2492 = vmatprep.subr.mxu0 0.0
        %2493 = vmatpush1.msra.mxu0 0.0
        %2494 = vmatprep.subr.mxu0 0.0
        %2495 = vmatpush1.msra.mxu0 0.0
        %2496 = vmatprep.subr.mxu0 0.0
        %2497 = vmatpush1.msra.mxu0 0.0
        %2498 = vmatprep.subr.mxu0 0.0
        %2499 = vmatpush1.msra.mxu0 0.0
        %2500 = vmatprep.subr.mxu0 0.0
        %2501 = vmatpush1.msra.mxu0 0.0
        %2502 = vmatprep.mubr.f32.mxu0 0.0
        %2503 = vmatmul.mubr.f32.gmra.mrb[0].mxu0 %v2331
        %v2504 = vpop.f32.mrb[0].mxu0
        %v2505 = vadd.f32 0.0, %v2504
        %v2506 = vpop.f32.mrb[0].mxu0
        %2507 = vmatprep.mubr.f32.mxu0 0.0
        %2508 = vmatmul.mubr.f32.gmra.mrb[0].mxu0 %v2334
        %v2509 = vpop.f32.mrb[0].mxu0
        %v2510 = vadd.f32 0.0, %v2509
        %v2511 = vpop.f32.mrb[0].mxu0
        %2512 = vmatprep.mubr.f32.mxu0 0.0
        %2513 = vmatmul.mubr.f32.gmra.mrb[0].mxu0 %v2337
        %v2514 = vpop.f32.mrb[0].mxu0
        %v2515 = vadd.f32 0.0, %v2514
        %v2516 = vpop.f32.mrb[0].mxu0
        %2517 = vmatprep.mubr.f32.mxu0 0.0
        %2518 = vmatmul.mubr.f32.gmra.mrb[0].mxu0 %v2340
        %v2519 = vpop.f32.mrb[0].mxu0
        %v2520 = vadd.f32 0.0, %v2519
        %v2521 = vpop.f32.mrb[0].mxu0
        %2522 = vmatprep.mubr.f32.mxu0 0.0
        %2523 = vmatmul.mubr.f32.gmra.mrb[0].mxu0 %v2343
        %v2524 = vpop.f32.mrb[0].mxu0
        %v2525 = vadd.f32 0.0, %v2524
        %v2526 = vpop.f32.mrb[0].mxu0
        %2527 = vmatprep.mubr.f32.mxu0 0.0
        %2528 = vmatmul.mubr.f32.gmra.mrb[0].mxu0 %v2346
        %v2529 = vpop.f32.mrb[0].mxu0
        %v2530 = vadd.f32 0.0, %v2529
        %v2531 = vpop.f32.mrb[0].mxu0
        %2532 = vmatprep.mubr.f32.mxu0 0.0
        %2533 = vmatmul.mubr.f32.gmra.mrb[0].mxu0 %v2349
        %v2534 = vpop.f32.mrb[0].mxu0
        %v2535 = vadd.f32 0.0, %v2534
        %v2536 = vpop.f32.mrb[0].mxu0
        %2537 = vmatprep.mubr.f32.mxu0 0.0
        %2538 = vmatmul.mubr.f32.gmra.mrb[0].mxu0 %v2352
        %v2539 = vpop.f32.mrb[0].mxu0
        %v2540 = vadd.f32 0.0, %v2539
        %v2541 = vpop.f32.mrb[0].mxu0
        %2542 = vmatprep.mubr.f32.mxu0 0.0
        %2543 = vmatmul.mubr.f32.gmra.mrb[0].mxu0 %v2355
        %v2544 = vpop.f32.mrb[0].mxu0
        %v2545 = vadd.f32 0.0, %v2544
        %v2546 = vpop.f32.mrb[0].mxu0
        %2547 = vmatprep.mubr.f32.mxu0 0.0
        %2548 = vmatmul.mubr.f32.gmra.mrb[0].mxu0 %v2358
        %v2549 = vpop.f32.mrb[0].mxu0
        %v2550 = vadd.f32 0.0, %v2549
        %v2551 = vpop.f32.mrb[0].mxu0
        %2552 = vmatprep.mubr.f32.mxu0 0.0
        %2553 = vmatmul.mubr.f32.gmra.mrb[0].mxu0 %v2361
        %v2554 = vpop.f32.mrb[0].mxu0
        %v2555 = vadd.f32 0.0, %v2554
        %v2556 = vpop.f32.mrb[0].mxu0
        %2557 = vmatprep.mubr.f32.mxu0 0.0
        %2558 = vmatmul.mubr.f32.gmra.mrb[0].mxu0 %v2364
        %v2559 = vpop.f32.mrb[0].mxu0
        %v2560 = vadd.f32 0.0, %v2559
        %v2561 = vpop.f32.mrb[0].mxu0
        %2562 = vmatprep.mubr.f32.mxu0 0.0
        %2563 = vmatmul.mubr.f32.gmra.mrb[0].mxu0 %v2367
        %v2564 = vpop.f32.mrb[0].mxu0
        %v2565 = vadd.f32 0.0, %v2564
        %v2566 = vpop.f32.mrb[0].mxu0
        %2567 = vmatprep.mubr.f32.mxu0 0.0
        %2568 = vmatmul.mubr.f32.gmra.mrb[0].mxu0 %v2370
        %v2569 = vpop.f32.mrb[0].mxu0
        %v2570 = vadd.f32 0.0, %v2569
        %v2571 = vpop.f32.mrb[0].mxu0
        %2572 = vmatprep.mubr.f32.mxu0 0.0
        %2573 = vmatmul.mubr.f32.gmra.mrb[0].mxu0 %v2373
        %v2574 = vpop.f32.mrb[0].mxu0
        %v2575 = vadd.f32 0.0, %v2574
        %v2576 = vpop.f32.mrb[0].mxu0
        %2577 = vmatprep.mubr.f32.mxu0 0.0
        %2578 = vmatmul.mubr.f32.gmra.mrb[0].mxu0 %v2376
        %v2579 = vpop.f32.mrb[0].mxu0
        %v2580 = vadd.f32 0.0, %v2579
        %v2581 = vpop.f32.mrb[0].mxu0
        %2582 = vmatprep.mubr.f32.mxu0 0.0
        %2583 = vmatmul.mubr.f32.gmra.mrb[0].mxu0 %v2379
        %v2584 = vpop.f32.mrb[0].mxu0
        %v2585 = vadd.f32 0.0, %v2584
        %v2586 = vpop.f32.mrb[0].mxu0
        %2587 = vmatprep.mubr.f32.mxu0 0.0
        %2588 = vmatmul.mubr.f32.gmra.mrb[0].mxu0 %v2382
        %v2589 = vpop.f32.mrb[0].mxu0
        %v2590 = vadd.f32 0.0, %v2589
        %v2591 = vpop.f32.mrb[0].mxu0
        %2592 = vmatprep.mubr.f32.mxu0 0.0
        %2593 = vmatmul.mubr.f32.gmra.mrb[0].mxu0 %v2385
        %v2594 = vpop.f32.mrb[0].mxu0
        %v2595 = vadd.f32 0.0, %v2594
        %v2596 = vpop.f32.mrb[0].mxu0
        %2597 = vmatprep.mubr.f32.mxu0 0.0
        %2598 = vmatmul.mubr.f32.gmra.mrb[0].mxu0 %v2388
        %v2599 = vpop.f32.mrb[0].mxu0
        %v2600 = vadd.f32 0.0, %v2599
        %v2601 = vpop.f32.mrb[0].mxu0
        %2602 = vmatprep.mubr.f32.mxu0 0.0
        %2603 = vmatmul.mubr.f32.gmra.mrb[0].mxu0 %v2391
        %v2604 = vpop.f32.mrb[0].mxu0
        %v2605 = vadd.f32 0.0, %v2604
        %v2606 = vpop.f32.mrb[0].mxu0
        %2607 = vmatprep.mubr.f32.mxu0 0.0
        %2608 = vmatmul.mubr.f32.gmra.mrb[0].mxu0 %v2394
        %v2609 = vpop.f32.mrb[0].mxu0
        %v2610 = vadd.f32 0.0, %v2609
        %v2611 = vpop.f32.mrb[0].mxu0
        %2612 = vmatprep.mubr.f32.mxu0 0.0
        %2613 = vmatmul.mubr.f32.gmra.mrb[0].mxu0 %v2397
        %v2614 = vpop.f32.mrb[0].mxu0
        %v2615 = vadd.f32 0.0, %v2614
        %v2616 = vpop.f32.mrb[0].mxu0
        %2617 = vmatprep.mubr.f32.mxu0 0.0
        %2618 = vmatmul.mubr.f32.gmra.mrb[0].mxu0 %v2400
        %v2619 = vpop.f32.mrb[0].mxu0
        %v2620 = vadd.f32 0.0, %v2619
        %v2621 = vpop.f32.mrb[0].mxu0
        %2622 = vmatprep.mubr.f32.mxu0 0.0
        %2623 = vmatmul.mubr.f32.gmra.mrb[0].mxu0 %v2403
        %v2624 = vpop.f32.mrb[0].mxu0
        %v2625 = vadd.f32 0.0, %v2624
        %v2626 = vpop.f32.mrb[0].mxu0
        %2627 = vmatprep.mubr.f32.mxu0 0.0
        %2628 = vmatmul.mubr.f32.gmra.mrb[0].mxu0 %v2406
        %v2629 = vpop.f32.mrb[0].mxu0
        %v2630 = vadd.f32 0.0, %v2629
        %v2631 = vpop.f32.mrb[0].mxu0
        %2632 = vmatprep.mubr.f32.mxu0 0.0
        %2633 = vmatmul.mubr.f32.gmra.mrb[0].mxu0 %v2409
        %v2634 = vpop.f32.mrb[0].mxu0
        %v2635 = vadd.f32 0.0, %v2634
        %v2636 = vpop.f32.mrb[0].mxu0
        %2637 = vmatprep.mubr.f32.mxu0 0.0
        %2638 = vmatmul.mubr.f32.gmra.mrb[0].mxu0 %v2412
        %v2639 = vpop.f32.mrb[0].mxu0
        %v2640 = vadd.f32 0.0, %v2639
        %v2641 = vpop.f32.mrb[0].mxu0
        %2642 = vmatprep.mubr.f32.mxu0 0.0
        %2643 = vmatmul.mubr.f32.gmra.mrb[0].mxu0 %v2415
        %v2644 = vpop.f32.mrb[0].mxu0
        %v2645 = vadd.f32 0.0, %v2644
        %v2646 = vpop.f32.mrb[0].mxu0
        %2647 = vmatprep.mubr.f32.mxu0 0.0
        %2648 = vmatmul.mubr.f32.gmra.mrb[0].mxu0 %v2418
        %v2649 = vpop.f32.mrb[0].mxu0
        %v2650 = vadd.f32 0.0, %v2649
        %v2651 = vpop.f32.mrb[0].mxu0
        %2652 = vmatprep.mubr.f32.mxu0 0.0
        %2653 = vmatmul.mubr.f32.gmra.mrb[0].mxu0 %v2421
        %v2654 = vpop.f32.mrb[0].mxu0
        %v2655 = vadd.f32 0.0, %v2654
        %v2656 = vpop.f32.mrb[0].mxu0
        %2657 = vmatprep.mubr.f32.mxu0 0.0
        %2658 = vmatmul.mubr.f32.gmra.mrb[0].mxu0 %v2424
        %v2659 = vpop.f32.mrb[0].mxu0
        %v2660 = vadd.f32 0.0, %v2659
        %v2661 = vpop.f32.mrb[0].mxu0
        %2662 = vmatprep.mubr.f32.mxu0 0.0
        %2663 = vmatmul.mubr.f32.gmra.mrb[0].mxu0 %v2427
        %v2664 = vpop.f32.mrb[0].mxu0
        %v2665 = vadd.f32 0.0, %v2664
        %v2666 = vpop.f32.mrb[0].mxu0
        %2667 = vmatprep.mubr.f32.mxu0 0.0
        %2668 = vmatmul.mubr.f32.gmra.mrb[0].mxu0 %v2430
        %v2669 = vpop.f32.mrb[0].mxu0
        %v2670 = vadd.f32 0.0, %v2669
        %v2671 = vpop.f32.mrb[0].mxu0
        %2672 = vmatprep.mubr.f32.mxu0 0.0
        %2673 = vmatmul.mubr.f32.gmra.mrb[0].mxu0 %v2433
        %v2674 = vpop.f32.mrb[0].mxu0
        %v2675 = vadd.f32 0.0, %v2674
        %v2676 = vpop.f32.mrb[0].mxu0
        %2677 = vmatprep.mubr.f32.mxu0 0.0
        %2678 = vmatmul.mubr.f32.gmra.mrb[0].mxu0 %v2436
        %v2679 = vpop.f32.mrb[0].mxu0
        %v2680 = vadd.f32 0.0, %v2679
        %v2681 = vpop.f32.mrb[0].mxu0
        %2682 = vdwg.mxu0
        %v2683 = vadd.f32 %v2255, %v2505
        %v2684 = vadd.f32 %v2256, %v2510
        %v2685 = vadd.f32 %v2257, %v2515
        %v2686 = vadd.f32 %v2258, %v2520
        %v2687 = vadd.f32 %v2259, %v2525
        %v2688 = vadd.f32 %v2260, %v2530
        %v2689 = vadd.f32 %v2261, %v2535
        %v2690 = vadd.f32 %v2262, %v2540
        %v2691 = vadd.f32 %v2263, %v2545
        %v2692 = vadd.f32 %v2264, %v2550
        %v2693 = vadd.f32 %v2265, %v2555
        %v2694 = vadd.f32 %v2266, %v2560
        %v2695 = vadd.f32 %v2267, %v2565
        %v2696 = vadd.f32 %v2268, %v2570
        %v2697 = vadd.f32 %v2269, %v2575
        %v2698 = vadd.f32 %v2270, %v2580
        %v2699 = vadd.f32 %v2271, %v2585
        %v2700 = vadd.f32 %v2272, %v2590
        %v2701 = vadd.f32 %v2273, %v2595
        %v2702 = vadd.f32 %v2274, %v2600
        %v2703 = vadd.f32 %v2275, %v2605
        %v2704 = vadd.f32 %v2276, %v2610
        %v2705 = vadd.f32 %v2277, %v2615
        %v2706 = vadd.f32 %v2278, %v2620
        %v2707 = vadd.f32 %v2279, %v2625
        %v2708 = vadd.f32 %v2280, %v2630
        %v2709 = vadd.f32 %v2281, %v2635
        %v2710 = vadd.f32 %v2282, %v2640
        %v2711 = vadd.f32 %v2283, %v2645
        %v2712 = vadd.f32 %v2284, %v2650
        %v2713 = vadd.f32 %v2285, %v2655
        %v2714 = vadd.f32 %v2286, %v2660
        %v2715 = vadd.f32 %v2287, %v2665
        %v2716 = vadd.f32 %v2288, %v2670
        %v2717 = vadd.f32 %v2289, %v2675
        %v2718 = vadd.f32 %v2290, %v2680
        %v2719 = vld [vmem:[%s222 + $0x24] sm:$0xff]
        %v2720 = vld [vmem:[%s222 + $0x2c] sm:$0xff]
        %v2721 = vld [vmem:[%s222 + $0x34] sm:$0xff]
        %v2722 = vld [vmem:[%s222 + $0x3c] sm:$0xff]
        %v2723 = vld [vmem:[%s222 + $0x44] sm:$0xff]
        %v2724 = vld [vmem:[%s222 + $0x4c] sm:$0xff]
        %v2725 = vld [vmem:[%s222 + $0x54] sm:$0xff]
        %v2726 = vld [vmem:[%s222 + $0x5c] sm:$0xff]
        %v2727 = vld [vmem:[%s222 + $0x64] sm:$0xff]
        %v2728 = vld [vmem:[%s222 + $0x6c] sm:$0xff]
        %v2729 = vld [vmem:[%s222 + $0x74] sm:$0xff]
        %v2730 = vld [vmem:[%s222 + $0x7c] sm:$0xff]
        %v2731 = vld [vmem:[%s222 + $0x84] sm:$0xff]
        %v2732 = vld [vmem:[%s222 + $0x8c] sm:$0xff]
        %v2733 = vld [vmem:[%s222 + $0x94] sm:$0xff]
        %v2734 = vld [vmem:[%s222 + $0x9c] sm:$0xff]
        %v2735 = vld [vmem:[%s222 + $0xa4] sm:$0xff]
        %v2736 = vld [vmem:[%s222 + $0xac] sm:$0xff]
        %v2737 = vld [vmem:[%s222 + $0xb4] sm:$0xff]
        %v2738 = vld [vmem:[%s222 + $0xbc] sm:$0xff]
        %v2739 = vld [vmem:[%s222 + $0xc4] sm:$0xff]
        %v2740 = vld [vmem:[%s222 + $0xcc] sm:$0xff]
        %v2741 = vld [vmem:[%s222 + $0xd4] sm:$0xff]
        %v2742 = vld [vmem:[%s222 + $0xdc] sm:$0xff]
        %v2743 = vld [vmem:[%s222 + $0xe4] sm:$0xff]
        %v2744 = vld [vmem:[%s222 + $0xec] sm:$0xff]
        %v2745 = vld [vmem:[%s222 + $0xf4] sm:$0xff]
        %v2746 = vld [vmem:[%s222 + $0xfc] sm:$0xff]
        %v2747 = vld [vmem:[%s222 + $0x104] sm:$0xff]
        %v2748 = vld [vmem:[%s222 + $0x10c] sm:$0xff]
        %v2749 = vld [vmem:[%s222 + $0x114] sm:$0xff]
        %v2750 = vld [vmem:[%s222 + $0x11c] sm:$0xff]
        %v2751 = vld [vmem:[%s222 + $0x124] sm:$0xff]
        %v2752 = vld [vmem:[%s222 + $0x12c] sm:$0xff]
        %v2753 = vld [vmem:[%s222 + $0x134] sm:$0xff]
        %v2754 = vld [vmem:[%s222 + $0x13c] sm:$0xff]
        %s2755 = scalar_lea.vmem %s1, 96
        %v2756 = vld [vmem:[%s2755] sm:$0xff]
        %v2757 = vld [vmem:[%s2755 + $0x8] sm:$0xff]
        %v2759 = vsel %vm300, %v2719, 0
        %v2762 = vsel %vm300, %v2720, 0
        %v2765 = vsel %vm300, %v2721, 0
        %v2768 = vsel %vm300, %v2722, 0
        %v2771 = vsel %vm300, %v2723, 0
        %v2774 = vsel %vm300, %v2724, 0
        %v2777 = vsel %vm300, %v2725, 0
        %v2780 = vsel %vm300, %v2726, 0
        %v2783 = vsel %vm300, %v2727, 0
        %v2786 = vsel %vm300, %v2728, 0
        %v2789 = vsel %vm300, %v2729, 0
        %v2792 = vsel %vm300, %v2730, 0
        %v2795 = vsel %vm300, %v2731, 0
        %v2798 = vsel %vm300, %v2732, 0
        %v2801 = vsel %vm300, %v2733, 0
        %v2804 = vsel %vm300, %v2734, 0
        %v2807 = vsel %vm300, %v2735, 0
        %v2810 = vsel %vm300, %v2736, 0
        %v2813 = vsel %vm300, %v2737, 0
        %v2816 = vsel %vm300, %v2738, 0
        %v2819 = vsel %vm300, %v2739, 0
        %v2822 = vsel %vm300, %v2740, 0
        %v2825 = vsel %vm300, %v2741, 0
        %v2828 = vsel %vm300, %v2742, 0
        %v2831 = vsel %vm300, %v2743, 0
        %v2834 = vsel %vm300, %v2744, 0
        %v2837 = vsel %vm300, %v2745, 0
        %v2840 = vsel %vm300, %v2746, 0
        %v2843 = vsel %vm300, %v2747, 0
        %v2846 = vsel %vm300, %v2748, 0
        %v2849 = vsel %vm300, %v2749, 0
        %v2852 = vsel %vm300, %v2750, 0
        %v2855 = vsel %vm300, %v2751, 0
        %v2858 = vsel %vm300, %v2752, 0
        %v2861 = vsel %vm300, %v2753, 0
        %v2864 = vsel %vm300, %v2754, 0
        %2866 = vmatprep.subr.mxu0 0.0
        %2867 = vmatpush1.msra.mxu0 %v2756
        %2868 = vmatprep.subr.mxu0 0.0
        %2869 = vmatpush1.msra.mxu0 %v2757
        %2870 = vmatprep.subr.mxu0 0.0
        %2871 = vmatpush1.msra.mxu0 0.0
        %2872 = vmatprep.subr.mxu0 0.0
        %2873 = vmatpush1.msra.mxu0 0.0
        %2874 = vmatprep.subr.mxu0 0.0
        %2875 = vmatpush1.msra.mxu0 0.0
        %2876 = vmatprep.subr.mxu0 0.0
        %2877 = vmatpush1.msra.mxu0 0.0
        %2878 = vmatprep.subr.mxu0 0.0
        %2879 = vmatpush1.msra.mxu0 0.0
        %2880 = vmatprep.subr.mxu0 0.0
        %2881 = vmatpush1.msra.mxu0 0.0
        %2882 = vmatprep.subr.mxu0 0.0
        %2883 = vmatpush1.msra.mxu0 0.0
        %2884 = vmatprep.subr.mxu0 0.0
        %2885 = vmatpush1.msra.mxu0 0.0
        %2886 = vmatprep.subr.mxu0 0.0
        %2887 = vmatpush1.msra.mxu0 0.0
        %2888 = vmatprep.subr.mxu0 0.0
        %2889 = vmatpush1.msra.mxu0 0.0
        %2890 = vmatprep.subr.mxu0 0.0
        %2891 = vmatpush1.msra.mxu0 0.0
        %2892 = vmatprep.subr.mxu0 0.0
        %2893 = vmatpush1.msra.mxu0 0.0
        %2894 = vmatprep.subr.mxu0 0.0
        %2895 = vmatpush1.msra.mxu0 0.0
        %2896 = vmatprep.subr.mxu0 0.0
        %2897 = vmatpush1.msra.mxu0 0.0
        %2898 = vmatprep.subr.mxu0 0.0
        %2899 = vmatpush1.msra.mxu0 0.0
        %2900 = vmatprep.subr.mxu0 0.0
        %2901 = vmatpush1.msra.mxu0 0.0
        %2902 = vmatprep.subr.mxu0 0.0
        %2903 = vmatpush1.msra.mxu0 0.0
        %2904 = vmatprep.subr.mxu0 0.0
        %2905 = vmatpush1.msra.mxu0 0.0
        %2906 = vmatprep.subr.mxu0 0.0
        %2907 = vmatpush1.msra.mxu0 0.0
        %2908 = vmatprep.subr.mxu0 0.0
        %2909 = vmatpush1.msra.mxu0 0.0
        %2910 = vmatprep.subr.mxu0 0.0
        %2911 = vmatpush1.msra.mxu0 0.0
        %2912 = vmatprep.subr.mxu0 0.0
        %2913 = vmatpush1.msra.mxu0 0.0
        %2914 = vmatprep.subr.mxu0 0.0
        %2915 = vmatpush1.msra.mxu0 0.0
        %2916 = vmatprep.subr.mxu0 0.0
        %2917 = vmatpush1.msra.mxu0 0.0
        %2918 = vmatprep.subr.mxu0 0.0
        %2919 = vmatpush1.msra.mxu0 0.0
        %2920 = vmatprep.subr.mxu0 0.0
        %2921 = vmatpush1.msra.mxu0 0.0
        %2922 = vmatprep.subr.mxu0 0.0
        %2923 = vmatpush1.msra.mxu0 0.0
        %2924 = vmatprep.subr.mxu0 0.0
        %2925 = vmatpush1.msra.mxu0 0.0
        %2926 = vmatprep.subr.mxu0 0.0
        %2927 = vmatpush1.msra.mxu0 0.0
        %2928 = vmatprep.subr.mxu0 0.0
        %2929 = vmatpush1.msra.mxu0 0.0
        %2930 = vmatprep.mubr.f32.mxu0 0.0
        %2931 = vmatmul.mubr.f32.gmra.mrb[0].mxu0 %v2759
        %v2932 = vpop.f32.mrb[0].mxu0
        %v2933 = vadd.f32 0.0, %v2932
        %v2934 = vpop.f32.mrb[0].mxu0
        %2935 = vmatprep.mubr.f32.mxu0 0.0
        %2936 = vmatmul.mubr.f32.gmra.mrb[0].mxu0 %v2762
        %v2937 = vpop.f32.mrb[0].mxu0
        %v2938 = vadd.f32 0.0, %v2937
        %v2939 = vpop.f32.mrb[0].mxu0
        %2940 = vmatprep.mubr.f32.mxu0 0.0
        %2941 = vmatmul.mubr.f32.gmra.mrb[0].mxu0 %v2765
        %v2942 = vpop.f32.mrb[0].mxu0
        %v2943 = vadd.f32 0.0, %v2942
        %v2944 = vpop.f32.mrb[0].mxu0
        %2945 = vmatprep.mubr.f32.mxu0 0.0
        %2946 = vmatmul.mubr.f32.gmra.mrb[0].mxu0 %v2768
        %v2947 = vpop.f32.mrb[0].mxu0
        %v2948 = vadd.f32 0.0, %v2947
        %v2949 = vpop.f32.mrb[0].mxu0
        %2950 = vmatprep.mubr.f32.mxu0 0.0
        %2951 = vmatmul.mubr.f32.gmra.mrb[0].mxu0 %v2771
        %v2952 = vpop.f32.mrb[0].mxu0
        %v2953 = vadd.f32 0.0, %v2952
        %v2954 = vpop.f32.mrb[0].mxu0
        %2955 = vmatprep.mubr.f32.mxu0 0.0
        %2956 = vmatmul.mubr.f32.gmra.mrb[0].mxu0 %v2774
        %v2957 = vpop.f32.mrb[0].mxu0
        %v2958 = vadd.f32 0.0, %v2957
        %v2959 = vpop.f32.mrb[0].mxu0
        %2960 = vmatprep.mubr.f32.mxu0 0.0
        %2961 = vmatmul.mubr.f32.gmra.mrb[0].mxu0 %v2777
        %v2962 = vpop.f32.mrb[0].mxu0
        %v2963 = vadd.f32 0.0, %v2962
        %v2964 = vpop.f32.mrb[0].mxu0
        %2965 = vmatprep.mubr.f32.mxu0 0.0
        %2966 = vmatmul.mubr.f32.gmra.mrb[0].mxu0 %v2780
        %v2967 = vpop.f32.mrb[0].mxu0
        %v2968 = vadd.f32 0.0, %v2967
        %v2969 = vpop.f32.mrb[0].mxu0
        %2970 = vmatprep.mubr.f32.mxu0 0.0
        %2971 = vmatmul.mubr.f32.gmra.mrb[0].mxu0 %v2783
        %v2972 = vpop.f32.mrb[0].mxu0
        %v2973 = vadd.f32 0.0, %v2972
        %v2974 = vpop.f32.mrb[0].mxu0
        %2975 = vmatprep.mubr.f32.mxu0 0.0
        %2976 = vmatmul.mubr.f32.gmra.mrb[0].mxu0 %v2786
        %v2977 = vpop.f32.mrb[0].mxu0
        %v2978 = vadd.f32 0.0, %v2977
        %v2979 = vpop.f32.mrb[0].mxu0
        %2980 = vmatprep.mubr.f32.mxu0 0.0
        %2981 = vmatmul.mubr.f32.gmra.mrb[0].mxu0 %v2789
        %v2982 = vpop.f32.mrb[0].mxu0
        %v2983 = vadd.f32 0.0, %v2982
        %v2984 = vpop.f32.mrb[0].mxu0
        %2985 = vmatprep.mubr.f32.mxu0 0.0
        %2986 = vmatmul.mubr.f32.gmra.mrb[0].mxu0 %v2792
        %v2987 = vpop.f32.mrb[0].mxu0
        %v2988 = vadd.f32 0.0, %v2987
        %v2989 = vpop.f32.mrb[0].mxu0
        %2990 = vmatprep.mubr.f32.mxu0 0.0
        %2991 = vmatmul.mubr.f32.gmra.mrb[0].mxu0 %v2795
        %v2992 = vpop.f32.mrb[0].mxu0
        %v2993 = vadd.f32 0.0, %v2992
        %v2994 = vpop.f32.mrb[0].mxu0
        %2995 = vmatprep.mubr.f32.mxu0 0.0
        %2996 = vmatmul.mubr.f32.gmra.mrb[0].mxu0 %v2798
        %v2997 = vpop.f32.mrb[0].mxu0
        %v2998 = vadd.f32 0.0, %v2997
        %v2999 = vpop.f32.mrb[0].mxu0
        %3000 = vmatprep.mubr.f32.mxu0 0.0
        %3001 = vmatmul.mubr.f32.gmra.mrb[0].mxu0 %v2801
        %v3002 = vpop.f32.mrb[0].mxu0
        %v3003 = vadd.f32 0.0, %v3002
        %v3004 = vpop.f32.mrb[0].mxu0
        %3005 = vmatprep.mubr.f32.mxu0 0.0
        %3006 = vmatmul.mubr.f32.gmra.mrb[0].mxu0 %v2804
        %v3007 = vpop.f32.mrb[0].mxu0
        %v3008 = vadd.f32 0.0, %v3007
        %v3009 = vpop.f32.mrb[0].mxu0
        %3010 = vmatprep.mubr.f32.mxu0 0.0
        %3011 = vmatmul.mubr.f32.gmra.mrb[0].mxu0 %v2807
        %v3012 = vpop.f32.mrb[0].mxu0
        %v3013 = vadd.f32 0.0, %v3012
        %v3014 = vpop.f32.mrb[0].mxu0
        %3015 = vmatprep.mubr.f32.mxu0 0.0
        %3016 = vmatmul.mubr.f32.gmra.mrb[0].mxu0 %v2810
        %v3017 = vpop.f32.mrb[0].mxu0
        %v3018 = vadd.f32 0.0, %v3017
        %v3019 = vpop.f32.mrb[0].mxu0
        %3020 = vmatprep.mubr.f32.mxu0 0.0
        %3021 = vmatmul.mubr.f32.gmra.mrb[0].mxu0 %v2813
        %v3022 = vpop.f32.mrb[0].mxu0
        %v3023 = vadd.f32 0.0, %v3022
        %v3024 = vpop.f32.mrb[0].mxu0
        %3025 = vmatprep.mubr.f32.mxu0 0.0
        %3026 = vmatmul.mubr.f32.gmra.mrb[0].mxu0 %v2816
        %v3027 = vpop.f32.mrb[0].mxu0
        %v3028 = vadd.f32 0.0, %v3027
        %v3029 = vpop.f32.mrb[0].mxu0
        %3030 = vmatprep.mubr.f32.mxu0 0.0
        %3031 = vmatmul.mubr.f32.gmra.mrb[0].mxu0 %v2819
        %v3032 = vpop.f32.mrb[0].mxu0
        %v3033 = vadd.f32 0.0, %v3032
        %v3034 = vpop.f32.mrb[0].mxu0
        %3035 = vmatprep.mubr.f32.mxu0 0.0
        %3036 = vmatmul.mubr.f32.gmra.mrb[0].mxu0 %v2822
        %v3037 = vpop.f32.mrb[0].mxu0
        %v3038 = vadd.f32 0.0, %v3037
        %v3039 = vpop.f32.mrb[0].mxu0
        %3040 = vmatprep.mubr.f32.mxu0 0.0
        %3041 = vmatmul.mubr.f32.gmra.mrb[0].mxu0 %v2825
        %v3042 = vpop.f32.mrb[0].mxu0
        %v3043 = vadd.f32 0.0, %v3042
        %v3044 = vpop.f32.mrb[0].mxu0
        %3045 = vmatprep.mubr.f32.mxu0 0.0
        %3046 = vmatmul.mubr.f32.gmra.mrb[0].mxu0 %v2828
        %v3047 = vpop.f32.mrb[0].mxu0
        %v3048 = vadd.f32 0.0, %v3047
        %v3049 = vpop.f32.mrb[0].mxu0
        %3050 = vmatprep.mubr.f32.mxu0 0.0
        %3051 = vmatmul.mubr.f32.gmra.mrb[0].mxu0 %v2831
        %v3052 = vpop.f32.mrb[0].mxu0
        %v3053 = vadd.f32 0.0, %v3052
        %v3054 = vpop.f32.mrb[0].mxu0
        %3055 = vmatprep.mubr.f32.mxu0 0.0
        %3056 = vmatmul.mubr.f32.gmra.mrb[0].mxu0 %v2834
        %v3057 = vpop.f32.mrb[0].mxu0
        %v3058 = vadd.f32 0.0, %v3057
        %v3059 = vpop.f32.mrb[0].mxu0
        %3060 = vmatprep.mubr.f32.mxu0 0.0
        %3061 = vmatmul.mubr.f32.gmra.mrb[0].mxu0 %v2837
        %v3062 = vpop.f32.mrb[0].mxu0
        %v3063 = vadd.f32 0.0, %v3062
        %v3064 = vpop.f32.mrb[0].mxu0
        %3065 = vmatprep.mubr.f32.mxu0 0.0
        %3066 = vmatmul.mubr.f32.gmra.mrb[0].mxu0 %v2840
        %v3067 = vpop.f32.mrb[0].mxu0
        %v3068 = vadd.f32 0.0, %v3067
        %v3069 = vpop.f32.mrb[0].mxu0
        %3070 = vmatprep.mubr.f32.mxu0 0.0
        %3071 = vmatmul.mubr.f32.gmra.mrb[0].mxu0 %v2843
        %v3072 = vpop.f32.mrb[0].mxu0
        %v3073 = vadd.f32 0.0, %v3072
        %v3074 = vpop.f32.mrb[0].mxu0
        %3075 = vmatprep.mubr.f32.mxu0 0.0
        %3076 = vmatmul.mubr.f32.gmra.mrb[0].mxu0 %v2846
        %v3077 = vpop.f32.mrb[0].mxu0
        %v3078 = vadd.f32 0.0, %v3077
        %v3079 = vpop.f32.mrb[0].mxu0
        %3080 = vmatprep.mubr.f32.mxu0 0.0
        %3081 = vmatmul.mubr.f32.gmra.mrb[0].mxu0 %v2849
        %v3082 = vpop.f32.mrb[0].mxu0
        %v3083 = vadd.f32 0.0, %v3082
        %v3084 = vpop.f32.mrb[0].mxu0
        %3085 = vmatprep.mubr.f32.mxu0 0.0
        %3086 = vmatmul.mubr.f32.gmra.mrb[0].mxu0 %v2852
        %v3087 = vpop.f32.mrb[0].mxu0
        %v3088 = vadd.f32 0.0, %v3087
        %v3089 = vpop.f32.mrb[0].mxu0
        %3090 = vmatprep.mubr.f32.mxu0 0.0
        %3091 = vmatmul.mubr.f32.gmra.mrb[0].mxu0 %v2855
        %v3092 = vpop.f32.mrb[0].mxu0
        %v3093 = vadd.f32 0.0, %v3092
        %v3094 = vpop.f32.mrb[0].mxu0
        %3095 = vmatprep.mubr.f32.mxu0 0.0
        %3096 = vmatmul.mubr.f32.gmra.mrb[0].mxu0 %v2858
        %v3097 = vpop.f32.mrb[0].mxu0
        %v3098 = vadd.f32 0.0, %v3097
        %v3099 = vpop.f32.mrb[0].mxu0
        %3100 = vmatprep.mubr.f32.mxu0 0.0
        %3101 = vmatmul.mubr.f32.gmra.mrb[0].mxu0 %v2861
        %v3102 = vpop.f32.mrb[0].mxu0
        %v3103 = vadd.f32 0.0, %v3102
        %v3104 = vpop.f32.mrb[0].mxu0
        %3105 = vmatprep.mubr.f32.mxu0 0.0
        %3106 = vmatmul.mubr.f32.gmra.mrb[0].mxu0 %v2864
        %v3107 = vpop.f32.mrb[0].mxu0
        %v3108 = vadd.f32 0.0, %v3107
        %v3109 = vpop.f32.mrb[0].mxu0
        %3110 = vdwg.mxu0
        %v3111 = vadd.f32 %v2683, %v2933
        %v3112 = vadd.f32 %v2684, %v2938
        %v3113 = vadd.f32 %v2685, %v2943
        %v3114 = vadd.f32 %v2686, %v2948
        %v3115 = vadd.f32 %v2687, %v2953
        %v3116 = vadd.f32 %v2688, %v2958
        %v3117 = vadd.f32 %v2689, %v2963
        %v3118 = vadd.f32 %v2690, %v2968
        %v3119 = vadd.f32 %v2691, %v2973
        %v3120 = vadd.f32 %v2692, %v2978
        %v3121 = vadd.f32 %v2693, %v2983
        %v3122 = vadd.f32 %v2694, %v2988
        %v3123 = vadd.f32 %v2695, %v2993
        %v3124 = vadd.f32 %v2696, %v2998
        %v3125 = vadd.f32 %v2697, %v3003
        %v3126 = vadd.f32 %v2698, %v3008
        %v3127 = vadd.f32 %v2699, %v3013
        %v3128 = vadd.f32 %v2700, %v3018
        %v3129 = vadd.f32 %v2701, %v3023
        %v3130 = vadd.f32 %v2702, %v3028
        %v3131 = vadd.f32 %v2703, %v3033
        %v3132 = vadd.f32 %v2704, %v3038
        %v3133 = vadd.f32 %v2705, %v3043
        %v3134 = vadd.f32 %v2706, %v3048
        %v3135 = vadd.f32 %v2707, %v3053
        %v3136 = vadd.f32 %v2708, %v3058
        %v3137 = vadd.f32 %v2709, %v3063
        %v3138 = vadd.f32 %v2710, %v3068
        %v3139 = vadd.f32 %v2711, %v3073
        %v3140 = vadd.f32 %v2712, %v3078
        %v3141 = vadd.f32 %v2713, %v3083
        %v3142 = vadd.f32 %v2714, %v3088
        %v3143 = vadd.f32 %v2715, %v3093
        %v3144 = vadd.f32 %v2716, %v3098
        %v3145 = vadd.f32 %v2717, %v3103
        %v3146 = vadd.f32 %v2718, %v3108
        %v3147 = vld [vmem:[%s222 + $0x25] sm:$0xff]
        %v3148 = vld [vmem:[%s222 + $0x2d] sm:$0xff]
        %v3149 = vld [vmem:[%s222 + $0x35] sm:$0xff]
        %v3150 = vld [vmem:[%s222 + $0x3d] sm:$0xff]
        %v3151 = vld [vmem:[%s222 + $0x45] sm:$0xff]
        %v3152 = vld [vmem:[%s222 + $0x4d] sm:$0xff]
        %v3153 = vld [vmem:[%s222 + $0x55] sm:$0xff]
        %v3154 = vld [vmem:[%s222 + $0x5d] sm:$0xff]
        %v3155 = vld [vmem:[%s222 + $0x65] sm:$0xff]
        %v3156 = vld [vmem:[%s222 + $0x6d] sm:$0xff]
        %v3157 = vld [vmem:[%s222 + $0x75] sm:$0xff]
        %v3158 = vld [vmem:[%s222 + $0x7d] sm:$0xff]
        %v3159 = vld [vmem:[%s222 + $0x85] sm:$0xff]
        %v3160 = vld [vmem:[%s222 + $0x8d] sm:$0xff]
        %v3161 = vld [vmem:[%s222 + $0x95] sm:$0xff]
        %v3162 = vld [vmem:[%s222 + $0x9d] sm:$0xff]
        %v3163 = vld [vmem:[%s222 + $0xa5] sm:$0xff]
        %v3164 = vld [vmem:[%s222 + $0xad] sm:$0xff]
        %v3165 = vld [vmem:[%s222 + $0xb5] sm:$0xff]
        %v3166 = vld [vmem:[%s222 + $0xbd] sm:$0xff]
        %v3167 = vld [vmem:[%s222 + $0xc5] sm:$0xff]
        %v3168 = vld [vmem:[%s222 + $0xcd] sm:$0xff]
        %v3169 = vld [vmem:[%s222 + $0xd5] sm:$0xff]
        %v3170 = vld [vmem:[%s222 + $0xdd] sm:$0xff]
        %v3171 = vld [vmem:[%s222 + $0xe5] sm:$0xff]
        %v3172 = vld [vmem:[%s222 + $0xed] sm:$0xff]
        %v3173 = vld [vmem:[%s222 + $0xf5] sm:$0xff]
        %v3174 = vld [vmem:[%s222 + $0xfd] sm:$0xff]
        %v3175 = vld [vmem:[%s222 + $0x105] sm:$0xff]
        %v3176 = vld [vmem:[%s222 + $0x10d] sm:$0xff]
        %v3177 = vld [vmem:[%s222 + $0x115] sm:$0xff]
        %v3178 = vld [vmem:[%s222 + $0x11d] sm:$0xff]
        %v3179 = vld [vmem:[%s222 + $0x125] sm:$0xff]
        %v3180 = vld [vmem:[%s222 + $0x12d] sm:$0xff]
        %v3181 = vld [vmem:[%s222 + $0x135] sm:$0xff]
        %v3182 = vld [vmem:[%s222 + $0x13d] sm:$0xff]
        %s3183 = scalar_lea.vmem %s1, 112
        %v3184 = vld [vmem:[%s3183] sm:$0xff]
        %v3185 = vld [vmem:[%s3183 + $0x8] sm:$0xff]
        %v3187 = vsel %vm300, %v3147, 0
        %v3190 = vsel %vm300, %v3148, 0
        %v3193 = vsel %vm300, %v3149, 0
        %v3196 = vsel %vm300, %v3150, 0
        %v3199 = vsel %vm300, %v3151, 0
        %v3202 = vsel %vm300, %v3152, 0
        %v3205 = vsel %vm300, %v3153, 0
        %v3208 = vsel %vm300, %v3154, 0
        %v3211 = vsel %vm300, %v3155, 0
        %v3214 = vsel %vm300, %v3156, 0
        %v3217 = vsel %vm300, %v3157, 0
        %v3220 = vsel %vm300, %v3158, 0
        %v3223 = vsel %vm300, %v3159, 0
        %v3226 = vsel %vm300, %v3160, 0
        %v3229 = vsel %vm300, %v3161, 0
        %v3232 = vsel %vm300, %v3162, 0
        %v3235 = vsel %vm300, %v3163, 0
        %v3238 = vsel %vm300, %v3164, 0
        %v3241 = vsel %vm300, %v3165, 0
        %v3244 = vsel %vm300, %v3166, 0
        %v3247 = vsel %vm300, %v3167, 0
        %v3250 = vsel %vm300, %v3168, 0
        %v3253 = vsel %vm300, %v3169, 0
        %v3256 = vsel %vm300, %v3170, 0
        %v3259 = vsel %vm300, %v3171, 0
        %v3262 = vsel %vm300, %v3172, 0
        %v3265 = vsel %vm300, %v3173, 0
        %v3268 = vsel %vm300, %v3174, 0
        %v3271 = vsel %vm300, %v3175, 0
        %v3274 = vsel %vm300, %v3176, 0
        %v3277 = vsel %vm300, %v3177, 0
        %v3280 = vsel %vm300, %v3178, 0
        %v3283 = vsel %vm300, %v3179, 0
        %v3286 = vsel %vm300, %v3180, 0
        %v3289 = vsel %vm300, %v3181, 0
        %v3292 = vsel %vm300, %v3182, 0
        %3294 = vmatprep.subr.mxu0 0.0
        %3295 = vmatpush1.msra.mxu0 %v3184
        %3296 = vmatprep.subr.mxu0 0.0
        %3297 = vmatpush1.msra.mxu0 %v3185
        %3298 = vmatprep.subr.mxu0 0.0
        %3299 = vmatpush1.msra.mxu0 0.0
        %3300 = vmatprep.subr.mxu0 0.0
        %3301 = vmatpush1.msra.mxu0 0.0
        %3302 = vmatprep.subr.mxu0 0.0
        %3303 = vmatpush1.msra.mxu0 0.0
        %3304 = vmatprep.subr.mxu0 0.0
        %3305 = vmatpush1.msra.mxu0 0.0
        %3306 = vmatprep.subr.mxu0 0.0
        %3307 = vmatpush1.msra.mxu0 0.0
        %3308 = vmatprep.subr.mxu0 0.0
        %3309 = vmatpush1.msra.mxu0 0.0
        %3310 = vmatprep.subr.mxu0 0.0
        %3311 = vmatpush1.msra.mxu0 0.0
        %3312 = vmatprep.subr.mxu0 0.0
        %3313 = vmatpush1.msra.mxu0 0.0
        %3314 = vmatprep.subr.mxu0 0.0
        %3315 = vmatpush1.msra.mxu0 0.0
        %3316 = vmatprep.subr.mxu0 0.0
        %3317 = vmatpush1.msra.mxu0 0.0
        %3318 = vmatprep.subr.mxu0 0.0
        %3319 = vmatpush1.msra.mxu0 0.0
        %3320 = vmatprep.subr.mxu0 0.0
        %3321 = vmatpush1.msra.mxu0 0.0
        %3322 = vmatprep.subr.mxu0 0.0
        %3323 = vmatpush1.msra.mxu0 0.0
        %3324 = vmatprep.subr.mxu0 0.0
        %3325 = vmatpush1.msra.mxu0 0.0
        %3326 = vmatprep.subr.mxu0 0.0
        %3327 = vmatpush1.msra.mxu0 0.0
        %3328 = vmatprep.subr.mxu0 0.0
        %3329 = vmatpush1.msra.mxu0 0.0
        %3330 = vmatprep.subr.mxu0 0.0
        %3331 = vmatpush1.msra.mxu0 0.0
        %3332 = vmatprep.subr.mxu0 0.0
        %3333 = vmatpush1.msra.mxu0 0.0
        %3334 = vmatprep.subr.mxu0 0.0
        %3335 = vmatpush1.msra.mxu0 0.0
        %3336 = vmatprep.subr.mxu0 0.0
        %3337 = vmatpush1.msra.mxu0 0.0
        %3338 = vmatprep.subr.mxu0 0.0
        %3339 = vmatpush1.msra.mxu0 0.0
        %3340 = vmatprep.subr.mxu0 0.0
        %3341 = vmatpush1.msra.mxu0 0.0
        %3342 = vmatprep.subr.mxu0 0.0
        %3343 = vmatpush1.msra.mxu0 0.0
        %3344 = vmatprep.subr.mxu0 0.0
        %3345 = vmatpush1.msra.mxu0 0.0
        %3346 = vmatprep.subr.mxu0 0.0
        %3347 = vmatpush1.msra.mxu0 0.0
        %3348 = vmatprep.subr.mxu0 0.0
        %3349 = vmatpush1.msra.mxu0 0.0
        %3350 = vmatprep.subr.mxu0 0.0
        %3351 = vmatpush1.msra.mxu0 0.0
        %3352 = vmatprep.subr.mxu0 0.0
        %3353 = vmatpush1.msra.mxu0 0.0
        %3354 = vmatprep.subr.mxu0 0.0
        %3355 = vmatpush1.msra.mxu0 0.0
        %3356 = vmatprep.subr.mxu0 0.0
        %3357 = vmatpush1.msra.mxu0 0.0
        %3358 = vmatprep.mubr.f32.mxu0 0.0
        %3359 = vmatmul.mubr.f32.gmra.mrb[0].mxu0 %v3187
        %v3360 = vpop.f32.mrb[0].mxu0
        %v3361 = vadd.f32 0.0, %v3360
        %v3362 = vpop.f32.mrb[0].mxu0
        %3363 = vmatprep.mubr.f32.mxu0 0.0
        %3364 = vmatmul.mubr.f32.gmra.mrb[0].mxu0 %v3190
        %v3365 = vpop.f32.mrb[0].mxu0
        %v3366 = vadd.f32 0.0, %v3365
        %v3367 = vpop.f32.mrb[0].mxu0
        %3368 = vmatprep.mubr.f32.mxu0 0.0
        %3369 = vmatmul.mubr.f32.gmra.mrb[0].mxu0 %v3193
        %v3370 = vpop.f32.mrb[0].mxu0
        %v3371 = vadd.f32 0.0, %v3370
        %v3372 = vpop.f32.mrb[0].mxu0
        %3373 = vmatprep.mubr.f32.mxu0 0.0
        %3374 = vmatmul.mubr.f32.gmra.mrb[0].mxu0 %v3196
        %v3375 = vpop.f32.mrb[0].mxu0
        %v3376 = vadd.f32 0.0, %v3375
        %v3377 = vpop.f32.mrb[0].mxu0
        %3378 = vmatprep.mubr.f32.mxu0 0.0
        %3379 = vmatmul.mubr.f32.gmra.mrb[0].mxu0 %v3199
        %v3380 = vpop.f32.mrb[0].mxu0
        %v3381 = vadd.f32 0.0, %v3380
        %v3382 = vpop.f32.mrb[0].mxu0
        %3383 = vmatprep.mubr.f32.mxu0 0.0
        %3384 = vmatmul.mubr.f32.gmra.mrb[0].mxu0 %v3202
        %v3385 = vpop.f32.mrb[0].mxu0
        %v3386 = vadd.f32 0.0, %v3385
        %v3387 = vpop.f32.mrb[0].mxu0
        %3388 = vmatprep.mubr.f32.mxu0 0.0
        %3389 = vmatmul.mubr.f32.gmra.mrb[0].mxu0 %v3205
        %v3390 = vpop.f32.mrb[0].mxu0
        %v3391 = vadd.f32 0.0, %v3390
        %v3392 = vpop.f32.mrb[0].mxu0
        %3393 = vmatprep.mubr.f32.mxu0 0.0
        %3394 = vmatmul.mubr.f32.gmra.mrb[0].mxu0 %v3208
        %v3395 = vpop.f32.mrb[0].mxu0
        %v3396 = vadd.f32 0.0, %v3395
        %v3397 = vpop.f32.mrb[0].mxu0
        %3398 = vmatprep.mubr.f32.mxu0 0.0
        %3399 = vmatmul.mubr.f32.gmra.mrb[0].mxu0 %v3211
        %v3400 = vpop.f32.mrb[0].mxu0
        %v3401 = vadd.f32 0.0, %v3400
        %v3402 = vpop.f32.mrb[0].mxu0
        %3403 = vmatprep.mubr.f32.mxu0 0.0
        %3404 = vmatmul.mubr.f32.gmra.mrb[0].mxu0 %v3214
        %v3405 = vpop.f32.mrb[0].mxu0
        %v3406 = vadd.f32 0.0, %v3405
        %v3407 = vpop.f32.mrb[0].mxu0
        %3408 = vmatprep.mubr.f32.mxu0 0.0
        %3409 = vmatmul.mubr.f32.gmra.mrb[0].mxu0 %v3217
        %v3410 = vpop.f32.mrb[0].mxu0
        %v3411 = vadd.f32 0.0, %v3410
        %v3412 = vpop.f32.mrb[0].mxu0
        %3413 = vmatprep.mubr.f32.mxu0 0.0
        %3414 = vmatmul.mubr.f32.gmra.mrb[0].mxu0 %v3220
        %v3415 = vpop.f32.mrb[0].mxu0
        %v3416 = vadd.f32 0.0, %v3415
        %v3417 = vpop.f32.mrb[0].mxu0
        %3418 = vmatprep.mubr.f32.mxu0 0.0
        %3419 = vmatmul.mubr.f32.gmra.mrb[0].mxu0 %v3223
        %v3420 = vpop.f32.mrb[0].mxu0
        %v3421 = vadd.f32 0.0, %v3420
        %v3422 = vpop.f32.mrb[0].mxu0
        %3423 = vmatprep.mubr.f32.mxu0 0.0
        %3424 = vmatmul.mubr.f32.gmra.mrb[0].mxu0 %v3226
        %v3425 = vpop.f32.mrb[0].mxu0
        %v3426 = vadd.f32 0.0, %v3425
        %v3427 = vpop.f32.mrb[0].mxu0
        %3428 = vmatprep.mubr.f32.mxu0 0.0
        %3429 = vmatmul.mubr.f32.gmra.mrb[0].mxu0 %v3229
        %v3430 = vpop.f32.mrb[0].mxu0
        %v3431 = vadd.f32 0.0, %v3430
        %v3432 = vpop.f32.mrb[0].mxu0
        %3433 = vmatprep.mubr.f32.mxu0 0.0
        %3434 = vmatmul.mubr.f32.gmra.mrb[0].mxu0 %v3232
        %v3435 = vpop.f32.mrb[0].mxu0
        %v3436 = vadd.f32 0.0, %v3435
        %v3437 = vpop.f32.mrb[0].mxu0
        %3438 = vmatprep.mubr.f32.mxu0 0.0
        %3439 = vmatmul.mubr.f32.gmra.mrb[0].mxu0 %v3235
        %v3440 = vpop.f32.mrb[0].mxu0
        %v3441 = vadd.f32 0.0, %v3440
        %v3442 = vpop.f32.mrb[0].mxu0
        %3443 = vmatprep.mubr.f32.mxu0 0.0
        %3444 = vmatmul.mubr.f32.gmra.mrb[0].mxu0 %v3238
        %v3445 = vpop.f32.mrb[0].mxu0
        %v3446 = vadd.f32 0.0, %v3445
        %v3447 = vpop.f32.mrb[0].mxu0
        %3448 = vmatprep.mubr.f32.mxu0 0.0
        %3449 = vmatmul.mubr.f32.gmra.mrb[0].mxu0 %v3241
        %v3450 = vpop.f32.mrb[0].mxu0
        %v3451 = vadd.f32 0.0, %v3450
        %v3452 = vpop.f32.mrb[0].mxu0
        %3453 = vmatprep.mubr.f32.mxu0 0.0
        %3454 = vmatmul.mubr.f32.gmra.mrb[0].mxu0 %v3244
        %v3455 = vpop.f32.mrb[0].mxu0
        %v3456 = vadd.f32 0.0, %v3455
        %v3457 = vpop.f32.mrb[0].mxu0
        %3458 = vmatprep.mubr.f32.mxu0 0.0
        %3459 = vmatmul.mubr.f32.gmra.mrb[0].mxu0 %v3247
        %v3460 = vpop.f32.mrb[0].mxu0
        %v3461 = vadd.f32 0.0, %v3460
        %v3462 = vpop.f32.mrb[0].mxu0
        %3463 = vmatprep.mubr.f32.mxu0 0.0
        %3464 = vmatmul.mubr.f32.gmra.mrb[0].mxu0 %v3250
        %v3465 = vpop.f32.mrb[0].mxu0
        %v3466 = vadd.f32 0.0, %v3465
        %v3467 = vpop.f32.mrb[0].mxu0
        %3468 = vmatprep.mubr.f32.mxu0 0.0
        %3469 = vmatmul.mubr.f32.gmra.mrb[0].mxu0 %v3253
        %v3470 = vpop.f32.mrb[0].mxu0
        %v3471 = vadd.f32 0.0, %v3470
        %v3472 = vpop.f32.mrb[0].mxu0
        %3473 = vmatprep.mubr.f32.mxu0 0.0
        %3474 = vmatmul.mubr.f32.gmra.mrb[0].mxu0 %v3256
        %v3475 = vpop.f32.mrb[0].mxu0
        %v3476 = vadd.f32 0.0, %v3475
        %v3477 = vpop.f32.mrb[0].mxu0
        %3478 = vmatprep.mubr.f32.mxu0 0.0
        %3479 = vmatmul.mubr.f32.gmra.mrb[0].mxu0 %v3259
        %v3480 = vpop.f32.mrb[0].mxu0
        %v3481 = vadd.f32 0.0, %v3480
        %v3482 = vpop.f32.mrb[0].mxu0
        %3483 = vmatprep.mubr.f32.mxu0 0.0
        %3484 = vmatmul.mubr.f32.gmra.mrb[0].mxu0 %v3262
        %v3485 = vpop.f32.mrb[0].mxu0
        %v3486 = vadd.f32 0.0, %v3485
        %v3487 = vpop.f32.mrb[0].mxu0
        %3488 = vmatprep.mubr.f32.mxu0 0.0
        %3489 = vmatmul.mubr.f32.gmra.mrb[0].mxu0 %v3265
        %v3490 = vpop.f32.mrb[0].mxu0
        %v3491 = vadd.f32 0.0, %v3490
        %v3492 = vpop.f32.mrb[0].mxu0
        %3493 = vmatprep.mubr.f32.mxu0 0.0
        %3494 = vmatmul.mubr.f32.gmra.mrb[0].mxu0 %v3268
        %v3495 = vpop.f32.mrb[0].mxu0
        %v3496 = vadd.f32 0.0, %v3495
        %v3497 = vpop.f32.mrb[0].mxu0
        %3498 = vmatprep.mubr.f32.mxu0 0.0
        %3499 = vmatmul.mubr.f32.gmra.mrb[0].mxu0 %v3271
        %v3500 = vpop.f32.mrb[0].mxu0
        %v3501 = vadd.f32 0.0, %v3500
        %v3502 = vpop.f32.mrb[0].mxu0
        %3503 = vmatprep.mubr.f32.mxu0 0.0
        %3504 = vmatmul.mubr.f32.gmra.mrb[0].mxu0 %v3274
        %v3505 = vpop.f32.mrb[0].mxu0
        %v3506 = vadd.f32 0.0, %v3505
        %v3507 = vpop.f32.mrb[0].mxu0
        %3508 = vmatprep.mubr.f32.mxu0 0.0
        %3509 = vmatmul.mubr.f32.gmra.mrb[0].mxu0 %v3277
        %v3510 = vpop.f32.mrb[0].mxu0
        %v3511 = vadd.f32 0.0, %v3510
        %v3512 = vpop.f32.mrb[0].mxu0
        %3513 = vmatprep.mubr.f32.mxu0 0.0
        %3514 = vmatmul.mubr.f32.gmra.mrb[0].mxu0 %v3280
        %v3515 = vpop.f32.mrb[0].mxu0
        %v3516 = vadd.f32 0.0, %v3515
        %v3517 = vpop.f32.mrb[0].mxu0
        %3518 = vmatprep.mubr.f32.mxu0 0.0
        %3519 = vmatmul.mubr.f32.gmra.mrb[0].mxu0 %v3283
        %v3520 = vpop.f32.mrb[0].mxu0
        %v3521 = vadd.f32 0.0, %v3520
        %v3522 = vpop.f32.mrb[0].mxu0
        %3523 = vmatprep.mubr.f32.mxu0 0.0
        %3524 = vmatmul.mubr.f32.gmra.mrb[0].mxu0 %v3286
        %v3525 = vpop.f32.mrb[0].mxu0
        %v3526 = vadd.f32 0.0, %v3525
        %v3527 = vpop.f32.mrb[0].mxu0
        %3528 = vmatprep.mubr.f32.mxu0 0.0
        %3529 = vmatmul.mubr.f32.gmra.mrb[0].mxu0 %v3289
        %v3530 = vpop.f32.mrb[0].mxu0
        %v3531 = vadd.f32 0.0, %v3530
        %v3532 = vpop.f32.mrb[0].mxu0
        %3533 = vmatprep.mubr.f32.mxu0 0.0
        %3534 = vmatmul.mubr.f32.gmra.mrb[0].mxu0 %v3292
        %v3535 = vpop.f32.mrb[0].mxu0
        %v3536 = vadd.f32 0.0, %v3535
        %v3537 = vpop.f32.mrb[0].mxu0
        %3538 = vdwg.mxu0
        %v3539 = vadd.f32 %v3111, %v3361
        %v3540 = vadd.f32 %v3112, %v3366
        %v3541 = vadd.f32 %v3113, %v3371
        %v3542 = vadd.f32 %v3114, %v3376
        %v3543 = vadd.f32 %v3115, %v3381
        %v3544 = vadd.f32 %v3116, %v3386
        %v3545 = vadd.f32 %v3117, %v3391
        %v3546 = vadd.f32 %v3118, %v3396
        %v3547 = vadd.f32 %v3119, %v3401
        %v3548 = vadd.f32 %v3120, %v3406
        %v3549 = vadd.f32 %v3121, %v3411
        %v3550 = vadd.f32 %v3122, %v3416
        %v3551 = vadd.f32 %v3123, %v3421
        %v3552 = vadd.f32 %v3124, %v3426
        %v3553 = vadd.f32 %v3125, %v3431
        %v3554 = vadd.f32 %v3126, %v3436
        %v3555 = vadd.f32 %v3127, %v3441
        %v3556 = vadd.f32 %v3128, %v3446
        %v3557 = vadd.f32 %v3129, %v3451
        %v3558 = vadd.f32 %v3130, %v3456
        %v3559 = vadd.f32 %v3131, %v3461
        %v3560 = vadd.f32 %v3132, %v3466
        %v3561 = vadd.f32 %v3133, %v3471
        %v3562 = vadd.f32 %v3134, %v3476
        %v3563 = vadd.f32 %v3135, %v3481
        %v3564 = vadd.f32 %v3136, %v3486
        %v3565 = vadd.f32 %v3137, %v3491
        %v3566 = vadd.f32 %v3138, %v3496
        %v3567 = vadd.f32 %v3139, %v3501
        %v3568 = vadd.f32 %v3140, %v3506
        %v3569 = vadd.f32 %v3141, %v3511
        %v3570 = vadd.f32 %v3142, %v3516
        %v3571 = vadd.f32 %v3143, %v3521
        %v3572 = vadd.f32 %v3144, %v3526
        %v3573 = vadd.f32 %v3145, %v3531
        %v3574 = vadd.f32 %v3146, %v3536
        %v3575 = vld [vmem:[%s222 + $0x26] sm:$0xff]
        %v3576 = vld [vmem:[%s222 + $0x2e] sm:$0xff]
        %v3577 = vld [vmem:[%s222 + $0x36] sm:$0xff]
        %v3578 = vld [vmem:[%s222 + $0x3e] sm:$0xff]
        %v3579 = vld [vmem:[%s222 + $0x46] sm:$0xff]
        %v3580 = vld [vmem:[%s222 + $0x4e] sm:$0xff]
        %v3581 = vld [vmem:[%s222 + $0x56] sm:$0xff]
        %v3582 = vld [vmem:[%s222 + $0x5e] sm:$0xff]
        %v3583 = vld [vmem:[%s222 + $0x66] sm:$0xff]
        %v3584 = vld [vmem:[%s222 + $0x6e] sm:$0xff]
        %v3585 = vld [vmem:[%s222 + $0x76] sm:$0xff]
        %v3586 = vld [vmem:[%s222 + $0x7e] sm:$0xff]
        %v3587 = vld [vmem:[%s222 + $0x86] sm:$0xff]
        %v3588 = vld [vmem:[%s222 + $0x8e] sm:$0xff]
        %v3589 = vld [vmem:[%s222 + $0x96] sm:$0xff]
        %v3590 = vld [vmem:[%s222 + $0x9e] sm:$0xff]
        %v3591 = vld [vmem:[%s222 + $0xa6] sm:$0xff]
        %v3592 = vld [vmem:[%s222 + $0xae] sm:$0xff]
        %v3593 = vld [vmem:[%s222 + $0xb6] sm:$0xff]
        %v3594 = vld [vmem:[%s222 + $0xbe] sm:$0xff]
        %v3595 = vld [vmem:[%s222 + $0xc6] sm:$0xff]
        %v3596 = vld [vmem:[%s222 + $0xce] sm:$0xff]
        %v3597 = vld [vmem:[%s222 + $0xd6] sm:$0xff]
        %v3598 = vld [vmem:[%s222 + $0xde] sm:$0xff]
        %v3599 = vld [vmem:[%s222 + $0xe6] sm:$0xff]
        %v3600 = vld [vmem:[%s222 + $0xee] sm:$0xff]
        %v3601 = vld [vmem:[%s222 + $0xf6] sm:$0xff]
        %v3602 = vld [vmem:[%s222 + $0xfe] sm:$0xff]
        %v3603 = vld [vmem:[%s222 + $0x106] sm:$0xff]
        %v3604 = vld [vmem:[%s222 + $0x10e] sm:$0xff]
        %v3605 = vld [vmem:[%s222 + $0x116] sm:$0xff]
        %v3606 = vld [vmem:[%s222 + $0x11e] sm:$0xff]
        %v3607 = vld [vmem:[%s222 + $0x126] sm:$0xff]
        %v3608 = vld [vmem:[%s222 + $0x12e] sm:$0xff]
        %v3609 = vld [vmem:[%s222 + $0x136] sm:$0xff]
        %v3610 = vld [vmem:[%s222 + $0x13e] sm:$0xff]
        %s3611 = scalar_lea.vmem %s1, 128
        %v3612 = vld [vmem:[%s3611] sm:$0xff]
        %v3613 = vld [vmem:[%s3611 + $0x8] sm:$0xff]
        %v3615 = vsel %vm300, %v3575, 0
        %v3618 = vsel %vm300, %v3576, 0
        %v3621 = vsel %vm300, %v3577, 0
        %v3624 = vsel %vm300, %v3578, 0
        %v3627 = vsel %vm300, %v3579, 0
        %v3630 = vsel %vm300, %v3580, 0
        %v3633 = vsel %vm300, %v3581, 0
        %v3636 = vsel %vm300, %v3582, 0
        %v3639 = vsel %vm300, %v3583, 0
        %v3642 = vsel %vm300, %v3584, 0
        %v3645 = vsel %vm300, %v3585, 0
        %v3648 = vsel %vm300, %v3586, 0
        %v3651 = vsel %vm300, %v3587, 0
        %v3654 = vsel %vm300, %v3588, 0
        %v3657 = vsel %vm300, %v3589, 0
        %v3660 = vsel %vm300, %v3590, 0
        %v3663 = vsel %vm300, %v3591, 0
        %v3666 = vsel %vm300, %v3592, 0
        %v3669 = vsel %vm300, %v3593, 0
        %v3672 = vsel %vm300, %v3594, 0
        %v3675 = vsel %vm300, %v3595, 0
        %v3678 = vsel %vm300, %v3596, 0
        %v3681 = vsel %vm300, %v3597, 0
        %v3684 = vsel %vm300, %v3598, 0
        %v3687 = vsel %vm300, %v3599, 0
        %v3690 = vsel %vm300, %v3600, 0
        %v3693 = vsel %vm300, %v3601, 0
        %v3696 = vsel %vm300, %v3602, 0
        %v3699 = vsel %vm300, %v3603, 0
        %v3702 = vsel %vm300, %v3604, 0
        %v3705 = vsel %vm300, %v3605, 0
        %v3708 = vsel %vm300, %v3606, 0
        %v3711 = vsel %vm300, %v3607, 0
        %v3714 = vsel %vm300, %v3608, 0
        %v3717 = vsel %vm300, %v3609, 0
        %v3720 = vsel %vm300, %v3610, 0
        %3722 = vmatprep.subr.mxu0 0.0
        %3723 = vmatpush1.msra.mxu0 %v3612
        %3724 = vmatprep.subr.mxu0 0.0
        %3725 = vmatpush1.msra.mxu0 %v3613
        %3726 = vmatprep.subr.mxu0 0.0
        %3727 = vmatpush1.msra.mxu0 0.0
        %3728 = vmatprep.subr.mxu0 0.0
        %3729 = vmatpush1.msra.mxu0 0.0
        %3730 = vmatprep.subr.mxu0 0.0
        %3731 = vmatpush1.msra.mxu0 0.0
        %3732 = vmatprep.subr.mxu0 0.0
        %3733 = vmatpush1.msra.mxu0 0.0
        %3734 = vmatprep.subr.mxu0 0.0
        %3735 = vmatpush1.msra.mxu0 0.0
        %3736 = vmatprep.subr.mxu0 0.0
        %3737 = vmatpush1.msra.mxu0 0.0
        %3738 = vmatprep.subr.mxu0 0.0
        %3739 = vmatpush1.msra.mxu0 0.0
        %3740 = vmatprep.subr.mxu0 0.0
        %3741 = vmatpush1.msra.mxu0 0.0
        %3742 = vmatprep.subr.mxu0 0.0
        %3743 = vmatpush1.msra.mxu0 0.0
        %3744 = vmatprep.subr.mxu0 0.0
        %3745 = vmatpush1.msra.mxu0 0.0
        %3746 = vmatprep.subr.mxu0 0.0
        %3747 = vmatpush1.msra.mxu0 0.0
        %3748 = vmatprep.subr.mxu0 0.0
        %3749 = vmatpush1.msra.mxu0 0.0
        %3750 = vmatprep.subr.mxu0 0.0
        %3751 = vmatpush1.msra.mxu0 0.0
        %3752 = vmatprep.subr.mxu0 0.0
        %3753 = vmatpush1.msra.mxu0 0.0
        %3754 = vmatprep.subr.mxu0 0.0
        %3755 = vmatpush1.msra.mxu0 0.0
        %3756 = vmatprep.subr.mxu0 0.0
        %3757 = vmatpush1.msra.mxu0 0.0
        %3758 = vmatprep.subr.mxu0 0.0
        %3759 = vmatpush1.msra.mxu0 0.0
        %3760 = vmatprep.subr.mxu0 0.0
        %3761 = vmatpush1.msra.mxu0 0.0
        %3762 = vmatprep.subr.mxu0 0.0
        %3763 = vmatpush1.msra.mxu0 0.0
        %3764 = vmatprep.subr.mxu0 0.0
        %3765 = vmatpush1.msra.mxu0 0.0
        %3766 = vmatprep.subr.mxu0 0.0
        %3767 = vmatpush1.msra.mxu0 0.0
        %3768 = vmatprep.subr.mxu0 0.0
        %3769 = vmatpush1.msra.mxu0 0.0
        %3770 = vmatprep.subr.mxu0 0.0
        %3771 = vmatpush1.msra.mxu0 0.0
        %3772 = vmatprep.subr.mxu0 0.0
        %3773 = vmatpush1.msra.mxu0 0.0
        %3774 = vmatprep.subr.mxu0 0.0
        %3775 = vmatpush1.msra.mxu0 0.0
        %3776 = vmatprep.subr.mxu0 0.0
        %3777 = vmatpush1.msra.mxu0 0.0
        %3778 = vmatprep.subr.mxu0 0.0
        %3779 = vmatpush1.msra.mxu0 0.0
        %3780 = vmatprep.subr.mxu0 0.0
        %3781 = vmatpush1.msra.mxu0 0.0
        %3782 = vmatprep.subr.mxu0 0.0
        %3783 = vmatpush1.msra.mxu0 0.0
        %3784 = vmatprep.subr.mxu0 0.0
        %3785 = vmatpush1.msra.mxu0 0.0
        %3786 = vmatprep.mubr.f32.mxu0 0.0
        %3787 = vmatmul.mubr.f32.gmra.mrb[0].mxu0 %v3615
        %v3788 = vpop.f32.mrb[0].mxu0
        %v3789 = vadd.f32 0.0, %v3788
        %v3790 = vpop.f32.mrb[0].mxu0
        %3791 = vmatprep.mubr.f32.mxu0 0.0
        %3792 = vmatmul.mubr.f32.gmra.mrb[0].mxu0 %v3618
        %v3793 = vpop.f32.mrb[0].mxu0
        %v3794 = vadd.f32 0.0, %v3793
        %v3795 = vpop.f32.mrb[0].mxu0
        %3796 = vmatprep.mubr.f32.mxu0 0.0
        %3797 = vmatmul.mubr.f32.gmra.mrb[0].mxu0 %v3621
        %v3798 = vpop.f32.mrb[0].mxu0
        %v3799 = vadd.f32 0.0, %v3798
        %v3800 = vpop.f32.mrb[0].mxu0
        %3801 = vmatprep.mubr.f32.mxu0 0.0
        %3802 = vmatmul.mubr.f32.gmra.mrb[0].mxu0 %v3624
        %v3803 = vpop.f32.mrb[0].mxu0
        %v3804 = vadd.f32 0.0, %v3803
        %v3805 = vpop.f32.mrb[0].mxu0
        %3806 = vmatprep.mubr.f32.mxu0 0.0
        %3807 = vmatmul.mubr.f32.gmra.mrb[0].mxu0 %v3627
        %v3808 = vpop.f32.mrb[0].mxu0
        %v3809 = vadd.f32 0.0, %v3808
        %v3810 = vpop.f32.mrb[0].mxu0
        %3811 = vmatprep.mubr.f32.mxu0 0.0
        %3812 = vmatmul.mubr.f32.gmra.mrb[0].mxu0 %v3630
        %v3813 = vpop.f32.mrb[0].mxu0
        %v3814 = vadd.f32 0.0, %v3813
        %v3815 = vpop.f32.mrb[0].mxu0
        %3816 = vmatprep.mubr.f32.mxu0 0.0
        %3817 = vmatmul.mubr.f32.gmra.mrb[0].mxu0 %v3633
        %v3818 = vpop.f32.mrb[0].mxu0
        %v3819 = vadd.f32 0.0, %v3818
        %v3820 = vpop.f32.mrb[0].mxu0
        %3821 = vmatprep.mubr.f32.mxu0 0.0
        %3822 = vmatmul.mubr.f32.gmra.mrb[0].mxu0 %v3636
        %v3823 = vpop.f32.mrb[0].mxu0
        %v3824 = vadd.f32 0.0, %v3823
        %v3825 = vpop.f32.mrb[0].mxu0
        %3826 = vmatprep.mubr.f32.mxu0 0.0
        %3827 = vmatmul.mubr.f32.gmra.mrb[0].mxu0 %v3639
        %v3828 = vpop.f32.mrb[0].mxu0
        %v3829 = vadd.f32 0.0, %v3828
        %v3830 = vpop.f32.mrb[0].mxu0
        %3831 = vmatprep.mubr.f32.mxu0 0.0
        %3832 = vmatmul.mubr.f32.gmra.mrb[0].mxu0 %v3642
        %v3833 = vpop.f32.mrb[0].mxu0
        %v3834 = vadd.f32 0.0, %v3833
        %v3835 = vpop.f32.mrb[0].mxu0
        %3836 = vmatprep.mubr.f32.mxu0 0.0
        %3837 = vmatmul.mubr.f32.gmra.mrb[0].mxu0 %v3645
        %v3838 = vpop.f32.mrb[0].mxu0
        %v3839 = vadd.f32 0.0, %v3838
        %v3840 = vpop.f32.mrb[0].mxu0
        %3841 = vmatprep.mubr.f32.mxu0 0.0
        %3842 = vmatmul.mubr.f32.gmra.mrb[0].mxu0 %v3648
        %v3843 = vpop.f32.mrb[0].mxu0
        %v3844 = vadd.f32 0.0, %v3843
        %v3845 = vpop.f32.mrb[0].mxu0
        %3846 = vmatprep.mubr.f32.mxu0 0.0
        %3847 = vmatmul.mubr.f32.gmra.mrb[0].mxu0 %v3651
        %v3848 = vpop.f32.mrb[0].mxu0
        %v3849 = vadd.f32 0.0, %v3848
        %v3850 = vpop.f32.mrb[0].mxu0
        %3851 = vmatprep.mubr.f32.mxu0 0.0
        %3852 = vmatmul.mubr.f32.gmra.mrb[0].mxu0 %v3654
        %v3853 = vpop.f32.mrb[0].mxu0
        %v3854 = vadd.f32 0.0, %v3853
        %v3855 = vpop.f32.mrb[0].mxu0
        %3856 = vmatprep.mubr.f32.mxu0 0.0
        %3857 = vmatmul.mubr.f32.gmra.mrb[0].mxu0 %v3657
        %v3858 = vpop.f32.mrb[0].mxu0
        %v3859 = vadd.f32 0.0, %v3858
        %v3860 = vpop.f32.mrb[0].mxu0
        %3861 = vmatprep.mubr.f32.mxu0 0.0
        %3862 = vmatmul.mubr.f32.gmra.mrb[0].mxu0 %v3660
        %v3863 = vpop.f32.mrb[0].mxu0
        %v3864 = vadd.f32 0.0, %v3863
        %v3865 = vpop.f32.mrb[0].mxu0
        %3866 = vmatprep.mubr.f32.mxu0 0.0
        %3867 = vmatmul.mubr.f32.gmra.mrb[0].mxu0 %v3663
        %v3868 = vpop.f32.mrb[0].mxu0
        %v3869 = vadd.f32 0.0, %v3868
        %v3870 = vpop.f32.mrb[0].mxu0
        %3871 = vmatprep.mubr.f32.mxu0 0.0
        %3872 = vmatmul.mubr.f32.gmra.mrb[0].mxu0 %v3666
        %v3873 = vpop.f32.mrb[0].mxu0
        %v3874 = vadd.f32 0.0, %v3873
        %v3875 = vpop.f32.mrb[0].mxu0
        %3876 = vmatprep.mubr.f32.mxu0 0.0
        %3877 = vmatmul.mubr.f32.gmra.mrb[0].mxu0 %v3669
        %v3878 = vpop.f32.mrb[0].mxu0
        %v3879 = vadd.f32 0.0, %v3878
        %v3880 = vpop.f32.mrb[0].mxu0
        %3881 = vmatprep.mubr.f32.mxu0 0.0
        %3882 = vmatmul.mubr.f32.gmra.mrb[0].mxu0 %v3672
        %v3883 = vpop.f32.mrb[0].mxu0
        %v3884 = vadd.f32 0.0, %v3883
        %v3885 = vpop.f32.mrb[0].mxu0
        %3886 = vmatprep.mubr.f32.mxu0 0.0
        %3887 = vmatmul.mubr.f32.gmra.mrb[0].mxu0 %v3675
        %v3888 = vpop.f32.mrb[0].mxu0
        %v3889 = vadd.f32 0.0, %v3888
        %v3890 = vpop.f32.mrb[0].mxu0
        %3891 = vmatprep.mubr.f32.mxu0 0.0
        %3892 = vmatmul.mubr.f32.gmra.mrb[0].mxu0 %v3678
        %v3893 = vpop.f32.mrb[0].mxu0
        %v3894 = vadd.f32 0.0, %v3893
        %v3895 = vpop.f32.mrb[0].mxu0
        %3896 = vmatprep.mubr.f32.mxu0 0.0
        %3897 = vmatmul.mubr.f32.gmra.mrb[0].mxu0 %v3681
        %v3898 = vpop.f32.mrb[0].mxu0
        %v3899 = vadd.f32 0.0, %v3898
        %v3900 = vpop.f32.mrb[0].mxu0
        %3901 = vmatprep.mubr.f32.mxu0 0.0
        %3902 = vmatmul.mubr.f32.gmra.mrb[0].mxu0 %v3684
        %v3903 = vpop.f32.mrb[0].mxu0
        %v3904 = vadd.f32 0.0, %v3903
        %v3905 = vpop.f32.mrb[0].mxu0
        %3906 = vmatprep.mubr.f32.mxu0 0.0
        %3907 = vmatmul.mubr.f32.gmra.mrb[0].mxu0 %v3687
        %v3908 = vpop.f32.mrb[0].mxu0
        %v3909 = vadd.f32 0.0, %v3908
        %v3910 = vpop.f32.mrb[0].mxu0
        %3911 = vmatprep.mubr.f32.mxu0 0.0
        %3912 = vmatmul.mubr.f32.gmra.mrb[0].mxu0 %v3690
        %v3913 = vpop.f32.mrb[0].mxu0
        %v3914 = vadd.f32 0.0, %v3913
        %v3915 = vpop.f32.mrb[0].mxu0
        %3916 = vmatprep.mubr.f32.mxu0 0.0
        %3917 = vmatmul.mubr.f32.gmra.mrb[0].mxu0 %v3693
        %v3918 = vpop.f32.mrb[0].mxu0
        %v3919 = vadd.f32 0.0, %v3918
        %v3920 = vpop.f32.mrb[0].mxu0
        %3921 = vmatprep.mubr.f32.mxu0 0.0
        %3922 = vmatmul.mubr.f32.gmra.mrb[0].mxu0 %v3696
        %v3923 = vpop.f32.mrb[0].mxu0
        %v3924 = vadd.f32 0.0, %v3923
        %v3925 = vpop.f32.mrb[0].mxu0
        %3926 = vmatprep.mubr.f32.mxu0 0.0
        %3927 = vmatmul.mubr.f32.gmra.mrb[0].mxu0 %v3699
        %v3928 = vpop.f32.mrb[0].mxu0
        %v3929 = vadd.f32 0.0, %v3928
        %v3930 = vpop.f32.mrb[0].mxu0
        %3931 = vmatprep.mubr.f32.mxu0 0.0
        %3932 = vmatmul.mubr.f32.gmra.mrb[0].mxu0 %v3702
        %v3933 = vpop.f32.mrb[0].mxu0
        %v3934 = vadd.f32 0.0, %v3933
        %v3935 = vpop.f32.mrb[0].mxu0
        %3936 = vmatprep.mubr.f32.mxu0 0.0
        %3937 = vmatmul.mubr.f32.gmra.mrb[0].mxu0 %v3705
        %v3938 = vpop.f32.mrb[0].mxu0
        %v3939 = vadd.f32 0.0, %v3938
        %v3940 = vpop.f32.mrb[0].mxu0
        %3941 = vmatprep.mubr.f32.mxu0 0.0
        %3942 = vmatmul.mubr.f32.gmra.mrb[0].mxu0 %v3708
        %v3943 = vpop.f32.mrb[0].mxu0
        %v3944 = vadd.f32 0.0, %v3943
        %v3945 = vpop.f32.mrb[0].mxu0
        %3946 = vmatprep.mubr.f32.mxu0 0.0
        %3947 = vmatmul.mubr.f32.gmra.mrb[0].mxu0 %v3711
        %v3948 = vpop.f32.mrb[0].mxu0
        %v3949 = vadd.f32 0.0, %v3948
        %v3950 = vpop.f32.mrb[0].mxu0
        %3951 = vmatprep.mubr.f32.mxu0 0.0
        %3952 = vmatmul.mubr.f32.gmra.mrb[0].mxu0 %v3714
        %v3953 = vpop.f32.mrb[0].mxu0
        %v3954 = vadd.f32 0.0, %v3953
        %v3955 = vpop.f32.mrb[0].mxu0
        %3956 = vmatprep.mubr.f32.mxu0 0.0
        %3957 = vmatmul.mubr.f32.gmra.mrb[0].mxu0 %v3717
        %v3958 = vpop.f32.mrb[0].mxu0
        %v3959 = vadd.f32 0.0, %v3958
        %v3960 = vpop.f32.mrb[0].mxu0
        %3961 = vmatprep.mubr.f32.mxu0 0.0
        %3962 = vmatmul.mubr.f32.gmra.mrb[0].mxu0 %v3720
        %v3963 = vpop.f32.mrb[0].mxu0
        %v3964 = vadd.f32 0.0, %v3963
        %v3965 = vpop.f32.mrb[0].mxu0
        %3966 = vdwg.mxu0
        %v3967 = vadd.f32 %v3539, %v3789
        %v3968 = vadd.f32 %v3540, %v3794
        %v3969 = vadd.f32 %v3541, %v3799
        %v3970 = vadd.f32 %v3542, %v3804
        %v3971 = vadd.f32 %v3543, %v3809
        %v3972 = vadd.f32 %v3544, %v3814
        %v3973 = vadd.f32 %v3545, %v3819
        %v3974 = vadd.f32 %v3546, %v3824
        %v3975 = vadd.f32 %v3547, %v3829
        %v3976 = vadd.f32 %v3548, %v3834
        %v3977 = vadd.f32 %v3549, %v3839
        %v3978 = vadd.f32 %v3550, %v3844
        %v3979 = vadd.f32 %v3551, %v3849
        %v3980 = vadd.f32 %v3552, %v3854
        %v3981 = vadd.f32 %v3553, %v3859
        %v3982 = vadd.f32 %v3554, %v3864
        %v3983 = vadd.f32 %v3555, %v3869
        %v3984 = vadd.f32 %v3556, %v3874
        %v3985 = vadd.f32 %v3557, %v3879
        %v3986 = vadd.f32 %v3558, %v3884
        %v3987 = vadd.f32 %v3559, %v3889
        %v3988 = vadd.f32 %v3560, %v3894
        %v3989 = vadd.f32 %v3561, %v3899
        %v3990 = vadd.f32 %v3562, %v3904
        %v3991 = vadd.f32 %v3563, %v3909
        %v3992 = vadd.f32 %v3564, %v3914
        %v3993 = vadd.f32 %v3565, %v3919
        %v3994 = vadd.f32 %v3566, %v3924
        %v3995 = vadd.f32 %v3567, %v3929
        %v3996 = vadd.f32 %v3568, %v3934
        %v3997 = vadd.f32 %v3569, %v3939
        %v3998 = vadd.f32 %v3570, %v3944
        %v3999 = vadd.f32 %v3571, %v3949
        %v4000 = vadd.f32 %v3572, %v3954
        %v4001 = vadd.f32 %v3573, %v3959
        %v4002 = vadd.f32 %v3574, %v3964
        %v4003 = vld [vmem:[%s2] sm:$0x1]
        %v4005 = vlaneseq
        %v4006 = vshrl.u32 %v4005, 7
        %v4007 = vsub.s32 0, %v4006
        %v4008 = vrot.slane %v4003, %v4007
        %v4010 = vadd.f32 %v3967, %v4008
        %v4011 = vadd.f32 %v3968, %v4008
        %v4012 = vadd.f32 %v3969, %v4008
        %v4013 = vadd.f32 %v3970, %v4008
        %v4014 = vadd.f32 %v3971, %v4008
        %v4015 = vadd.f32 %v3972, %v4008
        %v4016 = vadd.f32 %v3973, %v4008
        %v4017 = vadd.f32 %v3974, %v4008
        %v4018 = vadd.f32 %v3975, %v4008
        %v4019 = vadd.f32 %v3976, %v4008
        %v4020 = vadd.f32 %v3977, %v4008
        %v4021 = vadd.f32 %v3978, %v4008
        %v4022 = vadd.f32 %v3979, %v4008
        %v4023 = vadd.f32 %v3980, %v4008
        %v4024 = vadd.f32 %v3981, %v4008
        %v4025 = vadd.f32 %v3982, %v4008
        %v4026 = vadd.f32 %v3983, %v4008
        %v4027 = vadd.f32 %v3984, %v4008
        %v4028 = vadd.f32 %v3985, %v4008
        %v4029 = vadd.f32 %v3986, %v4008
        %v4030 = vadd.f32 %v3987, %v4008
        %v4031 = vadd.f32 %v3988, %v4008
        %v4032 = vadd.f32 %v3989, %v4008
        %v4033 = vadd.f32 %v3990, %v4008
        %v4034 = vadd.f32 %v3991, %v4008
        %v4035 = vadd.f32 %v3992, %v4008
        %v4036 = vadd.f32 %v3993, %v4008
        %v4037 = vadd.f32 %v3994, %v4008
        %v4038 = vadd.f32 %v3995, %v4008
        %v4039 = vadd.f32 %v3996, %v4008
        %v4040 = vadd.f32 %v3997, %v4008
        %v4041 = vadd.f32 %v3998, %v4008
        %v4042 = vadd.f32 %v3999, %v4008
        %v4043 = vadd.f32 %v4000, %v4008
        %v4044 = vadd.f32 %v4001, %v4008
        %v4045 = vadd.f32 %v4002, %v4008
        %v4046 = vmax.f32 %v4010, 0.0
        %v4047 = vmax.f32 %v4011, 0.0
        %v4048 = vmax.f32 %v4012, 0.0
        %v4049 = vmax.f32 %v4013, 0.0
        %v4050 = vmax.f32 %v4014, 0.0
        %v4051 = vmax.f32 %v4015, 0.0
        %v4052 = vmax.f32 %v4016, 0.0
        %v4053 = vmax.f32 %v4017, 0.0
        %v4054 = vmax.f32 %v4018, 0.0
        %v4055 = vmax.f32 %v4019, 0.0
        %v4056 = vmax.f32 %v4020, 0.0
        %v4057 = vmax.f32 %v4021, 0.0
        %v4058 = vmax.f32 %v4022, 0.0
        %v4059 = vmax.f32 %v4023, 0.0
        %v4060 = vmax.f32 %v4024, 0.0
        %v4061 = vmax.f32 %v4025, 0.0
        %v4062 = vmax.f32 %v4026, 0.0
        %v4063 = vmax.f32 %v4027, 0.0
        %v4064 = vmax.f32 %v4028, 0.0
        %v4065 = vmax.f32 %v4029, 0.0
        %v4066 = vmax.f32 %v4030, 0.0
        %v4067 = vmax.f32 %v4031, 0.0
        %v4068 = vmax.f32 %v4032, 0.0
        %v4069 = vmax.f32 %v4033, 0.0
        %v4070 = vmax.f32 %v4034, 0.0
        %v4071 = vmax.f32 %v4035, 0.0
        %v4072 = vmax.f32 %v4036, 0.0
        %v4073 = vmax.f32 %v4037, 0.0
        %v4074 = vmax.f32 %v4038, 0.0
        %v4075 = vmax.f32 %v4039, 0.0
        %v4076 = vmax.f32 %v4040, 0.0
        %v4077 = vmax.f32 %v4041, 0.0
        %v4078 = vmax.f32 %v4042, 0.0
        %v4079 = vmax.f32 %v4043, 0.0
        %v4080 = vmax.f32 %v4044, 0.0
        %v4081 = vmax.f32 %v4045, 0.0
        %v4082 = vlaneseq
        %v4083 = vshrl.u32 %v4082, 7
        %v4084 = vadd.s32 %v4083, 8
        %v4085 = vadd.s32 %v4083, 16
        %v4086 = vadd.s32 %v4083, 24
        %v4087 = vadd.s32 %v4083, 32
        %v4088 = vadd.s32 %v4083, 40
        %v4089 = vadd.s32 %v4083, 48
        %v4090 = vadd.s32 %v4083, 56
        %v4091 = vadd.s32 %v4083, 64
        %v4092 = vadd.s32 %v4083, 72
        %v4093 = vadd.s32 %v4083, 80
        %v4094 = vadd.s32 %v4083, 88
        %v4095 = vadd.s32 %v4083, 96
        %v4096 = vadd.s32 %v4083, 104
        %v4097 = vadd.s32 %v4083, 112
        %v4098 = vadd.s32 %v4083, 120
        %v4099 = vadd.s32 %v4083, 128
        %v4100 = vadd.s32 %v4083, 136
        %v4101 = vadd.s32 %v4083, 144
        %v4102 = vadd.s32 %v4083, 152
        %v4103 = vadd.s32 %v4083, 160
        %v4104 = vadd.s32 %v4083, 168
        %v4105 = vadd.s32 %v4083, 176
        %v4106 = vadd.s32 %v4083, 184
        %v4107 = vadd.s32 %v4083, 192
        %v4108 = vadd.s32 %v4083, 200
        %v4109 = vadd.s32 %v4083, 208
        %v4110 = vadd.s32 %v4083, 216
        %v4111 = vadd.s32 %v4083, 224
        %v4112 = vadd.s32 %v4083, 232
        %v4113 = vadd.s32 %v4083, 240
        %v4114 = vadd.s32 %v4083, 248
        %v4115 = vadd.s32 %v4083, 256
        %v4116 = vadd.s32 %v4083, 264
        %v4117 = vadd.s32 %v4083, 272
        %v4118 = vadd.s32 %v4083, 280
        %vm4119 = vcmp.lt.s32.totalorder %v4083, 0
        %v4120 = vsub.s32 0, %v4083
        %v4121 = vsel %vm4119, %v4120, %v4083
        %v4122 = vmul.u32.u64.compose %v4121, 3817748708
        %v4123 = vextract.low.u32 %v4122
        %v4124 = vextract.high.u32 %v4122
        %v4125 = vshrl.u32 %v4124, 4
        %v4126 = vmul.u32 %v4125, 18
        %v4127 = vsub.s32 %v4121, %v4126
        %v4128 = vsub.s32 0, %v4127
        %v4129 = vsel %vm4119, %v4128, %v4127
        %vm4130 = vcmp.lt.s32.totalorder %v4084, 0
        %v4131 = vsub.s32 0, %v4084
        %v4132 = vsel %vm4130, %v4131, %v4084
        %v4133 = vmul.u32.u64.compose %v4132, 3817748708
        %v4134 = vextract.low.u32 %v4133
        %v4135 = vextract.high.u32 %v4133
        %v4136 = vshrl.u32 %v4135, 4
        %v4137 = vmul.u32 %v4136, 18
        %v4138 = vsub.s32 %v4132, %v4137
        %v4139 = vsub.s32 0, %v4138
        %v4140 = vsel %vm4130, %v4139, %v4138
        %vm4141 = vcmp.lt.s32.totalorder %v4085, 0
        %v4142 = vsub.s32 0, %v4085
        %v4143 = vsel %vm4141, %v4142, %v4085
        %v4144 = vmul.u32.u64.compose %v4143, 3817748708
        %v4145 = vextract.low.u32 %v4144
        %v4146 = vextract.high.u32 %v4144
        %v4147 = vshrl.u32 %v4146, 4
        %v4148 = vmul.u32 %v4147, 18
        %v4149 = vsub.s32 %v4143, %v4148
        %v4150 = vsub.s32 0, %v4149
        %v4151 = vsel %vm4141, %v4150, %v4149
        %vm4152 = vcmp.lt.s32.totalorder %v4086, 0
        %v4153 = vsub.s32 0, %v4086
        %v4154 = vsel %vm4152, %v4153, %v4086
        %v4155 = vmul.u32.u64.compose %v4154, 3817748708
        %v4156 = vextract.low.u32 %v4155
        %v4157 = vextract.high.u32 %v4155
        %v4158 = vshrl.u32 %v4157, 4
        %v4159 = vmul.u32 %v4158, 18
        %v4160 = vsub.s32 %v4154, %v4159
        %v4161 = vsub.s32 0, %v4160
        %v4162 = vsel %vm4152, %v4161, %v4160
        %vm4163 = vcmp.lt.s32.totalorder %v4087, 0
        %v4164 = vsub.s32 0, %v4087
        %v4165 = vsel %vm4163, %v4164, %v4087
        %v4166 = vmul.u32.u64.compose %v4165, 3817748708
        %v4167 = vextract.low.u32 %v4166
        %v4168 = vextract.high.u32 %v4166
        %v4169 = vshrl.u32 %v4168, 4
        %v4170 = vmul.u32 %v4169, 18
        %v4171 = vsub.s32 %v4165, %v4170
        %v4172 = vsub.s32 0, %v4171
        %v4173 = vsel %vm4163, %v4172, %v4171
        %vm4174 = vcmp.lt.s32.totalorder %v4088, 0
        %v4175 = vsub.s32 0, %v4088
        %v4176 = vsel %vm4174, %v4175, %v4088
        %v4177 = vmul.u32.u64.compose %v4176, 3817748708
        %v4178 = vextract.low.u32 %v4177
        %v4179 = vextract.high.u32 %v4177
        %v4180 = vshrl.u32 %v4179, 4
        %v4181 = vmul.u32 %v4180, 18
        %v4182 = vsub.s32 %v4176, %v4181
        %v4183 = vsub.s32 0, %v4182
        %v4184 = vsel %vm4174, %v4183, %v4182
        %vm4185 = vcmp.lt.s32.totalorder %v4089, 0
        %v4186 = vsub.s32 0, %v4089
        %v4187 = vsel %vm4185, %v4186, %v4089
        %v4188 = vmul.u32.u64.compose %v4187, 3817748708
        %v4189 = vextract.low.u32 %v4188
        %v4190 = vextract.high.u32 %v4188
        %v4191 = vshrl.u32 %v4190, 4
        %v4192 = vmul.u32 %v4191, 18
        %v4193 = vsub.s32 %v4187, %v4192
        %v4194 = vsub.s32 0, %v4193
        %v4195 = vsel %vm4185, %v4194, %v4193
        %vm4196 = vcmp.lt.s32.totalorder %v4090, 0
        %v4197 = vsub.s32 0, %v4090
        %v4198 = vsel %vm4196, %v4197, %v4090
        %v4199 = vmul.u32.u64.compose %v4198, 3817748708
        %v4200 = vextract.low.u32 %v4199
        %v4201 = vextract.high.u32 %v4199
        %v4202 = vshrl.u32 %v4201, 4
        %v4203 = vmul.u32 %v4202, 18
        %v4204 = vsub.s32 %v4198, %v4203
        %v4205 = vsub.s32 0, %v4204
        %v4206 = vsel %vm4196, %v4205, %v4204
        %vm4207 = vcmp.lt.s32.totalorder %v4091, 0
        %v4208 = vsub.s32 0, %v4091
        %v4209 = vsel %vm4207, %v4208, %v4091
        %v4210 = vmul.u32.u64.compose %v4209, 3817748708
        %v4211 = vextract.low.u32 %v4210
        %v4212 = vextract.high.u32 %v4210
        %v4213 = vshrl.u32 %v4212, 4
        %v4214 = vmul.u32 %v4213, 18
        %v4215 = vsub.s32 %v4209, %v4214
        %v4216 = vsub.s32 0, %v4215
        %v4217 = vsel %vm4207, %v4216, %v4215
        %vm4218 = vcmp.lt.s32.totalorder %v4092, 0
        %v4219 = vsub.s32 0, %v4092
        %v4220 = vsel %vm4218, %v4219, %v4092
        %v4221 = vmul.u32.u64.compose %v4220, 3817748708
        %v4222 = vextract.low.u32 %v4221
        %v4223 = vextract.high.u32 %v4221
        %v4224 = vshrl.u32 %v4223, 4
        %v4225 = vmul.u32 %v4224, 18
        %v4226 = vsub.s32 %v4220, %v4225
        %v4227 = vsub.s32 0, %v4226
        %v4228 = vsel %vm4218, %v4227, %v4226
        %vm4229 = vcmp.lt.s32.totalorder %v4093, 0
        %v4230 = vsub.s32 0, %v4093
        %v4231 = vsel %vm4229, %v4230, %v4093
        %v4232 = vmul.u32.u64.compose %v4231, 3817748708
        %v4233 = vextract.low.u32 %v4232
        %v4234 = vextract.high.u32 %v4232
        %v4235 = vshrl.u32 %v4234, 4
        %v4236 = vmul.u32 %v4235, 18
        %v4237 = vsub.s32 %v4231, %v4236
        %v4238 = vsub.s32 0, %v4237
        %v4239 = vsel %vm4229, %v4238, %v4237
        %vm4240 = vcmp.lt.s32.totalorder %v4094, 0
        %v4241 = vsub.s32 0, %v4094
        %v4242 = vsel %vm4240, %v4241, %v4094
        %v4243 = vmul.u32.u64.compose %v4242, 3817748708
        %v4244 = vextract.low.u32 %v4243
        %v4245 = vextract.high.u32 %v4243
        %v4246 = vshrl.u32 %v4245, 4
        %v4247 = vmul.u32 %v4246, 18
        %v4248 = vsub.s32 %v4242, %v4247
        %v4249 = vsub.s32 0, %v4248
        %v4250 = vsel %vm4240, %v4249, %v4248
        %vm4251 = vcmp.lt.s32.totalorder %v4095, 0
        %v4252 = vsub.s32 0, %v4095
        %v4253 = vsel %vm4251, %v4252, %v4095
        %v4254 = vmul.u32.u64.compose %v4253, 3817748708
        %v4255 = vextract.low.u32 %v4254
        %v4256 = vextract.high.u32 %v4254
        %v4257 = vshrl.u32 %v4256, 4
        %v4258 = vmul.u32 %v4257, 18
        %v4259 = vsub.s32 %v4253, %v4258
        %v4260 = vsub.s32 0, %v4259
        %v4261 = vsel %vm4251, %v4260, %v4259
        %vm4262 = vcmp.lt.s32.totalorder %v4096, 0
        %v4263 = vsub.s32 0, %v4096
        %v4264 = vsel %vm4262, %v4263, %v4096
        %v4265 = vmul.u32.u64.compose %v4264, 3817748708
        %v4266 = vextract.low.u32 %v4265
        %v4267 = vextract.high.u32 %v4265
        %v4268 = vshrl.u32 %v4267, 4
        %v4269 = vmul.u32 %v4268, 18
        %v4270 = vsub.s32 %v4264, %v4269
        %v4271 = vsub.s32 0, %v4270
        %v4272 = vsel %vm4262, %v4271, %v4270
        %vm4273 = vcmp.lt.s32.totalorder %v4097, 0
        %v4274 = vsub.s32 0, %v4097
        %v4275 = vsel %vm4273, %v4274, %v4097
        %v4276 = vmul.u32.u64.compose %v4275, 3817748708
        %v4277 = vextract.low.u32 %v4276
        %v4278 = vextract.high.u32 %v4276
        %v4279 = vshrl.u32 %v4278, 4
        %v4280 = vmul.u32 %v4279, 18
        %v4281 = vsub.s32 %v4275, %v4280
        %v4282 = vsub.s32 0, %v4281
        %v4283 = vsel %vm4273, %v4282, %v4281
        %vm4284 = vcmp.lt.s32.totalorder %v4098, 0
        %v4285 = vsub.s32 0, %v4098
        %v4286 = vsel %vm4284, %v4285, %v4098
        %v4287 = vmul.u32.u64.compose %v4286, 3817748708
        %v4288 = vextract.low.u32 %v4287
        %v4289 = vextract.high.u32 %v4287
        %v4290 = vshrl.u32 %v4289, 4
        %v4291 = vmul.u32 %v4290, 18
        %v4292 = vsub.s32 %v4286, %v4291
        %v4293 = vsub.s32 0, %v4292
        %v4294 = vsel %vm4284, %v4293, %v4292
        %vm4295 = vcmp.lt.s32.totalorder %v4099, 0
        %v4296 = vsub.s32 0, %v4099
        %v4297 = vsel %vm4295, %v4296, %v4099
        %v4298 = vmul.u32.u64.compose %v4297, 3817748708
        %v4299 = vextract.low.u32 %v4298
        %v4300 = vextract.high.u32 %v4298
        %v4301 = vshrl.u32 %v4300, 4
        %v4302 = vmul.u32 %v4301, 18
        %v4303 = vsub.s32 %v4297, %v4302
        %v4304 = vsub.s32 0, %v4303
        %v4305 = vsel %vm4295, %v4304, %v4303
        %vm4306 = vcmp.lt.s32.totalorder %v4100, 0
        %v4307 = vsub.s32 0, %v4100
        %v4308 = vsel %vm4306, %v4307, %v4100
        %v4309 = vmul.u32.u64.compose %v4308, 3817748708
        %v4310 = vextract.low.u32 %v4309
        %v4311 = vextract.high.u32 %v4309
        %v4312 = vshrl.u32 %v4311, 4
        %v4313 = vmul.u32 %v4312, 18
        %v4314 = vsub.s32 %v4308, %v4313
        %v4315 = vsub.s32 0, %v4314
        %v4316 = vsel %vm4306, %v4315, %v4314
        %vm4317 = vcmp.lt.s32.totalorder %v4101, 0
        %v4318 = vsub.s32 0, %v4101
        %v4319 = vsel %vm4317, %v4318, %v4101
        %v4320 = vmul.u32.u64.compose %v4319, 3817748708
        %v4321 = vextract.low.u32 %v4320
        %v4322 = vextract.high.u32 %v4320
        %v4323 = vshrl.u32 %v4322, 4
        %v4324 = vmul.u32 %v4323, 18
        %v4325 = vsub.s32 %v4319, %v4324
        %v4326 = vsub.s32 0, %v4325
        %v4327 = vsel %vm4317, %v4326, %v4325
        %vm4328 = vcmp.lt.s32.totalorder %v4102, 0
        %v4329 = vsub.s32 0, %v4102
        %v4330 = vsel %vm4328, %v4329, %v4102
        %v4331 = vmul.u32.u64.compose %v4330, 3817748708
        %v4332 = vextract.low.u32 %v4331
        %v4333 = vextract.high.u32 %v4331
        %v4334 = vshrl.u32 %v4333, 4
        %v4335 = vmul.u32 %v4334, 18
        %v4336 = vsub.s32 %v4330, %v4335
        %v4337 = vsub.s32 0, %v4336
        %v4338 = vsel %vm4328, %v4337, %v4336
        %vm4339 = vcmp.lt.s32.totalorder %v4103, 0
        %v4340 = vsub.s32 0, %v4103
        %v4341 = vsel %vm4339, %v4340, %v4103
        %v4342 = vmul.u32.u64.compose %v4341, 3817748708
        %v4343 = vextract.low.u32 %v4342
        %v4344 = vextract.high.u32 %v4342
        %v4345 = vshrl.u32 %v4344, 4
        %v4346 = vmul.u32 %v4345, 18
        %v4347 = vsub.s32 %v4341, %v4346
        %v4348 = vsub.s32 0, %v4347
        %v4349 = vsel %vm4339, %v4348, %v4347
        %vm4350 = vcmp.lt.s32.totalorder %v4104, 0
        %v4351 = vsub.s32 0, %v4104
        %v4352 = vsel %vm4350, %v4351, %v4104
        %v4353 = vmul.u32.u64.compose %v4352, 3817748708
        %v4354 = vextract.low.u32 %v4353
        %v4355 = vextract.high.u32 %v4353
        %v4356 = vshrl.u32 %v4355, 4
        %v4357 = vmul.u32 %v4356, 18
        %v4358 = vsub.s32 %v4352, %v4357
        %v4359 = vsub.s32 0, %v4358
        %v4360 = vsel %vm4350, %v4359, %v4358
        %vm4361 = vcmp.lt.s32.totalorder %v4105, 0
        %v4362 = vsub.s32 0, %v4105
        %v4363 = vsel %vm4361, %v4362, %v4105
        %v4364 = vmul.u32.u64.compose %v4363, 3817748708
        %v4365 = vextract.low.u32 %v4364
        %v4366 = vextract.high.u32 %v4364
        %v4367 = vshrl.u32 %v4366, 4
        %v4368 = vmul.u32 %v4367, 18
        %v4369 = vsub.s32 %v4363, %v4368
        %v4370 = vsub.s32 0, %v4369
        %v4371 = vsel %vm4361, %v4370, %v4369
        %vm4372 = vcmp.lt.s32.totalorder %v4106, 0
        %v4373 = vsub.s32 0, %v4106
        %v4374 = vsel %vm4372, %v4373, %v4106
        %v4375 = vmul.u32.u64.compose %v4374, 3817748708
        %v4376 = vextract.low.u32 %v4375
        %v4377 = vextract.high.u32 %v4375
        %v4378 = vshrl.u32 %v4377, 4
        %v4379 = vmul.u32 %v4378, 18
        %v4380 = vsub.s32 %v4374, %v4379
        %v4381 = vsub.s32 0, %v4380
        %v4382 = vsel %vm4372, %v4381, %v4380
        %vm4383 = vcmp.lt.s32.totalorder %v4107, 0
        %v4384 = vsub.s32 0, %v4107
        %v4385 = vsel %vm4383, %v4384, %v4107
        %v4386 = vmul.u32.u64.compose %v4385, 3817748708
        %v4387 = vextract.low.u32 %v4386
        %v4388 = vextract.high.u32 %v4386
        %v4389 = vshrl.u32 %v4388, 4
        %v4390 = vmul.u32 %v4389, 18
        %v4391 = vsub.s32 %v4385, %v4390
        %v4392 = vsub.s32 0, %v4391
        %v4393 = vsel %vm4383, %v4392, %v4391
        %vm4394 = vcmp.lt.s32.totalorder %v4108, 0
        %v4395 = vsub.s32 0, %v4108
        %v4396 = vsel %vm4394, %v4395, %v4108
        %v4397 = vmul.u32.u64.compose %v4396, 3817748708
        %v4398 = vextract.low.u32 %v4397
        %v4399 = vextract.high.u32 %v4397
        %v4400 = vshrl.u32 %v4399, 4
        %v4401 = vmul.u32 %v4400, 18
        %v4402 = vsub.s32 %v4396, %v4401
        %v4403 = vsub.s32 0, %v4402
        %v4404 = vsel %vm4394, %v4403, %v4402
        %vm4405 = vcmp.lt.s32.totalorder %v4109, 0
        %v4406 = vsub.s32 0, %v4109
        %v4407 = vsel %vm4405, %v4406, %v4109
        %v4408 = vmul.u32.u64.compose %v4407, 3817748708
        %v4409 = vextract.low.u32 %v4408
        %v4410 = vextract.high.u32 %v4408
        %v4411 = vshrl.u32 %v4410, 4
        %v4412 = vmul.u32 %v4411, 18
        %v4413 = vsub.s32 %v4407, %v4412
        %v4414 = vsub.s32 0, %v4413
        %v4415 = vsel %vm4405, %v4414, %v4413
        %vm4416 = vcmp.lt.s32.totalorder %v4110, 0
        %v4417 = vsub.s32 0, %v4110
        %v4418 = vsel %vm4416, %v4417, %v4110
        %v4419 = vmul.u32.u64.compose %v4418, 3817748708
        %v4420 = vextract.low.u32 %v4419
        %v4421 = vextract.high.u32 %v4419
        %v4422 = vshrl.u32 %v4421, 4
        %v4423 = vmul.u32 %v4422, 18
        %v4424 = vsub.s32 %v4418, %v4423
        %v4425 = vsub.s32 0, %v4424
        %v4426 = vsel %vm4416, %v4425, %v4424
        %vm4427 = vcmp.lt.s32.totalorder %v4111, 0
        %v4428 = vsub.s32 0, %v4111
        %v4429 = vsel %vm4427, %v4428, %v4111
        %v4430 = vmul.u32.u64.compose %v4429, 3817748708
        %v4431 = vextract.low.u32 %v4430
        %v4432 = vextract.high.u32 %v4430
        %v4433 = vshrl.u32 %v4432, 4
        %v4434 = vmul.u32 %v4433, 18
        %v4435 = vsub.s32 %v4429, %v4434
        %v4436 = vsub.s32 0, %v4435
        %v4437 = vsel %vm4427, %v4436, %v4435
        %vm4438 = vcmp.lt.s32.totalorder %v4112, 0
        %v4439 = vsub.s32 0, %v4112
        %v4440 = vsel %vm4438, %v4439, %v4112
        %v4441 = vmul.u32.u64.compose %v4440, 3817748708
        %v4442 = vextract.low.u32 %v4441
        %v4443 = vextract.high.u32 %v4441
        %v4444 = vshrl.u32 %v4443, 4
        %v4445 = vmul.u32 %v4444, 18
        %v4446 = vsub.s32 %v4440, %v4445
        %v4447 = vsub.s32 0, %v4446
        %v4448 = vsel %vm4438, %v4447, %v4446
        %vm4449 = vcmp.lt.s32.totalorder %v4113, 0
        %v4450 = vsub.s32 0, %v4113
        %v4451 = vsel %vm4449, %v4450, %v4113
        %v4452 = vmul.u32.u64.compose %v4451, 3817748708
        %v4453 = vextract.low.u32 %v4452
        %v4454 = vextract.high.u32 %v4452
        %v4455 = vshrl.u32 %v4454, 4
        %v4456 = vmul.u32 %v4455, 18
        %v4457 = vsub.s32 %v4451, %v4456
        %v4458 = vsub.s32 0, %v4457
        %v4459 = vsel %vm4449, %v4458, %v4457
        %vm4460 = vcmp.lt.s32.totalorder %v4114, 0
        %v4461 = vsub.s32 0, %v4114
        %v4462 = vsel %vm4460, %v4461, %v4114
        %v4463 = vmul.u32.u64.compose %v4462, 3817748708
        %v4464 = vextract.low.u32 %v4463
        %v4465 = vextract.high.u32 %v4463
        %v4466 = vshrl.u32 %v4465, 4
        %v4467 = vmul.u32 %v4466, 18
        %v4468 = vsub.s32 %v4462, %v4467
        %v4469 = vsub.s32 0, %v4468
        %v4470 = vsel %vm4460, %v4469, %v4468
        %vm4471 = vcmp.lt.s32.totalorder %v4115, 0
        %v4472 = vsub.s32 0, %v4115
        %v4473 = vsel %vm4471, %v4472, %v4115
        %v4474 = vmul.u32.u64.compose %v4473, 3817748708
        %v4475 = vextract.low.u32 %v4474
        %v4476 = vextract.high.u32 %v4474
        %v4477 = vshrl.u32 %v4476, 4
        %v4478 = vmul.u32 %v4477, 18
        %v4479 = vsub.s32 %v4473, %v4478
        %v4480 = vsub.s32 0, %v4479
        %v4481 = vsel %vm4471, %v4480, %v4479
        %vm4482 = vcmp.lt.s32.totalorder %v4116, 0
        %v4483 = vsub.s32 0, %v4116
        %v4484 = vsel %vm4482, %v4483, %v4116
        %v4485 = vmul.u32.u64.compose %v4484, 3817748708
        %v4486 = vextract.low.u32 %v4485
        %v4487 = vextract.high.u32 %v4485
        %v4488 = vshrl.u32 %v4487, 4
        %v4489 = vmul.u32 %v4488, 18
        %v4490 = vsub.s32 %v4484, %v4489
        %v4491 = vsub.s32 0, %v4490
        %v4492 = vsel %vm4482, %v4491, %v4490
        %vm4493 = vcmp.lt.s32.totalorder %v4117, 0
        %v4494 = vsub.s32 0, %v4117
        %v4495 = vsel %vm4493, %v4494, %v4117
        %v4496 = vmul.u32.u64.compose %v4495, 3817748708
        %v4497 = vextract.low.u32 %v4496
        %v4498 = vextract.high.u32 %v4496
        %v4499 = vshrl.u32 %v4498, 4
        %v4500 = vmul.u32 %v4499, 18
        %v4501 = vsub.s32 %v4495, %v4500
        %v4502 = vsub.s32 0, %v4501
        %v4503 = vsel %vm4493, %v4502, %v4501
        %vm4504 = vcmp.lt.s32.totalorder %v4118, 0
        %v4505 = vsub.s32 0, %v4118
        %v4506 = vsel %vm4504, %v4505, %v4118
        %v4507 = vmul.u32.u64.compose %v4506, 3817748708
        %v4508 = vextract.low.u32 %v4507
        %v4509 = vextract.high.u32 %v4507
        %v4510 = vshrl.u32 %v4509, 4
        %v4511 = vmul.u32 %v4510, 18
        %v4512 = vsub.s32 %v4506, %v4511
        %v4513 = vsub.s32 0, %v4512
        %v4514 = vsel %vm4504, %v4513, %v4512
        %vm4515 = vcmp.ne.s32.totalorder %v4129, 0
        %vm4516 = vcmp.ne.s32.totalorder %v4140, 0
        %vm4517 = vcmp.ne.s32.totalorder %v4151, 0
        %vm4518 = vcmp.ne.s32.totalorder %v4162, 0
        %vm4519 = vcmp.ne.s32.totalorder %v4173, 0
        %vm4520 = vcmp.ne.s32.totalorder %v4184, 0
        %vm4521 = vcmp.ne.s32.totalorder %v4195, 0
        %vm4522 = vcmp.ne.s32.totalorder %v4206, 0
        %vm4523 = vcmp.ne.s32.totalorder %v4217, 0
        %vm4524 = vcmp.ne.s32.totalorder %v4228, 0
        %vm4525 = vcmp.ne.s32.totalorder %v4239, 0
        %vm4526 = vcmp.ne.s32.totalorder %v4250, 0
        %vm4527 = vcmp.ne.s32.totalorder %v4261, 0
        %vm4528 = vcmp.ne.s32.totalorder %v4272, 0
        %vm4529 = vcmp.ne.s32.totalorder %v4283, 0
        %vm4530 = vcmp.ne.s32.totalorder %v4294, 0
        %vm4531 = vcmp.ne.s32.totalorder %v4305, 0
        %vm4532 = vcmp.ne.s32.totalorder %v4316, 0
        %vm4533 = vcmp.ne.s32.totalorder %v4327, 0
        %vm4534 = vcmp.ne.s32.totalorder %v4338, 0
        %vm4535 = vcmp.ne.s32.totalorder %v4349, 0
        %vm4536 = vcmp.ne.s32.totalorder %v4360, 0
        %vm4537 = vcmp.ne.s32.totalorder %v4371, 0
        %vm4538 = vcmp.ne.s32.totalorder %v4382, 0
        %vm4539 = vcmp.ne.s32.totalorder %v4393, 0
        %vm4540 = vcmp.ne.s32.totalorder %v4404, 0
        %vm4541 = vcmp.ne.s32.totalorder %v4415, 0
        %vm4542 = vcmp.ne.s32.totalorder %v4426, 0
        %vm4543 = vcmp.ne.s32.totalorder %v4437, 0
        %vm4544 = vcmp.ne.s32.totalorder %v4448, 0
        %vm4545 = vcmp.ne.s32.totalorder %v4459, 0
        %vm4546 = vcmp.ne.s32.totalorder %v4470, 0
        %vm4547 = vcmp.ne.s32.totalorder %v4481, 0
        %vm4548 = vcmp.ne.s32.totalorder %v4492, 0
        %vm4549 = vcmp.ne.s32.totalorder %v4503, 0
        %vm4550 = vcmp.ne.s32.totalorder %v4514, 0
        %vm4551 = vcmp.lt.s32.totalorder %v4129, 0
        %vm4552 = vcmp.lt.s32.totalorder %v4140, 0
        %vm4553 = vcmp.lt.s32.totalorder %v4151, 0
        %vm4554 = vcmp.lt.s32.totalorder %v4162, 0
        %vm4555 = vcmp.lt.s32.totalorder %v4173, 0
        %vm4556 = vcmp.lt.s32.totalorder %v4184, 0
        %vm4557 = vcmp.lt.s32.totalorder %v4195, 0
        %vm4558 = vcmp.lt.s32.totalorder %v4206, 0
        %vm4559 = vcmp.lt.s32.totalorder %v4217, 0
        %vm4560 = vcmp.lt.s32.totalorder %v4228, 0
        %vm4561 = vcmp.lt.s32.totalorder %v4239, 0
        %vm4562 = vcmp.lt.s32.totalorder %v4250, 0
        %vm4563 = vcmp.lt.s32.totalorder %v4261, 0
        %vm4564 = vcmp.lt.s32.totalorder %v4272, 0
        %vm4565 = vcmp.lt.s32.totalorder %v4283, 0
        %vm4566 = vcmp.lt.s32.totalorder %v4294, 0
        %vm4567 = vcmp.lt.s32.totalorder %v4305, 0
        %vm4568 = vcmp.lt.s32.totalorder %v4316, 0
        %vm4569 = vcmp.lt.s32.totalorder %v4327, 0
        %vm4570 = vcmp.lt.s32.totalorder %v4338, 0
        %vm4571 = vcmp.lt.s32.totalorder %v4349, 0
        %vm4572 = vcmp.lt.s32.totalorder %v4360, 0
        %vm4573 = vcmp.lt.s32.totalorder %v4371, 0
        %vm4574 = vcmp.lt.s32.totalorder %v4382, 0
        %vm4575 = vcmp.lt.s32.totalorder %v4393, 0
        %vm4576 = vcmp.lt.s32.totalorder %v4404, 0
        %vm4577 = vcmp.lt.s32.totalorder %v4415, 0
        %vm4578 = vcmp.lt.s32.totalorder %v4426, 0
        %vm4579 = vcmp.lt.s32.totalorder %v4437, 0
        %vm4580 = vcmp.lt.s32.totalorder %v4448, 0
        %vm4581 = vcmp.lt.s32.totalorder %v4459, 0
        %vm4582 = vcmp.lt.s32.totalorder %v4470, 0
        %vm4583 = vcmp.lt.s32.totalorder %v4481, 0
        %vm4584 = vcmp.lt.s32.totalorder %v4492, 0
        %vm4585 = vcmp.lt.s32.totalorder %v4503, 0
        %vm4586 = vcmp.lt.s32.totalorder %v4514, 0
        %vm4587 = vmand %vm4551, %vm4515
        %vm4588 = vmand %vm4552, %vm4516
        %vm4589 = vmand %vm4553, %vm4517
        %vm4590 = vmand %vm4554, %vm4518
        %vm4591 = vmand %vm4555, %vm4519
        %vm4592 = vmand %vm4556, %vm4520
        %vm4593 = vmand %vm4557, %vm4521
        %vm4594 = vmand %vm4558, %vm4522
        %vm4595 = vmand %vm4559, %vm4523
        %vm4596 = vmand %vm4560, %vm4524
        %vm4597 = vmand %vm4561, %vm4525
        %vm4598 = vmand %vm4562, %vm4526
        %vm4599 = vmand %vm4563, %vm4527
        %vm4600 = vmand %vm4564, %vm4528
        %vm4601 = vmand %vm4565, %vm4529
        %vm4602 = vmand %vm4566, %vm4530
        %vm4603 = vmand %vm4567, %vm4531
        %vm4604 = vmand %vm4568, %vm4532
        %vm4605 = vmand %vm4569, %vm4533
        %vm4606 = vmand %vm4570, %vm4534
        %vm4607 = vmand %vm4571, %vm4535
        %vm4608 = vmand %vm4572, %vm4536
        %vm4609 = vmand %vm4573, %vm4537
        %vm4610 = vmand %vm4574, %vm4538
        %vm4611 = vmand %vm4575, %vm4539
        %vm4612 = vmand %vm4576, %vm4540
        %vm4613 = vmand %vm4577, %vm4541
        %vm4614 = vmand %vm4578, %vm4542
        %vm4615 = vmand %vm4579, %vm4543
        %vm4616 = vmand %vm4580, %vm4544
        %vm4617 = vmand %vm4581, %vm4545
        %vm4618 = vmand %vm4582, %vm4546
        %vm4619 = vmand %vm4583, %vm4547
        %vm4620 = vmand %vm4584, %vm4548
        %vm4621 = vmand %vm4585, %vm4549
        %vm4622 = vmand %vm4586, %vm4550
        %v4623 = vadd.s32 %v4129, 18
        %v4624 = vadd.s32 %v4140, 18
        %v4625 = vadd.s32 %v4151, 18
        %v4626 = vadd.s32 %v4162, 18
        %v4627 = vadd.s32 %v4173, 18
        %v4628 = vadd.s32 %v4184, 18
        %v4629 = vadd.s32 %v4195, 18
        %v4630 = vadd.s32 %v4206, 18
        %v4631 = vadd.s32 %v4217, 18
        %v4632 = vadd.s32 %v4228, 18
        %v4633 = vadd.s32 %v4239, 18
        %v4634 = vadd.s32 %v4250, 18
        %v4635 = vadd.s32 %v4261, 18
        %v4636 = vadd.s32 %v4272, 18
        %v4637 = vadd.s32 %v4283, 18
        %v4638 = vadd.s32 %v4294, 18
        %v4639 = vadd.s32 %v4305, 18
        %v4640 = vadd.s32 %v4316, 18
        %v4641 = vadd.s32 %v4327, 18
        %v4642 = vadd.s32 %v4338, 18
        %v4643 = vadd.s32 %v4349, 18
        %v4644 = vadd.s32 %v4360, 18
        %v4645 = vadd.s32 %v4371, 18
        %v4646 = vadd.s32 %v4382, 18
        %v4647 = vadd.s32 %v4393, 18
        %v4648 = vadd.s32 %v4404, 18
        %v4649 = vadd.s32 %v4415, 18
        %v4650 = vadd.s32 %v4426, 18
        %v4651 = vadd.s32 %v4437, 18
        %v4652 = vadd.s32 %v4448, 18
        %v4653 = vadd.s32 %v4459, 18
        %v4654 = vadd.s32 %v4470, 18
        %v4655 = vadd.s32 %v4481, 18
        %v4656 = vadd.s32 %v4492, 18
        %v4657 = vadd.s32 %v4503, 18
        %v4658 = vadd.s32 %v4514, 18
        %v4659 = vsel %vm4587, %v4623, %v4129
        %v4660 = vsel %vm4588, %v4624, %v4140
        %v4661 = vsel %vm4589, %v4625, %v4151
        %v4662 = vsel %vm4590, %v4626, %v4162
        %v4663 = vsel %vm4591, %v4627, %v4173
        %v4664 = vsel %vm4592, %v4628, %v4184
        %v4665 = vsel %vm4593, %v4629, %v4195
        %v4666 = vsel %vm4594, %v4630, %v4206
        %v4667 = vsel %vm4595, %v4631, %v4217
        %v4668 = vsel %vm4596, %v4632, %v4228
        %v4669 = vsel %vm4597, %v4633, %v4239
        %v4670 = vsel %vm4598, %v4634, %v4250
        %v4671 = vsel %vm4599, %v4635, %v4261
        %v4672 = vsel %vm4600, %v4636, %v4272
        %v4673 = vsel %vm4601, %v4637, %v4283
        %v4674 = vsel %vm4602, %v4638, %v4294
        %v4675 = vsel %vm4603, %v4639, %v4305
        %v4676 = vsel %vm4604, %v4640, %v4316
        %v4677 = vsel %vm4605, %v4641, %v4327
        %v4678 = vsel %vm4606, %v4642, %v4338
        %v4679 = vsel %vm4607, %v4643, %v4349
        %v4680 = vsel %vm4608, %v4644, %v4360
        %v4681 = vsel %vm4609, %v4645, %v4371
        %v4682 = vsel %vm4610, %v4646, %v4382
        %v4683 = vsel %vm4611, %v4647, %v4393
        %v4684 = vsel %vm4612, %v4648, %v4404
        %v4685 = vsel %vm4613, %v4649, %v4415
        %v4686 = vsel %vm4614, %v4650, %v4426
        %v4687 = vsel %vm4615, %v4651, %v4437
        %v4688 = vsel %vm4616, %v4652, %v4448
        %v4689 = vsel %vm4617, %v4653, %v4459
        %v4690 = vsel %vm4618, %v4654, %v4470
        %v4691 = vsel %vm4619, %v4655, %v4481
        %v4692 = vsel %vm4620, %v4656, %v4492
        %v4693 = vsel %vm4621, %v4657, %v4503
        %v4694 = vsel %vm4622, %v4658, %v4514
        %vm4695 = vcmp.lt.s32.totalorder %v4659, 16
        %vm4696 = vcmp.lt.s32.totalorder %v4660, 16
        %vm4697 = vcmp.lt.s32.totalorder %v4661, 16
        %vm4698 = vcmp.lt.s32.totalorder %v4662, 16
        %vm4699 = vcmp.lt.s32.totalorder %v4663, 16
        %vm4700 = vcmp.lt.s32.totalorder %v4664, 16
        %vm4701 = vcmp.lt.s32.totalorder %v4665, 16
        %vm4702 = vcmp.lt.s32.totalorder %v4666, 16
        %vm4703 = vcmp.lt.s32.totalorder %v4667, 16
        %vm4704 = vcmp.lt.s32.totalorder %v4668, 16
        %vm4705 = vcmp.lt.s32.totalorder %v4669, 16
        %vm4706 = vcmp.lt.s32.totalorder %v4670, 16
        %vm4707 = vcmp.lt.s32.totalorder %v4671, 16
        %vm4708 = vcmp.lt.s32.totalorder %v4672, 16
        %vm4709 = vcmp.lt.s32.totalorder %v4673, 16
        %vm4710 = vcmp.lt.s32.totalorder %v4674, 16
        %vm4711 = vcmp.lt.s32.totalorder %v4675, 16
        %vm4712 = vcmp.lt.s32.totalorder %v4676, 16
        %vm4713 = vcmp.lt.s32.totalorder %v4677, 16
        %vm4714 = vcmp.lt.s32.totalorder %v4678, 16
        %vm4715 = vcmp.lt.s32.totalorder %v4679, 16
        %vm4716 = vcmp.lt.s32.totalorder %v4680, 16
        %vm4717 = vcmp.lt.s32.totalorder %v4681, 16
        %vm4718 = vcmp.lt.s32.totalorder %v4682, 16
        %vm4719 = vcmp.lt.s32.totalorder %v4683, 16
        %vm4720 = vcmp.lt.s32.totalorder %v4684, 16
        %vm4721 = vcmp.lt.s32.totalorder %v4685, 16
        %vm4722 = vcmp.lt.s32.totalorder %v4686, 16
        %vm4723 = vcmp.lt.s32.totalorder %v4687, 16
        %vm4724 = vcmp.lt.s32.totalorder %v4688, 16
        %vm4725 = vcmp.lt.s32.totalorder %v4689, 16
        %vm4726 = vcmp.lt.s32.totalorder %v4690, 16
        %vm4727 = vcmp.lt.s32.totalorder %v4691, 16
        %vm4728 = vcmp.lt.s32.totalorder %v4692, 16
        %vm4729 = vcmp.lt.s32.totalorder %v4693, 16
        %vm4730 = vcmp.lt.s32.totalorder %v4694, 16
        %v4731 = vsel %vm4695, 1, 0
        %v4732 = vsel %vm4696, 1, 0
        %v4733 = vsel %vm4697, 1, 0
        %v4734 = vsel %vm4698, 1, 0
        %v4735 = vsel %vm4699, 1, 0
        %v4736 = vsel %vm4700, 1, 0
        %v4737 = vsel %vm4701, 1, 0
        %v4738 = vsel %vm4702, 1, 0
        %v4739 = vsel %vm4703, 1, 0
        %v4740 = vsel %vm4704, 1, 0
        %v4741 = vsel %vm4705, 1, 0
        %v4742 = vsel %vm4706, 1, 0
        %v4743 = vsel %vm4707, 1, 0
        %v4744 = vsel %vm4708, 1, 0
        %v4745 = vsel %vm4709, 1, 0
        %v4746 = vsel %vm4710, 1, 0
        %v4747 = vsel %vm4711, 1, 0
        %v4748 = vsel %vm4712, 1, 0
        %v4749 = vsel %vm4713, 1, 0
        %v4750 = vsel %vm4714, 1, 0
        %v4751 = vsel %vm4715, 1, 0
        %v4752 = vsel %vm4716, 1, 0
        %v4753 = vsel %vm4717, 1, 0
        %v4754 = vsel %vm4718, 1, 0
        %v4755 = vsel %vm4719, 1, 0
        %v4756 = vsel %vm4720, 1, 0
        %v4757 = vsel %vm4721, 1, 0
        %v4758 = vsel %vm4722, 1, 0
        %v4759 = vsel %vm4723, 1, 0
        %v4760 = vsel %vm4724, 1, 0
        %v4761 = vsel %vm4725, 1, 0
        %v4762 = vsel %vm4726, 1, 0
        %v4763 = vsel %vm4727, 1, 0
        %v4764 = vsel %vm4728, 1, 0
        %v4765 = vsel %vm4729, 1, 0
        %v4766 = vsel %vm4730, 1, 0
        %vm4767 = vcmp.eq.s32.totalorder %v4731, 1
        %vm4768 = vcmp.eq.s32.totalorder %v4732, 1
        %vm4769 = vcmp.eq.s32.totalorder %v4733, 1
        %vm4770 = vcmp.eq.s32.totalorder %v4734, 1
        %vm4771 = vcmp.eq.s32.totalorder %v4735, 1
        %vm4772 = vcmp.eq.s32.totalorder %v4736, 1
        %vm4773 = vcmp.eq.s32.totalorder %v4737, 1
        %vm4774 = vcmp.eq.s32.totalorder %v4738, 1
        %vm4775 = vcmp.eq.s32.totalorder %v4739, 1
        %vm4776 = vcmp.eq.s32.totalorder %v4740, 1
        %vm4777 = vcmp.eq.s32.totalorder %v4741, 1
        %vm4778 = vcmp.eq.s32.totalorder %v4742, 1
        %vm4779 = vcmp.eq.s32.totalorder %v4743, 1
        %vm4780 = vcmp.eq.s32.totalorder %v4744, 1
        %vm4781 = vcmp.eq.s32.totalorder %v4745, 1
        %vm4782 = vcmp.eq.s32.totalorder %v4746, 1
        %vm4783 = vcmp.eq.s32.totalorder %v4747, 1
        %vm4784 = vcmp.eq.s32.totalorder %v4748, 1
        %vm4785 = vcmp.eq.s32.totalorder %v4749, 1
        %vm4786 = vcmp.eq.s32.totalorder %v4750, 1
        %vm4787 = vcmp.eq.s32.totalorder %v4751, 1
        %vm4788 = vcmp.eq.s32.totalorder %v4752, 1
        %vm4789 = vcmp.eq.s32.totalorder %v4753, 1
        %vm4790 = vcmp.eq.s32.totalorder %v4754, 1
        %vm4791 = vcmp.eq.s32.totalorder %v4755, 1
        %vm4792 = vcmp.eq.s32.totalorder %v4756, 1
        %vm4793 = vcmp.eq.s32.totalorder %v4757, 1
        %vm4794 = vcmp.eq.s32.totalorder %v4758, 1
        %vm4795 = vcmp.eq.s32.totalorder %v4759, 1
        %vm4796 = vcmp.eq.s32.totalorder %v4760, 1
        %vm4797 = vcmp.eq.s32.totalorder %v4761, 1
        %vm4798 = vcmp.eq.s32.totalorder %v4762, 1
        %vm4799 = vcmp.eq.s32.totalorder %v4763, 1
        %vm4800 = vcmp.eq.s32.totalorder %v4764, 1
        %vm4801 = vcmp.eq.s32.totalorder %v4765, 1
        %vm4802 = vcmp.eq.s32.totalorder %v4766, 1
        %v4803 = vsel %vm4767, %v4046, 0.0
        %v4804 = vsel %vm4768, %v4047, 0.0
        %v4805 = vsel %vm4769, %v4048, 0.0
        %v4806 = vsel %vm4770, %v4049, 0.0
        %v4807 = vsel %vm4771, %v4050, 0.0
        %v4808 = vsel %vm4772, %v4051, 0.0
        %v4809 = vsel %vm4773, %v4052, 0.0
        %v4810 = vsel %vm4774, %v4053, 0.0
        %v4811 = vsel %vm4775, %v4054, 0.0
        %v4812 = vsel %vm4776, %v4055, 0.0
        %v4813 = vsel %vm4777, %v4056, 0.0
        %v4814 = vsel %vm4778, %v4057, 0.0
        %v4815 = vsel %vm4779, %v4058, 0.0
        %v4816 = vsel %vm4780, %v4059, 0.0
        %v4817 = vsel %vm4781, %v4060, 0.0
        %v4818 = vsel %vm4782, %v4061, 0.0
        %v4819 = vsel %vm4783, %v4062, 0.0
        %v4820 = vsel %vm4784, %v4063, 0.0
        %v4821 = vsel %vm4785, %v4064, 0.0
        %v4822 = vsel %vm4786, %v4065, 0.0
        %v4823 = vsel %vm4787, %v4066, 0.0
        %v4824 = vsel %vm4788, %v4067, 0.0
        %v4825 = vsel %vm4789, %v4068, 0.0
        %v4826 = vsel %vm4790, %v4069, 0.0
        %v4827 = vsel %vm4791, %v4070, 0.0
        %v4828 = vsel %vm4792, %v4071, 0.0
        %v4829 = vsel %vm4793, %v4072, 0.0
        %v4830 = vsel %vm4794, %v4073, 0.0
        %v4831 = vsel %vm4795, %v4074, 0.0
        %v4832 = vsel %vm4796, %v4075, 0.0
        %v4833 = vsel %vm4797, %v4076, 0.0
        %v4834 = vsel %vm4798, %v4077, 0.0
        %v4835 = vsel %vm4799, %v4078, 0.0
        %v4836 = vsel %vm4800, %v4079, 0.0
        %v4837 = vsel %vm4801, %v4080, 0.0
        %v4838 = vsel %vm4802, %v4081, 0.0
        %vm4839 = vcmask 64512
        %4840 = vst.msk [vmem:[#allocation2] sm:$0xff] %vm4839, 0.0
        %4841 = vst.msk [vmem:[#allocation2 + $0x8] sm:$0xff] %vm4839, 0.0
        %4842 = vst.msk [vmem:[#allocation2 + $0x10] sm:$0xff] %vm4839, 0.0
        %4843 = vst.msk [vmem:[#allocation2 + $0x138] sm:$0xff] %vm4839, 0.0
        %4844 = vst.msk [vmem:[#allocation2 + $0x140] sm:$0xff] %vm4839, 0.0
        %4845 = vst.msk [vmem:[#allocation2 + $0x148] sm:$0xff] %vm4839, 0.0
        %4846 = vst.msk [vmem:[#allocation2 + $0x150] sm:$0xff] %vm4839, 0.0
        %vm4847 = vcmask 59392
        %4848 = vst.msk [vmem:[#allocation2 + $0x158] sm:$0x7] %vm4847, 0.0
        %4849 = vst.msk [vmem:[#allocation2 + $0x18] sm:$0xff] %vm4839, %v4803
        %4850 = vst.msk [vmem:[#allocation2 + $0x20] sm:$0xff] %vm4839, %v4804
        %4851 = vst.msk [vmem:[#allocation2 + $0x28] sm:$0xff] %vm4839, %v4805
        %4852 = vst.msk [vmem:[#allocation2 + $0x30] sm:$0xff] %vm4839, %v4806
        %4853 = vst.msk [vmem:[#allocation2 + $0x38] sm:$0xff] %vm4839, %v4807
        %4854 = vst.msk [vmem:[#allocation2 + $0x40] sm:$0xff] %vm4839, %v4808
        %4855 = vst.msk [vmem:[#allocation2 + $0x48] sm:$0xff] %vm4839, %v4809
        %4856 = vst.msk [vmem:[#allocation2 + $0x50] sm:$0xff] %vm4839, %v4810
        %4857 = vst.msk [vmem:[#allocation2 + $0x58] sm:$0xff] %vm4839, %v4811
        %4858 = vst.msk [vmem:[#allocation2 + $0x60] sm:$0xff] %vm4839, %v4812
        %4859 = vst.msk [vmem:[#allocation2 + $0x68] sm:$0xff] %vm4839, %v4813
        %4860 = vst.msk [vmem:[#allocation2 + $0x70] sm:$0xff] %vm4839, %v4814
        %4861 = vst.msk [vmem:[#allocation2 + $0x78] sm:$0xff] %vm4839, %v4815
        %4862 = vst.msk [vmem:[#allocation2 + $0x80] sm:$0xff] %vm4839, %v4816
        %4863 = vst.msk [vmem:[#allocation2 + $0x88] sm:$0xff] %vm4839, %v4817
        %4864 = vst.msk [vmem:[#allocation2 + $0x90] sm:$0xff] %vm4839, %v4818
        %4865 = vst.msk [vmem:[#allocation2 + $0x98] sm:$0xff] %vm4839, %v4819
        %4866 = vst.msk [vmem:[#allocation2 + $0xa0] sm:$0xff] %vm4839, %v4820
        %4867 = vst.msk [vmem:[#allocation2 + $0xa8] sm:$0xff] %vm4839, %v4821
        %4868 = vst.msk [vmem:[#allocation2 + $0xb0] sm:$0xff] %vm4839, %v4822
        %4869 = vst.msk [vmem:[#allocation2 + $0xb8] sm:$0xff] %vm4839, %v4823
        %4870 = vst.msk [vmem:[#allocation2 + $0xc0] sm:$0xff] %vm4839, %v4824
        %4871 = vst.msk [vmem:[#allocation2 + $0xc8] sm:$0xff] %vm4839, %v4825
        %4872 = vst.msk [vmem:[#allocation2 + $0xd0] sm:$0xff] %vm4839, %v4826
        %4873 = vst.msk [vmem:[#allocation2 + $0xd8] sm:$0xff] %vm4839, %v4827
        %4874 = vst.msk [vmem:[#allocation2 + $0xe0] sm:$0xff] %vm4839, %v4828
        %4875 = vst.msk [vmem:[#allocation2 + $0xe8] sm:$0xff] %vm4839, %v4829
        %4876 = vst.msk [vmem:[#allocation2 + $0xf0] sm:$0xff] %vm4839, %v4830
        %4877 = vst.msk [vmem:[#allocation2 + $0xf8] sm:$0xff] %vm4839, %v4831
        %4878 = vst.msk [vmem:[#allocation2 + $0x100] sm:$0xff] %vm4839, %v4832
        %4879 = vst.msk [vmem:[#allocation2 + $0x108] sm:$0xff] %vm4839, %v4833
        %4880 = vst.msk [vmem:[#allocation2 + $0x110] sm:$0xff] %vm4839, %v4834
        %4881 = vst.msk [vmem:[#allocation2 + $0x118] sm:$0xff] %vm4839, %v4835
        %4882 = vst.msk [vmem:[#allocation2 + $0x120] sm:$0xff] %vm4839, %v4836
        %4883 = vst.msk [vmem:[#allocation2 + $0x128] sm:$0xff] %vm4839, %v4837
        %4884 = vst.msk [vmem:[#allocation2 + $0x130] sm:$0xff] %vm4839, %v4838
        %v4885 = vld [vmem:[#allocation2 + $0x5] sm:$0xff]
        %v4886 = vld [vmem:[#allocation2 + $0xd] sm:$0xff]
        %v4887 = vld [vmem:[#allocation2 + $0x15] sm:$0xff]
        %v4888 = vld [vmem:[#allocation2 + $0x1d] sm:$0xff]
        %v4889 = vld [vmem:[#allocation2 + $0x25] sm:$0xff]
        %v4890 = vld [vmem:[#allocation2 + $0x2d] sm:$0xff]
        %v4891 = vld [vmem:[#allocation2 + $0x35] sm:$0xff]
        %v4892 = vld [vmem:[#allocation2 + $0x3d] sm:$0xff]
        %v4893 = vld [vmem:[#allocation2 + $0x45] sm:$0xff]
        %v4894 = vld [vmem:[#allocation2 + $0x4d] sm:$0xff]
        %v4895 = vld [vmem:[#allocation2 + $0x55] sm:$0xff]
        %v4896 = vld [vmem:[#allocation2 + $0x5d] sm:$0xff]
        %v4897 = vld [vmem:[#allocation2 + $0x65] sm:$0xff]
        %v4898 = vld [vmem:[#allocation2 + $0x6d] sm:$0xff]
        %v4899 = vld [vmem:[#allocation2 + $0x75] sm:$0xff]
        %v4900 = vld [vmem:[#allocation2 + $0x7d] sm:$0xff]
        %v4901 = vld [vmem:[#allocation2 + $0x85] sm:$0xff]
        %v4902 = vld [vmem:[#allocation2 + $0x8d] sm:$0xff]
        %v4903 = vld [vmem:[#allocation2 + $0x95] sm:$0xff]
        %v4904 = vld [vmem:[#allocation2 + $0x9d] sm:$0xff]
        %v4905 = vld [vmem:[#allocation2 + $0xa5] sm:$0xff]
        %v4906 = vld [vmem:[#allocation2 + $0xad] sm:$0xff]
        %v4907 = vld [vmem:[#allocation2 + $0xb5] sm:$0xff]
        %v4908 = vld [vmem:[#allocation2 + $0xbd] sm:$0xff]
        %v4909 = vld [vmem:[#allocation2 + $0xc5] sm:$0xff]
        %v4910 = vld [vmem:[#allocation2 + $0xcd] sm:$0xff]
        %v4911 = vld [vmem:[#allocation2 + $0xd5] sm:$0xff]
        %v4912 = vld [vmem:[#allocation2 + $0xdd] sm:$0xff]
        %v4913 = vld [vmem:[#allocation2 + $0xe5] sm:$0xff]
        %v4914 = vld [vmem:[#allocation2 + $0xed] sm:$0xff]
        %v4915 = vld [vmem:[#allocation2 + $0xf5] sm:$0xff]
        %v4916 = vld [vmem:[#allocation2 + $0xfd] sm:$0xff]
        %v4917 = vld [vmem:[#allocation2 + $0x105] sm:$0xff]
        %v4918 = vld [vmem:[#allocation2 + $0x10d] sm:$0xff]
        %v4919 = vld [vmem:[#allocation2 + $0x115] sm:$0xff]
        %v4920 = vld [vmem:[#allocation2 + $0x11d] sm:$0xff]
        %v4921 = vld [vmem:[%s3] sm:$0xff]
        %v4922 = vld [vmem:[#allocation2 + $0x6] sm:$0xff]
        %v4923 = vld [vmem:[#allocation2 + $0xe] sm:$0xff]
        %v4924 = vld [vmem:[#allocation2 + $0x16] sm:$0xff]
        %v4925 = vld [vmem:[#allocation2 + $0x1e] sm:$0xff]
        %v4926 = vld [vmem:[#allocation2 + $0x26] sm:$0xff]
        %v4927 = vld [vmem:[#allocation2 + $0x2e] sm:$0xff]
        %v4928 = vld [vmem:[#allocation2 + $0x36] sm:$0xff]
        %v4929 = vld [vmem:[#allocation2 + $0x3e] sm:$0xff]
        %v4930 = vld [vmem:[#allocation2 + $0x46] sm:$0xff]
        %v4931 = vld [vmem:[#allocation2 + $0x4e] sm:$0xff]
        %v4932 = vld [vmem:[#allocation2 + $0x56] sm:$0xff]
        %v4933 = vld [vmem:[#allocation2 + $0x5e] sm:$0xff]
        %v4934 = vld [vmem:[#allocation2 + $0x66] sm:$0xff]
        %v4935 = vld [vmem:[#allocation2 + $0x6e] sm:$0xff]
        %v4936 = vld [vmem:[#allocation2 + $0x76] sm:$0xff]
        %v4937 = vld [vmem:[#allocation2 + $0x7e] sm:$0xff]
        %v4938 = vld [vmem:[#allocation2 + $0x86] sm:$0xff]
        %v4939 = vld [vmem:[#allocation2 + $0x8e] sm:$0xff]
        %v4940 = vld [vmem:[#allocation2 + $0x96] sm:$0xff]
        %v4941 = vld [vmem:[#allocation2 + $0x9e] sm:$0xff]
        %v4942 = vld [vmem:[#allocation2 + $0xa6] sm:$0xff]
        %v4943 = vld [vmem:[#allocation2 + $0xae] sm:$0xff]
        %v4944 = vld [vmem:[#allocation2 + $0xb6] sm:$0xff]
        %v4945 = vld [vmem:[#allocation2 + $0xbe] sm:$0xff]
        %v4946 = vld [vmem:[#allocation2 + $0xc6] sm:$0xff]
        %v4947 = vld [vmem:[#allocation2 + $0xce] sm:$0xff]
        %v4948 = vld [vmem:[#allocation2 + $0xd6] sm:$0xff]
        %v4949 = vld [vmem:[#allocation2 + $0xde] sm:$0xff]
        %v4950 = vld [vmem:[#allocation2 + $0xe6] sm:$0xff]
        %v4951 = vld [vmem:[#allocation2 + $0xee] sm:$0xff]
        %v4952 = vld [vmem:[#allocation2 + $0xf6] sm:$0xff]
        %v4953 = vld [vmem:[#allocation2 + $0xfe] sm:$0xff]
        %v4954 = vld [vmem:[#allocation2 + $0x106] sm:$0xff]
        %v4955 = vld [vmem:[#allocation2 + $0x10e] sm:$0xff]
        %v4956 = vld [vmem:[#allocation2 + $0x116] sm:$0xff]
        %v4957 = vld [vmem:[#allocation2 + $0x11e] sm:$0xff]
        %s4958 = scalar_lea.vmem %s3, 8
        %v4959 = vld [vmem:[%s4958] sm:$0xff]
        %v4961 = vsel %vm4839, %v4922, 0
        %v4964 = vsel %vm4839, %v4923, 0
        %v4967 = vsel %vm4839, %v4924, 0
        %v4970 = vsel %vm4839, %v4925, 0
        %v4973 = vsel %vm4839, %v4926, 0
        %v4976 = vsel %vm4839, %v4927, 0
        %v4979 = vsel %vm4839, %v4928, 0
        %v4982 = vsel %vm4839, %v4929, 0
        %v4985 = vsel %vm4839, %v4930, 0
        %v4988 = vsel %vm4839, %v4931, 0
        %v4991 = vsel %vm4839, %v4932, 0
        %v4994 = vsel %vm4839, %v4933, 0
        %v4997 = vsel %vm4839, %v4934, 0
        %v5000 = vsel %vm4839, %v4935, 0
        %v5003 = vsel %vm4839, %v4936, 0
        %v5006 = vsel %vm4839, %v4937, 0
        %v5009 = vsel %vm4839, %v4938, 0
        %v5012 = vsel %vm4839, %v4939, 0
        %v5015 = vsel %vm4839, %v4940, 0
        %v5018 = vsel %vm4839, %v4941, 0
        %v5021 = vsel %vm4839, %v4942, 0
        %v5024 = vsel %vm4839, %v4943, 0
        %v5027 = vsel %vm4839, %v4944, 0
        %v5030 = vsel %vm4839, %v4945, 0
        %v5033 = vsel %vm4839, %v4946, 0
        %v5036 = vsel %vm4839, %v4947, 0
        %v5039 = vsel %vm4839, %v4948, 0
        %v5042 = vsel %vm4839, %v4949, 0
        %v5045 = vsel %vm4839, %v4950, 0
        %v5048 = vsel %vm4839, %v4951, 0
        %v5051 = vsel %vm4839, %v4952, 0
        %v5054 = vsel %vm4839, %v4953, 0
        %v5057 = vsel %vm4839, %v4954, 0
        %v5060 = vsel %vm4839, %v4955, 0
        %v5063 = vsel %vm4839, %v4956, 0
        %v5066 = vsel %vm4839, %v4957, 0
        %5068 = vmatprep.subr.mxu0 0.0
        %5069 = vmatpush1.msra.mxu0 %v4959
        %5070 = vmatprep.subr.mxu0 0.0
        %5071 = vmatpush1.msra.mxu0 0.0
        %5072 = vmatprep.subr.mxu0 0.0
        %5073 = vmatpush1.msra.mxu0 0.0
        %5074 = vmatprep.subr.mxu0 0.0
        %5075 = vmatpush1.msra.mxu0 0.0
        %5076 = vmatprep.subr.mxu0 0.0
        %5077 = vmatpush1.msra.mxu0 0.0
        %5078 = vmatprep.subr.mxu0 0.0
        %5079 = vmatpush1.msra.mxu0 0.0
        %5080 = vmatprep.subr.mxu0 0.0
        %5081 = vmatpush1.msra.mxu0 0.0
        %5082 = vmatprep.subr.mxu0 0.0
        %5083 = vmatpush1.msra.mxu0 0.0
        %5084 = vmatprep.subr.mxu0 0.0
        %5085 = vmatpush1.msra.mxu0 0.0
        %5086 = vmatprep.subr.mxu0 0.0
        %5087 = vmatpush1.msra.mxu0 0.0
        %5088 = vmatprep.subr.mxu0 0.0
        %5089 = vmatpush1.msra.mxu0 0.0
        %5090 = vmatprep.subr.mxu0 0.0
        %5091 = vmatpush1.msra.mxu0 0.0
        %5092 = vmatprep.subr.mxu0 0.0
        %5093 = vmatpush1.msra.mxu0 0.0
        %5094 = vmatprep.subr.mxu0 0.0
        %5095 = vmatpush1.msra.mxu0 0.0
        %5096 = vmatprep.subr.mxu0 0.0
        %5097 = vmatpush1.msra.mxu0 0.0
        %5098 = vmatprep.subr.mxu0 0.0
        %5099 = vmatpush1.msra.mxu0 0.0
        %5100 = vmatprep.subr.mxu0 0.0
        %5101 = vmatpush1.msra.mxu0 0.0
        %5102 = vmatprep.subr.mxu0 0.0
        %5103 = vmatpush1.msra.mxu0 0.0
        %5104 = vmatprep.subr.mxu0 0.0
        %5105 = vmatpush1.msra.mxu0 0.0
        %5106 = vmatprep.subr.mxu0 0.0
        %5107 = vmatpush1.msra.mxu0 0.0
        %5108 = vmatprep.subr.mxu0 0.0
        %5109 = vmatpush1.msra.mxu0 0.0
        %5110 = vmatprep.subr.mxu0 0.0
        %5111 = vmatpush1.msra.mxu0 0.0
        %5112 = vmatprep.subr.mxu0 0.0
        %5113 = vmatpush1.msra.mxu0 0.0
        %5114 = vmatprep.subr.mxu0 0.0
        %5115 = vmatpush1.msra.mxu0 0.0
        %5116 = vmatprep.subr.mxu0 0.0
        %5117 = vmatpush1.msra.mxu0 0.0
        %5118 = vmatprep.subr.mxu0 0.0
        %5119 = vmatpush1.msra.mxu0 0.0
        %5120 = vmatprep.subr.mxu0 0.0
        %5121 = vmatpush1.msra.mxu0 0.0
        %5122 = vmatprep.subr.mxu0 0.0
        %5123 = vmatpush1.msra.mxu0 0.0
        %5124 = vmatprep.subr.mxu0 0.0
        %5125 = vmatpush1.msra.mxu0 0.0
        %5126 = vmatprep.subr.mxu0 0.0
        %5127 = vmatpush1.msra.mxu0 0.0
        %5128 = vmatprep.subr.mxu0 0.0
        %5129 = vmatpush1.msra.mxu0 0.0
        %5130 = vmatprep.subr.mxu0 0.0
        %5131 = vmatpush1.msra.mxu0 0.0
        %5132 = vmatprep.mubr.f32.mxu0 0.0
        %5133 = vmatmul.mubr.f32.gmra.mrb[0].mxu0 %v4961
        %v5134 = vpop.f32.mrb[0].mxu0
        %v5135 = vadd.f32 0.0, %v5134
        %v5136 = vpop.f32.mrb[0].mxu0
        %5137 = vmatprep.mubr.f32.mxu0 0.0
        %5138 = vmatmul.mubr.f32.gmra.mrb[0].mxu0 %v4964
        %v5139 = vpop.f32.mrb[0].mxu0
        %v5140 = vadd.f32 0.0, %v5139
        %v5141 = vpop.f32.mrb[0].mxu0
        %5142 = vmatprep.mubr.f32.mxu0 0.0
        %5143 = vmatmul.mubr.f32.gmra.mrb[0].mxu0 %v4967
        %v5144 = vpop.f32.mrb[0].mxu0
        %v5145 = vadd.f32 0.0, %v5144
        %v5146 = vpop.f32.mrb[0].mxu0
        %5147 = vmatprep.mubr.f32.mxu0 0.0
        %5148 = vmatmul.mubr.f32.gmra.mrb[0].mxu0 %v4970
        %v5149 = vpop.f32.mrb[0].mxu0
        %v5150 = vadd.f32 0.0, %v5149
        %v5151 = vpop.f32.mrb[0].mxu0
        %5152 = vmatprep.mubr.f32.mxu0 0.0
        %5153 = vmatmul.mubr.f32.gmra.mrb[0].mxu0 %v4973
        %v5154 = vpop.f32.mrb[0].mxu0
        %v5155 = vadd.f32 0.0, %v5154
        %v5156 = vpop.f32.mrb[0].mxu0
        %5157 = vmatprep.mubr.f32.mxu0 0.0
        %5158 = vmatmul.mubr.f32.gmra.mrb[0].mxu0 %v4976
        %v5159 = vpop.f32.mrb[0].mxu0
        %v5160 = vadd.f32 0.0, %v5159
        %v5161 = vpop.f32.mrb[0].mxu0
        %5162 = vmatprep.mubr.f32.mxu0 0.0
        %5163 = vmatmul.mubr.f32.gmra.mrb[0].mxu0 %v4979
        %v5164 = vpop.f32.mrb[0].mxu0
        %v5165 = vadd.f32 0.0, %v5164
        %v5166 = vpop.f32.mrb[0].mxu0
        %5167 = vmatprep.mubr.f32.mxu0 0.0
        %5168 = vmatmul.mubr.f32.gmra.mrb[0].mxu0 %v4982
        %v5169 = vpop.f32.mrb[0].mxu0
        %v5170 = vadd.f32 0.0, %v5169
        %v5171 = vpop.f32.mrb[0].mxu0
        %5172 = vmatprep.mubr.f32.mxu0 0.0
        %5173 = vmatmul.mubr.f32.gmra.mrb[0].mxu0 %v4985
        %v5174 = vpop.f32.mrb[0].mxu0
        %v5175 = vadd.f32 0.0, %v5174
        %v5176 = vpop.f32.mrb[0].mxu0
        %5177 = vmatprep.mubr.f32.mxu0 0.0
        %5178 = vmatmul.mubr.f32.gmra.mrb[0].mxu0 %v4988
        %v5179 = vpop.f32.mrb[0].mxu0
        %v5180 = vadd.f32 0.0, %v5179
        %v5181 = vpop.f32.mrb[0].mxu0
        %5182 = vmatprep.mubr.f32.mxu0 0.0
        %5183 = vmatmul.mubr.f32.gmra.mrb[0].mxu0 %v4991
        %v5184 = vpop.f32.mrb[0].mxu0
        %v5185 = vadd.f32 0.0, %v5184
        %v5186 = vpop.f32.mrb[0].mxu0
        %5187 = vmatprep.mubr.f32.mxu0 0.0
        %5188 = vmatmul.mubr.f32.gmra.mrb[0].mxu0 %v4994
        %v5189 = vpop.f32.mrb[0].mxu0
        %v5190 = vadd.f32 0.0, %v5189
        %v5191 = vpop.f32.mrb[0].mxu0
        %5192 = vmatprep.mubr.f32.mxu0 0.0
        %5193 = vmatmul.mubr.f32.gmra.mrb[0].mxu0 %v4997
        %v5194 = vpop.f32.mrb[0].mxu0
        %v5195 = vadd.f32 0.0, %v5194
        %v5196 = vpop.f32.mrb[0].mxu0
        %5197 = vmatprep.mubr.f32.mxu0 0.0
        %5198 = vmatmul.mubr.f32.gmra.mrb[0].mxu0 %v5000
        %v5199 = vpop.f32.mrb[0].mxu0
        %v5200 = vadd.f32 0.0, %v5199
        %v5201 = vpop.f32.mrb[0].mxu0
        %5202 = vmatprep.mubr.f32.mxu0 0.0
        %5203 = vmatmul.mubr.f32.gmra.mrb[0].mxu0 %v5003
        %v5204 = vpop.f32.mrb[0].mxu0
        %v5205 = vadd.f32 0.0, %v5204
        %v5206 = vpop.f32.mrb[0].mxu0
        %5207 = vmatprep.mubr.f32.mxu0 0.0
        %5208 = vmatmul.mubr.f32.gmra.mrb[0].mxu0 %v5006
        %v5209 = vpop.f32.mrb[0].mxu0
        %v5210 = vadd.f32 0.0, %v5209
        %v5211 = vpop.f32.mrb[0].mxu0
        %5212 = vmatprep.mubr.f32.mxu0 0.0
        %5213 = vmatmul.mubr.f32.gmra.mrb[0].mxu0 %v5009
        %v5214 = vpop.f32.mrb[0].mxu0
        %v5215 = vadd.f32 0.0, %v5214
        %v5216 = vpop.f32.mrb[0].mxu0
        %5217 = vmatprep.mubr.f32.mxu0 0.0
        %5218 = vmatmul.mubr.f32.gmra.mrb[0].mxu0 %v5012
        %v5219 = vpop.f32.mrb[0].mxu0
        %v5220 = vadd.f32 0.0, %v5219
        %v5221 = vpop.f32.mrb[0].mxu0
        %5222 = vmatprep.mubr.f32.mxu0 0.0
        %5223 = vmatmul.mubr.f32.gmra.mrb[0].mxu0 %v5015
        %v5224 = vpop.f32.mrb[0].mxu0
        %v5225 = vadd.f32 0.0, %v5224
        %v5226 = vpop.f32.mrb[0].mxu0
        %5227 = vmatprep.mubr.f32.mxu0 0.0
        %5228 = vmatmul.mubr.f32.gmra.mrb[0].mxu0 %v5018
        %v5229 = vpop.f32.mrb[0].mxu0
        %v5230 = vadd.f32 0.0, %v5229
        %v5231 = vpop.f32.mrb[0].mxu0
        %5232 = vmatprep.mubr.f32.mxu0 0.0
        %5233 = vmatmul.mubr.f32.gmra.mrb[0].mxu0 %v5021
        %v5234 = vpop.f32.mrb[0].mxu0
        %v5235 = vadd.f32 0.0, %v5234
        %v5236 = vpop.f32.mrb[0].mxu0
        %5237 = vmatprep.mubr.f32.mxu0 0.0
        %5238 = vmatmul.mubr.f32.gmra.mrb[0].mxu0 %v5024
        %v5239 = vpop.f32.mrb[0].mxu0
        %v5240 = vadd.f32 0.0, %v5239
        %v5241 = vpop.f32.mrb[0].mxu0
        %5242 = vmatprep.mubr.f32.mxu0 0.0
        %5243 = vmatmul.mubr.f32.gmra.mrb[0].mxu0 %v5027
        %v5244 = vpop.f32.mrb[0].mxu0
        %v5245 = vadd.f32 0.0, %v5244
        %v5246 = vpop.f32.mrb[0].mxu0
        %5247 = vmatprep.mubr.f32.mxu0 0.0
        %5248 = vmatmul.mubr.f32.gmra.mrb[0].mxu0 %v5030
        %v5249 = vpop.f32.mrb[0].mxu0
        %v5250 = vadd.f32 0.0, %v5249
        %v5251 = vpop.f32.mrb[0].mxu0
        %5252 = vmatprep.mubr.f32.mxu0 0.0
        %5253 = vmatmul.mubr.f32.gmra.mrb[0].mxu0 %v5033
        %v5254 = vpop.f32.mrb[0].mxu0
        %v5255 = vadd.f32 0.0, %v5254
        %v5256 = vpop.f32.mrb[0].mxu0
        %5257 = vmatprep.mubr.f32.mxu0 0.0
        %5258 = vmatmul.mubr.f32.gmra.mrb[0].mxu0 %v5036
        %v5259 = vpop.f32.mrb[0].mxu0
        %v5260 = vadd.f32 0.0, %v5259
        %v5261 = vpop.f32.mrb[0].mxu0
        %5262 = vmatprep.mubr.f32.mxu0 0.0
        %5263 = vmatmul.mubr.f32.gmra.mrb[0].mxu0 %v5039
        %v5264 = vpop.f32.mrb[0].mxu0
        %v5265 = vadd.f32 0.0, %v5264
        %v5266 = vpop.f32.mrb[0].mxu0
        %5267 = vmatprep.mubr.f32.mxu0 0.0
        %5268 = vmatmul.mubr.f32.gmra.mrb[0].mxu0 %v5042
        %v5269 = vpop.f32.mrb[0].mxu0
        %v5270 = vadd.f32 0.0, %v5269
        %v5271 = vpop.f32.mrb[0].mxu0
        %5272 = vmatprep.mubr.f32.mxu0 0.0
        %5273 = vmatmul.mubr.f32.gmra.mrb[0].mxu0 %v5045
        %v5274 = vpop.f32.mrb[0].mxu0
        %v5275 = vadd.f32 0.0, %v5274
        %v5276 = vpop.f32.mrb[0].mxu0
        %5277 = vmatprep.mubr.f32.mxu0 0.0
        %5278 = vmatmul.mubr.f32.gmra.mrb[0].mxu0 %v5048
        %v5279 = vpop.f32.mrb[0].mxu0
        %v5280 = vadd.f32 0.0, %v5279
        %v5281 = vpop.f32.mrb[0].mxu0
        %5282 = vmatprep.mubr.f32.mxu0 0.0
        %5283 = vmatmul.mubr.f32.gmra.mrb[0].mxu0 %v5051
        %v5284 = vpop.f32.mrb[0].mxu0
        %v5285 = vadd.f32 0.0, %v5284
        %v5286 = vpop.f32.mrb[0].mxu0
        %5287 = vmatprep.mubr.f32.mxu0 0.0
        %5288 = vmatmul.mubr.f32.gmra.mrb[0].mxu0 %v5054
        %v5289 = vpop.f32.mrb[0].mxu0
        %v5290 = vadd.f32 0.0, %v5289
        %v5291 = vpop.f32.mrb[0].mxu0
        %5292 = vmatprep.mubr.f32.mxu0 0.0
        %5293 = vmatmul.mubr.f32.gmra.mrb[0].mxu0 %v5057
        %v5294 = vpop.f32.mrb[0].mxu0
        %v5295 = vadd.f32 0.0, %v5294
        %v5296 = vpop.f32.mrb[0].mxu0
        %5297 = vmatprep.mubr.f32.mxu0 0.0
        %5298 = vmatmul.mubr.f32.gmra.mrb[0].mxu0 %v5060
        %v5299 = vpop.f32.mrb[0].mxu0
        %v5300 = vadd.f32 0.0, %v5299
        %v5301 = vpop.f32.mrb[0].mxu0
        %5302 = vmatprep.mubr.f32.mxu0 0.0
        %5303 = vmatmul.mubr.f32.gmra.mrb[0].mxu0 %v5063
        %v5304 = vpop.f32.mrb[0].mxu0
        %v5305 = vadd.f32 0.0, %v5304
        %v5306 = vpop.f32.mrb[0].mxu0
        %5307 = vmatprep.mubr.f32.mxu0 0.0
        %5308 = vmatmul.mubr.f32.gmra.mrb[0].mxu0 %v5066
        %v5309 = vpop.f32.mrb[0].mxu0
        %v5310 = vadd.f32 0.0, %v5309
        %v5311 = vpop.f32.mrb[0].mxu0
        %5312 = vdwg.mxu0
        %v5314 = vsel %vm4839, %v4885, 0
        %v5317 = vsel %vm4839, %v4886, 0
        %v5320 = vsel %vm4839, %v4887, 0
        %v5323 = vsel %vm4839, %v4888, 0
        %v5326 = vsel %vm4839, %v4889, 0
        %v5329 = vsel %vm4839, %v4890, 0
        %v5332 = vsel %vm4839, %v4891, 0
        %v5335 = vsel %vm4839, %v4892, 0
        %v5338 = vsel %vm4839, %v4893, 0
        %v5341 = vsel %vm4839, %v4894, 0
        %v5344 = vsel %vm4839, %v4895, 0
        %v5347 = vsel %vm4839, %v4896, 0
        %v5350 = vsel %vm4839, %v4897, 0
        %v5353 = vsel %vm4839, %v4898, 0
        %v5356 = vsel %vm4839, %v4899, 0
        %v5359 = vsel %vm4839, %v4900, 0
        %v5362 = vsel %vm4839, %v4901, 0
        %v5365 = vsel %vm4839, %v4902, 0
        %v5368 = vsel %vm4839, %v4903, 0
        %v5371 = vsel %vm4839, %v4904, 0
        %v5374 = vsel %vm4839, %v4905, 0
        %v5377 = vsel %vm4839, %v4906, 0
        %v5380 = vsel %vm4839, %v4907, 0
        %v5383 = vsel %vm4839, %v4908, 0
        %v5386 = vsel %vm4839, %v4909, 0
        %v5389 = vsel %vm4839, %v4910, 0
        %v5392 = vsel %vm4839, %v4911, 0
        %v5395 = vsel %vm4839, %v4912, 0
        %v5398 = vsel %vm4839, %v4913, 0
        %v5401 = vsel %vm4839, %v4914, 0
        %v5404 = vsel %vm4839, %v4915, 0
        %v5407 = vsel %vm4839, %v4916, 0
        %v5410 = vsel %vm4839, %v4917, 0
        %v5413 = vsel %vm4839, %v4918, 0
        %v5416 = vsel %vm4839, %v4919, 0
        %v5419 = vsel %vm4839, %v4920, 0
        %5421 = vmatprep.subr.mxu0 0.0
        %5422 = vmatpush1.msra.mxu0 %v4921
        %5423 = vmatprep.subr.mxu0 0.0
        %5424 = vmatpush1.msra.mxu0 0.0
        %5425 = vmatprep.subr.mxu0 0.0
        %5426 = vmatpush1.msra.mxu0 0.0
        %5427 = vmatprep.subr.mxu0 0.0
        %5428 = vmatpush1.msra.mxu0 0.0
        %5429 = vmatprep.subr.mxu0 0.0
        %5430 = vmatpush1.msra.mxu0 0.0
        %5431 = vmatprep.subr.mxu0 0.0
        %5432 = vmatpush1.msra.mxu0 0.0
        %5433 = vmatprep.subr.mxu0 0.0
        %5434 = vmatpush1.msra.mxu0 0.0
        %5435 = vmatprep.subr.mxu0 0.0
        %5436 = vmatpush1.msra.mxu0 0.0
        %5437 = vmatprep.subr.mxu0 0.0
        %5438 = vmatpush1.msra.mxu0 0.0
        %5439 = vmatprep.subr.mxu0 0.0
        %5440 = vmatpush1.msra.mxu0 0.0
        %5441 = vmatprep.subr.mxu0 0.0
        %5442 = vmatpush1.msra.mxu0 0.0
        %5443 = vmatprep.subr.mxu0 0.0
        %5444 = vmatpush1.msra.mxu0 0.0
        %5445 = vmatprep.subr.mxu0 0.0
        %5446 = vmatpush1.msra.mxu0 0.0
        %5447 = vmatprep.subr.mxu0 0.0
        %5448 = vmatpush1.msra.mxu0 0.0
        %5449 = vmatprep.subr.mxu0 0.0
        %5450 = vmatpush1.msra.mxu0 0.0
        %5451 = vmatprep.subr.mxu0 0.0
        %5452 = vmatpush1.msra.mxu0 0.0
        %5453 = vmatprep.subr.mxu0 0.0
        %5454 = vmatpush1.msra.mxu0 0.0
        %5455 = vmatprep.subr.mxu0 0.0
        %5456 = vmatpush1.msra.mxu0 0.0
        %5457 = vmatprep.subr.mxu0 0.0
        %5458 = vmatpush1.msra.mxu0 0.0
        %5459 = vmatprep.subr.mxu0 0.0
        %5460 = vmatpush1.msra.mxu0 0.0
        %5461 = vmatprep.subr.mxu0 0.0
        %5462 = vmatpush1.msra.mxu0 0.0
        %5463 = vmatprep.subr.mxu0 0.0
        %5464 = vmatpush1.msra.mxu0 0.0
        %5465 = vmatprep.subr.mxu0 0.0
        %5466 = vmatpush1.msra.mxu0 0.0
        %5467 = vmatprep.subr.mxu0 0.0
        %5468 = vmatpush1.msra.mxu0 0.0
        %5469 = vmatprep.subr.mxu0 0.0
        %5470 = vmatpush1.msra.mxu0 0.0
        %5471 = vmatprep.subr.mxu0 0.0
        %5472 = vmatpush1.msra.mxu0 0.0
        %5473 = vmatprep.subr.mxu0 0.0
        %5474 = vmatpush1.msra.mxu0 0.0
        %5475 = vmatprep.subr.mxu0 0.0
        %5476 = vmatpush1.msra.mxu0 0.0
        %5477 = vmatprep.subr.mxu0 0.0
        %5478 = vmatpush1.msra.mxu0 0.0
        %5479 = vmatprep.subr.mxu0 0.0
        %5480 = vmatpush1.msra.mxu0 0.0
        %5481 = vmatprep.subr.mxu0 0.0
        %5482 = vmatpush1.msra.mxu0 0.0
        %5483 = vmatprep.subr.mxu0 0.0
        %5484 = vmatpush1.msra.mxu0 0.0
        %5485 = vmatprep.mubr.f32.mxu0 0.0
        %5486 = vmatmul.mubr.f32.gmra.mrb[0].mxu0 %v5314
        %v5487 = vpop.f32.mrb[0].mxu0
        %v5488 = vadd.f32 %v5135, %v5487
        %v5489 = vpop.f32.mrb[0].mxu0
        %5490 = vmatprep.mubr.f32.mxu0 0.0
        %5491 = vmatmul.mubr.f32.gmra.mrb[0].mxu0 %v5317
        %v5492 = vpop.f32.mrb[0].mxu0
        %v5493 = vadd.f32 %v5140, %v5492
        %v5494 = vpop.f32.mrb[0].mxu0
        %5495 = vmatprep.mubr.f32.mxu0 0.0
        %5496 = vmatmul.mubr.f32.gmra.mrb[0].mxu0 %v5320
        %v5497 = vpop.f32.mrb[0].mxu0
        %v5498 = vadd.f32 %v5145, %v5497
        %v5499 = vpop.f32.mrb[0].mxu0
        %5500 = vmatprep.mubr.f32.mxu0 0.0
        %5501 = vmatmul.mubr.f32.gmra.mrb[0].mxu0 %v5323
        %v5502 = vpop.f32.mrb[0].mxu0
        %v5503 = vadd.f32 %v5150, %v5502
        %v5504 = vpop.f32.mrb[0].mxu0
        %5505 = vmatprep.mubr.f32.mxu0 0.0
        %5506 = vmatmul.mubr.f32.gmra.mrb[0].mxu0 %v5326
        %v5507 = vpop.f32.mrb[0].mxu0
        %v5508 = vadd.f32 %v5155, %v5507
        %v5509 = vpop.f32.mrb[0].mxu0
        %5510 = vmatprep.mubr.f32.mxu0 0.0
        %5511 = vmatmul.mubr.f32.gmra.mrb[0].mxu0 %v5329
        %v5512 = vpop.f32.mrb[0].mxu0
        %v5513 = vadd.f32 %v5160, %v5512
        %v5514 = vpop.f32.mrb[0].mxu0
        %5515 = vmatprep.mubr.f32.mxu0 0.0
        %5516 = vmatmul.mubr.f32.gmra.mrb[0].mxu0 %v5332
        %v5517 = vpop.f32.mrb[0].mxu0
        %v5518 = vadd.f32 %v5165, %v5517
        %v5519 = vpop.f32.mrb[0].mxu0
        %5520 = vmatprep.mubr.f32.mxu0 0.0
        %5521 = vmatmul.mubr.f32.gmra.mrb[0].mxu0 %v5335
        %v5522 = vpop.f32.mrb[0].mxu0
        %v5523 = vadd.f32 %v5170, %v5522
        %v5524 = vpop.f32.mrb[0].mxu0
        %5525 = vmatprep.mubr.f32.mxu0 0.0
        %5526 = vmatmul.mubr.f32.gmra.mrb[0].mxu0 %v5338
        %v5527 = vpop.f32.mrb[0].mxu0
        %v5528 = vadd.f32 %v5175, %v5527
        %v5529 = vpop.f32.mrb[0].mxu0
        %5530 = vmatprep.mubr.f32.mxu0 0.0
        %5531 = vmatmul.mubr.f32.gmra.mrb[0].mxu0 %v5341
        %v5532 = vpop.f32.mrb[0].mxu0
        %v5533 = vadd.f32 %v5180, %v5532
        %v5534 = vpop.f32.mrb[0].mxu0
        %5535 = vmatprep.mubr.f32.mxu0 0.0
        %5536 = vmatmul.mubr.f32.gmra.mrb[0].mxu0 %v5344
        %v5537 = vpop.f32.mrb[0].mxu0
        %v5538 = vadd.f32 %v5185, %v5537
        %v5539 = vpop.f32.mrb[0].mxu0
        %5540 = vmatprep.mubr.f32.mxu0 0.0
        %5541 = vmatmul.mubr.f32.gmra.mrb[0].mxu0 %v5347
        %v5542 = vpop.f32.mrb[0].mxu0
        %v5543 = vadd.f32 %v5190, %v5542
        %v5544 = vpop.f32.mrb[0].mxu0
        %5545 = vmatprep.mubr.f32.mxu0 0.0
        %5546 = vmatmul.mubr.f32.gmra.mrb[0].mxu0 %v5350
        %v5547 = vpop.f32.mrb[0].mxu0
        %v5548 = vadd.f32 %v5195, %v5547
        %v5549 = vpop.f32.mrb[0].mxu0
        %5550 = vmatprep.mubr.f32.mxu0 0.0
        %5551 = vmatmul.mubr.f32.gmra.mrb[0].mxu0 %v5353
        %v5552 = vpop.f32.mrb[0].mxu0
        %v5553 = vadd.f32 %v5200, %v5552
        %v5554 = vpop.f32.mrb[0].mxu0
        %5555 = vmatprep.mubr.f32.mxu0 0.0
        %5556 = vmatmul.mubr.f32.gmra.mrb[0].mxu0 %v5356
        %v5557 = vpop.f32.mrb[0].mxu0
        %v5558 = vadd.f32 %v5205, %v5557
        %v5559 = vpop.f32.mrb[0].mxu0
        %5560 = vmatprep.mubr.f32.mxu0 0.0
        %5561 = vmatmul.mubr.f32.gmra.mrb[0].mxu0 %v5359
        %v5562 = vpop.f32.mrb[0].mxu0
        %v5563 = vadd.f32 %v5210, %v5562
        %v5564 = vpop.f32.mrb[0].mxu0
        %5565 = vmatprep.mubr.f32.mxu0 0.0
        %5566 = vmatmul.mubr.f32.gmra.mrb[0].mxu0 %v5362
        %v5567 = vpop.f32.mrb[0].mxu0
        %v5568 = vadd.f32 %v5215, %v5567
        %v5569 = vpop.f32.mrb[0].mxu0
        %5570 = vmatprep.mubr.f32.mxu0 0.0
        %5571 = vmatmul.mubr.f32.gmra.mrb[0].mxu0 %v5365
        %v5572 = vpop.f32.mrb[0].mxu0
        %v5573 = vadd.f32 %v5220, %v5572
        %v5574 = vpop.f32.mrb[0].mxu0
        %5575 = vmatprep.mubr.f32.mxu0 0.0
        %5576 = vmatmul.mubr.f32.gmra.mrb[0].mxu0 %v5368
        %v5577 = vpop.f32.mrb[0].mxu0
        %v5578 = vadd.f32 %v5225, %v5577
        %v5579 = vpop.f32.mrb[0].mxu0
        %5580 = vmatprep.mubr.f32.mxu0 0.0
        %5581 = vmatmul.mubr.f32.gmra.mrb[0].mxu0 %v5371
        %v5582 = vpop.f32.mrb[0].mxu0
        %v5583 = vadd.f32 %v5230, %v5582
        %v5584 = vpop.f32.mrb[0].mxu0
        %5585 = vmatprep.mubr.f32.mxu0 0.0
        %5586 = vmatmul.mubr.f32.gmra.mrb[0].mxu0 %v5374
        %v5587 = vpop.f32.mrb[0].mxu0
        %v5588 = vadd.f32 %v5235, %v5587
        %v5589 = vpop.f32.mrb[0].mxu0
        %5590 = vmatprep.mubr.f32.mxu0 0.0
        %5591 = vmatmul.mubr.f32.gmra.mrb[0].mxu0 %v5377
        %v5592 = vpop.f32.mrb[0].mxu0
        %v5593 = vadd.f32 %v5240, %v5592
        %v5594 = vpop.f32.mrb[0].mxu0
        %5595 = vmatprep.mubr.f32.mxu0 0.0
        %5596 = vmatmul.mubr.f32.gmra.mrb[0].mxu0 %v5380
        %v5597 = vpop.f32.mrb[0].mxu0
        %v5598 = vadd.f32 %v5245, %v5597
        %v5599 = vpop.f32.mrb[0].mxu0
        %5600 = vmatprep.mubr.f32.mxu0 0.0
        %5601 = vmatmul.mubr.f32.gmra.mrb[0].mxu0 %v5383
        %v5602 = vpop.f32.mrb[0].mxu0
        %v5603 = vadd.f32 %v5250, %v5602
        %v5604 = vpop.f32.mrb[0].mxu0
        %5605 = vmatprep.mubr.f32.mxu0 0.0
        %5606 = vmatmul.mubr.f32.gmra.mrb[0].mxu0 %v5386
        %v5607 = vpop.f32.mrb[0].mxu0
        %v5608 = vadd.f32 %v5255, %v5607
        %v5609 = vpop.f32.mrb[0].mxu0
        %5610 = vmatprep.mubr.f32.mxu0 0.0
        %5611 = vmatmul.mubr.f32.gmra.mrb[0].mxu0 %v5389
        %v5612 = vpop.f32.mrb[0].mxu0
        %v5613 = vadd.f32 %v5260, %v5612
        %v5614 = vpop.f32.mrb[0].mxu0
        %5615 = vmatprep.mubr.f32.mxu0 0.0
        %5616 = vmatmul.mubr.f32.gmra.mrb[0].mxu0 %v5392
        %v5617 = vpop.f32.mrb[0].mxu0
        %v5618 = vadd.f32 %v5265, %v5617
        %v5619 = vpop.f32.mrb[0].mxu0
        %5620 = vmatprep.mubr.f32.mxu0 0.0
        %5621 = vmatmul.mubr.f32.gmra.mrb[0].mxu0 %v5395
        %v5622 = vpop.f32.mrb[0].mxu0
        %v5623 = vadd.f32 %v5270, %v5622
        %v5624 = vpop.f32.mrb[0].mxu0
        %5625 = vmatprep.mubr.f32.mxu0 0.0
        %5626 = vmatmul.mubr.f32.gmra.mrb[0].mxu0 %v5398
        %v5627 = vpop.f32.mrb[0].mxu0
        %v5628 = vadd.f32 %v5275, %v5627
        %v5629 = vpop.f32.mrb[0].mxu0
        %5630 = vmatprep.mubr.f32.mxu0 0.0
        %5631 = vmatmul.mubr.f32.gmra.mrb[0].mxu0 %v5401
        %v5632 = vpop.f32.mrb[0].mxu0
        %v5633 = vadd.f32 %v5280, %v5632
        %v5634 = vpop.f32.mrb[0].mxu0
        %5635 = vmatprep.mubr.f32.mxu0 0.0
        %5636 = vmatmul.mubr.f32.gmra.mrb[0].mxu0 %v5404
        %v5637 = vpop.f32.mrb[0].mxu0
        %v5638 = vadd.f32 %v5285, %v5637
        %v5639 = vpop.f32.mrb[0].mxu0
        %5640 = vmatprep.mubr.f32.mxu0 0.0
        %5641 = vmatmul.mubr.f32.gmra.mrb[0].mxu0 %v5407
        %v5642 = vpop.f32.mrb[0].mxu0
        %v5643 = vadd.f32 %v5290, %v5642
        %v5644 = vpop.f32.mrb[0].mxu0
        %5645 = vmatprep.mubr.f32.mxu0 0.0
        %5646 = vmatmul.mubr.f32.gmra.mrb[0].mxu0 %v5410
        %v5647 = vpop.f32.mrb[0].mxu0
        %v5648 = vadd.f32 %v5295, %v5647
        %v5649 = vpop.f32.mrb[0].mxu0
        %5650 = vmatprep.mubr.f32.mxu0 0.0
        %5651 = vmatmul.mubr.f32.gmra.mrb[0].mxu0 %v5413
        %v5652 = vpop.f32.mrb[0].mxu0
        %v5653 = vadd.f32 %v5300, %v5652
        %v5654 = vpop.f32.mrb[0].mxu0
        %5655 = vmatprep.mubr.f32.mxu0 0.0
        %5656 = vmatmul.mubr.f32.gmra.mrb[0].mxu0 %v5416
        %v5657 = vpop.f32.mrb[0].mxu0
        %v5658 = vadd.f32 %v5305, %v5657
        %v5659 = vpop.f32.mrb[0].mxu0
        %5660 = vmatprep.mubr.f32.mxu0 0.0
        %5661 = vmatmul.mubr.f32.gmra.mrb[0].mxu0 %v5419
        %v5662 = vpop.f32.mrb[0].mxu0
        %v5663 = vadd.f32 %v5310, %v5662
        %v5664 = vpop.f32.mrb[0].mxu0
        %5665 = vdwg.mxu0
        %v5666 = vld [vmem:[#allocation2 + $0x7] sm:$0xff]
        %v5667 = vld [vmem:[#allocation2 + $0xf] sm:$0xff]
        %v5668 = vld [vmem:[#allocation2 + $0x17] sm:$0xff]
        %v5669 = vld [vmem:[#allocation2 + $0x1f] sm:$0xff]
        %v5670 = vld [vmem:[#allocation2 + $0x27] sm:$0xff]
        %v5671 = vld [vmem:[#allocation2 + $0x2f] sm:$0xff]
        %v5672 = vld [vmem:[#allocation2 + $0x37] sm:$0xff]
        %v5673 = vld [vmem:[#allocation2 + $0x3f] sm:$0xff]
        %v5674 = vld [vmem:[#allocation2 + $0x47] sm:$0xff]
        %v5675 = vld [vmem:[#allocation2 + $0x4f] sm:$0xff]
        %v5676 = vld [vmem:[#allocation2 + $0x57] sm:$0xff]
        %v5677 = vld [vmem:[#allocation2 + $0x5f] sm:$0xff]
        %v5678 = vld [vmem:[#allocation2 + $0x67] sm:$0xff]
        %v5679 = vld [vmem:[#allocation2 + $0x6f] sm:$0xff]
        %v5680 = vld [vmem:[#allocation2 + $0x77] sm:$0xff]
        %v5681 = vld [vmem:[#allocation2 + $0x7f] sm:$0xff]
        %v5682 = vld [vmem:[#allocation2 + $0x87] sm:$0xff]
        %v5683 = vld [vmem:[#allocation2 + $0x8f] sm:$0xff]
        %v5684 = vld [vmem:[#allocation2 + $0x97] sm:$0xff]
        %v5685 = vld [vmem:[#allocation2 + $0x9f] sm:$0xff]
        %v5686 = vld [vmem:[#allocation2 + $0xa7] sm:$0xff]
        %v5687 = vld [vmem:[#allocation2 + $0xaf] sm:$0xff]
        %v5688 = vld [vmem:[#allocation2 + $0xb7] sm:$0xff]
        %v5689 = vld [vmem:[#allocation2 + $0xbf] sm:$0xff]
        %v5690 = vld [vmem:[#allocation2 + $0xc7] sm:$0xff]
        %v5691 = vld [vmem:[#allocation2 + $0xcf] sm:$0xff]
        %v5692 = vld [vmem:[#allocation2 + $0xd7] sm:$0xff]
        %v5693 = vld [vmem:[#allocation2 + $0xdf] sm:$0xff]
        %v5694 = vld [vmem:[#allocation2 + $0xe7] sm:$0xff]
        %v5695 = vld [vmem:[#allocation2 + $0xef] sm:$0xff]
        %v5696 = vld [vmem:[#allocation2 + $0xf7] sm:$0xff]
        %v5697 = vld [vmem:[#allocation2 + $0xff] sm:$0xff]
        %v5698 = vld [vmem:[#allocation2 + $0x107] sm:$0xff]
        %v5699 = vld [vmem:[#allocation2 + $0x10f] sm:$0xff]
        %v5700 = vld [vmem:[#allocation2 + $0x117] sm:$0xff]
        %v5701 = vld [vmem:[#allocation2 + $0x11f] sm:$0xff]
        %s5702 = scalar_lea.vmem %s3, 16
        %v5703 = vld [vmem:[%s5702] sm:$0xff]
        %v5705 = vsel %vm4839, %v5666, 0
        %v5708 = vsel %vm4839, %v5667, 0
        %v5711 = vsel %vm4839, %v5668, 0
        %v5714 = vsel %vm4839, %v5669, 0
        %v5717 = vsel %vm4839, %v5670, 0
        %v5720 = vsel %vm4839, %v5671, 0
        %v5723 = vsel %vm4839, %v5672, 0
        %v5726 = vsel %vm4839, %v5673, 0
        %v5729 = vsel %vm4839, %v5674, 0
        %v5732 = vsel %vm4839, %v5675, 0
        %v5735 = vsel %vm4839, %v5676, 0
        %v5738 = vsel %vm4839, %v5677, 0
        %v5741 = vsel %vm4839, %v5678, 0
        %v5744 = vsel %vm4839, %v5679, 0
        %v5747 = vsel %vm4839, %v5680, 0
        %v5750 = vsel %vm4839, %v5681, 0
        %v5753 = vsel %vm4839, %v5682, 0
        %v5756 = vsel %vm4839, %v5683, 0
        %v5759 = vsel %vm4839, %v5684, 0
        %v5762 = vsel %vm4839, %v5685, 0
        %v5765 = vsel %vm4839, %v5686, 0
        %v5768 = vsel %vm4839, %v5687, 0
        %v5771 = vsel %vm4839, %v5688, 0
        %v5774 = vsel %vm4839, %v5689, 0
        %v5777 = vsel %vm4839, %v5690, 0
        %v5780 = vsel %vm4839, %v5691, 0
        %v5783 = vsel %vm4839, %v5692, 0
        %v5786 = vsel %vm4839, %v5693, 0
        %v5789 = vsel %vm4839, %v5694, 0
        %v5792 = vsel %vm4839, %v5695, 0
        %v5795 = vsel %vm4839, %v5696, 0
        %v5798 = vsel %vm4839, %v5697, 0
        %v5801 = vsel %vm4839, %v5698, 0
        %v5804 = vsel %vm4839, %v5699, 0
        %v5807 = vsel %vm4839, %v5700, 0
        %v5810 = vsel %vm4839, %v5701, 0
        %5812 = vmatprep.subr.mxu0 0.0
        %5813 = vmatpush1.msra.mxu0 %v5703
        %5814 = vmatprep.subr.mxu0 0.0
        %5815 = vmatpush1.msra.mxu0 0.0
        %5816 = vmatprep.subr.mxu0 0.0
        %5817 = vmatpush1.msra.mxu0 0.0
        %5818 = vmatprep.subr.mxu0 0.0
        %5819 = vmatpush1.msra.mxu0 0.0
        %5820 = vmatprep.subr.mxu0 0.0
        %5821 = vmatpush1.msra.mxu0 0.0
        %5822 = vmatprep.subr.mxu0 0.0
        %5823 = vmatpush1.msra.mxu0 0.0
        %5824 = vmatprep.subr.mxu0 0.0
        %5825 = vmatpush1.msra.mxu0 0.0
        %5826 = vmatprep.subr.mxu0 0.0
        %5827 = vmatpush1.msra.mxu0 0.0
        %5828 = vmatprep.subr.mxu0 0.0
        %5829 = vmatpush1.msra.mxu0 0.0
        %5830 = vmatprep.subr.mxu0 0.0
        %5831 = vmatpush1.msra.mxu0 0.0
        %5832 = vmatprep.subr.mxu0 0.0
        %5833 = vmatpush1.msra.mxu0 0.0
        %5834 = vmatprep.subr.mxu0 0.0
        %5835 = vmatpush1.msra.mxu0 0.0
        %5836 = vmatprep.subr.mxu0 0.0
        %5837 = vmatpush1.msra.mxu0 0.0
        %5838 = vmatprep.subr.mxu0 0.0
        %5839 = vmatpush1.msra.mxu0 0.0
        %5840 = vmatprep.subr.mxu0 0.0
        %5841 = vmatpush1.msra.mxu0 0.0
        %5842 = vmatprep.subr.mxu0 0.0
        %5843 = vmatpush1.msra.mxu0 0.0
        %5844 = vmatprep.subr.mxu0 0.0
        %5845 = vmatpush1.msra.mxu0 0.0
        %5846 = vmatprep.subr.mxu0 0.0
        %5847 = vmatpush1.msra.mxu0 0.0
        %5848 = vmatprep.subr.mxu0 0.0
        %5849 = vmatpush1.msra.mxu0 0.0
        %5850 = vmatprep.subr.mxu0 0.0
        %5851 = vmatpush1.msra.mxu0 0.0
        %5852 = vmatprep.subr.mxu0 0.0
        %5853 = vmatpush1.msra.mxu0 0.0
        %5854 = vmatprep.subr.mxu0 0.0
        %5855 = vmatpush1.msra.mxu0 0.0
        %5856 = vmatprep.subr.mxu0 0.0
        %5857 = vmatpush1.msra.mxu0 0.0
        %5858 = vmatprep.subr.mxu0 0.0
        %5859 = vmatpush1.msra.mxu0 0.0
        %5860 = vmatprep.subr.mxu0 0.0
        %5861 = vmatpush1.msra.mxu0 0.0
        %5862 = vmatprep.subr.mxu0 0.0
        %5863 = vmatpush1.msra.mxu0 0.0
        %5864 = vmatprep.subr.mxu0 0.0
        %5865 = vmatpush1.msra.mxu0 0.0
        %5866 = vmatprep.subr.mxu0 0.0
        %5867 = vmatpush1.msra.mxu0 0.0
        %5868 = vmatprep.subr.mxu0 0.0
        %5869 = vmatpush1.msra.mxu0 0.0
        %5870 = vmatprep.subr.mxu0 0.0
        %5871 = vmatpush1.msra.mxu0 0.0
        %5872 = vmatprep.subr.mxu0 0.0
        %5873 = vmatpush1.msra.mxu0 0.0
        %5874 = vmatprep.subr.mxu0 0.0
        %5875 = vmatpush1.msra.mxu0 0.0
        %5876 = vmatprep.mubr.f32.mxu0 0.0
        %5877 = vmatmul.mubr.f32.gmra.mrb[0].mxu0 %v5705
        %v5878 = vpop.f32.mrb[0].mxu0
        %v5879 = vadd.f32 0.0, %v5878
        %v5880 = vpop.f32.mrb[0].mxu0
        %5881 = vmatprep.mubr.f32.mxu0 0.0
        %5882 = vmatmul.mubr.f32.gmra.mrb[0].mxu0 %v5708
        %v5883 = vpop.f32.mrb[0].mxu0
        %v5884 = vadd.f32 0.0, %v5883
        %v5885 = vpop.f32.mrb[0].mxu0
        %5886 = vmatprep.mubr.f32.mxu0 0.0
        %5887 = vmatmul.mubr.f32.gmra.mrb[0].mxu0 %v5711
        %v5888 = vpop.f32.mrb[0].mxu0
        %v5889 = vadd.f32 0.0, %v5888
        %v5890 = vpop.f32.mrb[0].mxu0
        %5891 = vmatprep.mubr.f32.mxu0 0.0
        %5892 = vmatmul.mubr.f32.gmra.mrb[0].mxu0 %v5714
        %v5893 = vpop.f32.mrb[0].mxu0
        %v5894 = vadd.f32 0.0, %v5893
        %v5895 = vpop.f32.mrb[0].mxu0
        %5896 = vmatprep.mubr.f32.mxu0 0.0
        %5897 = vmatmul.mubr.f32.gmra.mrb[0].mxu0 %v5717
        %v5898 = vpop.f32.mrb[0].mxu0
        %v5899 = vadd.f32 0.0, %v5898
        %v5900 = vpop.f32.mrb[0].mxu0
        %5901 = vmatprep.mubr.f32.mxu0 0.0
        %5902 = vmatmul.mubr.f32.gmra.mrb[0].mxu0 %v5720
        %v5903 = vpop.f32.mrb[0].mxu0
        %v5904 = vadd.f32 0.0, %v5903
        %v5905 = vpop.f32.mrb[0].mxu0
        %5906 = vmatprep.mubr.f32.mxu0 0.0
        %5907 = vmatmul.mubr.f32.gmra.mrb[0].mxu0 %v5723
        %v5908 = vpop.f32.mrb[0].mxu0
        %v5909 = vadd.f32 0.0, %v5908
        %v5910 = vpop.f32.mrb[0].mxu0
        %5911 = vmatprep.mubr.f32.mxu0 0.0
        %5912 = vmatmul.mubr.f32.gmra.mrb[0].mxu0 %v5726
        %v5913 = vpop.f32.mrb[0].mxu0
        %v5914 = vadd.f32 0.0, %v5913
        %v5915 = vpop.f32.mrb[0].mxu0
        %5916 = vmatprep.mubr.f32.mxu0 0.0
        %5917 = vmatmul.mubr.f32.gmra.mrb[0].mxu0 %v5729
        %v5918 = vpop.f32.mrb[0].mxu0
        %v5919 = vadd.f32 0.0, %v5918
        %v5920 = vpop.f32.mrb[0].mxu0
        %5921 = vmatprep.mubr.f32.mxu0 0.0
        %5922 = vmatmul.mubr.f32.gmra.mrb[0].mxu0 %v5732
        %v5923 = vpop.f32.mrb[0].mxu0
        %v5924 = vadd.f32 0.0, %v5923
        %v5925 = vpop.f32.mrb[0].mxu0
        %5926 = vmatprep.mubr.f32.mxu0 0.0
        %5927 = vmatmul.mubr.f32.gmra.mrb[0].mxu0 %v5735
        %v5928 = vpop.f32.mrb[0].mxu0
        %v5929 = vadd.f32 0.0, %v5928
        %v5930 = vpop.f32.mrb[0].mxu0
        %5931 = vmatprep.mubr.f32.mxu0 0.0
        %5932 = vmatmul.mubr.f32.gmra.mrb[0].mxu0 %v5738
        %v5933 = vpop.f32.mrb[0].mxu0
        %v5934 = vadd.f32 0.0, %v5933
        %v5935 = vpop.f32.mrb[0].mxu0
        %5936 = vmatprep.mubr.f32.mxu0 0.0
        %5937 = vmatmul.mubr.f32.gmra.mrb[0].mxu0 %v5741
        %v5938 = vpop.f32.mrb[0].mxu0
        %v5939 = vadd.f32 0.0, %v5938
        %v5940 = vpop.f32.mrb[0].mxu0
        %5941 = vmatprep.mubr.f32.mxu0 0.0
        %5942 = vmatmul.mubr.f32.gmra.mrb[0].mxu0 %v5744
        %v5943 = vpop.f32.mrb[0].mxu0
        %v5944 = vadd.f32 0.0, %v5943
        %v5945 = vpop.f32.mrb[0].mxu0
        %5946 = vmatprep.mubr.f32.mxu0 0.0
        %5947 = vmatmul.mubr.f32.gmra.mrb[0].mxu0 %v5747
        %v5948 = vpop.f32.mrb[0].mxu0
        %v5949 = vadd.f32 0.0, %v5948
        %v5950 = vpop.f32.mrb[0].mxu0
        %5951 = vmatprep.mubr.f32.mxu0 0.0
        %5952 = vmatmul.mubr.f32.gmra.mrb[0].mxu0 %v5750
        %v5953 = vpop.f32.mrb[0].mxu0
        %v5954 = vadd.f32 0.0, %v5953
        %v5955 = vpop.f32.mrb[0].mxu0
        %5956 = vmatprep.mubr.f32.mxu0 0.0
        %5957 = vmatmul.mubr.f32.gmra.mrb[0].mxu0 %v5753
        %v5958 = vpop.f32.mrb[0].mxu0
        %v5959 = vadd.f32 0.0, %v5958
        %v5960 = vpop.f32.mrb[0].mxu0
        %5961 = vmatprep.mubr.f32.mxu0 0.0
        %5962 = vmatmul.mubr.f32.gmra.mrb[0].mxu0 %v5756
        %v5963 = vpop.f32.mrb[0].mxu0
        %v5964 = vadd.f32 0.0, %v5963
        %v5965 = vpop.f32.mrb[0].mxu0
        %5966 = vmatprep.mubr.f32.mxu0 0.0
        %5967 = vmatmul.mubr.f32.gmra.mrb[0].mxu0 %v5759
        %v5968 = vpop.f32.mrb[0].mxu0
        %v5969 = vadd.f32 0.0, %v5968
        %v5970 = vpop.f32.mrb[0].mxu0
        %5971 = vmatprep.mubr.f32.mxu0 0.0
        %5972 = vmatmul.mubr.f32.gmra.mrb[0].mxu0 %v5762
        %v5973 = vpop.f32.mrb[0].mxu0
        %v5974 = vadd.f32 0.0, %v5973
        %v5975 = vpop.f32.mrb[0].mxu0
        %5976 = vmatprep.mubr.f32.mxu0 0.0
        %5977 = vmatmul.mubr.f32.gmra.mrb[0].mxu0 %v5765
        %v5978 = vpop.f32.mrb[0].mxu0
        %v5979 = vadd.f32 0.0, %v5978
        %v5980 = vpop.f32.mrb[0].mxu0
        %5981 = vmatprep.mubr.f32.mxu0 0.0
        %5982 = vmatmul.mubr.f32.gmra.mrb[0].mxu0 %v5768
        %v5983 = vpop.f32.mrb[0].mxu0
        %v5984 = vadd.f32 0.0, %v5983
        %v5985 = vpop.f32.mrb[0].mxu0
        %5986 = vmatprep.mubr.f32.mxu0 0.0
        %5987 = vmatmul.mubr.f32.gmra.mrb[0].mxu0 %v5771
        %v5988 = vpop.f32.mrb[0].mxu0
        %v5989 = vadd.f32 0.0, %v5988
        %v5990 = vpop.f32.mrb[0].mxu0
        %5991 = vmatprep.mubr.f32.mxu0 0.0
        %5992 = vmatmul.mubr.f32.gmra.mrb[0].mxu0 %v5774
        %v5993 = vpop.f32.mrb[0].mxu0
        %v5994 = vadd.f32 0.0, %v5993
        %v5995 = vpop.f32.mrb[0].mxu0
        %5996 = vmatprep.mubr.f32.mxu0 0.0
        %5997 = vmatmul.mubr.f32.gmra.mrb[0].mxu0 %v5777
        %v5998 = vpop.f32.mrb[0].mxu0
        %v5999 = vadd.f32 0.0, %v5998
        %v6000 = vpop.f32.mrb[0].mxu0
        %6001 = vmatprep.mubr.f32.mxu0 0.0
        %6002 = vmatmul.mubr.f32.gmra.mrb[0].mxu0 %v5780
        %v6003 = vpop.f32.mrb[0].mxu0
        %v6004 = vadd.f32 0.0, %v6003
        %v6005 = vpop.f32.mrb[0].mxu0
        %6006 = vmatprep.mubr.f32.mxu0 0.0
        %6007 = vmatmul.mubr.f32.gmra.mrb[0].mxu0 %v5783
        %v6008 = vpop.f32.mrb[0].mxu0
        %v6009 = vadd.f32 0.0, %v6008
        %v6010 = vpop.f32.mrb[0].mxu0
        %6011 = vmatprep.mubr.f32.mxu0 0.0
        %6012 = vmatmul.mubr.f32.gmra.mrb[0].mxu0 %v5786
        %v6013 = vpop.f32.mrb[0].mxu0
        %v6014 = vadd.f32 0.0, %v6013
        %v6015 = vpop.f32.mrb[0].mxu0
        %6016 = vmatprep.mubr.f32.mxu0 0.0
        %6017 = vmatmul.mubr.f32.gmra.mrb[0].mxu0 %v5789
        %v6018 = vpop.f32.mrb[0].mxu0
        %v6019 = vadd.f32 0.0, %v6018
        %v6020 = vpop.f32.mrb[0].mxu0
        %6021 = vmatprep.mubr.f32.mxu0 0.0
        %6022 = vmatmul.mubr.f32.gmra.mrb[0].mxu0 %v5792
        %v6023 = vpop.f32.mrb[0].mxu0
        %v6024 = vadd.f32 0.0, %v6023
        %v6025 = vpop.f32.mrb[0].mxu0
        %6026 = vmatprep.mubr.f32.mxu0 0.0
        %6027 = vmatmul.mubr.f32.gmra.mrb[0].mxu0 %v5795
        %v6028 = vpop.f32.mrb[0].mxu0
        %v6029 = vadd.f32 0.0, %v6028
        %v6030 = vpop.f32.mrb[0].mxu0
        %6031 = vmatprep.mubr.f32.mxu0 0.0
        %6032 = vmatmul.mubr.f32.gmra.mrb[0].mxu0 %v5798
        %v6033 = vpop.f32.mrb[0].mxu0
        %v6034 = vadd.f32 0.0, %v6033
        %v6035 = vpop.f32.mrb[0].mxu0
        %6036 = vmatprep.mubr.f32.mxu0 0.0
        %6037 = vmatmul.mubr.f32.gmra.mrb[0].mxu0 %v5801
        %v6038 = vpop.f32.mrb[0].mxu0
        %v6039 = vadd.f32 0.0, %v6038
        %v6040 = vpop.f32.mrb[0].mxu0
        %6041 = vmatprep.mubr.f32.mxu0 0.0
        %6042 = vmatmul.mubr.f32.gmra.mrb[0].mxu0 %v5804
        %v6043 = vpop.f32.mrb[0].mxu0
        %v6044 = vadd.f32 0.0, %v6043
        %v6045 = vpop.f32.mrb[0].mxu0
        %6046 = vmatprep.mubr.f32.mxu0 0.0
        %6047 = vmatmul.mubr.f32.gmra.mrb[0].mxu0 %v5807
        %v6048 = vpop.f32.mrb[0].mxu0
        %v6049 = vadd.f32 0.0, %v6048
        %v6050 = vpop.f32.mrb[0].mxu0
        %6051 = vmatprep.mubr.f32.mxu0 0.0
        %6052 = vmatmul.mubr.f32.gmra.mrb[0].mxu0 %v5810
        %v6053 = vpop.f32.mrb[0].mxu0
        %v6054 = vadd.f32 0.0, %v6053
        %v6055 = vpop.f32.mrb[0].mxu0
        %6056 = vdwg.mxu0
        %v6057 = vadd.f32 %v5488, %v5879
        %v6058 = vadd.f32 %v5493, %v5884
        %v6059 = vadd.f32 %v5498, %v5889
        %v6060 = vadd.f32 %v5503, %v5894
        %v6061 = vadd.f32 %v5508, %v5899
        %v6062 = vadd.f32 %v5513, %v5904
        %v6063 = vadd.f32 %v5518, %v5909
        %v6064 = vadd.f32 %v5523, %v5914
        %v6065 = vadd.f32 %v5528, %v5919
        %v6066 = vadd.f32 %v5533, %v5924
        %v6067 = vadd.f32 %v5538, %v5929
        %v6068 = vadd.f32 %v5543, %v5934
        %v6069 = vadd.f32 %v5548, %v5939
        %v6070 = vadd.f32 %v5553, %v5944
        %v6071 = vadd.f32 %v5558, %v5949
        %v6072 = vadd.f32 %v5563, %v5954
        %v6073 = vadd.f32 %v5568, %v5959
        %v6074 = vadd.f32 %v5573, %v5964
        %v6075 = vadd.f32 %v5578, %v5969
        %v6076 = vadd.f32 %v5583, %v5974
        %v6077 = vadd.f32 %v5588, %v5979
        %v6078 = vadd.f32 %v5593, %v5984
        %v6079 = vadd.f32 %v5598, %v5989
        %v6080 = vadd.f32 %v5603, %v5994
        %v6081 = vadd.f32 %v5608, %v5999
        %v6082 = vadd.f32 %v5613, %v6004
        %v6083 = vadd.f32 %v5618, %v6009
        %v6084 = vadd.f32 %v5623, %v6014
        %v6085 = vadd.f32 %v5628, %v6019
        %v6086 = vadd.f32 %v5633, %v6024
        %v6087 = vadd.f32 %v5638, %v6029
        %v6088 = vadd.f32 %v5643, %v6034
        %v6089 = vadd.f32 %v5648, %v6039
        %v6090 = vadd.f32 %v5653, %v6044
        %v6091 = vadd.f32 %v5658, %v6049
        %v6092 = vadd.f32 %v5663, %v6054
        %v6093 = vld [vmem:[#allocation2 + $0x17] sm:$0xff]
        %v6094 = vld [vmem:[#allocation2 + $0x1f] sm:$0xff]
        %v6095 = vld [vmem:[#allocation2 + $0x27] sm:$0xff]
        %v6096 = vld [vmem:[#allocation2 + $0x2f] sm:$0xff]
        %v6097 = vld [vmem:[#allocation2 + $0x37] sm:$0xff]
        %v6098 = vld [vmem:[#allocation2 + $0x3f] sm:$0xff]
        %v6099 = vld [vmem:[#allocation2 + $0x47] sm:$0xff]
        %v6100 = vld [vmem:[#allocation2 + $0x4f] sm:$0xff]
        %v6101 = vld [vmem:[#allocation2 + $0x57] sm:$0xff]
        %v6102 = vld [vmem:[#allocation2 + $0x5f] sm:$0xff]
        %v6103 = vld [vmem:[#allocation2 + $0x67] sm:$0xff]
        %v6104 = vld [vmem:[#allocation2 + $0x6f] sm:$0xff]
        %v6105 = vld [vmem:[#allocation2 + $0x77] sm:$0xff]
        %v6106 = vld [vmem:[#allocation2 + $0x7f] sm:$0xff]
        %v6107 = vld [vmem:[#allocation2 + $0x87] sm:$0xff]
        %v6108 = vld [vmem:[#allocation2 + $0x8f] sm:$0xff]
        %v6109 = vld [vmem:[#allocation2 + $0x97] sm:$0xff]
        %v6110 = vld [vmem:[#allocation2 + $0x9f] sm:$0xff]
        %v6111 = vld [vmem:[#allocation2 + $0xa7] sm:$0xff]
        %v6112 = vld [vmem:[#allocation2 + $0xaf] sm:$0xff]
        %v6113 = vld [vmem:[#allocation2 + $0xb7] sm:$0xff]
        %v6114 = vld [vmem:[#allocation2 + $0xbf] sm:$0xff]
        %v6115 = vld [vmem:[#allocation2 + $0xc7] sm:$0xff]
        %v6116 = vld [vmem:[#allocation2 + $0xcf] sm:$0xff]
        %v6117 = vld [vmem:[#allocation2 + $0xd7] sm:$0xff]
        %v6118 = vld [vmem:[#allocation2 + $0xdf] sm:$0xff]
        %v6119 = vld [vmem:[#allocation2 + $0xe7] sm:$0xff]
        %v6120 = vld [vmem:[#allocation2 + $0xef] sm:$0xff]
        %v6121 = vld [vmem:[#allocation2 + $0xf7] sm:$0xff]
        %v6122 = vld [vmem:[#allocation2 + $0xff] sm:$0xff]
        %v6123 = vld [vmem:[#allocation2 + $0x107] sm:$0xff]
        %v6124 = vld [vmem:[#allocation2 + $0x10f] sm:$0xff]
        %v6125 = vld [vmem:[#allocation2 + $0x117] sm:$0xff]
        %v6126 = vld [vmem:[#allocation2 + $0x11f] sm:$0xff]
        %v6127 = vld [vmem:[#allocation2 + $0x127] sm:$0xff]
        %v6128 = vld [vmem:[#allocation2 + $0x12f] sm:$0xff]
        %s6129 = scalar_lea.vmem %s3, 24
        %v6130 = vld [vmem:[%s6129] sm:$0xff]
        %v6132 = vsel %vm4839, %v6093, 0
        %v6135 = vsel %vm4839, %v6094, 0
        %v6138 = vsel %vm4839, %v6095, 0
        %v6141 = vsel %vm4839, %v6096, 0
        %v6144 = vsel %vm4839, %v6097, 0
        %v6147 = vsel %vm4839, %v6098, 0
        %v6150 = vsel %vm4839, %v6099, 0
        %v6153 = vsel %vm4839, %v6100, 0
        %v6156 = vsel %vm4839, %v6101, 0
        %v6159 = vsel %vm4839, %v6102, 0
        %v6162 = vsel %vm4839, %v6103, 0
        %v6165 = vsel %vm4839, %v6104, 0
        %v6168 = vsel %vm4839, %v6105, 0
        %v6171 = vsel %vm4839, %v6106, 0
        %v6174 = vsel %vm4839, %v6107, 0
        %v6177 = vsel %vm4839, %v6108, 0
        %v6180 = vsel %vm4839, %v6109, 0
        %v6183 = vsel %vm4839, %v6110, 0
        %v6186 = vsel %vm4839, %v6111, 0
        %v6189 = vsel %vm4839, %v6112, 0
        %v6192 = vsel %vm4839, %v6113, 0
        %v6195 = vsel %vm4839, %v6114, 0
        %v6198 = vsel %vm4839, %v6115, 0
        %v6201 = vsel %vm4839, %v6116, 0
        %v6204 = vsel %vm4839, %v6117, 0
        %v6207 = vsel %vm4839, %v6118, 0
        %v6210 = vsel %vm4839, %v6119, 0
        %v6213 = vsel %vm4839, %v6120, 0
        %v6216 = vsel %vm4839, %v6121, 0
        %v6219 = vsel %vm4839, %v6122, 0
        %v6222 = vsel %vm4839, %v6123, 0
        %v6225 = vsel %vm4839, %v6124, 0
        %v6228 = vsel %vm4839, %v6125, 0
        %v6231 = vsel %vm4839, %v6126, 0
        %v6234 = vsel %vm4839, %v6127, 0
        %v6237 = vsel %vm4839, %v6128, 0
        %6239 = vmatprep.subr.mxu0 0.0
        %6240 = vmatpush1.msra.mxu0 %v6130
        %6241 = vmatprep.subr.mxu0 0.0
        %6242 = vmatpush1.msra.mxu0 0.0
        %6243 = vmatprep.subr.mxu0 0.0
        %6244 = vmatpush1.msra.mxu0 0.0
        %6245 = vmatprep.subr.mxu0 0.0
        %6246 = vmatpush1.msra.mxu0 0.0
        %6247 = vmatprep.subr.mxu0 0.0
        %6248 = vmatpush1.msra.mxu0 0.0
        %6249 = vmatprep.subr.mxu0 0.0
        %6250 = vmatpush1.msra.mxu0 0.0
        %6251 = vmatprep.subr.mxu0 0.0
        %6252 = vmatpush1.msra.mxu0 0.0
        %6253 = vmatprep.subr.mxu0 0.0
        %6254 = vmatpush1.msra.mxu0 0.0
        %6255 = vmatprep.subr.mxu0 0.0
        %6256 = vmatpush1.msra.mxu0 0.0
        %6257 = vmatprep.subr.mxu0 0.0
        %6258 = vmatpush1.msra.mxu0 0.0
        %6259 = vmatprep.subr.mxu0 0.0
        %6260 = vmatpush1.msra.mxu0 0.0
        %6261 = vmatprep.subr.mxu0 0.0
        %6262 = vmatpush1.msra.mxu0 0.0
        %6263 = vmatprep.subr.mxu0 0.0
        %6264 = vmatpush1.msra.mxu0 0.0
        %6265 = vmatprep.subr.mxu0 0.0
        %6266 = vmatpush1.msra.mxu0 0.0
        %6267 = vmatprep.subr.mxu0 0.0
        %6268 = vmatpush1.msra.mxu0 0.0
        %6269 = vmatprep.subr.mxu0 0.0
        %6270 = vmatpush1.msra.mxu0 0.0
        %6271 = vmatprep.subr.mxu0 0.0
        %6272 = vmatpush1.msra.mxu0 0.0
        %6273 = vmatprep.subr.mxu0 0.0
        %6274 = vmatpush1.msra.mxu0 0.0
        %6275 = vmatprep.subr.mxu0 0.0
        %6276 = vmatpush1.msra.mxu0 0.0
        %6277 = vmatprep.subr.mxu0 0.0
        %6278 = vmatpush1.msra.mxu0 0.0
        %6279 = vmatprep.subr.mxu0 0.0
        %6280 = vmatpush1.msra.mxu0 0.0
        %6281 = vmatprep.subr.mxu0 0.0
        %6282 = vmatpush1.msra.mxu0 0.0
        %6283 = vmatprep.subr.mxu0 0.0
        %6284 = vmatpush1.msra.mxu0 0.0
        %6285 = vmatprep.subr.mxu0 0.0
        %6286 = vmatpush1.msra.mxu0 0.0
        %6287 = vmatprep.subr.mxu0 0.0
        %6288 = vmatpush1.msra.mxu0 0.0
        %6289 = vmatprep.subr.mxu0 0.0
        %6290 = vmatpush1.msra.mxu0 0.0
        %6291 = vmatprep.subr.mxu0 0.0
        %6292 = vmatpush1.msra.mxu0 0.0
        %6293 = vmatprep.subr.mxu0 0.0
        %6294 = vmatpush1.msra.mxu0 0.0
        %6295 = vmatprep.subr.mxu0 0.0
        %6296 = vmatpush1.msra.mxu0 0.0
        %6297 = vmatprep.subr.mxu0 0.0
        %6298 = vmatpush1.msra.mxu0 0.0
        %6299 = vmatprep.subr.mxu0 0.0
        %6300 = vmatpush1.msra.mxu0 0.0
        %6301 = vmatprep.subr.mxu0 0.0
        %6302 = vmatpush1.msra.mxu0 0.0
        %6303 = vmatprep.mubr.f32.mxu0 0.0
        %6304 = vmatmul.mubr.f32.gmra.mrb[0].mxu0 %v6132
        %v6305 = vpop.f32.mrb[0].mxu0
        %v6306 = vadd.f32 0.0, %v6305
        %v6307 = vpop.f32.mrb[0].mxu0
        %6308 = vmatprep.mubr.f32.mxu0 0.0
        %6309 = vmatmul.mubr.f32.gmra.mrb[0].mxu0 %v6135
        %v6310 = vpop.f32.mrb[0].mxu0
        %v6311 = vadd.f32 0.0, %v6310
        %v6312 = vpop.f32.mrb[0].mxu0
        %6313 = vmatprep.mubr.f32.mxu0 0.0
        %6314 = vmatmul.mubr.f32.gmra.mrb[0].mxu0 %v6138
        %v6315 = vpop.f32.mrb[0].mxu0
        %v6316 = vadd.f32 0.0, %v6315
        %v6317 = vpop.f32.mrb[0].mxu0
        %6318 = vmatprep.mubr.f32.mxu0 0.0
        %6319 = vmatmul.mubr.f32.gmra.mrb[0].mxu0 %v6141
        %v6320 = vpop.f32.mrb[0].mxu0
        %v6321 = vadd.f32 0.0, %v6320
        %v6322 = vpop.f32.mrb[0].mxu0
        %6323 = vmatprep.mubr.f32.mxu0 0.0
        %6324 = vmatmul.mubr.f32.gmra.mrb[0].mxu0 %v6144
        %v6325 = vpop.f32.mrb[0].mxu0
        %v6326 = vadd.f32 0.0, %v6325
        %v6327 = vpop.f32.mrb[0].mxu0
        %6328 = vmatprep.mubr.f32.mxu0 0.0
        %6329 = vmatmul.mubr.f32.gmra.mrb[0].mxu0 %v6147
        %v6330 = vpop.f32.mrb[0].mxu0
        %v6331 = vadd.f32 0.0, %v6330
        %v6332 = vpop.f32.mrb[0].mxu0
        %6333 = vmatprep.mubr.f32.mxu0 0.0
        %6334 = vmatmul.mubr.f32.gmra.mrb[0].mxu0 %v6150
        %v6335 = vpop.f32.mrb[0].mxu0
        %v6336 = vadd.f32 0.0, %v6335
        %v6337 = vpop.f32.mrb[0].mxu0
        %6338 = vmatprep.mubr.f32.mxu0 0.0
        %6339 = vmatmul.mubr.f32.gmra.mrb[0].mxu0 %v6153
        %v6340 = vpop.f32.mrb[0].mxu0
        %v6341 = vadd.f32 0.0, %v6340
        %v6342 = vpop.f32.mrb[0].mxu0
        %6343 = vmatprep.mubr.f32.mxu0 0.0
        %6344 = vmatmul.mubr.f32.gmra.mrb[0].mxu0 %v6156
        %v6345 = vpop.f32.mrb[0].mxu0
        %v6346 = vadd.f32 0.0, %v6345
        %v6347 = vpop.f32.mrb[0].mxu0
        %6348 = vmatprep.mubr.f32.mxu0 0.0
        %6349 = vmatmul.mubr.f32.gmra.mrb[0].mxu0 %v6159
        %v6350 = vpop.f32.mrb[0].mxu0
        %v6351 = vadd.f32 0.0, %v6350
        %v6352 = vpop.f32.mrb[0].mxu0
        %6353 = vmatprep.mubr.f32.mxu0 0.0
        %6354 = vmatmul.mubr.f32.gmra.mrb[0].mxu0 %v6162
        %v6355 = vpop.f32.mrb[0].mxu0
        %v6356 = vadd.f32 0.0, %v6355
        %v6357 = vpop.f32.mrb[0].mxu0
        %6358 = vmatprep.mubr.f32.mxu0 0.0
        %6359 = vmatmul.mubr.f32.gmra.mrb[0].mxu0 %v6165
        %v6360 = vpop.f32.mrb[0].mxu0
        %v6361 = vadd.f32 0.0, %v6360
        %v6362 = vpop.f32.mrb[0].mxu0
        %6363 = vmatprep.mubr.f32.mxu0 0.0
        %6364 = vmatmul.mubr.f32.gmra.mrb[0].mxu0 %v6168
        %v6365 = vpop.f32.mrb[0].mxu0
        %v6366 = vadd.f32 0.0, %v6365
        %v6367 = vpop.f32.mrb[0].mxu0
        %6368 = vmatprep.mubr.f32.mxu0 0.0
        %6369 = vmatmul.mubr.f32.gmra.mrb[0].mxu0 %v6171
        %v6370 = vpop.f32.mrb[0].mxu0
        %v6371 = vadd.f32 0.0, %v6370
        %v6372 = vpop.f32.mrb[0].mxu0
        %6373 = vmatprep.mubr.f32.mxu0 0.0
        %6374 = vmatmul.mubr.f32.gmra.mrb[0].mxu0 %v6174
        %v6375 = vpop.f32.mrb[0].mxu0
        %v6376 = vadd.f32 0.0, %v6375
        %v6377 = vpop.f32.mrb[0].mxu0
        %6378 = vmatprep.mubr.f32.mxu0 0.0
        %6379 = vmatmul.mubr.f32.gmra.mrb[0].mxu0 %v6177
        %v6380 = vpop.f32.mrb[0].mxu0
        %v6381 = vadd.f32 0.0, %v6380
        %v6382 = vpop.f32.mrb[0].mxu0
        %6383 = vmatprep.mubr.f32.mxu0 0.0
        %6384 = vmatmul.mubr.f32.gmra.mrb[0].mxu0 %v6180
        %v6385 = vpop.f32.mrb[0].mxu0
        %v6386 = vadd.f32 0.0, %v6385
        %v6387 = vpop.f32.mrb[0].mxu0
        %6388 = vmatprep.mubr.f32.mxu0 0.0
        %6389 = vmatmul.mubr.f32.gmra.mrb[0].mxu0 %v6183
        %v6390 = vpop.f32.mrb[0].mxu0
        %v6391 = vadd.f32 0.0, %v6390
        %v6392 = vpop.f32.mrb[0].mxu0
        %6393 = vmatprep.mubr.f32.mxu0 0.0
        %6394 = vmatmul.mubr.f32.gmra.mrb[0].mxu0 %v6186
        %v6395 = vpop.f32.mrb[0].mxu0
        %v6396 = vadd.f32 0.0, %v6395
        %v6397 = vpop.f32.mrb[0].mxu0
        %6398 = vmatprep.mubr.f32.mxu0 0.0
        %6399 = vmatmul.mubr.f32.gmra.mrb[0].mxu0 %v6189
        %v6400 = vpop.f32.mrb[0].mxu0
        %v6401 = vadd.f32 0.0, %v6400
        %v6402 = vpop.f32.mrb[0].mxu0
        %6403 = vmatprep.mubr.f32.mxu0 0.0
        %6404 = vmatmul.mubr.f32.gmra.mrb[0].mxu0 %v6192
        %v6405 = vpop.f32.mrb[0].mxu0
        %v6406 = vadd.f32 0.0, %v6405
        %v6407 = vpop.f32.mrb[0].mxu0
        %6408 = vmatprep.mubr.f32.mxu0 0.0
        %6409 = vmatmul.mubr.f32.gmra.mrb[0].mxu0 %v6195
        %v6410 = vpop.f32.mrb[0].mxu0
        %v6411 = vadd.f32 0.0, %v6410
        %v6412 = vpop.f32.mrb[0].mxu0
        %6413 = vmatprep.mubr.f32.mxu0 0.0
        %6414 = vmatmul.mubr.f32.gmra.mrb[0].mxu0 %v6198
        %v6415 = vpop.f32.mrb[0].mxu0
        %v6416 = vadd.f32 0.0, %v6415
        %v6417 = vpop.f32.mrb[0].mxu0
        %6418 = vmatprep.mubr.f32.mxu0 0.0
        %6419 = vmatmul.mubr.f32.gmra.mrb[0].mxu0 %v6201
        %v6420 = vpop.f32.mrb[0].mxu0
        %v6421 = vadd.f32 0.0, %v6420
        %v6422 = vpop.f32.mrb[0].mxu0
        %6423 = vmatprep.mubr.f32.mxu0 0.0
        %6424 = vmatmul.mubr.f32.gmra.mrb[0].mxu0 %v6204
        %v6425 = vpop.f32.mrb[0].mxu0
        %v6426 = vadd.f32 0.0, %v6425
        %v6427 = vpop.f32.mrb[0].mxu0
        %6428 = vmatprep.mubr.f32.mxu0 0.0
        %6429 = vmatmul.mubr.f32.gmra.mrb[0].mxu0 %v6207
        %v6430 = vpop.f32.mrb[0].mxu0
        %v6431 = vadd.f32 0.0, %v6430
        %v6432 = vpop.f32.mrb[0].mxu0
        %6433 = vmatprep.mubr.f32.mxu0 0.0
        %6434 = vmatmul.mubr.f32.gmra.mrb[0].mxu0 %v6210
        %v6435 = vpop.f32.mrb[0].mxu0
        %v6436 = vadd.f32 0.0, %v6435
        %v6437 = vpop.f32.mrb[0].mxu0
        %6438 = vmatprep.mubr.f32.mxu0 0.0
        %6439 = vmatmul.mubr.f32.gmra.mrb[0].mxu0 %v6213
        %v6440 = vpop.f32.mrb[0].mxu0
        %v6441 = vadd.f32 0.0, %v6440
        %v6442 = vpop.f32.mrb[0].mxu0
        %6443 = vmatprep.mubr.f32.mxu0 0.0
        %6444 = vmatmul.mubr.f32.gmra.mrb[0].mxu0 %v6216
        %v6445 = vpop.f32.mrb[0].mxu0
        %v6446 = vadd.f32 0.0, %v6445
        %v6447 = vpop.f32.mrb[0].mxu0
        %6448 = vmatprep.mubr.f32.mxu0 0.0
        %6449 = vmatmul.mubr.f32.gmra.mrb[0].mxu0 %v6219
        %v6450 = vpop.f32.mrb[0].mxu0
        %v6451 = vadd.f32 0.0, %v6450
        %v6452 = vpop.f32.mrb[0].mxu0
        %6453 = vmatprep.mubr.f32.mxu0 0.0
        %6454 = vmatmul.mubr.f32.gmra.mrb[0].mxu0 %v6222
        %v6455 = vpop.f32.mrb[0].mxu0
        %v6456 = vadd.f32 0.0, %v6455
        %v6457 = vpop.f32.mrb[0].mxu0
        %6458 = vmatprep.mubr.f32.mxu0 0.0
        %6459 = vmatmul.mubr.f32.gmra.mrb[0].mxu0 %v6225
        %v6460 = vpop.f32.mrb[0].mxu0
        %v6461 = vadd.f32 0.0, %v6460
        %v6462 = vpop.f32.mrb[0].mxu0
        %6463 = vmatprep.mubr.f32.mxu0 0.0
        %6464 = vmatmul.mubr.f32.gmra.mrb[0].mxu0 %v6228
        %v6465 = vpop.f32.mrb[0].mxu0
        %v6466 = vadd.f32 0.0, %v6465
        %v6467 = vpop.f32.mrb[0].mxu0
        %6468 = vmatprep.mubr.f32.mxu0 0.0
        %6469 = vmatmul.mubr.f32.gmra.mrb[0].mxu0 %v6231
        %v6470 = vpop.f32.mrb[0].mxu0
        %v6471 = vadd.f32 0.0, %v6470
        %v6472 = vpop.f32.mrb[0].mxu0
        %6473 = vmatprep.mubr.f32.mxu0 0.0
        %6474 = vmatmul.mubr.f32.gmra.mrb[0].mxu0 %v6234
        %v6475 = vpop.f32.mrb[0].mxu0
        %v6476 = vadd.f32 0.0, %v6475
        %v6477 = vpop.f32.mrb[0].mxu0
        %6478 = vmatprep.mubr.f32.mxu0 0.0
        %6479 = vmatmul.mubr.f32.gmra.mrb[0].mxu0 %v6237
        %v6480 = vpop.f32.mrb[0].mxu0
        %v6481 = vadd.f32 0.0, %v6480
        %v6482 = vpop.f32.mrb[0].mxu0
        %6483 = vdwg.mxu0
        %v6484 = vadd.f32 %v6057, %v6306
        %v6485 = vadd.f32 %v6058, %v6311
        %v6486 = vadd.f32 %v6059, %v6316
        %v6487 = vadd.f32 %v6060, %v6321
        %v6488 = vadd.f32 %v6061, %v6326
        %v6489 = vadd.f32 %v6062, %v6331
        %v6490 = vadd.f32 %v6063, %v6336
        %v6491 = vadd.f32 %v6064, %v6341
        %v6492 = vadd.f32 %v6065, %v6346
        %v6493 = vadd.f32 %v6066, %v6351
        %v6494 = vadd.f32 %v6067, %v6356
        %v6495 = vadd.f32 %v6068, %v6361
        %v6496 = vadd.f32 %v6069, %v6366
        %v6497 = vadd.f32 %v6070, %v6371
        %v6498 = vadd.f32 %v6071, %v6376
        %v6499 = vadd.f32 %v6072, %v6381
        %v6500 = vadd.f32 %v6073, %v6386
        %v6501 = vadd.f32 %v6074, %v6391
        %v6502 = vadd.f32 %v6075, %v6396
        %v6503 = vadd.f32 %v6076, %v6401
        %v6504 = vadd.f32 %v6077, %v6406
        %v6505 = vadd.f32 %v6078, %v6411
        %v6506 = vadd.f32 %v6079, %v6416
        %v6507 = vadd.f32 %v6080, %v6421
        %v6508 = vadd.f32 %v6081, %v6426
        %v6509 = vadd.f32 %v6082, %v6431
        %v6510 = vadd.f32 %v6083, %v6436
        %v6511 = vadd.f32 %v6084, %v6441
        %v6512 = vadd.f32 %v6085, %v6446
        %v6513 = vadd.f32 %v6086, %v6451
        %v6514 = vadd.f32 %v6087, %v6456
        %v6515 = vadd.f32 %v6088, %v6461
        %v6516 = vadd.f32 %v6089, %v6466
        %v6517 = vadd.f32 %v6090, %v6471
        %v6518 = vadd.f32 %v6091, %v6476
        %v6519 = vadd.f32 %v6092, %v6481
        %v6520 = vld [vmem:[#allocation2 + $0x18] sm:$0xff]
        %v6521 = vld [vmem:[#allocation2 + $0x20] sm:$0xff]
        %v6522 = vld [vmem:[#allocation2 + $0x28] sm:$0xff]
        %v6523 = vld [vmem:[#allocation2 + $0x30] sm:$0xff]
        %v6524 = vld [vmem:[#allocation2 + $0x38] sm:$0xff]
        %v6525 = vld [vmem:[#allocation2 + $0x40] sm:$0xff]
        %v6526 = vld [vmem:[#allocation2 + $0x48] sm:$0xff]
        %v6527 = vld [vmem:[#allocation2 + $0x50] sm:$0xff]
        %v6528 = vld [vmem:[#allocation2 + $0x58] sm:$0xff]
        %v6529 = vld [vmem:[#allocation2 + $0x60] sm:$0xff]
        %v6530 = vld [vmem:[#allocation2 + $0x68] sm:$0xff]
        %v6531 = vld [vmem:[#allocation2 + $0x70] sm:$0xff]
        %v6532 = vld [vmem:[#allocation2 + $0x78] sm:$0xff]
        %v6533 = vld [vmem:[#allocation2 + $0x80] sm:$0xff]
        %v6534 = vld [vmem:[#allocation2 + $0x88] sm:$0xff]
        %v6535 = vld [vmem:[#allocation2 + $0x90] sm:$0xff]
        %v6536 = vld [vmem:[#allocation2 + $0x98] sm:$0xff]
        %v6537 = vld [vmem:[#allocation2 + $0xa0] sm:$0xff]
        %v6538 = vld [vmem:[#allocation2 + $0xa8] sm:$0xff]
        %v6539 = vld [vmem:[#allocation2 + $0xb0] sm:$0xff]
        %v6540 = vld [vmem:[#allocation2 + $0xb8] sm:$0xff]
        %v6541 = vld [vmem:[#allocation2 + $0xc0] sm:$0xff]
        %v6542 = vld [vmem:[#allocation2 + $0xc8] sm:$0xff]
        %v6543 = vld [vmem:[#allocation2 + $0xd0] sm:$0xff]
        %v6544 = vld [vmem:[#allocation2 + $0xd8] sm:$0xff]
        %v6545 = vld [vmem:[#allocation2 + $0xe0] sm:$0xff]
        %v6546 = vld [vmem:[#allocation2 + $0xe8] sm:$0xff]
        %v6547 = vld [vmem:[#allocation2 + $0xf0] sm:$0xff]
        %v6548 = vld [vmem:[#allocation2 + $0xf8] sm:$0xff]
        %v6549 = vld [vmem:[#allocation2 + $0x100] sm:$0xff]
        %v6550 = vld [vmem:[#allocation2 + $0x108] sm:$0xff]
        %v6551 = vld [vmem:[#allocation2 + $0x110] sm:$0xff]
        %v6552 = vld [vmem:[#allocation2 + $0x118] sm:$0xff]
        %v6553 = vld [vmem:[#allocation2 + $0x120] sm:$0xff]
        %v6554 = vld [vmem:[#allocation2 + $0x128] sm:$0xff]
        %v6555 = vld [vmem:[#allocation2 + $0x130] sm:$0xff]
        %s6556 = scalar_lea.vmem %s3, 32
        %v6557 = vld [vmem:[%s6556] sm:$0xff]
        %v6559 = vsel %vm4839, %v6520, 0
        %v6562 = vsel %vm4839, %v6521, 0
        %v6565 = vsel %vm4839, %v6522, 0
        %v6568 = vsel %vm4839, %v6523, 0
        %v6571 = vsel %vm4839, %v6524, 0
        %v6574 = vsel %vm4839, %v6525, 0
        %v6577 = vsel %vm4839, %v6526, 0
        %v6580 = vsel %vm4839, %v6527, 0
        %v6583 = vsel %vm4839, %v6528, 0
        %v6586 = vsel %vm4839, %v6529, 0
        %v6589 = vsel %vm4839, %v6530, 0
        %v6592 = vsel %vm4839, %v6531, 0
        %v6595 = vsel %vm4839, %v6532, 0
        %v6598 = vsel %vm4839, %v6533, 0
        %v6601 = vsel %vm4839, %v6534, 0
        %v6604 = vsel %vm4839, %v6535, 0
        %v6607 = vsel %vm4839, %v6536, 0
        %v6610 = vsel %vm4839, %v6537, 0
        %v6613 = vsel %vm4839, %v6538, 0
        %v6616 = vsel %vm4839, %v6539, 0
        %v6619 = vsel %vm4839, %v6540, 0
        %v6622 = vsel %vm4839, %v6541, 0
        %v6625 = vsel %vm4839, %v6542, 0
        %v6628 = vsel %vm4839, %v6543, 0
        %v6631 = vsel %vm4839, %v6544, 0
        %v6634 = vsel %vm4839, %v6545, 0
        %v6637 = vsel %vm4839, %v6546, 0
        %v6640 = vsel %vm4839, %v6547, 0
        %v6643 = vsel %vm4839, %v6548, 0
        %v6646 = vsel %vm4839, %v6549, 0
        %v6649 = vsel %vm4839, %v6550, 0
        %v6652 = vsel %vm4839, %v6551, 0
        %v6655 = vsel %vm4839, %v6552, 0
        %v6658 = vsel %vm4839, %v6553, 0
        %v6661 = vsel %vm4839, %v6554, 0
        %v6664 = vsel %vm4839, %v6555, 0
        %6666 = vmatprep.subr.mxu0 0.0
        %6667 = vmatpush1.msra.mxu0 %v6557
        %6668 = vmatprep.subr.mxu0 0.0
        %6669 = vmatpush1.msra.mxu0 0.0
        %6670 = vmatprep.subr.mxu0 0.0
        %6671 = vmatpush1.msra.mxu0 0.0
        %6672 = vmatprep.subr.mxu0 0.0
        %6673 = vmatpush1.msra.mxu0 0.0
        %6674 = vmatprep.subr.mxu0 0.0
        %6675 = vmatpush1.msra.mxu0 0.0
        %6676 = vmatprep.subr.mxu0 0.0
        %6677 = vmatpush1.msra.mxu0 0.0
        %6678 = vmatprep.subr.mxu0 0.0
        %6679 = vmatpush1.msra.mxu0 0.0
        %6680 = vmatprep.subr.mxu0 0.0
        %6681 = vmatpush1.msra.mxu0 0.0
        %6682 = vmatprep.subr.mxu0 0.0
        %6683 = vmatpush1.msra.mxu0 0.0
        %6684 = vmatprep.subr.mxu0 0.0
        %6685 = vmatpush1.msra.mxu0 0.0
        %6686 = vmatprep.subr.mxu0 0.0
        %6687 = vmatpush1.msra.mxu0 0.0
        %6688 = vmatprep.subr.mxu0 0.0
        %6689 = vmatpush1.msra.mxu0 0.0
        %6690 = vmatprep.subr.mxu0 0.0
        %6691 = vmatpush1.msra.mxu0 0.0
        %6692 = vmatprep.subr.mxu0 0.0
        %6693 = vmatpush1.msra.mxu0 0.0
        %6694 = vmatprep.subr.mxu0 0.0
        %6695 = vmatpush1.msra.mxu0 0.0
        %6696 = vmatprep.subr.mxu0 0.0
        %6697 = vmatpush1.msra.mxu0 0.0
        %6698 = vmatprep.subr.mxu0 0.0
        %6699 = vmatpush1.msra.mxu0 0.0
        %6700 = vmatprep.subr.mxu0 0.0
        %6701 = vmatpush1.msra.mxu0 0.0
        %6702 = vmatprep.subr.mxu0 0.0
        %6703 = vmatpush1.msra.mxu0 0.0
        %6704 = vmatprep.subr.mxu0 0.0
        %6705 = vmatpush1.msra.mxu0 0.0
        %6706 = vmatprep.subr.mxu0 0.0
        %6707 = vmatpush1.msra.mxu0 0.0
        %6708 = vmatprep.subr.mxu0 0.0
        %6709 = vmatpush1.msra.mxu0 0.0
        %6710 = vmatprep.subr.mxu0 0.0
        %6711 = vmatpush1.msra.mxu0 0.0
        %6712 = vmatprep.subr.mxu0 0.0
        %6713 = vmatpush1.msra.mxu0 0.0
        %6714 = vmatprep.subr.mxu0 0.0
        %6715 = vmatpush1.msra.mxu0 0.0
        %6716 = vmatprep.subr.mxu0 0.0
        %6717 = vmatpush1.msra.mxu0 0.0
        %6718 = vmatprep.subr.mxu0 0.0
        %6719 = vmatpush1.msra.mxu0 0.0
        %6720 = vmatprep.subr.mxu0 0.0
        %6721 = vmatpush1.msra.mxu0 0.0
        %6722 = vmatprep.subr.mxu0 0.0
        %6723 = vmatpush1.msra.mxu0 0.0
        %6724 = vmatprep.subr.mxu0 0.0
        %6725 = vmatpush1.msra.mxu0 0.0
        %6726 = vmatprep.subr.mxu0 0.0
        %6727 = vmatpush1.msra.mxu0 0.0
        %6728 = vmatprep.subr.mxu0 0.0
        %6729 = vmatpush1.msra.mxu0 0.0
        %6730 = vmatprep.mubr.f32.mxu0 0.0
        %6731 = vmatmul.mubr.f32.gmra.mrb[0].mxu0 %v6559
        %v6732 = vpop.f32.mrb[0].mxu0
        %v6733 = vadd.f32 0.0, %v6732
        %v6734 = vpop.f32.mrb[0].mxu0
        %6735 = vmatprep.mubr.f32.mxu0 0.0
        %6736 = vmatmul.mubr.f32.gmra.mrb[0].mxu0 %v6562
        %v6737 = vpop.f32.mrb[0].mxu0
        %v6738 = vadd.f32 0.0, %v6737
        %v6739 = vpop.f32.mrb[0].mxu0
        %6740 = vmatprep.mubr.f32.mxu0 0.0
        %6741 = vmatmul.mubr.f32.gmra.mrb[0].mxu0 %v6565
        %v6742 = vpop.f32.mrb[0].mxu0
        %v6743 = vadd.f32 0.0, %v6742
        %v6744 = vpop.f32.mrb[0].mxu0
        %6745 = vmatprep.mubr.f32.mxu0 0.0
        %6746 = vmatmul.mubr.f32.gmra.mrb[0].mxu0 %v6568
        %v6747 = vpop.f32.mrb[0].mxu0
        %v6748 = vadd.f32 0.0, %v6747
        %v6749 = vpop.f32.mrb[0].mxu0
        %6750 = vmatprep.mubr.f32.mxu0 0.0
        %6751 = vmatmul.mubr.f32.gmra.mrb[0].mxu0 %v6571
        %v6752 = vpop.f32.mrb[0].mxu0
        %v6753 = vadd.f32 0.0, %v6752
        %v6754 = vpop.f32.mrb[0].mxu0
        %6755 = vmatprep.mubr.f32.mxu0 0.0
        %6756 = vmatmul.mubr.f32.gmra.mrb[0].mxu0 %v6574
        %v6757 = vpop.f32.mrb[0].mxu0
        %v6758 = vadd.f32 0.0, %v6757
        %v6759 = vpop.f32.mrb[0].mxu0
        %6760 = vmatprep.mubr.f32.mxu0 0.0
        %6761 = vmatmul.mubr.f32.gmra.mrb[0].mxu0 %v6577
        %v6762 = vpop.f32.mrb[0].mxu0
        %v6763 = vadd.f32 0.0, %v6762
        %v6764 = vpop.f32.mrb[0].mxu0
        %6765 = vmatprep.mubr.f32.mxu0 0.0
        %6766 = vmatmul.mubr.f32.gmra.mrb[0].mxu0 %v6580
        %v6767 = vpop.f32.mrb[0].mxu0
        %v6768 = vadd.f32 0.0, %v6767
        %v6769 = vpop.f32.mrb[0].mxu0
        %6770 = vmatprep.mubr.f32.mxu0 0.0
        %6771 = vmatmul.mubr.f32.gmra.mrb[0].mxu0 %v6583
        %v6772 = vpop.f32.mrb[0].mxu0
        %v6773 = vadd.f32 0.0, %v6772
        %v6774 = vpop.f32.mrb[0].mxu0
        %6775 = vmatprep.mubr.f32.mxu0 0.0
        %6776 = vmatmul.mubr.f32.gmra.mrb[0].mxu0 %v6586
        %v6777 = vpop.f32.mrb[0].mxu0
        %v6778 = vadd.f32 0.0, %v6777
        %v6779 = vpop.f32.mrb[0].mxu0
        %6780 = vmatprep.mubr.f32.mxu0 0.0
        %6781 = vmatmul.mubr.f32.gmra.mrb[0].mxu0 %v6589
        %v6782 = vpop.f32.mrb[0].mxu0
        %v6783 = vadd.f32 0.0, %v6782
        %v6784 = vpop.f32.mrb[0].mxu0
        %6785 = vmatprep.mubr.f32.mxu0 0.0
        %6786 = vmatmul.mubr.f32.gmra.mrb[0].mxu0 %v6592
        %v6787 = vpop.f32.mrb[0].mxu0
        %v6788 = vadd.f32 0.0, %v6787
        %v6789 = vpop.f32.mrb[0].mxu0
        %6790 = vmatprep.mubr.f32.mxu0 0.0
        %6791 = vmatmul.mubr.f32.gmra.mrb[0].mxu0 %v6595
        %v6792 = vpop.f32.mrb[0].mxu0
        %v6793 = vadd.f32 0.0, %v6792
        %v6794 = vpop.f32.mrb[0].mxu0
        %6795 = vmatprep.mubr.f32.mxu0 0.0
        %6796 = vmatmul.mubr.f32.gmra.mrb[0].mxu0 %v6598
        %v6797 = vpop.f32.mrb[0].mxu0
        %v6798 = vadd.f32 0.0, %v6797
        %v6799 = vpop.f32.mrb[0].mxu0
        %6800 = vmatprep.mubr.f32.mxu0 0.0
        %6801 = vmatmul.mubr.f32.gmra.mrb[0].mxu0 %v6601
        %v6802 = vpop.f32.mrb[0].mxu0
        %v6803 = vadd.f32 0.0, %v6802
        %v6804 = vpop.f32.mrb[0].mxu0
        %6805 = vmatprep.mubr.f32.mxu0 0.0
        %6806 = vmatmul.mubr.f32.gmra.mrb[0].mxu0 %v6604
        %v6807 = vpop.f32.mrb[0].mxu0
        %v6808 = vadd.f32 0.0, %v6807
        %v6809 = vpop.f32.mrb[0].mxu0
        %6810 = vmatprep.mubr.f32.mxu0 0.0
        %6811 = vmatmul.mubr.f32.gmra.mrb[0].mxu0 %v6607
        %v6812 = vpop.f32.mrb[0].mxu0
        %v6813 = vadd.f32 0.0, %v6812
        %v6814 = vpop.f32.mrb[0].mxu0
        %6815 = vmatprep.mubr.f32.mxu0 0.0
        %6816 = vmatmul.mubr.f32.gmra.mrb[0].mxu0 %v6610
        %v6817 = vpop.f32.mrb[0].mxu0
        %v6818 = vadd.f32 0.0, %v6817
        %v6819 = vpop.f32.mrb[0].mxu0
        %6820 = vmatprep.mubr.f32.mxu0 0.0
        %6821 = vmatmul.mubr.f32.gmra.mrb[0].mxu0 %v6613
        %v6822 = vpop.f32.mrb[0].mxu0
        %v6823 = vadd.f32 0.0, %v6822
        %v6824 = vpop.f32.mrb[0].mxu0
        %6825 = vmatprep.mubr.f32.mxu0 0.0
        %6826 = vmatmul.mubr.f32.gmra.mrb[0].mxu0 %v6616
        %v6827 = vpop.f32.mrb[0].mxu0
        %v6828 = vadd.f32 0.0, %v6827
        %v6829 = vpop.f32.mrb[0].mxu0
        %6830 = vmatprep.mubr.f32.mxu0 0.0
        %6831 = vmatmul.mubr.f32.gmra.mrb[0].mxu0 %v6619
        %v6832 = vpop.f32.mrb[0].mxu0
        %v6833 = vadd.f32 0.0, %v6832
        %v6834 = vpop.f32.mrb[0].mxu0
        %6835 = vmatprep.mubr.f32.mxu0 0.0
        %6836 = vmatmul.mubr.f32.gmra.mrb[0].mxu0 %v6622
        %v6837 = vpop.f32.mrb[0].mxu0
        %v6838 = vadd.f32 0.0, %v6837
        %v6839 = vpop.f32.mrb[0].mxu0
        %6840 = vmatprep.mubr.f32.mxu0 0.0
        %6841 = vmatmul.mubr.f32.gmra.mrb[0].mxu0 %v6625
        %v6842 = vpop.f32.mrb[0].mxu0
        %v6843 = vadd.f32 0.0, %v6842
        %v6844 = vpop.f32.mrb[0].mxu0
        %6845 = vmatprep.mubr.f32.mxu0 0.0
        %6846 = vmatmul.mubr.f32.gmra.mrb[0].mxu0 %v6628
        %v6847 = vpop.f32.mrb[0].mxu0
        %v6848 = vadd.f32 0.0, %v6847
        %v6849 = vpop.f32.mrb[0].mxu0
        %6850 = vmatprep.mubr.f32.mxu0 0.0
        %6851 = vmatmul.mubr.f32.gmra.mrb[0].mxu0 %v6631
        %v6852 = vpop.f32.mrb[0].mxu0
        %v6853 = vadd.f32 0.0, %v6852
        %v6854 = vpop.f32.mrb[0].mxu0
        %6855 = vmatprep.mubr.f32.mxu0 0.0
        %6856 = vmatmul.mubr.f32.gmra.mrb[0].mxu0 %v6634
        %v6857 = vpop.f32.mrb[0].mxu0
        %v6858 = vadd.f32 0.0, %v6857
        %v6859 = vpop.f32.mrb[0].mxu0
        %6860 = vmatprep.mubr.f32.mxu0 0.0
        %6861 = vmatmul.mubr.f32.gmra.mrb[0].mxu0 %v6637
        %v6862 = vpop.f32.mrb[0].mxu0
        %v6863 = vadd.f32 0.0, %v6862
        %v6864 = vpop.f32.mrb[0].mxu0
        %6865 = vmatprep.mubr.f32.mxu0 0.0
        %6866 = vmatmul.mubr.f32.gmra.mrb[0].mxu0 %v6640
        %v6867 = vpop.f32.mrb[0].mxu0
        %v6868 = vadd.f32 0.0, %v6867
        %v6869 = vpop.f32.mrb[0].mxu0
        %6870 = vmatprep.mubr.f32.mxu0 0.0
        %6871 = vmatmul.mubr.f32.gmra.mrb[0].mxu0 %v6643
        %v6872 = vpop.f32.mrb[0].mxu0
        %v6873 = vadd.f32 0.0, %v6872
        %v6874 = vpop.f32.mrb[0].mxu0
        %6875 = vmatprep.mubr.f32.mxu0 0.0
        %6876 = vmatmul.mubr.f32.gmra.mrb[0].mxu0 %v6646
        %v6877 = vpop.f32.mrb[0].mxu0
        %v6878 = vadd.f32 0.0, %v6877
        %v6879 = vpop.f32.mrb[0].mxu0
        %6880 = vmatprep.mubr.f32.mxu0 0.0
        %6881 = vmatmul.mubr.f32.gmra.mrb[0].mxu0 %v6649
        %v6882 = vpop.f32.mrb[0].mxu0
        %v6883 = vadd.f32 0.0, %v6882
        %v6884 = vpop.f32.mrb[0].mxu0
        %6885 = vmatprep.mubr.f32.mxu0 0.0
        %6886 = vmatmul.mubr.f32.gmra.mrb[0].mxu0 %v6652
        %v6887 = vpop.f32.mrb[0].mxu0
        %v6888 = vadd.f32 0.0, %v6887
        %v6889 = vpop.f32.mrb[0].mxu0
        %6890 = vmatprep.mubr.f32.mxu0 0.0
        %6891 = vmatmul.mubr.f32.gmra.mrb[0].mxu0 %v6655
        %v6892 = vpop.f32.mrb[0].mxu0
        %v6893 = vadd.f32 0.0, %v6892
        %v6894 = vpop.f32.mrb[0].mxu0
        %6895 = vmatprep.mubr.f32.mxu0 0.0
        %6896 = vmatmul.mubr.f32.gmra.mrb[0].mxu0 %v6658
        %v6897 = vpop.f32.mrb[0].mxu0
        %v6898 = vadd.f32 0.0, %v6897
        %v6899 = vpop.f32.mrb[0].mxu0
        %6900 = vmatprep.mubr.f32.mxu0 0.0
        %6901 = vmatmul.mubr.f32.gmra.mrb[0].mxu0 %v6661
        %v6902 = vpop.f32.mrb[0].mxu0
        %v6903 = vadd.f32 0.0, %v6902
        %v6904 = vpop.f32.mrb[0].mxu0
        %6905 = vmatprep.mubr.f32.mxu0 0.0
        %6906 = vmatmul.mubr.f32.gmra.mrb[0].mxu0 %v6664
        %v6907 = vpop.f32.mrb[0].mxu0
        %v6908 = vadd.f32 0.0, %v6907
        %v6909 = vpop.f32.mrb[0].mxu0
        %6910 = vdwg.mxu0
        %v6911 = vadd.f32 %v6484, %v6733
        %v6912 = vadd.f32 %v6485, %v6738
        %v6913 = vadd.f32 %v6486, %v6743
        %v6914 = vadd.f32 %v6487, %v6748
        %v6915 = vadd.f32 %v6488, %v6753
        %v6916 = vadd.f32 %v6489, %v6758
        %v6917 = vadd.f32 %v6490, %v6763
        %v6918 = vadd.f32 %v6491, %v6768
        %v6919 = vadd.f32 %v6492, %v6773
        %v6920 = vadd.f32 %v6493, %v6778
        %v6921 = vadd.f32 %v6494, %v6783
        %v6922 = vadd.f32 %v6495, %v6788
        %v6923 = vadd.f32 %v6496, %v6793
        %v6924 = vadd.f32 %v6497, %v6798
        %v6925 = vadd.f32 %v6498, %v6803
        %v6926 = vadd.f32 %v6499, %v6808
        %v6927 = vadd.f32 %v6500, %v6813
        %v6928 = vadd.f32 %v6501, %v6818
        %v6929 = vadd.f32 %v6502, %v6823
        %v6930 = vadd.f32 %v6503, %v6828
        %v6931 = vadd.f32 %v6504, %v6833
        %v6932 = vadd.f32 %v6505, %v6838
        %v6933 = vadd.f32 %v6506, %v6843
        %v6934 = vadd.f32 %v6507, %v6848
        %v6935 = vadd.f32 %v6508, %v6853
        %v6936 = vadd.f32 %v6509, %v6858
        %v6937 = vadd.f32 %v6510, %v6863
        %v6938 = vadd.f32 %v6511, %v6868
        %v6939 = vadd.f32 %v6512, %v6873
        %v6940 = vadd.f32 %v6513, %v6878
        %v6941 = vadd.f32 %v6514, %v6883
        %v6942 = vadd.f32 %v6515, %v6888
        %v6943 = vadd.f32 %v6516, %v6893
        %v6944 = vadd.f32 %v6517, %v6898
        %v6945 = vadd.f32 %v6518, %v6903
        %v6946 = vadd.f32 %v6519, %v6908
        %v6947 = vld [vmem:[#allocation2 + $0x19] sm:$0xff]
        %v6948 = vld [vmem:[#allocation2 + $0x21] sm:$0xff]
        %v6949 = vld [vmem:[#allocation2 + $0x29] sm:$0xff]
        %v6950 = vld [vmem:[#allocation2 + $0x31] sm:$0xff]
        %v6951 = vld [vmem:[#allocation2 + $0x39] sm:$0xff]
        %v6952 = vld [vmem:[#allocation2 + $0x41] sm:$0xff]
        %v6953 = vld [vmem:[#allocation2 + $0x49] sm:$0xff]
        %v6954 = vld [vmem:[#allocation2 + $0x51] sm:$0xff]
        %v6955 = vld [vmem:[#allocation2 + $0x59] sm:$0xff]
        %v6956 = vld [vmem:[#allocation2 + $0x61] sm:$0xff]
        %v6957 = vld [vmem:[#allocation2 + $0x69] sm:$0xff]
        %v6958 = vld [vmem:[#allocation2 + $0x71] sm:$0xff]
        %v6959 = vld [vmem:[#allocation2 + $0x79] sm:$0xff]
        %v6960 = vld [vmem:[#allocation2 + $0x81] sm:$0xff]
        %v6961 = vld [vmem:[#allocation2 + $0x89] sm:$0xff]
        %v6962 = vld [vmem:[#allocation2 + $0x91] sm:$0xff]
        %v6963 = vld [vmem:[#allocation2 + $0x99] sm:$0xff]
        %v6964 = vld [vmem:[#allocation2 + $0xa1] sm:$0xff]
        %v6965 = vld [vmem:[#allocation2 + $0xa9] sm:$0xff]
        %v6966 = vld [vmem:[#allocation2 + $0xb1] sm:$0xff]
        %v6967 = vld [vmem:[#allocation2 + $0xb9] sm:$0xff]
        %v6968 = vld [vmem:[#allocation2 + $0xc1] sm:$0xff]
        %v6969 = vld [vmem:[#allocation2 + $0xc9] sm:$0xff]
        %v6970 = vld [vmem:[#allocation2 + $0xd1] sm:$0xff]
        %v6971 = vld [vmem:[#allocation2 + $0xd9] sm:$0xff]
        %v6972 = vld [vmem:[#allocation2 + $0xe1] sm:$0xff]
        %v6973 = vld [vmem:[#allocation2 + $0xe9] sm:$0xff]
        %v6974 = vld [vmem:[#allocation2 + $0xf1] sm:$0xff]
        %v6975 = vld [vmem:[#allocation2 + $0xf9] sm:$0xff]
        %v6976 = vld [vmem:[#allocation2 + $0x101] sm:$0xff]
        %v6977 = vld [vmem:[#allocation2 + $0x109] sm:$0xff]
        %v6978 = vld [vmem:[#allocation2 + $0x111] sm:$0xff]
        %v6979 = vld [vmem:[#allocation2 + $0x119] sm:$0xff]
        %v6980 = vld [vmem:[#allocation2 + $0x121] sm:$0xff]
        %v6981 = vld [vmem:[#allocation2 + $0x129] sm:$0xff]
        %v6982 = vld [vmem:[#allocation2 + $0x131] sm:$0xff]
        %s6983 = scalar_lea.vmem %s3, 40
        %v6984 = vld [vmem:[%s6983] sm:$0xff]
        %v6986 = vsel %vm4839, %v6947, 0
        %v6989 = vsel %vm4839, %v6948, 0
        %v6992 = vsel %vm4839, %v6949, 0
        %v6995 = vsel %vm4839, %v6950, 0
        %v6998 = vsel %vm4839, %v6951, 0
        %v7001 = vsel %vm4839, %v6952, 0
        %v7004 = vsel %vm4839, %v6953, 0
        %v7007 = vsel %vm4839, %v6954, 0
        %v7010 = vsel %vm4839, %v6955, 0
        %v7013 = vsel %vm4839, %v6956, 0
        %v7016 = vsel %vm4839, %v6957, 0
        %v7019 = vsel %vm4839, %v6958, 0
        %v7022 = vsel %vm4839, %v6959, 0
        %v7025 = vsel %vm4839, %v6960, 0
        %v7028 = vsel %vm4839, %v6961, 0
        %v7031 = vsel %vm4839, %v6962, 0
        %v7034 = vsel %vm4839, %v6963, 0
        %v7037 = vsel %vm4839, %v6964, 0
        %v7040 = vsel %vm4839, %v6965, 0
        %v7043 = vsel %vm4839, %v6966, 0
        %v7046 = vsel %vm4839, %v6967, 0
        %v7049 = vsel %vm4839, %v6968, 0
        %v7052 = vsel %vm4839, %v6969, 0
        %v7055 = vsel %vm4839, %v6970, 0
        %v7058 = vsel %vm4839, %v6971, 0
        %v7061 = vsel %vm4839, %v6972, 0
        %v7064 = vsel %vm4839, %v6973, 0
        %v7067 = vsel %vm4839, %v6974, 0
        %v7070 = vsel %vm4839, %v6975, 0
        %v7073 = vsel %vm4839, %v6976, 0
        %v7076 = vsel %vm4839, %v6977, 0
        %v7079 = vsel %vm4839, %v6978, 0
        %v7082 = vsel %vm4839, %v6979, 0
        %v7085 = vsel %vm4839, %v6980, 0
        %v7088 = vsel %vm4839, %v6981, 0
        %v7091 = vsel %vm4839, %v6982, 0
        %7093 = vmatprep.subr.mxu0 0.0
        %7094 = vmatpush1.msra.mxu0 %v6984
        %7095 = vmatprep.subr.mxu0 0.0
        %7096 = vmatpush1.msra.mxu0 0.0
        %7097 = vmatprep.subr.mxu0 0.0
        %7098 = vmatpush1.msra.mxu0 0.0
        %7099 = vmatprep.subr.mxu0 0.0
        %7100 = vmatpush1.msra.mxu0 0.0
        %7101 = vmatprep.subr.mxu0 0.0
        %7102 = vmatpush1.msra.mxu0 0.0
        %7103 = vmatprep.subr.mxu0 0.0
        %7104 = vmatpush1.msra.mxu0 0.0
        %7105 = vmatprep.subr.mxu0 0.0
        %7106 = vmatpush1.msra.mxu0 0.0
        %7107 = vmatprep.subr.mxu0 0.0
        %7108 = vmatpush1.msra.mxu0 0.0
        %7109 = vmatprep.subr.mxu0 0.0
        %7110 = vmatpush1.msra.mxu0 0.0
        %7111 = vmatprep.subr.mxu0 0.0
        %7112 = vmatpush1.msra.mxu0 0.0
        %7113 = vmatprep.subr.mxu0 0.0
        %7114 = vmatpush1.msra.mxu0 0.0
        %7115 = vmatprep.subr.mxu0 0.0
        %7116 = vmatpush1.msra.mxu0 0.0
        %7117 = vmatprep.subr.mxu0 0.0
        %7118 = vmatpush1.msra.mxu0 0.0
        %7119 = vmatprep.subr.mxu0 0.0
        %7120 = vmatpush1.msra.mxu0 0.0
        %7121 = vmatprep.subr.mxu0 0.0
        %7122 = vmatpush1.msra.mxu0 0.0
        %7123 = vmatprep.subr.mxu0 0.0
        %7124 = vmatpush1.msra.mxu0 0.0
        %7125 = vmatprep.subr.mxu0 0.0
        %7126 = vmatpush1.msra.mxu0 0.0
        %7127 = vmatprep.subr.mxu0 0.0
        %7128 = vmatpush1.msra.mxu0 0.0
        %7129 = vmatprep.subr.mxu0 0.0
        %7130 = vmatpush1.msra.mxu0 0.0
        %7131 = vmatprep.subr.mxu0 0.0
        %7132 = vmatpush1.msra.mxu0 0.0
        %7133 = vmatprep.subr.mxu0 0.0
        %7134 = vmatpush1.msra.mxu0 0.0
        %7135 = vmatprep.subr.mxu0 0.0
        %7136 = vmatpush1.msra.mxu0 0.0
        %7137 = vmatprep.subr.mxu0 0.0
        %7138 = vmatpush1.msra.mxu0 0.0
        %7139 = vmatprep.subr.mxu0 0.0
        %7140 = vmatpush1.msra.mxu0 0.0
        %7141 = vmatprep.subr.mxu0 0.0
        %7142 = vmatpush1.msra.mxu0 0.0
        %7143 = vmatprep.subr.mxu0 0.0
        %7144 = vmatpush1.msra.mxu0 0.0
        %7145 = vmatprep.subr.mxu0 0.0
        %7146 = vmatpush1.msra.mxu0 0.0
        %7147 = vmatprep.subr.mxu0 0.0
        %7148 = vmatpush1.msra.mxu0 0.0
        %7149 = vmatprep.subr.mxu0 0.0
        %7150 = vmatpush1.msra.mxu0 0.0
        %7151 = vmatprep.subr.mxu0 0.0
        %7152 = vmatpush1.msra.mxu0 0.0
        %7153 = vmatprep.subr.mxu0 0.0
        %7154 = vmatpush1.msra.mxu0 0.0
        %7155 = vmatprep.subr.mxu0 0.0
        %7156 = vmatpush1.msra.mxu0 0.0
        %7157 = vmatprep.mubr.f32.mxu0 0.0
        %7158 = vmatmul.mubr.f32.gmra.mrb[0].mxu0 %v6986
        %v7159 = vpop.f32.mrb[0].mxu0
        %v7160 = vadd.f32 0.0, %v7159
        %v7161 = vpop.f32.mrb[0].mxu0
        %7162 = vmatprep.mubr.f32.mxu0 0.0
        %7163 = vmatmul.mubr.f32.gmra.mrb[0].mxu0 %v6989
        %v7164 = vpop.f32.mrb[0].mxu0
        %v7165 = vadd.f32 0.0, %v7164
        %v7166 = vpop.f32.mrb[0].mxu0
        %7167 = vmatprep.mubr.f32.mxu0 0.0
        %7168 = vmatmul.mubr.f32.gmra.mrb[0].mxu0 %v6992
        %v7169 = vpop.f32.mrb[0].mxu0
        %v7170 = vadd.f32 0.0, %v7169
        %v7171 = vpop.f32.mrb[0].mxu0
        %7172 = vmatprep.mubr.f32.mxu0 0.0
        %7173 = vmatmul.mubr.f32.gmra.mrb[0].mxu0 %v6995
        %v7174 = vpop.f32.mrb[0].mxu0
        %v7175 = vadd.f32 0.0, %v7174
        %v7176 = vpop.f32.mrb[0].mxu0
        %7177 = vmatprep.mubr.f32.mxu0 0.0
        %7178 = vmatmul.mubr.f32.gmra.mrb[0].mxu0 %v6998
        %v7179 = vpop.f32.mrb[0].mxu0
        %v7180 = vadd.f32 0.0, %v7179
        %v7181 = vpop.f32.mrb[0].mxu0
        %7182 = vmatprep.mubr.f32.mxu0 0.0
        %7183 = vmatmul.mubr.f32.gmra.mrb[0].mxu0 %v7001
        %v7184 = vpop.f32.mrb[0].mxu0
        %v7185 = vadd.f32 0.0, %v7184
        %v7186 = vpop.f32.mrb[0].mxu0
        %7187 = vmatprep.mubr.f32.mxu0 0.0
        %7188 = vmatmul.mubr.f32.gmra.mrb[0].mxu0 %v7004
        %v7189 = vpop.f32.mrb[0].mxu0
        %v7190 = vadd.f32 0.0, %v7189
        %v7191 = vpop.f32.mrb[0].mxu0
        %7192 = vmatprep.mubr.f32.mxu0 0.0
        %7193 = vmatmul.mubr.f32.gmra.mrb[0].mxu0 %v7007
        %v7194 = vpop.f32.mrb[0].mxu0
        %v7195 = vadd.f32 0.0, %v7194
        %v7196 = vpop.f32.mrb[0].mxu0
        %7197 = vmatprep.mubr.f32.mxu0 0.0
        %7198 = vmatmul.mubr.f32.gmra.mrb[0].mxu0 %v7010
        %v7199 = vpop.f32.mrb[0].mxu0
        %v7200 = vadd.f32 0.0, %v7199
        %v7201 = vpop.f32.mrb[0].mxu0
        %7202 = vmatprep.mubr.f32.mxu0 0.0
        %7203 = vmatmul.mubr.f32.gmra.mrb[0].mxu0 %v7013
        %v7204 = vpop.f32.mrb[0].mxu0
        %v7205 = vadd.f32 0.0, %v7204
        %v7206 = vpop.f32.mrb[0].mxu0
        %7207 = vmatprep.mubr.f32.mxu0 0.0
        %7208 = vmatmul.mubr.f32.gmra.mrb[0].mxu0 %v7016
        %v7209 = vpop.f32.mrb[0].mxu0
        %v7210 = vadd.f32 0.0, %v7209
        %v7211 = vpop.f32.mrb[0].mxu0
        %7212 = vmatprep.mubr.f32.mxu0 0.0
        %7213 = vmatmul.mubr.f32.gmra.mrb[0].mxu0 %v7019
        %v7214 = vpop.f32.mrb[0].mxu0
        %v7215 = vadd.f32 0.0, %v7214
        %v7216 = vpop.f32.mrb[0].mxu0
        %7217 = vmatprep.mubr.f32.mxu0 0.0
        %7218 = vmatmul.mubr.f32.gmra.mrb[0].mxu0 %v7022
        %v7219 = vpop.f32.mrb[0].mxu0
        %v7220 = vadd.f32 0.0, %v7219
        %v7221 = vpop.f32.mrb[0].mxu0
        %7222 = vmatprep.mubr.f32.mxu0 0.0
        %7223 = vmatmul.mubr.f32.gmra.mrb[0].mxu0 %v7025
        %v7224 = vpop.f32.mrb[0].mxu0
        %v7225 = vadd.f32 0.0, %v7224
        %v7226 = vpop.f32.mrb[0].mxu0
        %7227 = vmatprep.mubr.f32.mxu0 0.0
        %7228 = vmatmul.mubr.f32.gmra.mrb[0].mxu0 %v7028
        %v7229 = vpop.f32.mrb[0].mxu0
        %v7230 = vadd.f32 0.0, %v7229
        %v7231 = vpop.f32.mrb[0].mxu0
        %7232 = vmatprep.mubr.f32.mxu0 0.0
        %7233 = vmatmul.mubr.f32.gmra.mrb[0].mxu0 %v7031
        %v7234 = vpop.f32.mrb[0].mxu0
        %v7235 = vadd.f32 0.0, %v7234
        %v7236 = vpop.f32.mrb[0].mxu0
        %7237 = vmatprep.mubr.f32.mxu0 0.0
        %7238 = vmatmul.mubr.f32.gmra.mrb[0].mxu0 %v7034
        %v7239 = vpop.f32.mrb[0].mxu0
        %v7240 = vadd.f32 0.0, %v7239
        %v7241 = vpop.f32.mrb[0].mxu0
        %7242 = vmatprep.mubr.f32.mxu0 0.0
        %7243 = vmatmul.mubr.f32.gmra.mrb[0].mxu0 %v7037
        %v7244 = vpop.f32.mrb[0].mxu0
        %v7245 = vadd.f32 0.0, %v7244
        %v7246 = vpop.f32.mrb[0].mxu0
        %7247 = vmatprep.mubr.f32.mxu0 0.0
        %7248 = vmatmul.mubr.f32.gmra.mrb[0].mxu0 %v7040
        %v7249 = vpop.f32.mrb[0].mxu0
        %v7250 = vadd.f32 0.0, %v7249
        %v7251 = vpop.f32.mrb[0].mxu0
        %7252 = vmatprep.mubr.f32.mxu0 0.0
        %7253 = vmatmul.mubr.f32.gmra.mrb[0].mxu0 %v7043
        %v7254 = vpop.f32.mrb[0].mxu0
        %v7255 = vadd.f32 0.0, %v7254
        %v7256 = vpop.f32.mrb[0].mxu0
        %7257 = vmatprep.mubr.f32.mxu0 0.0
        %7258 = vmatmul.mubr.f32.gmra.mrb[0].mxu0 %v7046
        %v7259 = vpop.f32.mrb[0].mxu0
        %v7260 = vadd.f32 0.0, %v7259
        %v7261 = vpop.f32.mrb[0].mxu0
        %7262 = vmatprep.mubr.f32.mxu0 0.0
        %7263 = vmatmul.mubr.f32.gmra.mrb[0].mxu0 %v7049
        %v7264 = vpop.f32.mrb[0].mxu0
        %v7265 = vadd.f32 0.0, %v7264
        %v7266 = vpop.f32.mrb[0].mxu0
        %7267 = vmatprep.mubr.f32.mxu0 0.0
        %7268 = vmatmul.mubr.f32.gmra.mrb[0].mxu0 %v7052
        %v7269 = vpop.f32.mrb[0].mxu0
        %v7270 = vadd.f32 0.0, %v7269
        %v7271 = vpop.f32.mrb[0].mxu0
        %7272 = vmatprep.mubr.f32.mxu0 0.0
        %7273 = vmatmul.mubr.f32.gmra.mrb[0].mxu0 %v7055
        %v7274 = vpop.f32.mrb[0].mxu0
        %v7275 = vadd.f32 0.0, %v7274
        %v7276 = vpop.f32.mrb[0].mxu0
        %7277 = vmatprep.mubr.f32.mxu0 0.0
        %7278 = vmatmul.mubr.f32.gmra.mrb[0].mxu0 %v7058
        %v7279 = vpop.f32.mrb[0].mxu0
        %v7280 = vadd.f32 0.0, %v7279
        %v7281 = vpop.f32.mrb[0].mxu0
        %7282 = vmatprep.mubr.f32.mxu0 0.0
        %7283 = vmatmul.mubr.f32.gmra.mrb[0].mxu0 %v7061
        %v7284 = vpop.f32.mrb[0].mxu0
        %v7285 = vadd.f32 0.0, %v7284
        %v7286 = vpop.f32.mrb[0].mxu0
        %7287 = vmatprep.mubr.f32.mxu0 0.0
        %7288 = vmatmul.mubr.f32.gmra.mrb[0].mxu0 %v7064
        %v7289 = vpop.f32.mrb[0].mxu0
        %v7290 = vadd.f32 0.0, %v7289
        %v7291 = vpop.f32.mrb[0].mxu0
        %7292 = vmatprep.mubr.f32.mxu0 0.0
        %7293 = vmatmul.mubr.f32.gmra.mrb[0].mxu0 %v7067
        %v7294 = vpop.f32.mrb[0].mxu0
        %v7295 = vadd.f32 0.0, %v7294
        %v7296 = vpop.f32.mrb[0].mxu0
        %7297 = vmatprep.mubr.f32.mxu0 0.0
        %7298 = vmatmul.mubr.f32.gmra.mrb[0].mxu0 %v7070
        %v7299 = vpop.f32.mrb[0].mxu0
        %v7300 = vadd.f32 0.0, %v7299
        %v7301 = vpop.f32.mrb[0].mxu0
        %7302 = vmatprep.mubr.f32.mxu0 0.0
        %7303 = vmatmul.mubr.f32.gmra.mrb[0].mxu0 %v7073
        %v7304 = vpop.f32.mrb[0].mxu0
        %v7305 = vadd.f32 0.0, %v7304
        %v7306 = vpop.f32.mrb[0].mxu0
        %7307 = vmatprep.mubr.f32.mxu0 0.0
        %7308 = vmatmul.mubr.f32.gmra.mrb[0].mxu0 %v7076
        %v7309 = vpop.f32.mrb[0].mxu0
        %v7310 = vadd.f32 0.0, %v7309
        %v7311 = vpop.f32.mrb[0].mxu0
        %7312 = vmatprep.mubr.f32.mxu0 0.0
        %7313 = vmatmul.mubr.f32.gmra.mrb[0].mxu0 %v7079
        %v7314 = vpop.f32.mrb[0].mxu0
        %v7315 = vadd.f32 0.0, %v7314
        %v7316 = vpop.f32.mrb[0].mxu0
        %7317 = vmatprep.mubr.f32.mxu0 0.0
        %7318 = vmatmul.mubr.f32.gmra.mrb[0].mxu0 %v7082
        %v7319 = vpop.f32.mrb[0].mxu0
        %v7320 = vadd.f32 0.0, %v7319
        %v7321 = vpop.f32.mrb[0].mxu0
        %7322 = vmatprep.mubr.f32.mxu0 0.0
        %7323 = vmatmul.mubr.f32.gmra.mrb[0].mxu0 %v7085
        %v7324 = vpop.f32.mrb[0].mxu0
        %v7325 = vadd.f32 0.0, %v7324
        %v7326 = vpop.f32.mrb[0].mxu0
        %7327 = vmatprep.mubr.f32.mxu0 0.0
        %7328 = vmatmul.mubr.f32.gmra.mrb[0].mxu0 %v7088
        %v7329 = vpop.f32.mrb[0].mxu0
        %v7330 = vadd.f32 0.0, %v7329
        %v7331 = vpop.f32.mrb[0].mxu0
        %7332 = vmatprep.mubr.f32.mxu0 0.0
        %7333 = vmatmul.mubr.f32.gmra.mrb[0].mxu0 %v7091
        %v7334 = vpop.f32.mrb[0].mxu0
        %v7335 = vadd.f32 0.0, %v7334
        %v7336 = vpop.f32.mrb[0].mxu0
        %7337 = vdwg.mxu0
        %v7338 = vadd.f32 %v6911, %v7160
        %v7339 = vadd.f32 %v6912, %v7165
        %v7340 = vadd.f32 %v6913, %v7170
        %v7341 = vadd.f32 %v6914, %v7175
        %v7342 = vadd.f32 %v6915, %v7180
        %v7343 = vadd.f32 %v6916, %v7185
        %v7344 = vadd.f32 %v6917, %v7190
        %v7345 = vadd.f32 %v6918, %v7195
        %v7346 = vadd.f32 %v6919, %v7200
        %v7347 = vadd.f32 %v6920, %v7205
        %v7348 = vadd.f32 %v6921, %v7210
        %v7349 = vadd.f32 %v6922, %v7215
        %v7350 = vadd.f32 %v6923, %v7220
        %v7351 = vadd.f32 %v6924, %v7225
        %v7352 = vadd.f32 %v6925, %v7230
        %v7353 = vadd.f32 %v6926, %v7235
        %v7354 = vadd.f32 %v6927, %v7240
        %v7355 = vadd.f32 %v6928, %v7245
        %v7356 = vadd.f32 %v6929, %v7250
        %v7357 = vadd.f32 %v6930, %v7255
        %v7358 = vadd.f32 %v6931, %v7260
        %v7359 = vadd.f32 %v6932, %v7265
        %v7360 = vadd.f32 %v6933, %v7270
        %v7361 = vadd.f32 %v6934, %v7275
        %v7362 = vadd.f32 %v6935, %v7280
        %v7363 = vadd.f32 %v6936, %v7285
        %v7364 = vadd.f32 %v6937, %v7290
        %v7365 = vadd.f32 %v6938, %v7295
        %v7366 = vadd.f32 %v6939, %v7300
        %v7367 = vadd.f32 %v6940, %v7305
        %v7368 = vadd.f32 %v6941, %v7310
        %v7369 = vadd.f32 %v6942, %v7315
        %v7370 = vadd.f32 %v6943, %v7320
        %v7371 = vadd.f32 %v6944, %v7325
        %v7372 = vadd.f32 %v6945, %v7330
        %v7373 = vadd.f32 %v6946, %v7335
        %v7374 = vld [vmem:[#allocation2 + $0x29] sm:$0xff]
        %v7375 = vld [vmem:[#allocation2 + $0x31] sm:$0xff]
        %v7376 = vld [vmem:[#allocation2 + $0x39] sm:$0xff]
        %v7377 = vld [vmem:[#allocation2 + $0x41] sm:$0xff]
        %v7378 = vld [vmem:[#allocation2 + $0x49] sm:$0xff]
        %v7379 = vld [vmem:[#allocation2 + $0x51] sm:$0xff]
        %v7380 = vld [vmem:[#allocation2 + $0x59] sm:$0xff]
        %v7381 = vld [vmem:[#allocation2 + $0x61] sm:$0xff]
        %v7382 = vld [vmem:[#allocation2 + $0x69] sm:$0xff]
        %v7383 = vld [vmem:[#allocation2 + $0x71] sm:$0xff]
        %v7384 = vld [vmem:[#allocation2 + $0x79] sm:$0xff]
        %v7385 = vld [vmem:[#allocation2 + $0x81] sm:$0xff]
        %v7386 = vld [vmem:[#allocation2 + $0x89] sm:$0xff]
        %v7387 = vld [vmem:[#allocation2 + $0x91] sm:$0xff]
        %v7388 = vld [vmem:[#allocation2 + $0x99] sm:$0xff]
        %v7389 = vld [vmem:[#allocation2 + $0xa1] sm:$0xff]
        %v7390 = vld [vmem:[#allocation2 + $0xa9] sm:$0xff]
        %v7391 = vld [vmem:[#allocation2 + $0xb1] sm:$0xff]
        %v7392 = vld [vmem:[#allocation2 + $0xb9] sm:$0xff]
        %v7393 = vld [vmem:[#allocation2 + $0xc1] sm:$0xff]
        %v7394 = vld [vmem:[#allocation2 + $0xc9] sm:$0xff]
        %v7395 = vld [vmem:[#allocation2 + $0xd1] sm:$0xff]
        %v7396 = vld [vmem:[#allocation2 + $0xd9] sm:$0xff]
        %v7397 = vld [vmem:[#allocation2 + $0xe1] sm:$0xff]
        %v7398 = vld [vmem:[#allocation2 + $0xe9] sm:$0xff]
        %v7399 = vld [vmem:[#allocation2 + $0xf1] sm:$0xff]
        %v7400 = vld [vmem:[#allocation2 + $0xf9] sm:$0xff]
        %v7401 = vld [vmem:[#allocation2 + $0x101] sm:$0xff]
        %v7402 = vld [vmem:[#allocation2 + $0x109] sm:$0xff]
        %v7403 = vld [vmem:[#allocation2 + $0x111] sm:$0xff]
        %v7404 = vld [vmem:[#allocation2 + $0x119] sm:$0xff]
        %v7405 = vld [vmem:[#allocation2 + $0x121] sm:$0xff]
        %v7406 = vld [vmem:[#allocation2 + $0x129] sm:$0xff]
        %v7407 = vld [vmem:[#allocation2 + $0x131] sm:$0xff]
        %v7408 = vld [vmem:[#allocation2 + $0x139] sm:$0xff]
        %v7409 = vld [vmem:[#allocation2 + $0x141] sm:$0xff]
        %s7410 = scalar_lea.vmem %s3, 48
        %v7411 = vld [vmem:[%s7410] sm:$0xff]
        %v7413 = vsel %vm4839, %v7374, 0
        %v7416 = vsel %vm4839, %v7375, 0
        %v7419 = vsel %vm4839, %v7376, 0
        %v7422 = vsel %vm4839, %v7377, 0
        %v7425 = vsel %vm4839, %v7378, 0
        %v7428 = vsel %vm4839, %v7379, 0
        %v7431 = vsel %vm4839, %v7380, 0
        %v7434 = vsel %vm4839, %v7381, 0
        %v7437 = vsel %vm4839, %v7382, 0
        %v7440 = vsel %vm4839, %v7383, 0
        %v7443 = vsel %vm4839, %v7384, 0
        %v7446 = vsel %vm4839, %v7385, 0
        %v7449 = vsel %vm4839, %v7386, 0
        %v7452 = vsel %vm4839, %v7387, 0
        %v7455 = vsel %vm4839, %v7388, 0
        %v7458 = vsel %vm4839, %v7389, 0
        %v7461 = vsel %vm4839, %v7390, 0
        %v7464 = vsel %vm4839, %v7391, 0
        %v7467 = vsel %vm4839, %v7392, 0
        %v7470 = vsel %vm4839, %v7393, 0
        %v7473 = vsel %vm4839, %v7394, 0
        %v7476 = vsel %vm4839, %v7395, 0
        %v7479 = vsel %vm4839, %v7396, 0
        %v7482 = vsel %vm4839, %v7397, 0
        %v7485 = vsel %vm4839, %v7398, 0
        %v7488 = vsel %vm4839, %v7399, 0
        %v7491 = vsel %vm4839, %v7400, 0
        %v7494 = vsel %vm4839, %v7401, 0
        %v7497 = vsel %vm4839, %v7402, 0
        %v7500 = vsel %vm4839, %v7403, 0
        %v7503 = vsel %vm4839, %v7404, 0
        %v7506 = vsel %vm4839, %v7405, 0
        %v7509 = vsel %vm4839, %v7406, 0
        %v7512 = vsel %vm4839, %v7407, 0
        %v7515 = vsel %vm4839, %v7408, 0
        %v7518 = vsel %vm4839, %v7409, 0
        %7520 = vmatprep.subr.mxu0 0.0
        %7521 = vmatpush1.msra.mxu0 %v7411
        %7522 = vmatprep.subr.mxu0 0.0
        %7523 = vmatpush1.msra.mxu0 0.0
        %7524 = vmatprep.subr.mxu0 0.0
        %7525 = vmatpush1.msra.mxu0 0.0
        %7526 = vmatprep.subr.mxu0 0.0
        %7527 = vmatpush1.msra.mxu0 0.0
        %7528 = vmatprep.subr.mxu0 0.0
        %7529 = vmatpush1.msra.mxu0 0.0
        %7530 = vmatprep.subr.mxu0 0.0
        %7531 = vmatpush1.msra.mxu0 0.0
        %7532 = vmatprep.subr.mxu0 0.0
        %7533 = vmatpush1.msra.mxu0 0.0
        %7534 = vmatprep.subr.mxu0 0.0
        %7535 = vmatpush1.msra.mxu0 0.0
        %7536 = vmatprep.subr.mxu0 0.0
        %7537 = vmatpush1.msra.mxu0 0.0
        %7538 = vmatprep.subr.mxu0 0.0
        %7539 = vmatpush1.msra.mxu0 0.0
        %7540 = vmatprep.subr.mxu0 0.0
        %7541 = vmatpush1.msra.mxu0 0.0
        %7542 = vmatprep.subr.mxu0 0.0
        %7543 = vmatpush1.msra.mxu0 0.0
        %7544 = vmatprep.subr.mxu0 0.0
        %7545 = vmatpush1.msra.mxu0 0.0
        %7546 = vmatprep.subr.mxu0 0.0
        %7547 = vmatpush1.msra.mxu0 0.0
        %7548 = vmatprep.subr.mxu0 0.0
        %7549 = vmatpush1.msra.mxu0 0.0
        %7550 = vmatprep.subr.mxu0 0.0
        %7551 = vmatpush1.msra.mxu0 0.0
        %7552 = vmatprep.subr.mxu0 0.0
        %7553 = vmatpush1.msra.mxu0 0.0
        %7554 = vmatprep.subr.mxu0 0.0
        %7555 = vmatpush1.msra.mxu0 0.0
        %7556 = vmatprep.subr.mxu0 0.0
        %7557 = vmatpush1.msra.mxu0 0.0
        %7558 = vmatprep.subr.mxu0 0.0
        %7559 = vmatpush1.msra.mxu0 0.0
        %7560 = vmatprep.subr.mxu0 0.0
        %7561 = vmatpush1.msra.mxu0 0.0
        %7562 = vmatprep.subr.mxu0 0.0
        %7563 = vmatpush1.msra.mxu0 0.0
        %7564 = vmatprep.subr.mxu0 0.0
        %7565 = vmatpush1.msra.mxu0 0.0
        %7566 = vmatprep.subr.mxu0 0.0
        %7567 = vmatpush1.msra.mxu0 0.0
        %7568 = vmatprep.subr.mxu0 0.0
        %7569 = vmatpush1.msra.mxu0 0.0
        %7570 = vmatprep.subr.mxu0 0.0
        %7571 = vmatpush1.msra.mxu0 0.0
        %7572 = vmatprep.subr.mxu0 0.0
        %7573 = vmatpush1.msra.mxu0 0.0
        %7574 = vmatprep.subr.mxu0 0.0
        %7575 = vmatpush1.msra.mxu0 0.0
        %7576 = vmatprep.subr.mxu0 0.0
        %7577 = vmatpush1.msra.mxu0 0.0
        %7578 = vmatprep.subr.mxu0 0.0
        %7579 = vmatpush1.msra.mxu0 0.0
        %7580 = vmatprep.subr.mxu0 0.0
        %7581 = vmatpush1.msra.mxu0 0.0
        %7582 = vmatprep.subr.mxu0 0.0
        %7583 = vmatpush1.msra.mxu0 0.0
        %7584 = vmatprep.mubr.f32.mxu0 0.0
        %7585 = vmatmul.mubr.f32.gmra.mrb[0].mxu0 %v7413
        %v7586 = vpop.f32.mrb[0].mxu0
        %v7587 = vadd.f32 0.0, %v7586
        %v7588 = vpop.f32.mrb[0].mxu0
        %7589 = vmatprep.mubr.f32.mxu0 0.0
        %7590 = vmatmul.mubr.f32.gmra.mrb[0].mxu0 %v7416
        %v7591 = vpop.f32.mrb[0].mxu0
        %v7592 = vadd.f32 0.0, %v7591
        %v7593 = vpop.f32.mrb[0].mxu0
        %7594 = vmatprep.mubr.f32.mxu0 0.0
        %7595 = vmatmul.mubr.f32.gmra.mrb[0].mxu0 %v7419
        %v7596 = vpop.f32.mrb[0].mxu0
        %v7597 = vadd.f32 0.0, %v7596
        %v7598 = vpop.f32.mrb[0].mxu0
        %7599 = vmatprep.mubr.f32.mxu0 0.0
        %7600 = vmatmul.mubr.f32.gmra.mrb[0].mxu0 %v7422
        %v7601 = vpop.f32.mrb[0].mxu0
        %v7602 = vadd.f32 0.0, %v7601
        %v7603 = vpop.f32.mrb[0].mxu0
        %7604 = vmatprep.mubr.f32.mxu0 0.0
        %7605 = vmatmul.mubr.f32.gmra.mrb[0].mxu0 %v7425
        %v7606 = vpop.f32.mrb[0].mxu0
        %v7607 = vadd.f32 0.0, %v7606
        %v7608 = vpop.f32.mrb[0].mxu0
        %7609 = vmatprep.mubr.f32.mxu0 0.0
        %7610 = vmatmul.mubr.f32.gmra.mrb[0].mxu0 %v7428
        %v7611 = vpop.f32.mrb[0].mxu0
        %v7612 = vadd.f32 0.0, %v7611
        %v7613 = vpop.f32.mrb[0].mxu0
        %7614 = vmatprep.mubr.f32.mxu0 0.0
        %7615 = vmatmul.mubr.f32.gmra.mrb[0].mxu0 %v7431
        %v7616 = vpop.f32.mrb[0].mxu0
        %v7617 = vadd.f32 0.0, %v7616
        %v7618 = vpop.f32.mrb[0].mxu0
        %7619 = vmatprep.mubr.f32.mxu0 0.0
        %7620 = vmatmul.mubr.f32.gmra.mrb[0].mxu0 %v7434
        %v7621 = vpop.f32.mrb[0].mxu0
        %v7622 = vadd.f32 0.0, %v7621
        %v7623 = vpop.f32.mrb[0].mxu0
        %7624 = vmatprep.mubr.f32.mxu0 0.0
        %7625 = vmatmul.mubr.f32.gmra.mrb[0].mxu0 %v7437
        %v7626 = vpop.f32.mrb[0].mxu0
        %v7627 = vadd.f32 0.0, %v7626
        %v7628 = vpop.f32.mrb[0].mxu0
        %7629 = vmatprep.mubr.f32.mxu0 0.0
        %7630 = vmatmul.mubr.f32.gmra.mrb[0].mxu0 %v7440
        %v7631 = vpop.f32.mrb[0].mxu0
        %v7632 = vadd.f32 0.0, %v7631
        %v7633 = vpop.f32.mrb[0].mxu0
        %7634 = vmatprep.mubr.f32.mxu0 0.0
        %7635 = vmatmul.mubr.f32.gmra.mrb[0].mxu0 %v7443
        %v7636 = vpop.f32.mrb[0].mxu0
        %v7637 = vadd.f32 0.0, %v7636
        %v7638 = vpop.f32.mrb[0].mxu0
        %7639 = vmatprep.mubr.f32.mxu0 0.0
        %7640 = vmatmul.mubr.f32.gmra.mrb[0].mxu0 %v7446
        %v7641 = vpop.f32.mrb[0].mxu0
        %v7642 = vadd.f32 0.0, %v7641
        %v7643 = vpop.f32.mrb[0].mxu0
        %7644 = vmatprep.mubr.f32.mxu0 0.0
        %7645 = vmatmul.mubr.f32.gmra.mrb[0].mxu0 %v7449
        %v7646 = vpop.f32.mrb[0].mxu0
        %v7647 = vadd.f32 0.0, %v7646
        %v7648 = vpop.f32.mrb[0].mxu0
        %7649 = vmatprep.mubr.f32.mxu0 0.0
        %7650 = vmatmul.mubr.f32.gmra.mrb[0].mxu0 %v7452
        %v7651 = vpop.f32.mrb[0].mxu0
        %v7652 = vadd.f32 0.0, %v7651
        %v7653 = vpop.f32.mrb[0].mxu0
        %7654 = vmatprep.mubr.f32.mxu0 0.0
        %7655 = vmatmul.mubr.f32.gmra.mrb[0].mxu0 %v7455
        %v7656 = vpop.f32.mrb[0].mxu0
        %v7657 = vadd.f32 0.0, %v7656
        %v7658 = vpop.f32.mrb[0].mxu0
        %7659 = vmatprep.mubr.f32.mxu0 0.0
        %7660 = vmatmul.mubr.f32.gmra.mrb[0].mxu0 %v7458
        %v7661 = vpop.f32.mrb[0].mxu0
        %v7662 = vadd.f32 0.0, %v7661
        %v7663 = vpop.f32.mrb[0].mxu0
        %7664 = vmatprep.mubr.f32.mxu0 0.0
        %7665 = vmatmul.mubr.f32.gmra.mrb[0].mxu0 %v7461
        %v7666 = vpop.f32.mrb[0].mxu0
        %v7667 = vadd.f32 0.0, %v7666
        %v7668 = vpop.f32.mrb[0].mxu0
        %7669 = vmatprep.mubr.f32.mxu0 0.0
        %7670 = vmatmul.mubr.f32.gmra.mrb[0].mxu0 %v7464
        %v7671 = vpop.f32.mrb[0].mxu0
        %v7672 = vadd.f32 0.0, %v7671
        %v7673 = vpop.f32.mrb[0].mxu0
        %7674 = vmatprep.mubr.f32.mxu0 0.0
        %7675 = vmatmul.mubr.f32.gmra.mrb[0].mxu0 %v7467
        %v7676 = vpop.f32.mrb[0].mxu0
        %v7677 = vadd.f32 0.0, %v7676
        %v7678 = vpop.f32.mrb[0].mxu0
        %7679 = vmatprep.mubr.f32.mxu0 0.0
        %7680 = vmatmul.mubr.f32.gmra.mrb[0].mxu0 %v7470
        %v7681 = vpop.f32.mrb[0].mxu0
        %v7682 = vadd.f32 0.0, %v7681
        %v7683 = vpop.f32.mrb[0].mxu0
        %7684 = vmatprep.mubr.f32.mxu0 0.0
        %7685 = vmatmul.mubr.f32.gmra.mrb[0].mxu0 %v7473
        %v7686 = vpop.f32.mrb[0].mxu0
        %v7687 = vadd.f32 0.0, %v7686
        %v7688 = vpop.f32.mrb[0].mxu0
        %7689 = vmatprep.mubr.f32.mxu0 0.0
        %7690 = vmatmul.mubr.f32.gmra.mrb[0].mxu0 %v7476
        %v7691 = vpop.f32.mrb[0].mxu0
        %v7692 = vadd.f32 0.0, %v7691
        %v7693 = vpop.f32.mrb[0].mxu0
        %7694 = vmatprep.mubr.f32.mxu0 0.0
        %7695 = vmatmul.mubr.f32.gmra.mrb[0].mxu0 %v7479
        %v7696 = vpop.f32.mrb[0].mxu0
        %v7697 = vadd.f32 0.0, %v7696
        %v7698 = vpop.f32.mrb[0].mxu0
        %7699 = vmatprep.mubr.f32.mxu0 0.0
        %7700 = vmatmul.mubr.f32.gmra.mrb[0].mxu0 %v7482
        %v7701 = vpop.f32.mrb[0].mxu0
        %v7702 = vadd.f32 0.0, %v7701
        %v7703 = vpop.f32.mrb[0].mxu0
        %7704 = vmatprep.mubr.f32.mxu0 0.0
        %7705 = vmatmul.mubr.f32.gmra.mrb[0].mxu0 %v7485
        %v7706 = vpop.f32.mrb[0].mxu0
        %v7707 = vadd.f32 0.0, %v7706
        %v7708 = vpop.f32.mrb[0].mxu0
        %7709 = vmatprep.mubr.f32.mxu0 0.0
        %7710 = vmatmul.mubr.f32.gmra.mrb[0].mxu0 %v7488
        %v7711 = vpop.f32.mrb[0].mxu0
        %v7712 = vadd.f32 0.0, %v7711
        %v7713 = vpop.f32.mrb[0].mxu0
        %7714 = vmatprep.mubr.f32.mxu0 0.0
        %7715 = vmatmul.mubr.f32.gmra.mrb[0].mxu0 %v7491
        %v7716 = vpop.f32.mrb[0].mxu0
        %v7717 = vadd.f32 0.0, %v7716
        %v7718 = vpop.f32.mrb[0].mxu0
        %7719 = vmatprep.mubr.f32.mxu0 0.0
        %7720 = vmatmul.mubr.f32.gmra.mrb[0].mxu0 %v7494
        %v7721 = vpop.f32.mrb[0].mxu0
        %v7722 = vadd.f32 0.0, %v7721
        %v7723 = vpop.f32.mrb[0].mxu0
        %7724 = vmatprep.mubr.f32.mxu0 0.0
        %7725 = vmatmul.mubr.f32.gmra.mrb[0].mxu0 %v7497
        %v7726 = vpop.f32.mrb[0].mxu0
        %v7727 = vadd.f32 0.0, %v7726
        %v7728 = vpop.f32.mrb[0].mxu0
        %7729 = vmatprep.mubr.f32.mxu0 0.0
        %7730 = vmatmul.mubr.f32.gmra.mrb[0].mxu0 %v7500
        %v7731 = vpop.f32.mrb[0].mxu0
        %v7732 = vadd.f32 0.0, %v7731
        %v7733 = vpop.f32.mrb[0].mxu0
        %7734 = vmatprep.mubr.f32.mxu0 0.0
        %7735 = vmatmul.mubr.f32.gmra.mrb[0].mxu0 %v7503
        %v7736 = vpop.f32.mrb[0].mxu0
        %v7737 = vadd.f32 0.0, %v7736
        %v7738 = vpop.f32.mrb[0].mxu0
        %7739 = vmatprep.mubr.f32.mxu0 0.0
        %7740 = vmatmul.mubr.f32.gmra.mrb[0].mxu0 %v7506
        %v7741 = vpop.f32.mrb[0].mxu0
        %v7742 = vadd.f32 0.0, %v7741
        %v7743 = vpop.f32.mrb[0].mxu0
        %7744 = vmatprep.mubr.f32.mxu0 0.0
        %7745 = vmatmul.mubr.f32.gmra.mrb[0].mxu0 %v7509
        %v7746 = vpop.f32.mrb[0].mxu0
        %v7747 = vadd.f32 0.0, %v7746
        %v7748 = vpop.f32.mrb[0].mxu0
        %7749 = vmatprep.mubr.f32.mxu0 0.0
        %7750 = vmatmul.mubr.f32.gmra.mrb[0].mxu0 %v7512
        %v7751 = vpop.f32.mrb[0].mxu0
        %v7752 = vadd.f32 0.0, %v7751
        %v7753 = vpop.f32.mrb[0].mxu0
        %7754 = vmatprep.mubr.f32.mxu0 0.0
        %7755 = vmatmul.mubr.f32.gmra.mrb[0].mxu0 %v7515
        %v7756 = vpop.f32.mrb[0].mxu0
        %v7757 = vadd.f32 0.0, %v7756
        %v7758 = vpop.f32.mrb[0].mxu0
        %7759 = vmatprep.mubr.f32.mxu0 0.0
        %7760 = vmatmul.mubr.f32.gmra.mrb[0].mxu0 %v7518
        %v7761 = vpop.f32.mrb[0].mxu0
        %v7762 = vadd.f32 0.0, %v7761
        %v7763 = vpop.f32.mrb[0].mxu0
        %7764 = vdwg.mxu0
        %v7765 = vadd.f32 %v7338, %v7587
        %v7766 = vadd.f32 %v7339, %v7592
        %v7767 = vadd.f32 %v7340, %v7597
        %v7768 = vadd.f32 %v7341, %v7602
        %v7769 = vadd.f32 %v7342, %v7607
        %v7770 = vadd.f32 %v7343, %v7612
        %v7771 = vadd.f32 %v7344, %v7617
        %v7772 = vadd.f32 %v7345, %v7622
        %v7773 = vadd.f32 %v7346, %v7627
        %v7774 = vadd.f32 %v7347, %v7632
        %v7775 = vadd.f32 %v7348, %v7637
        %v7776 = vadd.f32 %v7349, %v7642
        %v7777 = vadd.f32 %v7350, %v7647
        %v7778 = vadd.f32 %v7351, %v7652
        %v7779 = vadd.f32 %v7352, %v7657
        %v7780 = vadd.f32 %v7353, %v7662
        %v7781 = vadd.f32 %v7354, %v7667
        %v7782 = vadd.f32 %v7355, %v7672
        %v7783 = vadd.f32 %v7356, %v7677
        %v7784 = vadd.f32 %v7357, %v7682
        %v7785 = vadd.f32 %v7358, %v7687
        %v7786 = vadd.f32 %v7359, %v7692
        %v7787 = vadd.f32 %v7360, %v7697
        %v7788 = vadd.f32 %v7361, %v7702
        %v7789 = vadd.f32 %v7362, %v7707
        %v7790 = vadd.f32 %v7363, %v7712
        %v7791 = vadd.f32 %v7364, %v7717
        %v7792 = vadd.f32 %v7365, %v7722
        %v7793 = vadd.f32 %v7366, %v7727
        %v7794 = vadd.f32 %v7367, %v7732
        %v7795 = vadd.f32 %v7368, %v7737
        %v7796 = vadd.f32 %v7369, %v7742
        %v7797 = vadd.f32 %v7370, %v7747
        %v7798 = vadd.f32 %v7371, %v7752
        %v7799 = vadd.f32 %v7372, %v7757
        %v7800 = vadd.f32 %v7373, %v7762
        %v7801 = vld [vmem:[#allocation2 + $0x2a] sm:$0xff]
        %v7802 = vld [vmem:[#allocation2 + $0x32] sm:$0xff]
        %v7803 = vld [vmem:[#allocation2 + $0x3a] sm:$0xff]
        %v7804 = vld [vmem:[#allocation2 + $0x42] sm:$0xff]
        %v7805 = vld [vmem:[#allocation2 + $0x4a] sm:$0xff]
        %v7806 = vld [vmem:[#allocation2 + $0x52] sm:$0xff]
        %v7807 = vld [vmem:[#allocation2 + $0x5a] sm:$0xff]
        %v7808 = vld [vmem:[#allocation2 + $0x62] sm:$0xff]
        %v7809 = vld [vmem:[#allocation2 + $0x6a] sm:$0xff]
        %v7810 = vld [vmem:[#allocation2 + $0x72] sm:$0xff]
        %v7811 = vld [vmem:[#allocation2 + $0x7a] sm:$0xff]
        %v7812 = vld [vmem:[#allocation2 + $0x82] sm:$0xff]
        %v7813 = vld [vmem:[#allocation2 + $0x8a] sm:$0xff]
        %v7814 = vld [vmem:[#allocation2 + $0x92] sm:$0xff]
        %v7815 = vld [vmem:[#allocation2 + $0x9a] sm:$0xff]
        %v7816 = vld [vmem:[#allocation2 + $0xa2] sm:$0xff]
        %v7817 = vld [vmem:[#allocation2 + $0xaa] sm:$0xff]
        %v7818 = vld [vmem:[#allocation2 + $0xb2] sm:$0xff]
        %v7819 = vld [vmem:[#allocation2 + $0xba] sm:$0xff]
        %v7820 = vld [vmem:[#allocation2 + $0xc2] sm:$0xff]
        %v7821 = vld [vmem:[#allocation2 + $0xca] sm:$0xff]
        %v7822 = vld [vmem:[#allocation2 + $0xd2] sm:$0xff]
        %v7823 = vld [vmem:[#allocation2 + $0xda] sm:$0xff]
        %v7824 = vld [vmem:[#allocation2 + $0xe2] sm:$0xff]
        %v7825 = vld [vmem:[#allocation2 + $0xea] sm:$0xff]
        %v7826 = vld [vmem:[#allocation2 + $0xf2] sm:$0xff]
        %v7827 = vld [vmem:[#allocation2 + $0xfa] sm:$0xff]
        %v7828 = vld [vmem:[#allocation2 + $0x102] sm:$0xff]
        %v7829 = vld [vmem:[#allocation2 + $0x10a] sm:$0xff]
        %v7830 = vld [vmem:[#allocation2 + $0x112] sm:$0xff]
        %v7831 = vld [vmem:[#allocation2 + $0x11a] sm:$0xff]
        %v7832 = vld [vmem:[#allocation2 + $0x122] sm:$0xff]
        %v7833 = vld [vmem:[#allocation2 + $0x12a] sm:$0xff]
        %v7834 = vld [vmem:[#allocation2 + $0x132] sm:$0xff]
        %v7835 = vld [vmem:[#allocation2 + $0x13a] sm:$0xff]
        %v7836 = vld [vmem:[#allocation2 + $0x142] sm:$0xff]
        %s7837 = scalar_lea.vmem %s3, 56
        %v7838 = vld [vmem:[%s7837] sm:$0xff]
        %v7840 = vsel %vm4839, %v7801, 0
        %v7843 = vsel %vm4839, %v7802, 0
        %v7846 = vsel %vm4839, %v7803, 0
        %v7849 = vsel %vm4839, %v7804, 0
        %v7852 = vsel %vm4839, %v7805, 0
        %v7855 = vsel %vm4839, %v7806, 0
        %v7858 = vsel %vm4839, %v7807, 0
        %v7861 = vsel %vm4839, %v7808, 0
        %v7864 = vsel %vm4839, %v7809, 0
        %v7867 = vsel %vm4839, %v7810, 0
        %v7870 = vsel %vm4839, %v7811, 0
        %v7873 = vsel %vm4839, %v7812, 0
        %v7876 = vsel %vm4839, %v7813, 0
        %v7879 = vsel %vm4839, %v7814, 0
        %v7882 = vsel %vm4839, %v7815, 0
        %v7885 = vsel %vm4839, %v7816, 0
        %v7888 = vsel %vm4839, %v7817, 0
        %v7891 = vsel %vm4839, %v7818, 0
        %v7894 = vsel %vm4839, %v7819, 0
        %v7897 = vsel %vm4839, %v7820, 0
        %v7900 = vsel %vm4839, %v7821, 0
        %v7903 = vsel %vm4839, %v7822, 0
        %v7906 = vsel %vm4839, %v7823, 0
        %v7909 = vsel %vm4839, %v7824, 0
        %v7912 = vsel %vm4839, %v7825, 0
        %v7915 = vsel %vm4839, %v7826, 0
        %v7918 = vsel %vm4839, %v7827, 0
        %v7921 = vsel %vm4839, %v7828, 0
        %v7924 = vsel %vm4839, %v7829, 0
        %v7927 = vsel %vm4839, %v7830, 0
        %v7930 = vsel %vm4839, %v7831, 0
        %v7933 = vsel %vm4839, %v7832, 0
        %v7936 = vsel %vm4839, %v7833, 0
        %v7939 = vsel %vm4839, %v7834, 0
        %v7942 = vsel %vm4839, %v7835, 0
        %v7945 = vsel %vm4839, %v7836, 0
        %7947 = vmatprep.subr.mxu0 0.0
        %7948 = vmatpush1.msra.mxu0 %v7838
        %7949 = vmatprep.subr.mxu0 0.0
        %7950 = vmatpush1.msra.mxu0 0.0
        %7951 = vmatprep.subr.mxu0 0.0
        %7952 = vmatpush1.msra.mxu0 0.0
        %7953 = vmatprep.subr.mxu0 0.0
        %7954 = vmatpush1.msra.mxu0 0.0
        %7955 = vmatprep.subr.mxu0 0.0
        %7956 = vmatpush1.msra.mxu0 0.0
        %7957 = vmatprep.subr.mxu0 0.0
        %7958 = vmatpush1.msra.mxu0 0.0
        %7959 = vmatprep.subr.mxu0 0.0
        %7960 = vmatpush1.msra.mxu0 0.0
        %7961 = vmatprep.subr.mxu0 0.0
        %7962 = vmatpush1.msra.mxu0 0.0
        %7963 = vmatprep.subr.mxu0 0.0
        %7964 = vmatpush1.msra.mxu0 0.0
        %7965 = vmatprep.subr.mxu0 0.0
        %7966 = vmatpush1.msra.mxu0 0.0
        %7967 = vmatprep.subr.mxu0 0.0
        %7968 = vmatpush1.msra.mxu0 0.0
        %7969 = vmatprep.subr.mxu0 0.0
        %7970 = vmatpush1.msra.mxu0 0.0
        %7971 = vmatprep.subr.mxu0 0.0
        %7972 = vmatpush1.msra.mxu0 0.0
        %7973 = vmatprep.subr.mxu0 0.0
        %7974 = vmatpush1.msra.mxu0 0.0
        %7975 = vmatprep.subr.mxu0 0.0
        %7976 = vmatpush1.msra.mxu0 0.0
        %7977 = vmatprep.subr.mxu0 0.0
        %7978 = vmatpush1.msra.mxu0 0.0
        %7979 = vmatprep.subr.mxu0 0.0
        %7980 = vmatpush1.msra.mxu0 0.0
        %7981 = vmatprep.subr.mxu0 0.0
        %7982 = vmatpush1.msra.mxu0 0.0
        %7983 = vmatprep.subr.mxu0 0.0
        %7984 = vmatpush1.msra.mxu0 0.0
        %7985 = vmatprep.subr.mxu0 0.0
        %7986 = vmatpush1.msra.mxu0 0.0
        %7987 = vmatprep.subr.mxu0 0.0
        %7988 = vmatpush1.msra.mxu0 0.0
        %7989 = vmatprep.subr.mxu0 0.0
        %7990 = vmatpush1.msra.mxu0 0.0
        %7991 = vmatprep.subr.mxu0 0.0
        %7992 = vmatpush1.msra.mxu0 0.0
        %7993 = vmatprep.subr.mxu0 0.0
        %7994 = vmatpush1.msra.mxu0 0.0
        %7995 = vmatprep.subr.mxu0 0.0
        %7996 = vmatpush1.msra.mxu0 0.0
        %7997 = vmatprep.subr.mxu0 0.0
        %7998 = vmatpush1.msra.mxu0 0.0
        %7999 = vmatprep.subr.mxu0 0.0
        %8000 = vmatpush1.msra.mxu0 0.0
        %8001 = vmatprep.subr.mxu0 0.0
        %8002 = vmatpush1.msra.mxu0 0.0
        %8003 = vmatprep.subr.mxu0 0.0
        %8004 = vmatpush1.msra.mxu0 0.0
        %8005 = vmatprep.subr.mxu0 0.0
        %8006 = vmatpush1.msra.mxu0 0.0
        %8007 = vmatprep.subr.mxu0 0.0
        %8008 = vmatpush1.msra.mxu0 0.0
        %8009 = vmatprep.subr.mxu0 0.0
        %8010 = vmatpush1.msra.mxu0 0.0
        %8011 = vmatprep.mubr.f32.mxu0 0.0
        %8012 = vmatmul.mubr.f32.gmra.mrb[0].mxu0 %v7840
        %v8013 = vpop.f32.mrb[0].mxu0
        %v8014 = vadd.f32 0.0, %v8013
        %v8015 = vpop.f32.mrb[0].mxu0
        %8016 = vmatprep.mubr.f32.mxu0 0.0
        %8017 = vmatmul.mubr.f32.gmra.mrb[0].mxu0 %v7843
        %v8018 = vpop.f32.mrb[0].mxu0
        %v8019 = vadd.f32 0.0, %v8018
        %v8020 = vpop.f32.mrb[0].mxu0
        %8021 = vmatprep.mubr.f32.mxu0 0.0
        %8022 = vmatmul.mubr.f32.gmra.mrb[0].mxu0 %v7846
        %v8023 = vpop.f32.mrb[0].mxu0
        %v8024 = vadd.f32 0.0, %v8023
        %v8025 = vpop.f32.mrb[0].mxu0
        %8026 = vmatprep.mubr.f32.mxu0 0.0
        %8027 = vmatmul.mubr.f32.gmra.mrb[0].mxu0 %v7849
        %v8028 = vpop.f32.mrb[0].mxu0
        %v8029 = vadd.f32 0.0, %v8028
        %v8030 = vpop.f32.mrb[0].mxu0
        %8031 = vmatprep.mubr.f32.mxu0 0.0
        %8032 = vmatmul.mubr.f32.gmra.mrb[0].mxu0 %v7852
        %v8033 = vpop.f32.mrb[0].mxu0
        %v8034 = vadd.f32 0.0, %v8033
        %v8035 = vpop.f32.mrb[0].mxu0
        %8036 = vmatprep.mubr.f32.mxu0 0.0
        %8037 = vmatmul.mubr.f32.gmra.mrb[0].mxu0 %v7855
        %v8038 = vpop.f32.mrb[0].mxu0
        %v8039 = vadd.f32 0.0, %v8038
        %v8040 = vpop.f32.mrb[0].mxu0
        %8041 = vmatprep.mubr.f32.mxu0 0.0
        %8042 = vmatmul.mubr.f32.gmra.mrb[0].mxu0 %v7858
        %v8043 = vpop.f32.mrb[0].mxu0
        %v8044 = vadd.f32 0.0, %v8043
        %v8045 = vpop.f32.mrb[0].mxu0
        %8046 = vmatprep.mubr.f32.mxu0 0.0
        %8047 = vmatmul.mubr.f32.gmra.mrb[0].mxu0 %v7861
        %v8048 = vpop.f32.mrb[0].mxu0
        %v8049 = vadd.f32 0.0, %v8048
        %v8050 = vpop.f32.mrb[0].mxu0
        %8051 = vmatprep.mubr.f32.mxu0 0.0
        %8052 = vmatmul.mubr.f32.gmra.mrb[0].mxu0 %v7864
        %v8053 = vpop.f32.mrb[0].mxu0
        %v8054 = vadd.f32 0.0, %v8053
        %v8055 = vpop.f32.mrb[0].mxu0
        %8056 = vmatprep.mubr.f32.mxu0 0.0
        %8057 = vmatmul.mubr.f32.gmra.mrb[0].mxu0 %v7867
        %v8058 = vpop.f32.mrb[0].mxu0
        %v8059 = vadd.f32 0.0, %v8058
        %v8060 = vpop.f32.mrb[0].mxu0
        %8061 = vmatprep.mubr.f32.mxu0 0.0
        %8062 = vmatmul.mubr.f32.gmra.mrb[0].mxu0 %v7870
        %v8063 = vpop.f32.mrb[0].mxu0
        %v8064 = vadd.f32 0.0, %v8063
        %v8065 = vpop.f32.mrb[0].mxu0
        %8066 = vmatprep.mubr.f32.mxu0 0.0
        %8067 = vmatmul.mubr.f32.gmra.mrb[0].mxu0 %v7873
        %v8068 = vpop.f32.mrb[0].mxu0
        %v8069 = vadd.f32 0.0, %v8068
        %v8070 = vpop.f32.mrb[0].mxu0
        %8071 = vmatprep.mubr.f32.mxu0 0.0
        %8072 = vmatmul.mubr.f32.gmra.mrb[0].mxu0 %v7876
        %v8073 = vpop.f32.mrb[0].mxu0
        %v8074 = vadd.f32 0.0, %v8073
        %v8075 = vpop.f32.mrb[0].mxu0
        %8076 = vmatprep.mubr.f32.mxu0 0.0
        %8077 = vmatmul.mubr.f32.gmra.mrb[0].mxu0 %v7879
        %v8078 = vpop.f32.mrb[0].mxu0
        %v8079 = vadd.f32 0.0, %v8078
        %v8080 = vpop.f32.mrb[0].mxu0
        %8081 = vmatprep.mubr.f32.mxu0 0.0
        %8082 = vmatmul.mubr.f32.gmra.mrb[0].mxu0 %v7882
        %v8083 = vpop.f32.mrb[0].mxu0
        %v8084 = vadd.f32 0.0, %v8083
        %v8085 = vpop.f32.mrb[0].mxu0
        %8086 = vmatprep.mubr.f32.mxu0 0.0
        %8087 = vmatmul.mubr.f32.gmra.mrb[0].mxu0 %v7885
        %v8088 = vpop.f32.mrb[0].mxu0
        %v8089 = vadd.f32 0.0, %v8088
        %v8090 = vpop.f32.mrb[0].mxu0
        %8091 = vmatprep.mubr.f32.mxu0 0.0
        %8092 = vmatmul.mubr.f32.gmra.mrb[0].mxu0 %v7888
        %v8093 = vpop.f32.mrb[0].mxu0
        %v8094 = vadd.f32 0.0, %v8093
        %v8095 = vpop.f32.mrb[0].mxu0
        %8096 = vmatprep.mubr.f32.mxu0 0.0
        %8097 = vmatmul.mubr.f32.gmra.mrb[0].mxu0 %v7891
        %v8098 = vpop.f32.mrb[0].mxu0
        %v8099 = vadd.f32 0.0, %v8098
        %v8100 = vpop.f32.mrb[0].mxu0
        %8101 = vmatprep.mubr.f32.mxu0 0.0
        %8102 = vmatmul.mubr.f32.gmra.mrb[0].mxu0 %v7894
        %v8103 = vpop.f32.mrb[0].mxu0
        %v8104 = vadd.f32 0.0, %v8103
        %v8105 = vpop.f32.mrb[0].mxu0
        %8106 = vmatprep.mubr.f32.mxu0 0.0
        %8107 = vmatmul.mubr.f32.gmra.mrb[0].mxu0 %v7897
        %v8108 = vpop.f32.mrb[0].mxu0
        %v8109 = vadd.f32 0.0, %v8108
        %v8110 = vpop.f32.mrb[0].mxu0
        %8111 = vmatprep.mubr.f32.mxu0 0.0
        %8112 = vmatmul.mubr.f32.gmra.mrb[0].mxu0 %v7900
        %v8113 = vpop.f32.mrb[0].mxu0
        %v8114 = vadd.f32 0.0, %v8113
        %v8115 = vpop.f32.mrb[0].mxu0
        %8116 = vmatprep.mubr.f32.mxu0 0.0
        %8117 = vmatmul.mubr.f32.gmra.mrb[0].mxu0 %v7903
        %v8118 = vpop.f32.mrb[0].mxu0
        %v8119 = vadd.f32 0.0, %v8118
        %v8120 = vpop.f32.mrb[0].mxu0
        %8121 = vmatprep.mubr.f32.mxu0 0.0
        %8122 = vmatmul.mubr.f32.gmra.mrb[0].mxu0 %v7906
        %v8123 = vpop.f32.mrb[0].mxu0
        %v8124 = vadd.f32 0.0, %v8123
        %v8125 = vpop.f32.mrb[0].mxu0
        %8126 = vmatprep.mubr.f32.mxu0 0.0
        %8127 = vmatmul.mubr.f32.gmra.mrb[0].mxu0 %v7909
        %v8128 = vpop.f32.mrb[0].mxu0
        %v8129 = vadd.f32 0.0, %v8128
        %v8130 = vpop.f32.mrb[0].mxu0
        %8131 = vmatprep.mubr.f32.mxu0 0.0
        %8132 = vmatmul.mubr.f32.gmra.mrb[0].mxu0 %v7912
        %v8133 = vpop.f32.mrb[0].mxu0
        %v8134 = vadd.f32 0.0, %v8133
        %v8135 = vpop.f32.mrb[0].mxu0
        %8136 = vmatprep.mubr.f32.mxu0 0.0
        %8137 = vmatmul.mubr.f32.gmra.mrb[0].mxu0 %v7915
        %v8138 = vpop.f32.mrb[0].mxu0
        %v8139 = vadd.f32 0.0, %v8138
        %v8140 = vpop.f32.mrb[0].mxu0
        %8141 = vmatprep.mubr.f32.mxu0 0.0
        %8142 = vmatmul.mubr.f32.gmra.mrb[0].mxu0 %v7918
        %v8143 = vpop.f32.mrb[0].mxu0
        %v8144 = vadd.f32 0.0, %v8143
        %v8145 = vpop.f32.mrb[0].mxu0
        %8146 = vmatprep.mubr.f32.mxu0 0.0
        %8147 = vmatmul.mubr.f32.gmra.mrb[0].mxu0 %v7921
        %v8148 = vpop.f32.mrb[0].mxu0
        %v8149 = vadd.f32 0.0, %v8148
        %v8150 = vpop.f32.mrb[0].mxu0
        %8151 = vmatprep.mubr.f32.mxu0 0.0
        %8152 = vmatmul.mubr.f32.gmra.mrb[0].mxu0 %v7924
        %v8153 = vpop.f32.mrb[0].mxu0
        %v8154 = vadd.f32 0.0, %v8153
        %v8155 = vpop.f32.mrb[0].mxu0
        %8156 = vmatprep.mubr.f32.mxu0 0.0
        %8157 = vmatmul.mubr.f32.gmra.mrb[0].mxu0 %v7927
        %v8158 = vpop.f32.mrb[0].mxu0
        %v8159 = vadd.f32 0.0, %v8158
        %v8160 = vpop.f32.mrb[0].mxu0
        %8161 = vmatprep.mubr.f32.mxu0 0.0
        %8162 = vmatmul.mubr.f32.gmra.mrb[0].mxu0 %v7930
        %v8163 = vpop.f32.mrb[0].mxu0
        %v8164 = vadd.f32 0.0, %v8163
        %v8165 = vpop.f32.mrb[0].mxu0
        %8166 = vmatprep.mubr.f32.mxu0 0.0
        %8167 = vmatmul.mubr.f32.gmra.mrb[0].mxu0 %v7933
        %v8168 = vpop.f32.mrb[0].mxu0
        %v8169 = vadd.f32 0.0, %v8168
        %v8170 = vpop.f32.mrb[0].mxu0
        %8171 = vmatprep.mubr.f32.mxu0 0.0
        %8172 = vmatmul.mubr.f32.gmra.mrb[0].mxu0 %v7936
        %v8173 = vpop.f32.mrb[0].mxu0
        %v8174 = vadd.f32 0.0, %v8173
        %v8175 = vpop.f32.mrb[0].mxu0
        %8176 = vmatprep.mubr.f32.mxu0 0.0
        %8177 = vmatmul.mubr.f32.gmra.mrb[0].mxu0 %v7939
        %v8178 = vpop.f32.mrb[0].mxu0
        %v8179 = vadd.f32 0.0, %v8178
        %v8180 = vpop.f32.mrb[0].mxu0
        %8181 = vmatprep.mubr.f32.mxu0 0.0
        %8182 = vmatmul.mubr.f32.gmra.mrb[0].mxu0 %v7942
        %v8183 = vpop.f32.mrb[0].mxu0
        %v8184 = vadd.f32 0.0, %v8183
        %v8185 = vpop.f32.mrb[0].mxu0
        %8186 = vmatprep.mubr.f32.mxu0 0.0
        %8187 = vmatmul.mubr.f32.gmra.mrb[0].mxu0 %v7945
        %v8188 = vpop.f32.mrb[0].mxu0
        %v8189 = vadd.f32 0.0, %v8188
        %v8190 = vpop.f32.mrb[0].mxu0
        %8191 = vdwg.mxu0
        %v8192 = vadd.f32 %v7765, %v8014
        %v8193 = vadd.f32 %v7766, %v8019
        %v8194 = vadd.f32 %v7767, %v8024
        %v8195 = vadd.f32 %v7768, %v8029
        %v8196 = vadd.f32 %v7769, %v8034
        %v8197 = vadd.f32 %v7770, %v8039
        %v8198 = vadd.f32 %v7771, %v8044
        %v8199 = vadd.f32 %v7772, %v8049
        %v8200 = vadd.f32 %v7773, %v8054
        %v8201 = vadd.f32 %v7774, %v8059
        %v8202 = vadd.f32 %v7775, %v8064
        %v8203 = vadd.f32 %v7776, %v8069
        %v8204 = vadd.f32 %v7777, %v8074
        %v8205 = vadd.f32 %v7778, %v8079
        %v8206 = vadd.f32 %v7779, %v8084
        %v8207 = vadd.f32 %v7780, %v8089
        %v8208 = vadd.f32 %v7781, %v8094
        %v8209 = vadd.f32 %v7782, %v8099
        %v8210 = vadd.f32 %v7783, %v8104
        %v8211 = vadd.f32 %v7784, %v8109
        %v8212 = vadd.f32 %v7785, %v8114
        %v8213 = vadd.f32 %v7786, %v8119
        %v8214 = vadd.f32 %v7787, %v8124
        %v8215 = vadd.f32 %v7788, %v8129
        %v8216 = vadd.f32 %v7789, %v8134
        %v8217 = vadd.f32 %v7790, %v8139
        %v8218 = vadd.f32 %v7791, %v8144
        %v8219 = vadd.f32 %v7792, %v8149
        %v8220 = vadd.f32 %v7793, %v8154
        %v8221 = vadd.f32 %v7794, %v8159
        %v8222 = vadd.f32 %v7795, %v8164
        %v8223 = vadd.f32 %v7796, %v8169
        %v8224 = vadd.f32 %v7797, %v8174
        %v8225 = vadd.f32 %v7798, %v8179
        %v8226 = vadd.f32 %v7799, %v8184
        %v8227 = vadd.f32 %v7800, %v8189
        %v8228 = vld [vmem:[#allocation2 + $0x2b] sm:$0xff]
        %v8229 = vld [vmem:[#allocation2 + $0x33] sm:$0xff]
        %v8230 = vld [vmem:[#allocation2 + $0x3b] sm:$0xff]
        %v8231 = vld [vmem:[#allocation2 + $0x43] sm:$0xff]
        %v8232 = vld [vmem:[#allocation2 + $0x4b] sm:$0xff]
        %v8233 = vld [vmem:[#allocation2 + $0x53] sm:$0xff]
        %v8234 = vld [vmem:[#allocation2 + $0x5b] sm:$0xff]
        %v8235 = vld [vmem:[#allocation2 + $0x63] sm:$0xff]
        %v8236 = vld [vmem:[#allocation2 + $0x6b] sm:$0xff]
        %v8237 = vld [vmem:[#allocation2 + $0x73] sm:$0xff]
        %v8238 = vld [vmem:[#allocation2 + $0x7b] sm:$0xff]
        %v8239 = vld [vmem:[#allocation2 + $0x83] sm:$0xff]
        %v8240 = vld [vmem:[#allocation2 + $0x8b] sm:$0xff]
        %v8241 = vld [vmem:[#allocation2 + $0x93] sm:$0xff]
        %v8242 = vld [vmem:[#allocation2 + $0x9b] sm:$0xff]
        %v8243 = vld [vmem:[#allocation2 + $0xa3] sm:$0xff]
        %v8244 = vld [vmem:[#allocation2 + $0xab] sm:$0xff]
        %v8245 = vld [vmem:[#allocation2 + $0xb3] sm:$0xff]
        %v8246 = vld [vmem:[#allocation2 + $0xbb] sm:$0xff]
        %v8247 = vld [vmem:[#allocation2 + $0xc3] sm:$0xff]
        %v8248 = vld [vmem:[#allocation2 + $0xcb] sm:$0xff]
        %v8249 = vld [vmem:[#allocation2 + $0xd3] sm:$0xff]
        %v8250 = vld [vmem:[#allocation2 + $0xdb] sm:$0xff]
        %v8251 = vld [vmem:[#allocation2 + $0xe3] sm:$0xff]
        %v8252 = vld [vmem:[#allocation2 + $0xeb] sm:$0xff]
        %v8253 = vld [vmem:[#allocation2 + $0xf3] sm:$0xff]
        %v8254 = vld [vmem:[#allocation2 + $0xfb] sm:$0xff]
        %v8255 = vld [vmem:[#allocation2 + $0x103] sm:$0xff]
        %v8256 = vld [vmem:[#allocation2 + $0x10b] sm:$0xff]
        %v8257 = vld [vmem:[#allocation2 + $0x113] sm:$0xff]
        %v8258 = vld [vmem:[#allocation2 + $0x11b] sm:$0xff]
        %v8259 = vld [vmem:[#allocation2 + $0x123] sm:$0xff]
        %v8260 = vld [vmem:[#allocation2 + $0x12b] sm:$0xff]
        %v8261 = vld [vmem:[#allocation2 + $0x133] sm:$0xff]
        %v8262 = vld [vmem:[#allocation2 + $0x13b] sm:$0xff]
        %v8263 = vld [vmem:[#allocation2 + $0x143] sm:$0xff]
        %s8264 = scalar_lea.vmem %s3, 64
        %v8265 = vld [vmem:[%s8264] sm:$0xff]
        %v8267 = vsel %vm4839, %v8228, 0
        %v8270 = vsel %vm4839, %v8229, 0
        %v8273 = vsel %vm4839, %v8230, 0
        %v8276 = vsel %vm4839, %v8231, 0
        %v8279 = vsel %vm4839, %v8232, 0
        %v8282 = vsel %vm4839, %v8233, 0
        %v8285 = vsel %vm4839, %v8234, 0
        %v8288 = vsel %vm4839, %v8235, 0
        %v8291 = vsel %vm4839, %v8236, 0
        %v8294 = vsel %vm4839, %v8237, 0
        %v8297 = vsel %vm4839, %v8238, 0
        %v8300 = vsel %vm4839, %v8239, 0
        %v8303 = vsel %vm4839, %v8240, 0
        %v8306 = vsel %vm4839, %v8241, 0
        %v8309 = vsel %vm4839, %v8242, 0
        %v8312 = vsel %vm4839, %v8243, 0
        %v8315 = vsel %vm4839, %v8244, 0
        %v8318 = vsel %vm4839, %v8245, 0
        %v8321 = vsel %vm4839, %v8246, 0
        %v8324 = vsel %vm4839, %v8247, 0
        %v8327 = vsel %vm4839, %v8248, 0
        %v8330 = vsel %vm4839, %v8249, 0
        %v8333 = vsel %vm4839, %v8250, 0
        %v8336 = vsel %vm4839, %v8251, 0
        %v8339 = vsel %vm4839, %v8252, 0
        %v8342 = vsel %vm4839, %v8253, 0
        %v8345 = vsel %vm4839, %v8254, 0
        %v8348 = vsel %vm4839, %v8255, 0
        %v8351 = vsel %vm4839, %v8256, 0
        %v8354 = vsel %vm4839, %v8257, 0
        %v8357 = vsel %vm4839, %v8258, 0
        %v8360 = vsel %vm4839, %v8259, 0
        %v8363 = vsel %vm4839, %v8260, 0
        %v8366 = vsel %vm4839, %v8261, 0
        %v8369 = vsel %vm4839, %v8262, 0
        %v8372 = vsel %vm4839, %v8263, 0
        %8374 = vmatprep.subr.mxu0 0.0
        %8375 = vmatpush1.msra.mxu0 %v8265
        %8376 = vmatprep.subr.mxu0 0.0
        %8377 = vmatpush1.msra.mxu0 0.0
        %8378 = vmatprep.subr.mxu0 0.0
        %8379 = vmatpush1.msra.mxu0 0.0
        %8380 = vmatprep.subr.mxu0 0.0
        %8381 = vmatpush1.msra.mxu0 0.0
        %8382 = vmatprep.subr.mxu0 0.0
        %8383 = vmatpush1.msra.mxu0 0.0
        %8384 = vmatprep.subr.mxu0 0.0
        %8385 = vmatpush1.msra.mxu0 0.0
        %8386 = vmatprep.subr.mxu0 0.0
        %8387 = vmatpush1.msra.mxu0 0.0
        %8388 = vmatprep.subr.mxu0 0.0
        %8389 = vmatpush1.msra.mxu0 0.0
        %8390 = vmatprep.subr.mxu0 0.0
        %8391 = vmatpush1.msra.mxu0 0.0
        %8392 = vmatprep.subr.mxu0 0.0
        %8393 = vmatpush1.msra.mxu0 0.0
        %8394 = vmatprep.subr.mxu0 0.0
        %8395 = vmatpush1.msra.mxu0 0.0
        %8396 = vmatprep.subr.mxu0 0.0
        %8397 = vmatpush1.msra.mxu0 0.0
        %8398 = vmatprep.subr.mxu0 0.0
        %8399 = vmatpush1.msra.mxu0 0.0
        %8400 = vmatprep.subr.mxu0 0.0
        %8401 = vmatpush1.msra.mxu0 0.0
        %8402 = vmatprep.subr.mxu0 0.0
        %8403 = vmatpush1.msra.mxu0 0.0
        %8404 = vmatprep.subr.mxu0 0.0
        %8405 = vmatpush1.msra.mxu0 0.0
        %8406 = vmatprep.subr.mxu0 0.0
        %8407 = vmatpush1.msra.mxu0 0.0
        %8408 = vmatprep.subr.mxu0 0.0
        %8409 = vmatpush1.msra.mxu0 0.0
        %8410 = vmatprep.subr.mxu0 0.0
        %8411 = vmatpush1.msra.mxu0 0.0
        %8412 = vmatprep.subr.mxu0 0.0
        %8413 = vmatpush1.msra.mxu0 0.0
        %8414 = vmatprep.subr.mxu0 0.0
        %8415 = vmatpush1.msra.mxu0 0.0
        %8416 = vmatprep.subr.mxu0 0.0
        %8417 = vmatpush1.msra.mxu0 0.0
        %8418 = vmatprep.subr.mxu0 0.0
        %8419 = vmatpush1.msra.mxu0 0.0
        %8420 = vmatprep.subr.mxu0 0.0
        %8421 = vmatpush1.msra.mxu0 0.0
        %8422 = vmatprep.subr.mxu0 0.0
        %8423 = vmatpush1.msra.mxu0 0.0
        %8424 = vmatprep.subr.mxu0 0.0
        %8425 = vmatpush1.msra.mxu0 0.0
        %8426 = vmatprep.subr.mxu0 0.0
        %8427 = vmatpush1.msra.mxu0 0.0
        %8428 = vmatprep.subr.mxu0 0.0
        %8429 = vmatpush1.msra.mxu0 0.0
        %8430 = vmatprep.subr.mxu0 0.0
        %8431 = vmatpush1.msra.mxu0 0.0
        %8432 = vmatprep.subr.mxu0 0.0
        %8433 = vmatpush1.msra.mxu0 0.0
        %8434 = vmatprep.subr.mxu0 0.0
        %8435 = vmatpush1.msra.mxu0 0.0
        %8436 = vmatprep.subr.mxu0 0.0
        %8437 = vmatpush1.msra.mxu0 0.0
        %8438 = vmatprep.mubr.f32.mxu0 0.0
        %8439 = vmatmul.mubr.f32.gmra.mrb[0].mxu0 %v8267
        %v8440 = vpop.f32.mrb[0].mxu0
        %v8441 = vadd.f32 0.0, %v8440
        %v8442 = vpop.f32.mrb[0].mxu0
        %8443 = vmatprep.mubr.f32.mxu0 0.0
        %8444 = vmatmul.mubr.f32.gmra.mrb[0].mxu0 %v8270
        %v8445 = vpop.f32.mrb[0].mxu0
        %v8446 = vadd.f32 0.0, %v8445
        %v8447 = vpop.f32.mrb[0].mxu0
        %8448 = vmatprep.mubr.f32.mxu0 0.0
        %8449 = vmatmul.mubr.f32.gmra.mrb[0].mxu0 %v8273
        %v8450 = vpop.f32.mrb[0].mxu0
        %v8451 = vadd.f32 0.0, %v8450
        %v8452 = vpop.f32.mrb[0].mxu0
        %8453 = vmatprep.mubr.f32.mxu0 0.0
        %8454 = vmatmul.mubr.f32.gmra.mrb[0].mxu0 %v8276
        %v8455 = vpop.f32.mrb[0].mxu0
        %v8456 = vadd.f32 0.0, %v8455
        %v8457 = vpop.f32.mrb[0].mxu0
        %8458 = vmatprep.mubr.f32.mxu0 0.0
        %8459 = vmatmul.mubr.f32.gmra.mrb[0].mxu0 %v8279
        %v8460 = vpop.f32.mrb[0].mxu0
        %v8461 = vadd.f32 0.0, %v8460
        %v8462 = vpop.f32.mrb[0].mxu0
        %8463 = vmatprep.mubr.f32.mxu0 0.0
        %8464 = vmatmul.mubr.f32.gmra.mrb[0].mxu0 %v8282
        %v8465 = vpop.f32.mrb[0].mxu0
        %v8466 = vadd.f32 0.0, %v8465
        %v8467 = vpop.f32.mrb[0].mxu0
        %8468 = vmatprep.mubr.f32.mxu0 0.0
        %8469 = vmatmul.mubr.f32.gmra.mrb[0].mxu0 %v8285
        %v8470 = vpop.f32.mrb[0].mxu0
        %v8471 = vadd.f32 0.0, %v8470
        %v8472 = vpop.f32.mrb[0].mxu0
        %8473 = vmatprep.mubr.f32.mxu0 0.0
        %8474 = vmatmul.mubr.f32.gmra.mrb[0].mxu0 %v8288
        %v8475 = vpop.f32.mrb[0].mxu0
        %v8476 = vadd.f32 0.0, %v8475
        %v8477 = vpop.f32.mrb[0].mxu0
        %8478 = vmatprep.mubr.f32.mxu0 0.0
        %8479 = vmatmul.mubr.f32.gmra.mrb[0].mxu0 %v8291
        %v8480 = vpop.f32.mrb[0].mxu0
        %v8481 = vadd.f32 0.0, %v8480
        %v8482 = vpop.f32.mrb[0].mxu0
        %8483 = vmatprep.mubr.f32.mxu0 0.0
        %8484 = vmatmul.mubr.f32.gmra.mrb[0].mxu0 %v8294
        %v8485 = vpop.f32.mrb[0].mxu0
        %v8486 = vadd.f32 0.0, %v8485
        %v8487 = vpop.f32.mrb[0].mxu0
        %8488 = vmatprep.mubr.f32.mxu0 0.0
        %8489 = vmatmul.mubr.f32.gmra.mrb[0].mxu0 %v8297
        %v8490 = vpop.f32.mrb[0].mxu0
        %v8491 = vadd.f32 0.0, %v8490
        %v8492 = vpop.f32.mrb[0].mxu0
        %8493 = vmatprep.mubr.f32.mxu0 0.0
        %8494 = vmatmul.mubr.f32.gmra.mrb[0].mxu0 %v8300
        %v8495 = vpop.f32.mrb[0].mxu0
        %v8496 = vadd.f32 0.0, %v8495
        %v8497 = vpop.f32.mrb[0].mxu0
        %8498 = vmatprep.mubr.f32.mxu0 0.0
        %8499 = vmatmul.mubr.f32.gmra.mrb[0].mxu0 %v8303
        %v8500 = vpop.f32.mrb[0].mxu0
        %v8501 = vadd.f32 0.0, %v8500
        %v8502 = vpop.f32.mrb[0].mxu0
        %8503 = vmatprep.mubr.f32.mxu0 0.0
        %8504 = vmatmul.mubr.f32.gmra.mrb[0].mxu0 %v8306
        %v8505 = vpop.f32.mrb[0].mxu0
        %v8506 = vadd.f32 0.0, %v8505
        %v8507 = vpop.f32.mrb[0].mxu0
        %8508 = vmatprep.mubr.f32.mxu0 0.0
        %8509 = vmatmul.mubr.f32.gmra.mrb[0].mxu0 %v8309
        %v8510 = vpop.f32.mrb[0].mxu0
        %v8511 = vadd.f32 0.0, %v8510
        %v8512 = vpop.f32.mrb[0].mxu0
        %8513 = vmatprep.mubr.f32.mxu0 0.0
        %8514 = vmatmul.mubr.f32.gmra.mrb[0].mxu0 %v8312
        %v8515 = vpop.f32.mrb[0].mxu0
        %v8516 = vadd.f32 0.0, %v8515
        %v8517 = vpop.f32.mrb[0].mxu0
        %8518 = vmatprep.mubr.f32.mxu0 0.0
        %8519 = vmatmul.mubr.f32.gmra.mrb[0].mxu0 %v8315
        %v8520 = vpop.f32.mrb[0].mxu0
        %v8521 = vadd.f32 0.0, %v8520
        %v8522 = vpop.f32.mrb[0].mxu0
        %8523 = vmatprep.mubr.f32.mxu0 0.0
        %8524 = vmatmul.mubr.f32.gmra.mrb[0].mxu0 %v8318
        %v8525 = vpop.f32.mrb[0].mxu0
        %v8526 = vadd.f32 0.0, %v8525
        %v8527 = vpop.f32.mrb[0].mxu0
        %8528 = vmatprep.mubr.f32.mxu0 0.0
        %8529 = vmatmul.mubr.f32.gmra.mrb[0].mxu0 %v8321
        %v8530 = vpop.f32.mrb[0].mxu0
        %v8531 = vadd.f32 0.0, %v8530
        %v8532 = vpop.f32.mrb[0].mxu0
        %8533 = vmatprep.mubr.f32.mxu0 0.0
        %8534 = vmatmul.mubr.f32.gmra.mrb[0].mxu0 %v8324
        %v8535 = vpop.f32.mrb[0].mxu0
        %v8536 = vadd.f32 0.0, %v8535
        %v8537 = vpop.f32.mrb[0].mxu0
        %8538 = vmatprep.mubr.f32.mxu0 0.0
        %8539 = vmatmul.mubr.f32.gmra.mrb[0].mxu0 %v8327
        %v8540 = vpop.f32.mrb[0].mxu0
        %v8541 = vadd.f32 0.0, %v8540
        %v8542 = vpop.f32.mrb[0].mxu0
        %8543 = vmatprep.mubr.f32.mxu0 0.0
        %8544 = vmatmul.mubr.f32.gmra.mrb[0].mxu0 %v8330
        %v8545 = vpop.f32.mrb[0].mxu0
        %v8546 = vadd.f32 0.0, %v8545
        %v8547 = vpop.f32.mrb[0].mxu0
        %8548 = vmatprep.mubr.f32.mxu0 0.0
        %8549 = vmatmul.mubr.f32.gmra.mrb[0].mxu0 %v8333
        %v8550 = vpop.f32.mrb[0].mxu0
        %v8551 = vadd.f32 0.0, %v8550
        %v8552 = vpop.f32.mrb[0].mxu0
        %8553 = vmatprep.mubr.f32.mxu0 0.0
        %8554 = vmatmul.mubr.f32.gmra.mrb[0].mxu0 %v8336
        %v8555 = vpop.f32.mrb[0].mxu0
        %v8556 = vadd.f32 0.0, %v8555
        %v8557 = vpop.f32.mrb[0].mxu0
        %8558 = vmatprep.mubr.f32.mxu0 0.0
        %8559 = vmatmul.mubr.f32.gmra.mrb[0].mxu0 %v8339
        %v8560 = vpop.f32.mrb[0].mxu0
        %v8561 = vadd.f32 0.0, %v8560
        %v8562 = vpop.f32.mrb[0].mxu0
        %8563 = vmatprep.mubr.f32.mxu0 0.0
        %8564 = vmatmul.mubr.f32.gmra.mrb[0].mxu0 %v8342
        %v8565 = vpop.f32.mrb[0].mxu0
        %v8566 = vadd.f32 0.0, %v8565
        %v8567 = vpop.f32.mrb[0].mxu0
        %8568 = vmatprep.mubr.f32.mxu0 0.0
        %8569 = vmatmul.mubr.f32.gmra.mrb[0].mxu0 %v8345
        %v8570 = vpop.f32.mrb[0].mxu0
        %v8571 = vadd.f32 0.0, %v8570
        %v8572 = vpop.f32.mrb[0].mxu0
        %8573 = vmatprep.mubr.f32.mxu0 0.0
        %8574 = vmatmul.mubr.f32.gmra.mrb[0].mxu0 %v8348
        %v8575 = vpop.f32.mrb[0].mxu0
        %v8576 = vadd.f32 0.0, %v8575
        %v8577 = vpop.f32.mrb[0].mxu0
        %8578 = vmatprep.mubr.f32.mxu0 0.0
        %8579 = vmatmul.mubr.f32.gmra.mrb[0].mxu0 %v8351
        %v8580 = vpop.f32.mrb[0].mxu0
        %v8581 = vadd.f32 0.0, %v8580
        %v8582 = vpop.f32.mrb[0].mxu0
        %8583 = vmatprep.mubr.f32.mxu0 0.0
        %8584 = vmatmul.mubr.f32.gmra.mrb[0].mxu0 %v8354
        %v8585 = vpop.f32.mrb[0].mxu0
        %v8586 = vadd.f32 0.0, %v8585
        %v8587 = vpop.f32.mrb[0].mxu0
        %8588 = vmatprep.mubr.f32.mxu0 0.0
        %8589 = vmatmul.mubr.f32.gmra.mrb[0].mxu0 %v8357
        %v8590 = vpop.f32.mrb[0].mxu0
        %v8591 = vadd.f32 0.0, %v8590
        %v8592 = vpop.f32.mrb[0].mxu0
        %8593 = vmatprep.mubr.f32.mxu0 0.0
        %8594 = vmatmul.mubr.f32.gmra.mrb[0].mxu0 %v8360
        %v8595 = vpop.f32.mrb[0].mxu0
        %v8596 = vadd.f32 0.0, %v8595
        %v8597 = vpop.f32.mrb[0].mxu0
        %8598 = vmatprep.mubr.f32.mxu0 0.0
        %8599 = vmatmul.mubr.f32.gmra.mrb[0].mxu0 %v8363
        %v8600 = vpop.f32.mrb[0].mxu0
        %v8601 = vadd.f32 0.0, %v8600
        %v8602 = vpop.f32.mrb[0].mxu0
        %8603 = vmatprep.mubr.f32.mxu0 0.0
        %8604 = vmatmul.mubr.f32.gmra.mrb[0].mxu0 %v8366
        %v8605 = vpop.f32.mrb[0].mxu0
        %v8606 = vadd.f32 0.0, %v8605
        %v8607 = vpop.f32.mrb[0].mxu0
        %8608 = vmatprep.mubr.f32.mxu0 0.0
        %8609 = vmatmul.mubr.f32.gmra.mrb[0].mxu0 %v8369
        %v8610 = vpop.f32.mrb[0].mxu0
        %v8611 = vadd.f32 0.0, %v8610
        %v8612 = vpop.f32.mrb[0].mxu0
        %8613 = vmatprep.mubr.f32.mxu0 0.0
        %8614 = vmatmul.mubr.f32.gmra.mrb[0].mxu0 %v8372
        %v8615 = vpop.f32.mrb[0].mxu0
        %v8616 = vadd.f32 0.0, %v8615
        %v8617 = vpop.f32.mrb[0].mxu0
        %8618 = vdwg.mxu0
        %v8619 = vadd.f32 %v8192, %v8441
        %v8620 = vadd.f32 %v8193, %v8446
        %v8621 = vadd.f32 %v8194, %v8451
        %v8622 = vadd.f32 %v8195, %v8456
        %v8623 = vadd.f32 %v8196, %v8461
        %v8624 = vadd.f32 %v8197, %v8466
        %v8625 = vadd.f32 %v8198, %v8471
        %v8626 = vadd.f32 %v8199, %v8476
        %v8627 = vadd.f32 %v8200, %v8481
        %v8628 = vadd.f32 %v8201, %v8486
        %v8629 = vadd.f32 %v8202, %v8491
        %v8630 = vadd.f32 %v8203, %v8496
        %v8631 = vadd.f32 %v8204, %v8501
        %v8632 = vadd.f32 %v8205, %v8506
        %v8633 = vadd.f32 %v8206, %v8511
        %v8634 = vadd.f32 %v8207, %v8516
        %v8635 = vadd.f32 %v8208, %v8521
        %v8636 = vadd.f32 %v8209, %v8526
        %v8637 = vadd.f32 %v8210, %v8531
        %v8638 = vadd.f32 %v8211, %v8536
        %v8639 = vadd.f32 %v8212, %v8541
        %v8640 = vadd.f32 %v8213, %v8546
        %v8641 = vadd.f32 %v8214, %v8551
        %v8642 = vadd.f32 %v8215, %v8556
        %v8643 = vadd.f32 %v8216, %v8561
        %v8644 = vadd.f32 %v8217, %v8566
        %v8645 = vadd.f32 %v8218, %v8571
        %v8646 = vadd.f32 %v8219, %v8576
        %v8647 = vadd.f32 %v8220, %v8581
        %v8648 = vadd.f32 %v8221, %v8586
        %v8649 = vadd.f32 %v8222, %v8591
        %v8650 = vadd.f32 %v8223, %v8596
        %v8651 = vadd.f32 %v8224, %v8601
        %v8652 = vadd.f32 %v8225, %v8606
        %v8653 = vadd.f32 %v8226, %v8611
        %v8654 = vadd.f32 %v8227, %v8616
        %v8655 = vld [vmem:[%s4] sm:$0x1]
        %v8657 = vlaneseq
        %v8658 = vshrl.u32 %v8657, 7
        %v8659 = vsub.s32 0, %v8658
        %v8660 = vrot.slane %v8655, %v8659
        %v8662 = vadd.f32 %v8619, %v8660
        %v8663 = vadd.f32 %v8620, %v8660
        %v8664 = vadd.f32 %v8621, %v8660
        %v8665 = vadd.f32 %v8622, %v8660
        %v8666 = vadd.f32 %v8623, %v8660
        %v8667 = vadd.f32 %v8624, %v8660
        %v8668 = vadd.f32 %v8625, %v8660
        %v8669 = vadd.f32 %v8626, %v8660
        %v8670 = vadd.f32 %v8627, %v8660
        %v8671 = vadd.f32 %v8628, %v8660
        %v8672 = vadd.f32 %v8629, %v8660
        %v8673 = vadd.f32 %v8630, %v8660
        %v8674 = vadd.f32 %v8631, %v8660
        %v8675 = vadd.f32 %v8632, %v8660
        %v8676 = vadd.f32 %v8633, %v8660
        %v8677 = vadd.f32 %v8634, %v8660
        %v8678 = vadd.f32 %v8635, %v8660
        %v8679 = vadd.f32 %v8636, %v8660
        %v8680 = vadd.f32 %v8637, %v8660
        %v8681 = vadd.f32 %v8638, %v8660
        %v8682 = vadd.f32 %v8639, %v8660
        %v8683 = vadd.f32 %v8640, %v8660
        %v8684 = vadd.f32 %v8641, %v8660
        %v8685 = vadd.f32 %v8642, %v8660
        %v8686 = vadd.f32 %v8643, %v8660
        %v8687 = vadd.f32 %v8644, %v8660
        %v8688 = vadd.f32 %v8645, %v8660
        %v8689 = vadd.f32 %v8646, %v8660
        %v8690 = vadd.f32 %v8647, %v8660
        %v8691 = vadd.f32 %v8648, %v8660
        %v8692 = vadd.f32 %v8649, %v8660
        %v8693 = vadd.f32 %v8650, %v8660
        %v8694 = vadd.f32 %v8651, %v8660
        %v8695 = vadd.f32 %v8652, %v8660
        %v8696 = vadd.f32 %v8653, %v8660
        %v8697 = vadd.f32 %v8654, %v8660
        %v8698 = vmax.f32 %v8662, 0.0
        %v8699 = vmax.f32 %v8663, 0.0
        %v8700 = vmax.f32 %v8664, 0.0
        %v8701 = vmax.f32 %v8665, 0.0
        %v8702 = vmax.f32 %v8666, 0.0
        %v8703 = vmax.f32 %v8667, 0.0
        %v8704 = vmax.f32 %v8668, 0.0
        %v8705 = vmax.f32 %v8669, 0.0
        %v8706 = vmax.f32 %v8670, 0.0
        %v8707 = vmax.f32 %v8671, 0.0
        %v8708 = vmax.f32 %v8672, 0.0
        %v8709 = vmax.f32 %v8673, 0.0
        %v8710 = vmax.f32 %v8674, 0.0
        %v8711 = vmax.f32 %v8675, 0.0
        %v8712 = vmax.f32 %v8676, 0.0
        %v8713 = vmax.f32 %v8677, 0.0
        %v8714 = vmax.f32 %v8678, 0.0
        %v8715 = vmax.f32 %v8679, 0.0
        %v8716 = vmax.f32 %v8680, 0.0
        %v8717 = vmax.f32 %v8681, 0.0
        %v8718 = vmax.f32 %v8682, 0.0
        %v8719 = vmax.f32 %v8683, 0.0
        %v8720 = vmax.f32 %v8684, 0.0
        %v8721 = vmax.f32 %v8685, 0.0
        %v8722 = vmax.f32 %v8686, 0.0
        %v8723 = vmax.f32 %v8687, 0.0
        %v8724 = vmax.f32 %v8688, 0.0
        %v8725 = vmax.f32 %v8689, 0.0
        %v8726 = vmax.f32 %v8690, 0.0
        %v8727 = vmax.f32 %v8691, 0.0
        %v8728 = vmax.f32 %v8692, 0.0
        %v8729 = vmax.f32 %v8693, 0.0
        %v8730 = vmax.f32 %v8694, 0.0
        %v8731 = vmax.f32 %v8695, 0.0
        %v8732 = vmax.f32 %v8696, 0.0
        %v8733 = vmax.f32 %v8697, 0.0
        %vm8768 = vcmask 1045504
        %v8769 = vrot.slane %v8700, 2
        %v8770 = vrot.slane %v8701, 2
        %v8771 = vsel %vm8768, %v8769, %v8770
        %v8772 = vrot.slane %v8702, 2
        %v8773 = vsel %vm8768, %v8770, %v8772
        %v8774 = vrot.slane %v8703, 2
        %v8775 = vsel %vm8768, %v8772, %v8774
        %v8776 = vrot.slane %v8704, 2
        %v8777 = vrot.slane %v8705, 2
        %v8778 = vsel %vm8768, %v8776, %v8777
        %v8779 = vrot.slane %v8706, 2
        %v8780 = vsel %vm8768, %v8777, %v8779
        %v8781 = vrot.slane %v8707, 2
        %v8782 = vsel %vm8768, %v8779, %v8781
        %v8783 = vrot.slane %v8708, 2
        %v8784 = vsel %vm8768, %v8781, %v8783
        %v8785 = vrot.slane %v8709, 2
        %v8786 = vrot.slane %v8710, 2
        %v8787 = vsel %vm8768, %v8785, %v8786
        %v8788 = vrot.slane %v8711, 2
        %v8789 = vsel %vm8768, %v8786, %v8788
        %v8790 = vrot.slane %v8712, 2
        %v8791 = vsel %vm8768, %v8788, %v8790
        %v8792 = vrot.slane %v8713, 2
        %v8793 = vrot.slane %v8714, 2
        %v8794 = vsel %vm8768, %v8792, %v8793
        %v8795 = vrot.slane %v8715, 2
        %v8796 = vsel %vm8768, %v8793, %v8795
        %v8797 = vrot.slane %v8716, 2
        %v8798 = vsel %vm8768, %v8795, %v8797
        %v8799 = vrot.slane %v8717, 2
        %v8800 = vsel %vm8768, %v8797, %v8799
        %v8801 = vrot.slane %v8718, 2
        %v8802 = vrot.slane %v8719, 2
        %v8803 = vsel %vm8768, %v8801, %v8802
        %v8804 = vrot.slane %v8720, 2
        %v8805 = vsel %vm8768, %v8802, %v8804
        %v8806 = vrot.slane %v8721, 2
        %v8807 = vsel %vm8768, %v8804, %v8806
        %v8808 = vrot.slane %v8722, 2
        %v8809 = vrot.slane %v8723, 2
        %v8810 = vsel %vm8768, %v8808, %v8809
        %v8811 = vrot.slane %v8724, 2
        %v8812 = vsel %vm8768, %v8809, %v8811
        %v8813 = vrot.slane %v8725, 2
        %v8814 = vsel %vm8768, %v8811, %v8813
        %v8815 = vrot.slane %v8726, 2
        %v8816 = vsel %vm8768, %v8813, %v8815
        %v8817 = vrot.slane %v8727, 2
        %v8818 = vrot.slane %v8728, 2
        %v8819 = vsel %vm8768, %v8817, %v8818
        %v8820 = vrot.slane %v8729, 2
        %v8821 = vsel %vm8768, %v8818, %v8820
        %v8822 = vrot.slane %v8730, 2
        %v8823 = vsel %vm8768, %v8820, %v8822
        %v8824 = vrot.slane %v8731, 2
        %v8825 = vrot.slane %v8732, 2
        %v8826 = vsel %vm8768, %v8824, %v8825
        %v8827 = vrot.slane %v8733, 2
        %v8828 = vsel %vm8768, %v8825, %v8827
        %v8856 = vmax.f32 %v8698, %v8771
        %v8857 = vmax.f32 %v8699, %v8773
        %v8858 = vmax.f32 %v8700, %v8775
        %v8859 = vmax.f32 %v8702, %v8778
        %v8860 = vmax.f32 %v8703, %v8780
        %v8861 = vmax.f32 %v8704, %v8782
        %v8862 = vmax.f32 %v8705, %v8784
        %v8863 = vmax.f32 %v8707, %v8787
        %v8864 = vmax.f32 %v8708, %v8789
        %v8865 = vmax.f32 %v8709, %v8791
        %v8866 = vmax.f32 %v8711, %v8794
        %v8867 = vmax.f32 %v8712, %v8796
        %v8868 = vmax.f32 %v8713, %v8798
        %v8869 = vmax.f32 %v8714, %v8800
        %v8870 = vmax.f32 %v8716, %v8803
        %v8871 = vmax.f32 %v8717, %v8805
        %v8872 = vmax.f32 %v8718, %v8807
        %v8873 = vmax.f32 %v8720, %v8810
        %v8874 = vmax.f32 %v8721, %v8812
        %v8875 = vmax.f32 %v8722, %v8814
        %v8876 = vmax.f32 %v8723, %v8816
        %v8877 = vmax.f32 %v8725, %v8819
        %v8878 = vmax.f32 %v8726, %v8821
        %v8879 = vmax.f32 %v8727, %v8823
        %v8880 = vmax.f32 %v8729, %v8826
        %v8881 = vmax.f32 %v8730, %v8828
        %v8882 = vmax.f32 %v8731, %v8827
        %vm8910 = vcmask 1046528
        %v8911 = vrot.slane %v8856, 1
        %v8912 = vrot.slane %v8857, 1
        %v8913 = vsel %vm8910, %v8911, %v8912
        %v8914 = vrot.slane %v8858, 1
        %v8915 = vsel %vm8910, %v8912, %v8914
        %v8916 = vrot.slane %v8859, 1
        %v8917 = vrot.slane %v8860, 1
        %v8918 = vsel %vm8910, %v8916, %v8917
        %v8919 = vrot.slane %v8861, 1
        %v8920 = vsel %vm8910, %v8917, %v8919
        %v8921 = vrot.slane %v8862, 1
        %v8922 = vsel %vm8910, %v8919, %v8921
        %v8923 = vrot.slane %v8863, 1
        %v8924 = vrot.slane %v8864, 1
        %v8925 = vsel %vm8910, %v8923, %v8924
        %v8926 = vrot.slane %v8865, 1
        %v8927 = vsel %vm8910, %v8924, %v8926
        %v8928 = vrot.slane %v8866, 1
        %v8929 = vrot.slane %v8867, 1
        %v8930 = vsel %vm8910, %v8928, %v8929
        %v8931 = vrot.slane %v8868, 1
        %v8932 = vsel %vm8910, %v8929, %v8931
        %v8933 = vrot.slane %v8869, 1
        %v8934 = vsel %vm8910, %v8931, %v8933
        %v8935 = vrot.slane %v8870, 1
        %v8936 = vrot.slane %v8871, 1
        %v8937 = vsel %vm8910, %v8935, %v8936
        %v8938 = vrot.slane %v8872, 1
        %v8939 = vsel %vm8910, %v8936, %v8938
        %v8940 = vrot.slane %v8873, 1
        %v8941 = vrot.slane %v8874, 1
        %v8942 = vsel %vm8910, %v8940, %v8941
        %v8943 = vrot.slane %v8875, 1
        %v8944 = vsel %vm8910, %v8941, %v8943
        %v8945 = vrot.slane %v8876, 1
        %v8946 = vsel %vm8910, %v8943, %v8945
        %v8947 = vrot.slane %v8877, 1
        %v8948 = vrot.slane %v8878, 1
        %v8949 = vsel %vm8910, %v8947, %v8948
        %v8950 = vrot.slane %v8879, 1
        %v8951 = vsel %vm8910, %v8948, %v8950
        %v8952 = vrot.slane %v8880, 1
        %v8953 = vrot.slane %v8881, 1
        %v8954 = vsel %vm8910, %v8952, %v8953
        %v8955 = vrot.slane %v8882, 1
        %v8956 = vsel %vm8910, %v8953, %v8955
        %v8977 = vmax.f32 %v8856, %v8913
        %v8978 = vmax.f32 %v8857, %v8915
        %v8979 = vmax.f32 %v8859, %v8918
        %v8980 = vmax.f32 %v8860, %v8920
        %v8981 = vmax.f32 %v8861, %v8922
        %v8982 = vmax.f32 %v8863, %v8925
        %v8983 = vmax.f32 %v8864, %v8927
        %v8984 = vmax.f32 %v8866, %v8930
        %v8985 = vmax.f32 %v8867, %v8932
        %v8986 = vmax.f32 %v8868, %v8934
        %v8987 = vmax.f32 %v8870, %v8937
        %v8988 = vmax.f32 %v8871, %v8939
        %v8989 = vmax.f32 %v8873, %v8942
        %v8990 = vmax.f32 %v8874, %v8944
        %v8991 = vmax.f32 %v8875, %v8946
        %v8992 = vmax.f32 %v8877, %v8949
        %v8993 = vmax.f32 %v8878, %v8951
        %v8994 = vmax.f32 %v8880, %v8954
        %v8995 = vmax.f32 %v8881, %v8956
        %v8996 = vmax.f32 %v8882, %v8955
        %v8997 = vlaneseq
        %v8998 = vand.u32 %v8997, 127
        %v8999 = vmul.u32 %v4083, 2
        %vm9000 = vcmp.eq.s32.totalorder %v8998, %v8999
        %v9001 = vsel %vm9000, 1, 0
        %v9002 = vcvt.s32.f32 %v9001
        %v9004 = vsel %vm300, %v9002, 0
        %9006 = vmatprep.subr.mxu0 0.0
        %9007 = vmatpush1.msra.mxu0 %v8977
        %9008 = vmatprep.subr.mxu0 0.0
        %9009 = vmatpush1.msra.mxu0 %v8978
        %9010 = vmatprep.subr.mxu0 0.0
        %9011 = vmatpush1.msra.mxu0 0.0
        %9012 = vmatprep.subr.mxu0 0.0
        %9013 = vmatpush1.msra.mxu0 0.0
        %9014 = vmatprep.subr.mxu0 0.0
        %9015 = vmatpush1.msra.mxu0 0.0
        %9016 = vmatprep.subr.mxu0 0.0
        %9017 = vmatpush1.msra.mxu0 0.0
        %9018 = vmatprep.subr.mxu0 0.0
        %9019 = vmatpush1.msra.mxu0 0.0
        %9020 = vmatprep.subr.mxu0 0.0
        %9021 = vmatpush1.msra.mxu0 0.0
        %9022 = vmatprep.subr.mxu0 0.0
        %9023 = vmatpush1.msra.mxu0 0.0
        %9024 = vmatprep.subr.mxu0 0.0
        %9025 = vmatpush1.msra.mxu0 0.0
        %9026 = vmatprep.subr.mxu0 0.0
        %9027 = vmatpush1.msra.mxu0 0.0
        %9028 = vmatprep.subr.mxu0 0.0
        %9029 = vmatpush1.msra.mxu0 0.0
        %9030 = vmatprep.subr.mxu0 0.0
        %9031 = vmatpush1.msra.mxu0 0.0
        %9032 = vmatprep.subr.mxu0 0.0
        %9033 = vmatpush1.msra.mxu0 0.0
        %9034 = vmatprep.subr.mxu0 0.0
        %9035 = vmatpush1.msra.mxu0 0.0
        %9036 = vmatprep.subr.mxu0 0.0
        %9037 = vmatpush1.msra.mxu0 0.0
        %9038 = vmatprep.subr.mxu0 0.0
        %9039 = vmatpush1.msra.mxu0 0.0
        %9040 = vmatprep.subr.mxu0 0.0
        %9041 = vmatpush1.msra.mxu0 0.0
        %9042 = vmatprep.subr.mxu0 0.0
        %9043 = vmatpush1.msra.mxu0 0.0
        %9044 = vmatprep.subr.mxu0 0.0
        %9045 = vmatpush1.msra.mxu0 0.0
        %9046 = vmatprep.subr.mxu0 0.0
        %9047 = vmatpush1.msra.mxu0 0.0
        %9048 = vmatprep.subr.mxu0 0.0
        %9049 = vmatpush1.msra.mxu0 0.0
        %9050 = vmatprep.subr.mxu0 0.0
        %9051 = vmatpush1.msra.mxu0 0.0
        %9052 = vmatprep.subr.mxu0 0.0
        %9053 = vmatpush1.msra.mxu0 0.0
        %9054 = vmatprep.subr.mxu0 0.0
        %9055 = vmatpush1.msra.mxu0 0.0
        %9056 = vmatprep.subr.mxu0 0.0
        %9057 = vmatpush1.msra.mxu0 0.0
        %9058 = vmatprep.subr.mxu0 0.0
        %9059 = vmatpush1.msra.mxu0 0.0
        %9060 = vmatprep.subr.mxu0 0.0
        %9061 = vmatpush1.msra.mxu0 0.0
        %9062 = vmatprep.subr.mxu0 0.0
        %9063 = vmatpush1.msra.mxu0 0.0
        %9064 = vmatprep.subr.mxu0 0.0
        %9065 = vmatpush1.msra.mxu0 0.0
        %9066 = vmatprep.subr.mxu0 0.0
        %9067 = vmatpush1.msra.mxu0 0.0
        %9068 = vmatprep.subr.mxu0 0.0
        %9069 = vmatpush1.msra.mxu0 0.0
        %9070 = vmatprep.mubr.f32.mxu0 0.0
        %9071 = vmatmul.mubr.f32.gmra.mrb[0].mxu0 %v9004
        %v9072 = vpop.f32.mrb[0].mxu0
        %v9073 = vadd.f32 0.0, %v9072
        %v9074 = vpop.f32.mrb[0].mxu0
        %9075 = vdwg.mxu0
        %9076 = vst.msk [vmem:[%s217] sm:$0xff] %vm4839, %v9073
        %vm9080 = vcmask 1043456
        %v9081 = vrot.slane %v8979, 4
        %v9082 = vrot.slane %v8980, 4
        %v9083 = vsel %vm9080, %v9081, %v9082
        %v9084 = vrot.slane %v8981, 4
        %v9085 = vsel %vm9080, %v9082, %v9084
        %9088 = vmatprep.subr.mxu0 0.0
        %9089 = vmatpush1.msra.mxu0 %v9083
        %9090 = vmatprep.subr.mxu0 0.0
        %9091 = vmatpush1.msra.mxu0 %v9085
        %9092 = vmatprep.subr.mxu0 0.0
        %9093 = vmatpush1.msra.mxu0 0.0
        %9094 = vmatprep.subr.mxu0 0.0
        %9095 = vmatpush1.msra.mxu0 0.0
        %9096 = vmatprep.subr.mxu0 0.0
        %9097 = vmatpush1.msra.mxu0 0.0
        %9098 = vmatprep.subr.mxu0 0.0
        %9099 = vmatpush1.msra.mxu0 0.0
        %9100 = vmatprep.subr.mxu0 0.0
        %9101 = vmatpush1.msra.mxu0 0.0
        %9102 = vmatprep.subr.mxu0 0.0
        %9103 = vmatpush1.msra.mxu0 0.0
        %9104 = vmatprep.subr.mxu0 0.0
        %9105 = vmatpush1.msra.mxu0 0.0
        %9106 = vmatprep.subr.mxu0 0.0
        %9107 = vmatpush1.msra.mxu0 0.0
        %9108 = vmatprep.subr.mxu0 0.0
        %9109 = vmatpush1.msra.mxu0 0.0
        %9110 = vmatprep.subr.mxu0 0.0
        %9111 = vmatpush1.msra.mxu0 0.0
        %9112 = vmatprep.subr.mxu0 0.0
        %9113 = vmatpush1.msra.mxu0 0.0
        %9114 = vmatprep.subr.mxu0 0.0
        %9115 = vmatpush1.msra.mxu0 0.0
        %9116 = vmatprep.subr.mxu0 0.0
        %9117 = vmatpush1.msra.mxu0 0.0
        %9118 = vmatprep.subr.mxu0 0.0
        %9119 = vmatpush1.msra.mxu0 0.0
        %9120 = vmatprep.subr.mxu0 0.0
        %9121 = vmatpush1.msra.mxu0 0.0
        %9122 = vmatprep.subr.mxu0 0.0
        %9123 = vmatpush1.msra.mxu0 0.0
        %9124 = vmatprep.subr.mxu0 0.0
        %9125 = vmatpush1.msra.mxu0 0.0
        %9126 = vmatprep.subr.mxu0 0.0
        %9127 = vmatpush1.msra.mxu0 0.0
        %9128 = vmatprep.subr.mxu0 0.0
        %9129 = vmatpush1.msra.mxu0 0.0
        %9130 = vmatprep.subr.mxu0 0.0
        %9131 = vmatpush1.msra.mxu0 0.0
        %9132 = vmatprep.subr.mxu0 0.0
        %9133 = vmatpush1.msra.mxu0 0.0
        %9134 = vmatprep.subr.mxu0 0.0
        %9135 = vmatpush1.msra.mxu0 0.0
        %9136 = vmatprep.subr.mxu0 0.0
        %9137 = vmatpush1.msra.mxu0 0.0
        %9138 = vmatprep.subr.mxu0 0.0
        %9139 = vmatpush1.msra.mxu0 0.0
        %9140 = vmatprep.subr.mxu0 0.0
        %9141 = vmatpush1.msra.mxu0 0.0
        %9142 = vmatprep.subr.mxu0 0.0
        %9143 = vmatpush1.msra.mxu0 0.0
        %9144 = vmatprep.subr.mxu0 0.0
        %9145 = vmatpush1.msra.mxu0 0.0
        %9146 = vmatprep.subr.mxu0 0.0
        %9147 = vmatpush1.msra.mxu0 0.0
        %9148 = vmatprep.subr.mxu0 0.0
        %9149 = vmatpush1.msra.mxu0 0.0
        %9150 = vmatprep.subr.mxu0 0.0
        %9151 = vmatpush1.msra.mxu0 0.0
        %9152 = vmatprep.mubr.f32.mxu0 0.0
        %9153 = vmatmul.mubr.f32.gmra.mrb[0].mxu0 %v9004
        %v9154 = vpop.f32.mrb[0].mxu0
        %v9155 = vadd.f32 0.0, %v9154
        %v9156 = vpop.f32.mrb[0].mxu0
        %9157 = vdwg.mxu0
        %s9158 = scalar_lea.vmem %s217, 8 [#allocation3]
        %9159 = vst.msk [vmem:[%s9158] sm:$0xff] %vm4839, %v9155
        %9160 = vmatprep.subr.mxu0 0.0
        %9161 = vmatpush1.msra.mxu0 %v8982
        %9162 = vmatprep.subr.mxu0 0.0
        %9163 = vmatpush1.msra.mxu0 %v8983
        %9164 = vmatprep.subr.mxu0 0.0
        %9165 = vmatpush1.msra.mxu0 0.0
        %9166 = vmatprep.subr.mxu0 0.0
        %9167 = vmatpush1.msra.mxu0 0.0
        %9168 = vmatprep.subr.mxu0 0.0
        %9169 = vmatpush1.msra.mxu0 0.0
        %9170 = vmatprep.subr.mxu0 0.0
        %9171 = vmatpush1.msra.mxu0 0.0
        %9172 = vmatprep.subr.mxu0 0.0
        %9173 = vmatpush1.msra.mxu0 0.0
        %9174 = vmatprep.subr.mxu0 0.0
        %9175 = vmatpush1.msra.mxu0 0.0
        %9176 = vmatprep.subr.mxu0 0.0
        %9177 = vmatpush1.msra.mxu0 0.0
        %9178 = vmatprep.subr.mxu0 0.0
        %9179 = vmatpush1.msra.mxu0 0.0
        %9180 = vmatprep.subr.mxu0 0.0
        %9181 = vmatpush1.msra.mxu0 0.0
        %9182 = vmatprep.subr.mxu0 0.0
        %9183 = vmatpush1.msra.mxu0 0.0
        %9184 = vmatprep.subr.mxu0 0.0
        %9185 = vmatpush1.msra.mxu0 0.0
        %9186 = vmatprep.subr.mxu0 0.0
        %9187 = vmatpush1.msra.mxu0 0.0
        %9188 = vmatprep.subr.mxu0 0.0
        %9189 = vmatpush1.msra.mxu0 0.0
        %9190 = vmatprep.subr.mxu0 0.0
        %9191 = vmatpush1.msra.mxu0 0.0
        %9192 = vmatprep.subr.mxu0 0.0
        %9193 = vmatpush1.msra.mxu0 0.0
        %9194 = vmatprep.subr.mxu0 0.0
        %9195 = vmatpush1.msra.mxu0 0.0
        %9196 = vmatprep.subr.mxu0 0.0
        %9197 = vmatpush1.msra.mxu0 0.0
        %9198 = vmatprep.subr.mxu0 0.0
        %9199 = vmatpush1.msra.mxu0 0.0
        %9200 = vmatprep.subr.mxu0 0.0
        %9201 = vmatpush1.msra.mxu0 0.0
        %9202 = vmatprep.subr.mxu0 0.0
        %9203 = vmatpush1.msra.mxu0 0.0
        %9204 = vmatprep.subr.mxu0 0.0
        %9205 = vmatpush1.msra.mxu0 0.0
        %9206 = vmatprep.subr.mxu0 0.0
        %9207 = vmatpush1.msra.mxu0 0.0
        %9208 = vmatprep.subr.mxu0 0.0
        %9209 = vmatpush1.msra.mxu0 0.0
        %9210 = vmatprep.subr.mxu0 0.0
        %9211 = vmatpush1.msra.mxu0 0.0
        %9212 = vmatprep.subr.mxu0 0.0
        %9213 = vmatpush1.msra.mxu0 0.0
        %9214 = vmatprep.subr.mxu0 0.0
        %9215 = vmatpush1.msra.mxu0 0.0
        %9216 = vmatprep.subr.mxu0 0.0
        %9217 = vmatpush1.msra.mxu0 0.0
        %9218 = vmatprep.subr.mxu0 0.0
        %9219 = vmatpush1.msra.mxu0 0.0
        %9220 = vmatprep.subr.mxu0 0.0
        %9221 = vmatpush1.msra.mxu0 0.0
        %9222 = vmatprep.subr.mxu0 0.0
        %9223 = vmatpush1.msra.mxu0 0.0
        %9224 = vmatprep.mubr.f32.mxu0 0.0
        %9225 = vmatmul.mubr.f32.gmra.mrb[0].mxu0 %v9004
        %v9226 = vpop.f32.mrb[0].mxu0
        %v9227 = vadd.f32 0.0, %v9226
        %v9228 = vpop.f32.mrb[0].mxu0
        %9229 = vdwg.mxu0
        %s9230 = scalar_lea.vmem %s217, 16 [#allocation3]
        %9231 = vst.msk [vmem:[%s9230] sm:$0xff] %vm4839, %v9227
        %v9235 = vrot.slane %v8984, 4
        %v9236 = vrot.slane %v8985, 4
        %v9237 = vsel %vm9080, %v9235, %v9236
        %v9238 = vrot.slane %v8986, 4
        %v9239 = vsel %vm9080, %v9236, %v9238
        %9242 = vmatprep.subr.mxu0 0.0
        %9243 = vmatpush1.msra.mxu0 %v9237
        %9244 = vmatprep.subr.mxu0 0.0
        %9245 = vmatpush1.msra.mxu0 %v9239
        %9246 = vmatprep.subr.mxu0 0.0
        %9247 = vmatpush1.msra.mxu0 0.0
        %9248 = vmatprep.subr.mxu0 0.0
        %9249 = vmatpush1.msra.mxu0 0.0
        %9250 = vmatprep.subr.mxu0 0.0
        %9251 = vmatpush1.msra.mxu0 0.0
        %9252 = vmatprep.subr.mxu0 0.0
        %9253 = vmatpush1.msra.mxu0 0.0
        %9254 = vmatprep.subr.mxu0 0.0
        %9255 = vmatpush1.msra.mxu0 0.0
        %9256 = vmatprep.subr.mxu0 0.0
        %9257 = vmatpush1.msra.mxu0 0.0
        %9258 = vmatprep.subr.mxu0 0.0
        %9259 = vmatpush1.msra.mxu0 0.0
        %9260 = vmatprep.subr.mxu0 0.0
        %9261 = vmatpush1.msra.mxu0 0.0
        %9262 = vmatprep.subr.mxu0 0.0
        %9263 = vmatpush1.msra.mxu0 0.0
        %9264 = vmatprep.subr.mxu0 0.0
        %9265 = vmatpush1.msra.mxu0 0.0
        %9266 = vmatprep.subr.mxu0 0.0
        %9267 = vmatpush1.msra.mxu0 0.0
        %9268 = vmatprep.subr.mxu0 0.0
        %9269 = vmatpush1.msra.mxu0 0.0
        %9270 = vmatprep.subr.mxu0 0.0
        %9271 = vmatpush1.msra.mxu0 0.0
        %9272 = vmatprep.subr.mxu0 0.0
        %9273 = vmatpush1.msra.mxu0 0.0
        %9274 = vmatprep.subr.mxu0 0.0
        %9275 = vmatpush1.msra.mxu0 0.0
        %9276 = vmatprep.subr.mxu0 0.0
        %9277 = vmatpush1.msra.mxu0 0.0
        %9278 = vmatprep.subr.mxu0 0.0
        %9279 = vmatpush1.msra.mxu0 0.0
        %9280 = vmatprep.subr.mxu0 0.0
        %9281 = vmatpush1.msra.mxu0 0.0
        %9282 = vmatprep.subr.mxu0 0.0
        %9283 = vmatpush1.msra.mxu0 0.0
        %9284 = vmatprep.subr.mxu0 0.0
        %9285 = vmatpush1.msra.mxu0 0.0
        %9286 = vmatprep.subr.mxu0 0.0
        %9287 = vmatpush1.msra.mxu0 0.0
        %9288 = vmatprep.subr.mxu0 0.0
        %9289 = vmatpush1.msra.mxu0 0.0
        %9290 = vmatprep.subr.mxu0 0.0
        %9291 = vmatpush1.msra.mxu0 0.0
        %9292 = vmatprep.subr.mxu0 0.0
        %9293 = vmatpush1.msra.mxu0 0.0
        %9294 = vmatprep.subr.mxu0 0.0
        %9295 = vmatpush1.msra.mxu0 0.0
        %9296 = vmatprep.subr.mxu0 0.0
        %9297 = vmatpush1.msra.mxu0 0.0
        %9298 = vmatprep.subr.mxu0 0.0
        %9299 = vmatpush1.msra.mxu0 0.0
        %9300 = vmatprep.subr.mxu0 0.0
        %9301 = vmatpush1.msra.mxu0 0.0
        %9302 = vmatprep.subr.mxu0 0.0
        %9303 = vmatpush1.msra.mxu0 0.0
        %9304 = vmatprep.subr.mxu0 0.0
        %9305 = vmatpush1.msra.mxu0 0.0
        %9306 = vmatprep.mubr.f32.mxu0 0.0
        %9307 = vmatmul.mubr.f32.gmra.mrb[0].mxu0 %v9004
        %v9308 = vpop.f32.mrb[0].mxu0
        %v9309 = vadd.f32 0.0, %v9308
        %v9310 = vpop.f32.mrb[0].mxu0
        %9311 = vdwg.mxu0
        %s9312 = scalar_lea.vmem %s217, 24 [#allocation3]
        %9313 = vst.msk [vmem:[%s9312] sm:$0xff] %vm4839, %v9309
        %9314 = vmatprep.subr.mxu0 0.0
        %9315 = vmatpush1.msra.mxu0 %v8987
        %9316 = vmatprep.subr.mxu0 0.0
        %9317 = vmatpush1.msra.mxu0 %v8988
        %9318 = vmatprep.subr.mxu0 0.0
        %9319 = vmatpush1.msra.mxu0 0.0
        %9320 = vmatprep.subr.mxu0 0.0
        %9321 = vmatpush1.msra.mxu0 0.0
        %9322 = vmatprep.subr.mxu0 0.0
        %9323 = vmatpush1.msra.mxu0 0.0
        %9324 = vmatprep.subr.mxu0 0.0
        %9325 = vmatpush1.msra.mxu0 0.0
        %9326 = vmatprep.subr.mxu0 0.0
        %9327 = vmatpush1.msra.mxu0 0.0
        %9328 = vmatprep.subr.mxu0 0.0
        %9329 = vmatpush1.msra.mxu0 0.0
        %9330 = vmatprep.subr.mxu0 0.0
        %9331 = vmatpush1.msra.mxu0 0.0
        %9332 = vmatprep.subr.mxu0 0.0
        %9333 = vmatpush1.msra.mxu0 0.0
        %9334 = vmatprep.subr.mxu0 0.0
        %9335 = vmatpush1.msra.mxu0 0.0
        %9336 = vmatprep.subr.mxu0 0.0
        %9337 = vmatpush1.msra.mxu0 0.0
        %9338 = vmatprep.subr.mxu0 0.0
        %9339 = vmatpush1.msra.mxu0 0.0
        %9340 = vmatprep.subr.mxu0 0.0
        %9341 = vmatpush1.msra.mxu0 0.0
        %9342 = vmatprep.subr.mxu0 0.0
        %9343 = vmatpush1.msra.mxu0 0.0
        %9344 = vmatprep.subr.mxu0 0.0
        %9345 = vmatpush1.msra.mxu0 0.0
        %9346 = vmatprep.subr.mxu0 0.0
        %9347 = vmatpush1.msra.mxu0 0.0
        %9348 = vmatprep.subr.mxu0 0.0
        %9349 = vmatpush1.msra.mxu0 0.0
        %9350 = vmatprep.subr.mxu0 0.0
        %9351 = vmatpush1.msra.mxu0 0.0
        %9352 = vmatprep.subr.mxu0 0.0
        %9353 = vmatpush1.msra.mxu0 0.0
        %9354 = vmatprep.subr.mxu0 0.0
        %9355 = vmatpush1.msra.mxu0 0.0
        %9356 = vmatprep.subr.mxu0 0.0
        %9357 = vmatpush1.msra.mxu0 0.0
        %9358 = vmatprep.subr.mxu0 0.0
        %9359 = vmatpush1.msra.mxu0 0.0
        %9360 = vmatprep.subr.mxu0 0.0
        %9361 = vmatpush1.msra.mxu0 0.0
        %9362 = vmatprep.subr.mxu0 0.0
        %9363 = vmatpush1.msra.mxu0 0.0
        %9364 = vmatprep.subr.mxu0 0.0
        %9365 = vmatpush1.msra.mxu0 0.0
        %9366 = vmatprep.subr.mxu0 0.0
        %9367 = vmatpush1.msra.mxu0 0.0
        %9368 = vmatprep.subr.mxu0 0.0
        %9369 = vmatpush1.msra.mxu0 0.0
        %9370 = vmatprep.subr.mxu0 0.0
        %9371 = vmatpush1.msra.mxu0 0.0
        %9372 = vmatprep.subr.mxu0 0.0
        %9373 = vmatpush1.msra.mxu0 0.0
        %9374 = vmatprep.subr.mxu0 0.0
        %9375 = vmatpush1.msra.mxu0 0.0
        %9376 = vmatprep.subr.mxu0 0.0
        %9377 = vmatpush1.msra.mxu0 0.0
        %9378 = vmatprep.mubr.f32.mxu0 0.0
        %9379 = vmatmul.mubr.f32.gmra.mrb[0].mxu0 %v9004
        %v9380 = vpop.f32.mrb[0].mxu0
        %v9381 = vadd.f32 0.0, %v9380
        %v9382 = vpop.f32.mrb[0].mxu0
        %9383 = vdwg.mxu0
        %s9384 = scalar_lea.vmem %s217, 32 [#allocation3]
        %9385 = vst.msk [vmem:[%s9384] sm:$0xff] %vm4839, %v9381
        %v9389 = vrot.slane %v8989, 4
        %v9390 = vrot.slane %v8990, 4
        %v9391 = vsel %vm9080, %v9389, %v9390
        %v9392 = vrot.slane %v8991, 4
        %v9393 = vsel %vm9080, %v9390, %v9392
        %9396 = vmatprep.subr.mxu0 0.0
        %9397 = vmatpush1.msra.mxu0 %v9391
        %9398 = vmatprep.subr.mxu0 0.0
        %9399 = vmatpush1.msra.mxu0 %v9393
        %9400 = vmatprep.subr.mxu0 0.0
        %9401 = vmatpush1.msra.mxu0 0.0
        %9402 = vmatprep.subr.mxu0 0.0
        %9403 = vmatpush1.msra.mxu0 0.0
        %9404 = vmatprep.subr.mxu0 0.0
        %9405 = vmatpush1.msra.mxu0 0.0
        %9406 = vmatprep.subr.mxu0 0.0
        %9407 = vmatpush1.msra.mxu0 0.0
        %9408 = vmatprep.subr.mxu0 0.0
        %9409 = vmatpush1.msra.mxu0 0.0
        %9410 = vmatprep.subr.mxu0 0.0
        %9411 = vmatpush1.msra.mxu0 0.0
        %9412 = vmatprep.subr.mxu0 0.0
        %9413 = vmatpush1.msra.mxu0 0.0
        %9414 = vmatprep.subr.mxu0 0.0
        %9415 = vmatpush1.msra.mxu0 0.0
        %9416 = vmatprep.subr.mxu0 0.0
        %9417 = vmatpush1.msra.mxu0 0.0
        %9418 = vmatprep.subr.mxu0 0.0
        %9419 = vmatpush1.msra.mxu0 0.0
        %9420 = vmatprep.subr.mxu0 0.0
        %9421 = vmatpush1.msra.mxu0 0.0
        %9422 = vmatprep.subr.mxu0 0.0
        %9423 = vmatpush1.msra.mxu0 0.0
        %9424 = vmatprep.subr.mxu0 0.0
        %9425 = vmatpush1.msra.mxu0 0.0
        %9426 = vmatprep.subr.mxu0 0.0
        %9427 = vmatpush1.msra.mxu0 0.0
        %9428 = vmatprep.subr.mxu0 0.0
        %9429 = vmatpush1.msra.mxu0 0.0
        %9430 = vmatprep.subr.mxu0 0.0
        %9431 = vmatpush1.msra.mxu0 0.0
        %9432 = vmatprep.subr.mxu0 0.0
        %9433 = vmatpush1.msra.mxu0 0.0
        %9434 = vmatprep.subr.mxu0 0.0
        %9435 = vmatpush1.msra.mxu0 0.0
        %9436 = vmatprep.subr.mxu0 0.0
        %9437 = vmatpush1.msra.mxu0 0.0
        %9438 = vmatprep.subr.mxu0 0.0
        %9439 = vmatpush1.msra.mxu0 0.0
        %9440 = vmatprep.subr.mxu0 0.0
        %9441 = vmatpush1.msra.mxu0 0.0
        %9442 = vmatprep.subr.mxu0 0.0
        %9443 = vmatpush1.msra.mxu0 0.0
        %9444 = vmatprep.subr.mxu0 0.0
        %9445 = vmatpush1.msra.mxu0 0.0
        %9446 = vmatprep.subr.mxu0 0.0
        %9447 = vmatpush1.msra.mxu0 0.0
        %9448 = vmatprep.subr.mxu0 0.0
        %9449 = vmatpush1.msra.mxu0 0.0
        %9450 = vmatprep.subr.mxu0 0.0
        %9451 = vmatpush1.msra.mxu0 0.0
        %9452 = vmatprep.subr.mxu0 0.0
        %9453 = vmatpush1.msra.mxu0 0.0
        %9454 = vmatprep.subr.mxu0 0.0
        %9455 = vmatpush1.msra.mxu0 0.0
        %9456 = vmatprep.subr.mxu0 0.0
        %9457 = vmatpush1.msra.mxu0 0.0
        %9458 = vmatprep.subr.mxu0 0.0
        %9459 = vmatpush1.msra.mxu0 0.0
        %9460 = vmatprep.mubr.f32.mxu0 0.0
        %9461 = vmatmul.mubr.f32.gmra.mrb[0].mxu0 %v9004
        %v9462 = vpop.f32.mrb[0].mxu0
        %v9463 = vadd.f32 0.0, %v9462
        %v9464 = vpop.f32.mrb[0].mxu0
        %9465 = vdwg.mxu0
        %s9466 = scalar_lea.vmem %s217, 40 [#allocation3]
        %9467 = vst.msk [vmem:[%s9466] sm:$0xff] %vm4839, %v9463
        %9468 = vmatprep.subr.mxu0 0.0
        %9469 = vmatpush1.msra.mxu0 %v8992
        %9470 = vmatprep.subr.mxu0 0.0
        %9471 = vmatpush1.msra.mxu0 %v8993
        %9472 = vmatprep.subr.mxu0 0.0
        %9473 = vmatpush1.msra.mxu0 0.0
        %9474 = vmatprep.subr.mxu0 0.0
        %9475 = vmatpush1.msra.mxu0 0.0
        %9476 = vmatprep.subr.mxu0 0.0
        %9477 = vmatpush1.msra.mxu0 0.0
        %9478 = vmatprep.subr.mxu0 0.0
        %9479 = vmatpush1.msra.mxu0 0.0
        %9480 = vmatprep.subr.mxu0 0.0
        %9481 = vmatpush1.msra.mxu0 0.0
        %9482 = vmatprep.subr.mxu0 0.0
        %9483 = vmatpush1.msra.mxu0 0.0
        %9484 = vmatprep.subr.mxu0 0.0
        %9485 = vmatpush1.msra.mxu0 0.0
        %9486 = vmatprep.subr.mxu0 0.0
        %9487 = vmatpush1.msra.mxu0 0.0
        %9488 = vmatprep.subr.mxu0 0.0
        %9489 = vmatpush1.msra.mxu0 0.0
        %9490 = vmatprep.subr.mxu0 0.0
        %9491 = vmatpush1.msra.mxu0 0.0
        %9492 = vmatprep.subr.mxu0 0.0
        %9493 = vmatpush1.msra.mxu0 0.0
        %9494 = vmatprep.subr.mxu0 0.0
        %9495 = vmatpush1.msra.mxu0 0.0
        %9496 = vmatprep.subr.mxu0 0.0
        %9497 = vmatpush1.msra.mxu0 0.0
        %9498 = vmatprep.subr.mxu0 0.0
        %9499 = vmatpush1.msra.mxu0 0.0
        %9500 = vmatprep.subr.mxu0 0.0
        %9501 = vmatpush1.msra.mxu0 0.0
        %9502 = vmatprep.subr.mxu0 0.0
        %9503 = vmatpush1.msra.mxu0 0.0
        %9504 = vmatprep.subr.mxu0 0.0
        %9505 = vmatpush1.msra.mxu0 0.0
        %9506 = vmatprep.subr.mxu0 0.0
        %9507 = vmatpush1.msra.mxu0 0.0
        %9508 = vmatprep.subr.mxu0 0.0
        %9509 = vmatpush1.msra.mxu0 0.0
        %9510 = vmatprep.subr.mxu0 0.0
        %9511 = vmatpush1.msra.mxu0 0.0
        %9512 = vmatprep.subr.mxu0 0.0
        %9513 = vmatpush1.msra.mxu0 0.0
        %9514 = vmatprep.subr.mxu0 0.0
        %9515 = vmatpush1.msra.mxu0 0.0
        %9516 = vmatprep.subr.mxu0 0.0
        %9517 = vmatpush1.msra.mxu0 0.0
        %9518 = vmatprep.subr.mxu0 0.0
        %9519 = vmatpush1.msra.mxu0 0.0
        %9520 = vmatprep.subr.mxu0 0.0
        %9521 = vmatpush1.msra.mxu0 0.0
        %9522 = vmatprep.subr.mxu0 0.0
        %9523 = vmatpush1.msra.mxu0 0.0
        %9524 = vmatprep.subr.mxu0 0.0
        %9525 = vmatpush1.msra.mxu0 0.0
        %9526 = vmatprep.subr.mxu0 0.0
        %9527 = vmatpush1.msra.mxu0 0.0
        %9528 = vmatprep.subr.mxu0 0.0
        %9529 = vmatpush1.msra.mxu0 0.0
        %9530 = vmatprep.subr.mxu0 0.0
        %9531 = vmatpush1.msra.mxu0 0.0
        %9532 = vmatprep.mubr.f32.mxu0 0.0
        %9533 = vmatmul.mubr.f32.gmra.mrb[0].mxu0 %v9004
        %v9534 = vpop.f32.mrb[0].mxu0
        %v9535 = vadd.f32 0.0, %v9534
        %v9536 = vpop.f32.mrb[0].mxu0
        %9537 = vdwg.mxu0
        %s9538 = scalar_lea.vmem %s217, 48 [#allocation3]
        %9539 = vst.msk [vmem:[%s9538] sm:$0xff] %vm4839, %v9535
        %v9543 = vrot.slane %v8994, 4
        %v9544 = vrot.slane %v8995, 4
        %v9545 = vsel %vm9080, %v9543, %v9544
        %v9546 = vrot.slane %v8996, 4
        %v9547 = vsel %vm9080, %v9544, %v9546
        %9550 = vmatprep.subr.mxu0 0.0
        %9551 = vmatpush1.msra.mxu0 %v9545
        %9552 = vmatprep.subr.mxu0 0.0
        %9553 = vmatpush1.msra.mxu0 %v9547
        %9554 = vmatprep.subr.mxu0 0.0
        %9555 = vmatpush1.msra.mxu0 0.0
        %9556 = vmatprep.subr.mxu0 0.0
        %9557 = vmatpush1.msra.mxu0 0.0
        %9558 = vmatprep.subr.mxu0 0.0
        %9559 = vmatpush1.msra.mxu0 0.0
        %9560 = vmatprep.subr.mxu0 0.0
        %9561 = vmatpush1.msra.mxu0 0.0
        %9562 = vmatprep.subr.mxu0 0.0
        %9563 = vmatpush1.msra.mxu0 0.0
        %9564 = vmatprep.subr.mxu0 0.0
        %9565 = vmatpush1.msra.mxu0 0.0
        %9566 = vmatprep.subr.mxu0 0.0
        %9567 = vmatpush1.msra.mxu0 0.0
        %9568 = vmatprep.subr.mxu0 0.0
        %9569 = vmatpush1.msra.mxu0 0.0
        %9570 = vmatprep.subr.mxu0 0.0
        %9571 = vmatpush1.msra.mxu0 0.0
        %9572 = vmatprep.subr.mxu0 0.0
        %9573 = vmatpush1.msra.mxu0 0.0
        %9574 = vmatprep.subr.mxu0 0.0
        %9575 = vmatpush1.msra.mxu0 0.0
        %9576 = vmatprep.subr.mxu0 0.0
        %9577 = vmatpush1.msra.mxu0 0.0
        %9578 = vmatprep.subr.mxu0 0.0
        %9579 = vmatpush1.msra.mxu0 0.0
        %9580 = vmatprep.subr.mxu0 0.0
        %9581 = vmatpush1.msra.mxu0 0.0
        %9582 = vmatprep.subr.mxu0 0.0
        %9583 = vmatpush1.msra.mxu0 0.0
        %9584 = vmatprep.subr.mxu0 0.0
        %9585 = vmatpush1.msra.mxu0 0.0
        %9586 = vmatprep.subr.mxu0 0.0
        %9587 = vmatpush1.msra.mxu0 0.0
        %9588 = vmatprep.subr.mxu0 0.0
        %9589 = vmatpush1.msra.mxu0 0.0
        %9590 = vmatprep.subr.mxu0 0.0
        %9591 = vmatpush1.msra.mxu0 0.0
        %9592 = vmatprep.subr.mxu0 0.0
        %9593 = vmatpush1.msra.mxu0 0.0
        %9594 = vmatprep.subr.mxu0 0.0
        %9595 = vmatpush1.msra.mxu0 0.0
        %9596 = vmatprep.subr.mxu0 0.0
        %9597 = vmatpush1.msra.mxu0 0.0
        %9598 = vmatprep.subr.mxu0 0.0
        %9599 = vmatpush1.msra.mxu0 0.0
        %9600 = vmatprep.subr.mxu0 0.0
        %9601 = vmatpush1.msra.mxu0 0.0
        %9602 = vmatprep.subr.mxu0 0.0
        %9603 = vmatpush1.msra.mxu0 0.0
        %9604 = vmatprep.subr.mxu0 0.0
        %9605 = vmatpush1.msra.mxu0 0.0
        %9606 = vmatprep.subr.mxu0 0.0
        %9607 = vmatpush1.msra.mxu0 0.0
        %9608 = vmatprep.subr.mxu0 0.0
        %9609 = vmatpush1.msra.mxu0 0.0
        %9610 = vmatprep.subr.mxu0 0.0
        %9611 = vmatpush1.msra.mxu0 0.0
        %9612 = vmatprep.subr.mxu0 0.0
        %9613 = vmatpush1.msra.mxu0 0.0
        %9614 = vmatprep.mubr.f32.mxu0 0.0
        %9615 = vmatmul.mubr.f32.gmra.mrb[0].mxu0 %v9004
        %v9616 = vpop.f32.mrb[0].mxu0
        %v9617 = vadd.f32 0.0, %v9616
        %v9618 = vpop.f32.mrb[0].mxu0
        %9619 = vdwg.mxu0
        %s9620 = scalar_lea.vmem %s217, 56 [#allocation3]
        %9621 = vst.msk [vmem:[%s9620] sm:$0xff] %vm4839, %v9617
        %s9622 = sand.u32 %s137, 1
        %s9623 = scalar_lea.sflag [#allocation4], %s9622
        %s9624 = sand.u32 %s137, 1
        %s9625 = smul.addr %s9624, 64
        %s9626 = scalar_lea.vmem [#allocation3], %s9625
        // Predicated region
        $region41: #{tpu_custom_call.1} parent=39 // pred_check
          %p9627 = pneg %p147
        $region42: #{tpu_custom_call.1} parent=39 // pred_check_branch
          %9629 = sbr.rel (%p9627) target = $region44
        $region43: #{tpu_custom_call.1} parent=39 // pred_region
          %s9631 = ssub.s32 1024, 1024
          %9632 = vsyncadd %s9623, %s9631
          %s9633 = smul.addr %s19, 8
          %s9634 = smul.addr %s9633, 128
          %s9635 = scalar_lea.hbm %s5, %s9634
          %s9636 = sshll.u32 %s9626, 4
          %s9637 = int_to_ptr.vmem [resolvable:$true] %s9636
          %9642 = dma.vmem_to_hbm [thread:$0]  %s9637, 1024, %s9635, %s9623, 128, 128, 8
        $region44: #{tpu_custom_call.1} parent=39 // pred_fallthru
          _
      $region40: #{tpu_custom_call.1} parent=5 // pred_fallthru
        _
      %p9643 = scmp.le.s32.totalorder 2, %s14
      // Predicated region
      $region45: #{tpu_custom_call.1} parent=5 // pred_check
        %p9644 = pneg %p9643
      $region46: #{tpu_custom_call.1} parent=5 // pred_check_branch
        %9646 = sbr.rel (%p9644) target = $region48
      $region47: #{tpu_custom_call.1} parent=5 // pred_region
        %s9647 = ssub.s32 %s14, 2
        // Predicated region
        $region49: #{tpu_custom_call.1} parent=47 // pred_check
          %p9648 = pneg %p153
        $region50: #{tpu_custom_call.1} parent=47 // pred_check_branch
          %9650 = sbr.rel (%p9648) target = $region52
        $region51: #{tpu_custom_call.1} parent=47 // pred_region
          %s9651 = sand.u32 %s138, 1
          %s9652 = scalar_lea.sflag [#allocation4], %s9651
          %s9653 = sand.u32 %s138, 1
          %s9654 = smul.addr %s9653, 64
          %s9655 = scalar_lea.vmem [#allocation3], %s9654
          %9656 = dma.done %s9652, 1024
        $region52: #{tpu_custom_call.1} parent=47 // pred_fallthru
          _
      $region48: #{tpu_custom_call.1} parent=5 // pred_fallthru
        _
    $region6: #{tpu_custom_call.1} parent=1 // loop_footer
      %s18 = sadd.s32 1, %s14
    $region7: #{tpu_custom_call.1} parent=1 // loop_footer_branch
      %13 = sbr.rel target = $region3
    $region8: #{tpu_custom_call.1} parent=1 // loop_exit
      _
    %9657 = vsyncpa [#allocation4], 1
    %s9658 = scalar_lea.sflag [#allocation4], 1
    %9659 = vsyncpa %s9658, 1

</llo_original>
